<compile_context>
chip_gen: v5e
topology: v5e:2x2
jax: 0.10.0
libtpu: 0.0.40
codegen_flags: <defaults>
</compile_context>

<pallas_src>
import math
import functools
import jax
import jax.numpy as jnp
import numpy as np
from jax.experimental import pallas as pl
from jax.experimental.pallas import tpu as pltpu

# ----- small config consistent with the module's forward -----
CONFIG = dict(
    hidden_size=32,
    num_head=4,
    modal_size=3,                      # only used by the unused transpose2/3 helpers
    w_len=8, v_len=8, a_len=16,        # seq = 8 + 8 + 16 = 32
    attention_dropout_prob=0.0,
    hidden_dropout_prob=0.0,
    layer_norm_eps=1e-12,
    output_attention=True,
)

# Masked-score fill value.  A power of two, exactly representable in bf16, so it
# survives any MXU operand truncation bit-exactly; post-softmax it behaves
# identically to the reference's -1e9 (exp underflows to 0 in partially masked
# groups, fully masked groups become exactly uniform).
MASK_FILL = -float(2 ** 30)


def _mmsa_kernel(hs_ref, mask_ref, colw_ref, grp_ref, hm_ref, ohcg_ref, ohgc_ref,
                 wqkv_ref, bqkv_ref, wd_ref, bd_ref, gamma_ref, beta_ref,
                 out_ref, prob_ref=None, *, num_head, eps):
    Bt, S, H = hs_ref.shape
    C = num_head * S              # lane-dense attention width (= 128 here)
    G = num_head * 3              # number of (head, modality-segment) groups

    x = hs_ref[...]                                   # (Bt, S, H) f32
    x2 = x.reshape(Bt * S, H)

    # ---- fused Q/K/V projection: one bf16 (Bt*S, H) @ (H, 3H) MXU matmul ----
    # (wq / bq are pre-scaled by 1/sqrt(head_dim) on the host.)
    qkv = jnp.dot(x2.astype(jnp.bfloat16), wqkv_ref[...],
                  preferred_element_type=jnp.float32) + bqkv_ref[...]
    q = qkv[:, :H].reshape(Bt, S, H).astype(jnp.bfloat16)
    k = qkv[:, H:2 * H].reshape(Bt, S, H).astype(jnp.bfloat16)
    v = qkv[:, 2 * H:].reshape(Bt, S, H).astype(jnp.bfloat16)

    # ---- block-diagonal K / V: heads laid out along the 128-lane axis. ------
    # Single broadcasted multiply (no concatenate copies): column block h only
    # keeps hidden rows of head h, so the per-head score/context matmuls fuse
    # into one lane-dense matmul per example.
    hm = hm_ref[...]                                              # (nh, H) bf16 {0,1}
    k_bd = (k[:, None, :, :] * hm[None, :, None, :]).reshape(Bt, C, H)   # (Bt, C, H) bf16
    v_bd = (v[:, None, :, :] * hm[None, :, None, :]).reshape(Bt, C, H)   # (Bt, C, H) bf16

    # scores[b, q, h*S + j] = <q_h[b, q], k_h[b, j]> / sqrt(dh)
    s = jnp.einsum('bqd,bkd->bqk', q, k_bd,
                   preferred_element_type=jnp.float32)            # (Bt, S, C) f32

    # ---- pairwise attention mask, recomputed in-kernel from (Bt, S) ----
    mrow = mask_ref[...][:, 0, :]                                 # (Bt, S)
    mcol = jnp.concatenate([mrow] * num_head, axis=-1)            # (Bt, C)  (tiny)
    valid = (mrow[:, :, None] != 0.0) & (mcol[:, None, :] != 0.0) # (Bt, S, C)
    s = jnp.where(valid, s, jnp.float32(MASK_FILL))               # masked_fill

    s2 = s.reshape(Bt * S, C)

    # ---- segment softmax (word / video / audio per head), full-width ----
    grp = grp_ref[...]                                            # (1, C) int32
    NEG = jnp.float32(-3e38)
    m_b = jnp.float32(0.0)
    for g in range(G):                    # static unroll, whole-vreg masked maxima
        gm = grp == g
        m_g = jnp.max(jnp.where(gm, s2, NEG), axis=-1, keepdims=True)
        m_b = jnp.where(gm, m_g, m_b)     # select chain (no extra full-width adds)
    e = jnp.exp(s2 - m_b)

    # per-group denominators via one-hot matmuls (MXU), broadcast back to columns
    dsum = jnp.dot(e, ohcg_ref[...], preferred_element_type=jnp.float32)    # (Bt*S, G)
    d_b = jnp.dot(dsum, ohgc_ref[...], preferred_element_type=jnp.float32)  # (Bt*S, C)
    inv = pl.reciprocal(d_b, approx=True)                                   # EUP, no Newton
    p2 = e * inv * colw_ref[...]          # per-modality weights (w_a / w_b / w_c)

    # TODO(synk): dropout_1 / dropout_2 are identity here (eval mode, p = 0).
    if prob_ref is not None:
        prob_ref[...] = p2.reshape(Bt, S, C)   # single 128-lane-dense store per step

    # ---- context: heads merged for free by the same block-diagonal layout ----
    p3 = p2.astype(jnp.bfloat16).reshape(Bt, S, C)
    ctx = jnp.einsum('bqk,bkd->bqd', p3, v_bd,
                     preferred_element_type=jnp.float32)          # (Bt, S, H)
    ctx2 = ctx.reshape(Bt * S, H)

    d_out = jnp.dot(ctx2.astype(jnp.bfloat16), wd_ref[...],
                    preferred_element_type=jnp.float32) + bd_ref[...]
    r = d_out + x2                                                # residual (f32)
    mu = jnp.mean(r, axis=-1, keepdims=True)
    var = jnp.mean((r - mu) ** 2, axis=-1, keepdims=True)
    y = (r - mu) * jax.lax.rsqrt(var + eps) * gamma_ref[...] + beta_ref[...]
    out_ref[...] = y.reshape(Bt, S, H)


def multimodal_self_attention(hidden_state, attention_mask, params, config,
                              block_b=32, prob_torch_layout=True):
    B, S, H = hidden_state.shape
    nh = config['num_head']
    dh = H // nh
    wl, vl, al = config['w_len'], config['v_len'], config['a_len']
    assert S == wl + vl + al
    C, G = nh * S, nh * 3

    # ---- batch tiling: big tiles, padded batch, >= 2 grid steps when worthwhile
    # (so a "parallel" axis exists for dual-TensorCore chips).  Per-step working
    # set is ~200 KiB per example, so block_b=32 stays far under the v7x VMEM cap.
    n_steps = max(pl.cdiv(B, block_b), 2 if B >= 16 else 1)
    bt = pl.cdiv(B, n_steps)
    B_pad = bt * n_steps
    if B_pad != B:
        hidden_state = jnp.pad(hidden_state, ((0, B_pad - B), (0, 0), (0, 0)))
        attention_mask = jnp.pad(attention_mask, ((0, B_pad - B), (0, 0)))

    # ---- host-side glue (pre-transposed / fused / bf16 weights, constant tables)
    scale = 1.0 / math.sqrt(dh)
    wqkv_t = jnp.concatenate([params['wq'].T * scale, params['wk'].T, params['wv'].T],
                             axis=1).astype(jnp.bfloat16)                            # (H, 3H)
    bqkv = jnp.concatenate([params['bq'] * scale, params['bk'],
                            params['bv']])[None, :].astype(jnp.float32)              # (1, 3H)
    wd_t = params['wd'].T.astype(jnp.bfloat16)                                       # (H, H)

    colw_s = jnp.concatenate([
        params['w_a'] * jnp.ones((wl,), jnp.float32),
        params['w_b'] * jnp.ones((vl,), jnp.float32),
        params['w_c'] * jnp.ones((al,), jnp.float32)])
    colw = jnp.tile(colw_s, nh)[None, :].astype(jnp.float32)                         # (1, C)

    j_np = np.arange(S)
    seg_np = np.where(j_np < wl, 0, np.where(j_np < wl + vl, 1, 2))                  # (S,)
    grp_np = (np.repeat(np.arange(nh), S) * 3 + np.tile(seg_np, nh)).astype(np.int32)
    grp_row = jnp.asarray(grp_np[None, :])                                           # (1, C)
    headmask = jnp.asarray(
        (np.arange(nh)[:, None] == (np.arange(H) // dh)[None, :]).astype(np.float32)
    ).astype(jnp.bfloat16)                                                           # (nh, H)
    onehot_cg_np = (grp_np[:, None] == np.arange(G)[None, :]).astype(np.float32)
    onehot_cg = jnp.asarray(onehot_cg_np)                                            # (C, G)
    onehot_gc = jnp.asarray(np.ascontiguousarray(onehot_cg_np.T))                    # (G, C)

    mask3 = attention_mask.astype(jnp.float32).reshape(B_pad, 1, S)

    kernel = functools.partial(_mmsa_kernel, num_head=nh, eps=config['layer_norm_eps'])

    def const(shape):
        return pl.BlockSpec(shape, lambda i, _n=len(shape): (0,) * _n)

    emit_prob = bool(config['output_attention'])
    out_shape = jax.ShapeDtypeStruct((B_pad, S, H), jnp.float32)
    out_specs = pl.BlockSpec((bt, S, H), lambda i: (i, 0, 0))
    if emit_prob:
        out_shape = (out_shape, jax.ShapeDtypeStruct((B_pad, S, C), jnp.float32))
        out_specs = (out_specs, pl.BlockSpec((bt, S, C), lambda i: (i, 0, 0)))

    grid_spec = pltpu.PrefetchScalarGridSpec(
        num_scalar_prefetch=0, grid=(n_steps,),
        in_specs=[
            pl.BlockSpec((bt, S, H), lambda i: (i, 0, 0)),   # hidden_state
            pl.BlockSpec((bt, 1, S), lambda i: (i, 0, 0)),   # attention_mask
            const((1, C)),                                   # per-column modality weights
            const((1, C)),                                   # (head, segment) group ids
            const((nh, H)),                                  # per-head hidden-row mask
            const((C, G)),                                   # one-hot col -> group
            const((G, C)),                                   # one-hot group -> col
            const((H, 3 * H)), const((1, 3 * H)),            # fused wqkv^T (bf16), bqkv
            const((H, H)), const((1, H)),                    # wd^T (bf16), bd
            const((1, H)), const((1, H)),                    # gamma, beta
        ],
        out_specs=out_specs,
    )

    outs = pl.pallas_call(
        kernel,
        out_shape=out_shape,
        grid_spec=grid_spec,
        compiler_params=pltpu.CompilerParams(
            dimension_semantics=("parallel",),
            vmem_limit_bytes=48 * 1024 * 1024),
    )(hidden_state.astype(jnp.float32), mask3, colw, grp_row, headmask,
      onehot_cg, onehot_gc, wqkv_t, bqkv, wd_t,
      params['bd'][None, :].astype(jnp.float32),
      params['gamma'][None, :].astype(jnp.float32),
      params['beta'][None, :].astype(jnp.float32))

    if emit_prob:
        out_hidden, prob_flat = outs
        out_hidden = out_hidden[:B]
        prob = prob_flat[:B]
        if prob_torch_layout:
            # (B, S, nh*S) lane-dense kernel layout -> torch layout (B, nh, S, S)
            prob = prob.reshape(B, S, nh, S).transpose(0, 2, 1, 3)
        return out_hidden, prob
    return (outs[:B],)


def reference(hidden_state, attention_mask, params, config):
    """Pure-JAX re-implementation of the PyTorch forward (eval mode)."""
    B, S, H = hidden_state.shape
    nh = config['num_head']
    dh = H // nh
    wl, vl, al = config['w_len'], config['v_len'], config['a_len']

    def lin(x, w, b):
        return x @ w.T + b

    q = lin(hidden_state, params['wq'], params['bq']).reshape(B, S, nh, dh).transpose(0, 2, 1, 3)
    k = lin(hidden_state, params['wk'], params['bk']).reshape(B, S, nh, dh).transpose(0, 2, 1, 3)
    v = lin(hidden_state, params['wv'], params['bv']).reshape(B, S, nh, dh).transpose(0, 2, 1, 3)

    s = jnp.einsum('bhqd,bhkd->bhqk', q, k) / math.sqrt(dh)
    pair = attention_mask[:, :, None] * attention_mask[:, None, :]
    s = jnp.where((pair == 0.0)[:, None], -1e9, s)

    p = jnp.concatenate([
        jax.nn.softmax(s[..., :wl], axis=-1),
        jax.nn.softmax(s[..., wl:wl + vl], axis=-1),
        jax.nn.softmax(s[..., wl + vl:wl + vl + al], axis=-1)], axis=-1)
    colw = jnp.concatenate([
        params['w_a'] * jnp.ones((wl,)), params['w_b'] * jnp.ones((vl,)),
        params['w_c'] * jnp.ones((al,))])
    p = p * colw[None, None, None, :]

    ctx = jnp.einsum('bhqk,bhkd->bhqd', p, v).transpose(0, 2, 1, 3).reshape(B, S, H)
    ctx = lin(ctx, params['wd'], params['bd'])
    r = ctx + hidden_state
    mu = jnp.mean(r, axis=-1, keepdims=True)
    var = jnp.mean((r - mu) ** 2, axis=-1, keepdims=True)
    y = (r - mu) / jnp.sqrt(var + config['layer_norm_eps']) * params['gamma'] + params['beta']
    return y, p


if __name__ == "__main__":
    cfg = dict(CONFIG)
    H = cfg['hidden_size']
    S = cfg['w_len'] + cfg['v_len'] + cfg['a_len']
    B = 19      # odd batch: exercises batch padding and a 2-step "parallel" grid

    key = jax.random.PRNGKey(0)
    ks = jax.random.split(key, 12)
    params = dict(
        wq=0.05 * jax.random.normal(ks[0], (H, H), jnp.float32),
        bq=0.01 * jax.random.normal(ks[1], (H,), jnp.float32),
        wk=0.05 * jax.random.normal(ks[2], (H, H), jnp.float32),
        bk=0.01 * jax.random.normal(ks[3], (H,), jnp.float32),
        wv=0.05 * jax.random.normal(ks[4], (H, H), jnp.float32),
        bv=0.01 * jax.random.normal(ks[5], (H,), jnp.float32),
        wd=0.05 * jax.random.normal(ks[6], (H, H), jnp.float32),
        bd=0.01 * jax.random.normal(ks[7], (H,), jnp.float32),
        gamma=1.0 + 0.1 * jax.random.normal(ks[9], (H,), jnp.float32),
        beta=0.1 * jax.random.normal(ks[10], (H,), jnp.float32),
        w_a=jnp.float32(0.62), w_b=jnp.float32(0.2), w_c=jnp.float32(0.2),
    )

    hidden = jax.random.normal(ks[8], (B, S, H), jnp.float32)
    # masks exercise: partially masked audio segment / fully-masked query rows
    # (batch 1) and a fully-masked word segment (batch 5).
    attn_mask = jnp.ones((B, S), jnp.float32)
    attn_mask = attn_mask.at[1, -4:].set(0.0)
    attn_mask = attn_mask.at[5, :cfg['w_len']].set(0.0)

    out_hidden, out_prob = multimodal_self_attention(hidden, attn_mask, params, cfg)
    out_hidden = jax.block_until_ready(out_hidden)
    out_prob = jax.block_until_ready(out_prob)

    ref_hidden, ref_prob = reference(hidden, attn_mask, params, cfg)
    np.testing.assert_allclose(np.asarray(out_hidden), np.asarray(ref_hidden),
                               rtol=1e-3, atol=1e-3)
    np.testing.assert_allclose(np.asarray(out_prob), np.asarray(ref_prob),
                               rtol=1e-3, atol=1e-3)

    # variant that skips the attention-prob output entirely
    cfg2 = dict(cfg, output_attention=False)
    (out_hidden2,) = multimodal_self_attention(hidden, attn_mask, params, cfg2)
    out_hidden2 = jax.block_until_ready(out_hidden2)
    np.testing.assert_allclose(np.asarray(out_hidden2), np.asarray(ref_hidden),
                               rtol=1e-3, atol=1e-3)
    print("KERNEL_OK")
</pallas_src>

<mosaic_0001>
module attributes {stable_mosaic.version = 11 : i64} {
  func.func @_mmsa_kernel(%arg0: i32, %arg1: memref<10x32x32xf32, #tpu.memory_space<vmem>>, %arg2: memref<10x1x32xf32, #tpu.memory_space<vmem>>, %arg3: memref<1x128xf32, #tpu.memory_space<vmem>>, %arg4: memref<1x128xi32, #tpu.memory_space<vmem>>, %arg5: memref<4x32xbf16, #tpu.memory_space<vmem>>, %arg6: memref<128x12xf32, #tpu.memory_space<vmem>>, %arg7: memref<12x128xf32, #tpu.memory_space<vmem>>, %arg8: memref<32x96xbf16, #tpu.memory_space<vmem>>, %arg9: memref<1x96xf32, #tpu.memory_space<vmem>>, %arg10: memref<32x32xbf16, #tpu.memory_space<vmem>>, %arg11: memref<1x32xf32, #tpu.memory_space<vmem>>, %arg12: memref<1x32xf32, #tpu.memory_space<vmem>>, %arg13: memref<1x32xf32, #tpu.memory_space<vmem>>, %arg14: memref<10x32x32xf32, #tpu.memory_space<vmem>>, %arg15: memref<10x32x128xf32, #tpu.memory_space<vmem>>) attributes {dimension_semantics = [#tpu.dimension_semantics<parallel>], iteration_bounds = array<i64: 2>, scalar_prefetch = 0 : i64, scratch_operands = 0 : i64, tpu.core_type = #tpu.core_type<tc>, window_params = [{transform_indices = @transform_0, window_bounds = array<i64: 10, 32, 32>}, {transform_indices = @transform_1, window_bounds = array<i64: 10, 1, 32>}, {pipeline_mode = #tpu.pipeline_mode<synchronous>, transform_indices = @transform_2, window_bounds = array<i64: 1, 128>}, {pipeline_mode = #tpu.pipeline_mode<synchronous>, transform_indices = @transform_3, window_bounds = array<i64: 1, 128>}, {pipeline_mode = #tpu.pipeline_mode<synchronous>, transform_indices = @transform_4, window_bounds = array<i64: 4, 32>}, {pipeline_mode = #tpu.pipeline_mode<synchronous>, transform_indices = @transform_5, window_bounds = array<i64: 128, 12>}, {pipeline_mode = #tpu.pipeline_mode<synchronous>, transform_indices = @transform_6, window_bounds = array<i64: 12, 128>}, {pipeline_mode = #tpu.pipeline_mode<synchronous>, transform_indices = @transform_7, window_bounds = array<i64: 32, 96>}, {pipeline_mode = #tpu.pipeline_mode<synchronous>, transform_indices = @transform_8, window_bounds = array<i64: 1, 96>}, {pipeline_mode = #tpu.pipeline_mode<synchronous>, transform_indices = @transform_9, window_bounds = array<i64: 32, 32>}, {pipeline_mode = #tpu.pipeline_mode<synchronous>, transform_indices = @transform_10, window_bounds = array<i64: 1, 32>}, {pipeline_mode = #tpu.pipeline_mode<synchronous>, transform_indices = @transform_11, window_bounds = array<i64: 1, 32>}, {pipeline_mode = #tpu.pipeline_mode<synchronous>, transform_indices = @transform_12, window_bounds = array<i64: 1, 32>}, {transform_indices = @transform_13, window_bounds = array<i64: 10, 32, 32>}, {transform_indices = @transform_14, window_bounds = array<i64: 10, 32, 128>}]} {
    %c0 = arith.constant 0 : index
    %c0_0 = arith.constant 0 : index
    %c0_1 = arith.constant 0 : index
    %0 = vector.load %arg1[%c0, %c0_0, %c0_1] : memref<10x32x32xf32, #tpu.memory_space<vmem>>, vector<10x32x32xf32>
    %1 = vector.shape_cast %0 : vector<10x32x32xf32> to vector<320x32xf32>
    %2 = arith.truncf %1 : vector<320x32xf32> to vector<320x32xbf16>
    %c0_2 = arith.constant 0 : index
    %c0_3 = arith.constant 0 : index
    %3 = vector.load %arg8[%c0_2, %c0_3] : memref<32x96xbf16, #tpu.memory_space<vmem>>, vector<32x96xbf16>
    %cst = arith.constant dense<0.000000e+00> : vector<320x96xf32>
    %4 = tpu.matmul %2, %3, %cst {dimension_numbers = #tpu.dot_dimension_numbers<[1], [0], [0], [1], [0, 0, 1, 1], [], []>} : vector<320x32xbf16>, vector<32x96xbf16>, vector<320x96xf32> -> vector<320x96xf32>
    %c0_4 = arith.constant 0 : index
    %c0_5 = arith.constant 0 : index
    %5 = vector.load %arg9[%c0_4, %c0_5] : memref<1x96xf32, #tpu.memory_space<vmem>>, vector<1x96xf32>
    %6 = vector.broadcast %5 : vector<1x96xf32> to vector<320x96xf32>
    %7 = arith.addf %4, %6 : vector<320x96xf32>
    %8 = vector.extract_strided_slice %7 {offsets = [0, 0], sizes = [320, 32], strides = [1, 1]} : vector<320x96xf32> to vector<320x32xf32>
    %9 = vector.shape_cast %8 : vector<320x32xf32> to vector<10x32x32xf32>
    %10 = arith.truncf %9 : vector<10x32x32xf32> to vector<10x32x32xbf16>
    %11 = vector.extract_strided_slice %7 {offsets = [0, 32], sizes = [320, 32], strides = [1, 1]} : vector<320x96xf32> to vector<320x32xf32>
    %12 = vector.shape_cast %11 : vector<320x32xf32> to vector<10x32x32xf32>
    %13 = arith.truncf %12 : vector<10x32x32xf32> to vector<10x32x32xbf16>
    %14 = vector.extract_strided_slice %7 {offsets = [0, 64], sizes = [320, 32], strides = [1, 1]} : vector<320x96xf32> to vector<320x32xf32>
    %15 = vector.shape_cast %14 : vector<320x32xf32> to vector<10x32x32xf32>
    %16 = arith.truncf %15 : vector<10x32x32xf32> to vector<10x32x32xbf16>
    %c0_6 = arith.constant 0 : index
    %c0_7 = arith.constant 0 : index
    %17 = vector.load %arg5[%c0_6, %c0_7] : memref<4x32xbf16, #tpu.memory_space<vmem>>, vector<4x32xbf16>
    %18 = vector.shape_cast %13 : vector<10x32x32xbf16> to vector<10x1x32x32xbf16>
    %19 = vector.shape_cast %17 : vector<4x32xbf16> to vector<1x4x1x32xbf16>
    %20 = vector.broadcast %18 : vector<10x1x32x32xbf16> to vector<10x4x32x32xbf16>
    %21 = vector.broadcast %19 : vector<1x4x1x32xbf16> to vector<10x4x32x32xbf16>
    %22 = arith.mulf %20, %21 : vector<10x4x32x32xbf16>
    %23 = vector.shape_cast %22 : vector<10x4x32x32xbf16> to vector<10x128x32xbf16>
    %24 = vector.shape_cast %16 : vector<10x32x32xbf16> to vector<10x1x32x32xbf16>
    %25 = vector.shape_cast %17 : vector<4x32xbf16> to vector<1x4x1x32xbf16>
    %26 = vector.broadcast %24 : vector<10x1x32x32xbf16> to vector<10x4x32x32xbf16>
    %27 = vector.broadcast %25 : vector<1x4x1x32xbf16> to vector<10x4x32x32xbf16>
    %28 = arith.mulf %26, %27 : vector<10x4x32x32xbf16>
    %29 = vector.shape_cast %28 : vector<10x4x32x32xbf16> to vector<10x128x32xbf16>
    "tpu.trace_start"() <{level = 10 : i32, message = "bqd,bkd->bqk"}> : () -> ()
    %cst_8 = arith.constant dense<0.000000e+00> : vector<10x32x128xf32>
    %30 = tpu.matmul %10, %23, %cst_8 {dimension_numbers = #tpu.dot_dimension_numbers<[2], [2], [1], [1], [0, 0, 0, 1, 1, 1], [0], [0]>} : vector<10x32x32xbf16>, vector<10x128x32xbf16>, vector<10x32x128xf32> -> vector<10x32x128xf32>
    "tpu.trace_stop"() : () -> ()
    %c0_9 = arith.constant 0 : index
    %c0_10 = arith.constant 0 : index
    %c0_11 = arith.constant 0 : index
    %31 = vector.load %arg2[%c0_9, %c0_10, %c0_11] : memref<10x1x32xf32, #tpu.memory_space<vmem>>, vector<10x1x32xf32>
    %32 = vector.shape_cast %31 : vector<10x1x32xf32> to vector<10x32xf32>
    %33 = tpu.concatenate %32, %32, %32, %32 in 1 : vector<10x32xf32>, vector<10x32xf32>, vector<10x32xf32>, vector<10x32xf32> -> vector<10x128xf32>
    %34 = vector.shape_cast %32 : vector<10x32xf32> to vector<10x32x1xf32>
    %cst_12 = arith.constant 0.000000e+00 : f32
    %35 = vector.broadcast %cst_12 : f32 to vector<10x32x1xf32>
    %36 = arith.cmpf one, %34, %35 : vector<10x32x1xf32>
    %37 = vector.shape_cast %33 : vector<10x128xf32> to vector<10x1x128xf32>
    %cst_13 = arith.constant 0.000000e+00 : f32
    %38 = vector.broadcast %cst_13 : f32 to vector<10x1x128xf32>
    %39 = arith.cmpf one, %37, %38 : vector<10x1x128xf32>
    %40 = vector.broadcast %36 : vector<10x32x1xi1> to vector<10x32x128xi1>
    %41 = vector.broadcast %39 : vector<10x1x128xi1> to vector<10x32x128xi1>
    %42 = arith.andi %40, %41 : vector<10x32x128xi1>
    %cst_14 = arith.constant -1.07374182E+9 : f32
    %43 = vector.broadcast %cst_14 : f32 to vector<10x32x128xf32>
    %44 = arith.select %42, %30, %43 : vector<10x32x128xi1>, vector<10x32x128xf32>
    %45 = vector.shape_cast %44 : vector<10x32x128xf32> to vector<320x128xf32>
    %c0_15 = arith.constant 0 : index
    %c0_16 = arith.constant 0 : index
    %46 = vector.load %arg4[%c0_15, %c0_16] : memref<1x128xi32, #tpu.memory_space<vmem>>, vector<1x128xi32>
    %c0_i32 = arith.constant 0 : i32
    %47 = vector.broadcast %c0_i32 : i32 to vector<1x128xi32>
    %48 = arith.cmpi eq, %46, %47 : vector<1x128xi32>
    %cst_17 = arith.constant -3.000000e+38 : f32
    %49 = vector.shape_cast %48 : vector<1x128xi1> to vector<1x128xi1>
    %50 = vector.broadcast %49 : vector<1x128xi1> to vector<320x128xi1>
    %51 = vector.broadcast %cst_17 : f32 to vector<320x128xf32>
    %52 = arith.select %50, %45, %51 : vector<320x128xi1>, vector<320x128xf32>
    %cst_18 = arith.constant dense<0xFF800000> : vector<320xf32>
    %53 = vector.multi_reduction <maximumf>, %52, %cst_18 [1] : vector<320x128xf32> to vector<320xf32>
    %54 = vector.shape_cast %53 : vector<320xf32> to vector<320x1xf32>
    %cst_19 = arith.constant 0.000000e+00 : f32
    %55 = vector.shape_cast %48 : vector<1x128xi1> to vector<1x128xi1>
    %56 = vector.broadcast %55 : vector<1x128xi1> to vector<320x128xi1>
    %57 = vector.shape_cast %54 : vector<320x1xf32> to vector<320x1xf32>
    %58 = vector.broadcast %57 : vector<320x1xf32> to vector<320x128xf32>
    %59 = vector.broadcast %cst_19 : f32 to vector<320x128xf32>
    %60 = arith.select %56, %58, %59 : vector<320x128xi1>, vector<320x128xf32>
    %c1_i32 = arith.constant 1 : i32
    %61 = vector.broadcast %c1_i32 : i32 to vector<1x128xi32>
    %62 = arith.cmpi eq, %46, %61 : vector<1x128xi32>
    %cst_20 = arith.constant -3.000000e+38 : f32
    %63 = vector.shape_cast %62 : vector<1x128xi1> to vector<1x128xi1>
    %64 = vector.broadcast %63 : vector<1x128xi1> to vector<320x128xi1>
    %65 = vector.broadcast %cst_20 : f32 to vector<320x128xf32>
    %66 = arith.select %64, %45, %65 : vector<320x128xi1>, vector<320x128xf32>
    %cst_21 = arith.constant dense<0xFF800000> : vector<320xf32>
    %67 = vector.multi_reduction <maximumf>, %66, %cst_21 [1] : vector<320x128xf32> to vector<320xf32>
    %68 = vector.shape_cast %67 : vector<320xf32> to vector<320x1xf32>
    %69 = vector.shape_cast %62 : vector<1x128xi1> to vector<1x128xi1>
    %70 = vector.broadcast %69 : vector<1x128xi1> to vector<320x128xi1>
    %71 = vector.shape_cast %68 : vector<320x1xf32> to vector<320x1xf32>
    %72 = vector.broadcast %71 : vector<320x1xf32> to vector<320x128xf32>
    %73 = arith.select %70, %72, %60 : vector<320x128xi1>, vector<320x128xf32>
    %c2_i32 = arith.constant 2 : i32
    %74 = vector.broadcast %c2_i32 : i32 to vector<1x128xi32>
    %75 = arith.cmpi eq, %46, %74 : vector<1x128xi32>
    %cst_22 = arith.constant -3.000000e+38 : f32
    %76 = vector.shape_cast %75 : vector<1x128xi1> to vector<1x128xi1>
    %77 = vector.broadcast %76 : vector<1x128xi1> to vector<320x128xi1>
    %78 = vector.broadcast %cst_22 : f32 to vector<320x128xf32>
    %79 = arith.select %77, %45, %78 : vector<320x128xi1>, vector<320x128xf32>
    %cst_23 = arith.constant dense<0xFF800000> : vector<320xf32>
    %80 = vector.multi_reduction <maximumf>, %79, %cst_23 [1] : vector<320x128xf32> to vector<320xf32>
    %81 = vector.shape_cast %80 : vector<320xf32> to vector<320x1xf32>
    %82 = vector.shape_cast %75 : vector<1x128xi1> to vector<1x128xi1>
    %83 = vector.broadcast %82 : vector<1x128xi1> to vector<320x128xi1>
    %84 = vector.shape_cast %81 : vector<320x1xf32> to vector<320x1xf32>
    %85 = vector.broadcast %84 : vector<320x1xf32> to vector<320x128xf32>
    %86 = arith.select %83, %85, %73 : vector<320x128xi1>, vector<320x128xf32>
    %c3_i32 = arith.constant 3 : i32
    %87 = vector.broadcast %c3_i32 : i32 to vector<1x128xi32>
    %88 = arith.cmpi eq, %46, %87 : vector<1x128xi32>
    %cst_24 = arith.constant -3.000000e+38 : f32
    %89 = vector.shape_cast %88 : vector<1x128xi1> to vector<1x128xi1>
    %90 = vector.broadcast %89 : vector<1x128xi1> to vector<320x128xi1>
    %91 = vector.broadcast %cst_24 : f32 to vector<320x128xf32>
    %92 = arith.select %90, %45, %91 : vector<320x128xi1>, vector<320x128xf32>
    %cst_25 = arith.constant dense<0xFF800000> : vector<320xf32>
    %93 = vector.multi_reduction <maximumf>, %92, %cst_25 [1] : vector<320x128xf32> to vector<320xf32>
    %94 = vector.shape_cast %93 : vector<320xf32> to vector<320x1xf32>
    %95 = vector.shape_cast %88 : vector<1x128xi1> to vector<1x128xi1>
    %96 = vector.broadcast %95 : vector<1x128xi1> to vector<320x128xi1>
    %97 = vector.shape_cast %94 : vector<320x1xf32> to vector<320x1xf32>
    %98 = vector.broadcast %97 : vector<320x1xf32> to vector<320x128xf32>
    %99 = arith.select %96, %98, %86 : vector<320x128xi1>, vector<320x128xf32>
    %c4_i32 = arith.constant 4 : i32
    %100 = vector.broadcast %c4_i32 : i32 to vector<1x128xi32>
    %101 = arith.cmpi eq, %46, %100 : vector<1x128xi32>
    %cst_26 = arith.constant -3.000000e+38 : f32
    %102 = vector.shape_cast %101 : vector<1x128xi1> to vector<1x128xi1>
    %103 = vector.broadcast %102 : vector<1x128xi1> to vector<320x128xi1>
    %104 = vector.broadcast %cst_26 : f32 to vector<320x128xf32>
    %105 = arith.select %103, %45, %104 : vector<320x128xi1>, vector<320x128xf32>
    %cst_27 = arith.constant dense<0xFF800000> : vector<320xf32>
    %106 = vector.multi_reduction <maximumf>, %105, %cst_27 [1] : vector<320x128xf32> to vector<320xf32>
    %107 = vector.shape_cast %106 : vector<320xf32> to vector<320x1xf32>
    %108 = vector.shape_cast %101 : vector<1x128xi1> to vector<1x128xi1>
    %109 = vector.broadcast %108 : vector<1x128xi1> to vector<320x128xi1>
    %110 = vector.shape_cast %107 : vector<320x1xf32> to vector<320x1xf32>
    %111 = vector.broadcast %110 : vector<320x1xf32> to vector<320x128xf32>
    %112 = arith.select %109, %111, %99 : vector<320x128xi1>, vector<320x128xf32>
    %c5_i32 = arith.constant 5 : i32
    %113 = vector.broadcast %c5_i32 : i32 to vector<1x128xi32>
    %114 = arith.cmpi eq, %46, %113 : vector<1x128xi32>
    %cst_28 = arith.constant -3.000000e+38 : f32
    %115 = vector.shape_cast %114 : vector<1x128xi1> to vector<1x128xi1>
    %116 = vector.broadcast %115 : vector<1x128xi1> to vector<320x128xi1>
    %117 = vector.broadcast %cst_28 : f32 to vector<320x128xf32>
    %118 = arith.select %116, %45, %117 : vector<320x128xi1>, vector<320x128xf32>
    %cst_29 = arith.constant dense<0xFF800000> : vector<320xf32>
    %119 = vector.multi_reduction <maximumf>, %118, %cst_29 [1] : vector<320x128xf32> to vector<320xf32>
    %120 = vector.shape_cast %119 : vector<320xf32> to vector<320x1xf32>
    %121 = vector.shape_cast %114 : vector<1x128xi1> to vector<1x128xi1>
    %122 = vector.broadcast %121 : vector<1x128xi1> to vector<320x128xi1>
    %123 = vector.shape_cast %120 : vector<320x1xf32> to vector<320x1xf32>
    %124 = vector.broadcast %123 : vector<320x1xf32> to vector<320x128xf32>
    %125 = arith.select %122, %124, %112 : vector<320x128xi1>, vector<320x128xf32>
    %c6_i32 = arith.constant 6 : i32
    %126 = vector.broadcast %c6_i32 : i32 to vector<1x128xi32>
    %127 = arith.cmpi eq, %46, %126 : vector<1x128xi32>
    %cst_30 = arith.constant -3.000000e+38 : f32
    %128 = vector.shape_cast %127 : vector<1x128xi1> to vector<1x128xi1>
    %129 = vector.broadcast %128 : vector<1x128xi1> to vector<320x128xi1>
    %130 = vector.broadcast %cst_30 : f32 to vector<320x128xf32>
    %131 = arith.select %129, %45, %130 : vector<320x128xi1>, vector<320x128xf32>
    %cst_31 = arith.constant dense<0xFF800000> : vector<320xf32>
    %132 = vector.multi_reduction <maximumf>, %131, %cst_31 [1] : vector<320x128xf32> to vector<320xf32>
    %133 = vector.shape_cast %132 : vector<320xf32> to vector<320x1xf32>
    %134 = vector.shape_cast %127 : vector<1x128xi1> to vector<1x128xi1>
    %135 = vector.broadcast %134 : vector<1x128xi1> to vector<320x128xi1>
    %136 = vector.shape_cast %133 : vector<320x1xf32> to vector<320x1xf32>
    %137 = vector.broadcast %136 : vector<320x1xf32> to vector<320x128xf32>
    %138 = arith.select %135, %137, %125 : vector<320x128xi1>, vector<320x128xf32>
    %c7_i32 = arith.constant 7 : i32
    %139 = vector.broadcast %c7_i32 : i32 to vector<1x128xi32>
    %140 = arith.cmpi eq, %46, %139 : vector<1x128xi32>
    %cst_32 = arith.constant -3.000000e+38 : f32
    %141 = vector.shape_cast %140 : vector<1x128xi1> to vector<1x128xi1>
    %142 = vector.broadcast %141 : vector<1x128xi1> to vector<320x128xi1>
    %143 = vector.broadcast %cst_32 : f32 to vector<320x128xf32>
    %144 = arith.select %142, %45, %143 : vector<320x128xi1>, vector<320x128xf32>
    %cst_33 = arith.constant dense<0xFF800000> : vector<320xf32>
    %145 = vector.multi_reduction <maximumf>, %144, %cst_33 [1] : vector<320x128xf32> to vector<320xf32>
    %146 = vector.shape_cast %145 : vector<320xf32> to vector<320x1xf32>
    %147 = vector.shape_cast %140 : vector<1x128xi1> to vector<1x128xi1>
    %148 = vector.broadcast %147 : vector<1x128xi1> to vector<320x128xi1>
    %149 = vector.shape_cast %146 : vector<320x1xf32> to vector<320x1xf32>
    %150 = vector.broadcast %149 : vector<320x1xf32> to vector<320x128xf32>
    %151 = arith.select %148, %150, %138 : vector<320x128xi1>, vector<320x128xf32>
    %c8_i32 = arith.constant 8 : i32
    %152 = vector.broadcast %c8_i32 : i32 to vector<1x128xi32>
    %153 = arith.cmpi eq, %46, %152 : vector<1x128xi32>
    %cst_34 = arith.constant -3.000000e+38 : f32
    %154 = vector.shape_cast %153 : vector<1x128xi1> to vector<1x128xi1>
    %155 = vector.broadcast %154 : vector<1x128xi1> to vector<320x128xi1>
    %156 = vector.broadcast %cst_34 : f32 to vector<320x128xf32>
    %157 = arith.select %155, %45, %156 : vector<320x128xi1>, vector<320x128xf32>
    %cst_35 = arith.constant dense<0xFF800000> : vector<320xf32>
    %158 = vector.multi_reduction <maximumf>, %157, %cst_35 [1] : vector<320x128xf32> to vector<320xf32>
    %159 = vector.shape_cast %158 : vector<320xf32> to vector<320x1xf32>
    %160 = vector.shape_cast %153 : vector<1x128xi1> to vector<1x128xi1>
    %161 = vector.broadcast %160 : vector<1x128xi1> to vector<320x128xi1>
    %162 = vector.shape_cast %159 : vector<320x1xf32> to vector<320x1xf32>
    %163 = vector.broadcast %162 : vector<320x1xf32> to vector<320x128xf32>
    %164 = arith.select %161, %163, %151 : vector<320x128xi1>, vector<320x128xf32>
    %c9_i32 = arith.constant 9 : i32
    %165 = vector.broadcast %c9_i32 : i32 to vector<1x128xi32>
    %166 = arith.cmpi eq, %46, %165 : vector<1x128xi32>
    %cst_36 = arith.constant -3.000000e+38 : f32
    %167 = vector.shape_cast %166 : vector<1x128xi1> to vector<1x128xi1>
    %168 = vector.broadcast %167 : vector<1x128xi1> to vector<320x128xi1>
    %169 = vector.broadcast %cst_36 : f32 to vector<320x128xf32>
    %170 = arith.select %168, %45, %169 : vector<320x128xi1>, vector<320x128xf32>
    %cst_37 = arith.constant dense<0xFF800000> : vector<320xf32>
    %171 = vector.multi_reduction <maximumf>, %170, %cst_37 [1] : vector<320x128xf32> to vector<320xf32>
    %172 = vector.shape_cast %171 : vector<320xf32> to vector<320x1xf32>
    %173 = vector.shape_cast %166 : vector<1x128xi1> to vector<1x128xi1>
    %174 = vector.broadcast %173 : vector<1x128xi1> to vector<320x128xi1>
    %175 = vector.shape_cast %172 : vector<320x1xf32> to vector<320x1xf32>
    %176 = vector.broadcast %175 : vector<320x1xf32> to vector<320x128xf32>
    %177 = arith.select %174, %176, %164 : vector<320x128xi1>, vector<320x128xf32>
    %c10_i32 = arith.constant 10 : i32
    %178 = vector.broadcast %c10_i32 : i32 to vector<1x128xi32>
    %179 = arith.cmpi eq, %46, %178 : vector<1x128xi32>
    %cst_38 = arith.constant -3.000000e+38 : f32
    %180 = vector.shape_cast %179 : vector<1x128xi1> to vector<1x128xi1>
    %181 = vector.broadcast %180 : vector<1x128xi1> to vector<320x128xi1>
    %182 = vector.broadcast %cst_38 : f32 to vector<320x128xf32>
    %183 = arith.select %181, %45, %182 : vector<320x128xi1>, vector<320x128xf32>
    %cst_39 = arith.constant dense<0xFF800000> : vector<320xf32>
    %184 = vector.multi_reduction <maximumf>, %183, %cst_39 [1] : vector<320x128xf32> to vector<320xf32>
    %185 = vector.shape_cast %184 : vector<320xf32> to vector<320x1xf32>
    %186 = vector.shape_cast %179 : vector<1x128xi1> to vector<1x128xi1>
    %187 = vector.broadcast %186 : vector<1x128xi1> to vector<320x128xi1>
    %188 = vector.shape_cast %185 : vector<320x1xf32> to vector<320x1xf32>
    %189 = vector.broadcast %188 : vector<320x1xf32> to vector<320x128xf32>
    %190 = arith.select %187, %189, %177 : vector<320x128xi1>, vector<320x128xf32>
    %c11_i32 = arith.constant 11 : i32
    %191 = vector.broadcast %c11_i32 : i32 to vector<1x128xi32>
    %192 = arith.cmpi eq, %46, %191 : vector<1x128xi32>
    %cst_40 = arith.constant -3.000000e+38 : f32
    %193 = vector.shape_cast %192 : vector<1x128xi1> to vector<1x128xi1>
    %194 = vector.broadcast %193 : vector<1x128xi1> to vector<320x128xi1>
    %195 = vector.broadcast %cst_40 : f32 to vector<320x128xf32>
    %196 = arith.select %194, %45, %195 : vector<320x128xi1>, vector<320x128xf32>
    %cst_41 = arith.constant dense<0xFF800000> : vector<320xf32>
    %197 = vector.multi_reduction <maximumf>, %196, %cst_41 [1] : vector<320x128xf32> to vector<320xf32>
    %198 = vector.shape_cast %197 : vector<320xf32> to vector<320x1xf32>
    %199 = vector.shape_cast %192 : vector<1x128xi1> to vector<1x128xi1>
    %200 = vector.broadcast %199 : vector<1x128xi1> to vector<320x128xi1>
    %201 = vector.shape_cast %198 : vector<320x1xf32> to vector<320x1xf32>
    %202 = vector.broadcast %201 : vector<320x1xf32> to vector<320x128xf32>
    %203 = arith.select %200, %202, %190 : vector<320x128xi1>, vector<320x128xf32>
    %204 = arith.subf %45, %203 : vector<320x128xf32>
    %205 = math.exp %204 : vector<320x128xf32>
    %c0_42 = arith.constant 0 : index
    %c0_43 = arith.constant 0 : index
    %206 = vector.load %arg6[%c0_42, %c0_43] : memref<128x12xf32, #tpu.memory_space<vmem>>, vector<128x12xf32>
    %cst_44 = arith.constant dense<0.000000e+00> : vector<320x12xf32>
    %207 = tpu.matmul %205, %206, %cst_44 {dimension_numbers = #tpu.dot_dimension_numbers<[1], [0], [0], [1], [0, 0, 1, 1], [], []>} : vector<320x128xf32>, vector<128x12xf32>, vector<320x12xf32> -> vector<320x12xf32>
    %c0_45 = arith.constant 0 : index
    %c0_46 = arith.constant 0 : index
    %208 = vector.load %arg7[%c0_45, %c0_46] : memref<12x128xf32, #tpu.memory_space<vmem>>, vector<12x128xf32>
    %cst_47 = arith.constant dense<0.000000e+00> : vector<320x128xf32>
    %209 = tpu.matmul %207, %208, %cst_47 {dimension_numbers = #tpu.dot_dimension_numbers<[1], [0], [0], [1], [0, 0, 1, 1], [], []>} : vector<320x12xf32>, vector<12x128xf32>, vector<320x128xf32> -> vector<320x128xf32>
    %210 = tpu.reciprocal %209 {approx = true} : vector<320x128xf32> -> vector<320x128xf32>
    %211 = arith.mulf %205, %210 : vector<320x128xf32>
    %c0_48 = arith.constant 0 : index
    %c0_49 = arith.constant 0 : index
    %212 = vector.load %arg3[%c0_48, %c0_49] : memref<1x128xf32, #tpu.memory_space<vmem>>, vector<1x128xf32>
    %213 = vector.broadcast %212 : vector<1x128xf32> to vector<320x128xf32>
    %214 = arith.mulf %211, %213 : vector<320x128xf32>
    %215 = vector.shape_cast %214 : vector<320x128xf32> to vector<10x32x128xf32>
    %c0_50 = arith.constant 0 : index
    %c0_51 = arith.constant 0 : index
    %c0_52 = arith.constant 0 : index
    %216 = vector.load %arg15[%c0_50, %c0_51, %c0_52] : memref<10x32x128xf32, #tpu.memory_space<vmem>>, vector<10x32x128xf32>
    tpu.vector_store %arg15[%c0_50, %c0_51, %c0_52], %215 {strides = array<i32>} : memref<10x32x128xf32, #tpu.memory_space<vmem>>, vector<10x32x128xf32>,
    %217 = arith.truncf %214 : vector<320x128xf32> to vector<320x128xbf16>
    %218 = vector.shape_cast %217 : vector<320x128xbf16> to vector<10x32x128xbf16>
    "tpu.trace_start"() <{level = 10 : i32, message = "bqk,bkd->bqd"}> : () -> ()
    %cst_53 = arith.constant dense<0.000000e+00> : vector<10x32x32xf32>
    %219 = tpu.matmul %218, %29, %cst_53 {dimension_numbers = #tpu.dot_dimension_numbers<[2], [1], [1], [2], [0, 0, 0, 1, 1, 2], [0], [0]>} : vector<10x32x128xbf16>, vector<10x128x32xbf16>, vector<10x32x32xf32> -> vector<10x32x32xf32>
    "tpu.trace_stop"() : () -> ()
    %220 = vector.shape_cast %219 : vector<10x32x32xf32> to vector<320x32xf32>
    %221 = arith.truncf %220 : vector<320x32xf32> to vector<320x32xbf16>
    %c0_54 = arith.constant 0 : index
    %c0_55 = arith.constant 0 : index
    %222 = vector.load %arg10[%c0_54, %c0_55] : memref<32x32xbf16, #tpu.memory_space<vmem>>, vector<32x32xbf16>
    %cst_56 = arith.constant dense<0.000000e+00> : vector<320x32xf32>
    %223 = tpu.matmul %221, %222, %cst_56 {dimension_numbers = #tpu.dot_dimension_numbers<[1], [0], [0], [1], [0, 0, 1, 1], [], []>} : vector<320x32xbf16>, vector<32x32xbf16>, vector<320x32xf32> -> vector<320x32xf32>
    %c0_57 = arith.constant 0 : index
    %c0_58 = arith.constant 0 : index
    %224 = vector.load %arg11[%c0_57, %c0_58] : memref<1x32xf32, #tpu.memory_space<vmem>>, vector<1x32xf32>
    %225 = vector.broadcast %224 : vector<1x32xf32> to vector<320x32xf32>
    %226 = arith.addf %223, %225 : vector<320x32xf32>
    %227 = arith.addf %226, %1 : vector<320x32xf32>
    %cst_59 = arith.constant dense<0.000000e+00> : vector<320xf32>
    %228 = vector.multi_reduction <add>, %227, %cst_59 [1] : vector<320x32xf32> to vector<320xf32>
    %229 = vector.shape_cast %228 : vector<320xf32> to vector<320x1xf32>
    %cst_60 = arith.constant 3.200000e+01 : f32
    %230 = vector.broadcast %cst_60 : f32 to vector<320x1xf32>
    %231 = arith.divf %229, %230 : vector<320x1xf32>
    %232 = vector.broadcast %231 : vector<320x1xf32> to vector<320x32xf32>
    %233 = arith.subf %227, %232 : vector<320x32xf32>
    %234 = arith.mulf %233, %233 : vector<320x32xf32>
    %cst_61 = arith.constant dense<0.000000e+00> : vector<320xf32>
    %235 = vector.multi_reduction <add>, %234, %cst_61 [1] : vector<320x32xf32> to vector<320xf32>
    %236 = vector.shape_cast %235 : vector<320xf32> to vector<320x1xf32>
    %cst_62 = arith.constant 3.200000e+01 : f32
    %237 = vector.broadcast %cst_62 : f32 to vector<320x1xf32>
    %238 = arith.divf %236, %237 : vector<320x1xf32>
    %239 = vector.broadcast %231 : vector<320x1xf32> to vector<320x32xf32>
    %240 = arith.subf %227, %239 : vector<320x32xf32>
    %cst_63 = arith.constant 9.99999996E-13 : f32
    %241 = vector.broadcast %cst_63 : f32 to vector<320x1xf32>
    %242 = arith.addf %238, %241 : vector<320x1xf32>
    %243 = math.rsqrt %242 : vector<320x1xf32>
    %244 = vector.broadcast %243 : vector<320x1xf32> to vector<320x32xf32>
    %245 = arith.mulf %240, %244 : vector<320x32xf32>
    %c0_64 = arith.constant 0 : index
    %c0_65 = arith.constant 0 : index
    %246 = vector.load %arg12[%c0_64, %c0_65] : memref<1x32xf32, #tpu.memory_space<vmem>>, vector<1x32xf32>
    %247 = vector.broadcast %246 : vector<1x32xf32> to vector<320x32xf32>
    %248 = arith.mulf %245, %247 : vector<320x32xf32>
    %c0_66 = arith.constant 0 : index
    %c0_67 = arith.constant 0 : index
    %249 = vector.load %arg13[%c0_66, %c0_67] : memref<1x32xf32, #tpu.memory_space<vmem>>, vector<1x32xf32>
    %250 = vector.broadcast %249 : vector<1x32xf32> to vector<320x32xf32>
    %251 = arith.addf %248, %250 : vector<320x32xf32>
    %252 = vector.shape_cast %251 : vector<320x32xf32> to vector<10x32x32xf32>
    %c0_68 = arith.constant 0 : index
    %c0_69 = arith.constant 0 : index
    %c0_70 = arith.constant 0 : index
    %253 = vector.load %arg14[%c0_68, %c0_69, %c0_70] : memref<10x32x32xf32, #tpu.memory_space<vmem>>, vector<10x32x32xf32>
    tpu.vector_store %arg14[%c0_68, %c0_69, %c0_70], %252 {strides = array<i32>} : memref<10x32x32xf32, #tpu.memory_space<vmem>>, vector<10x32x32xf32>,
    return
  }
  func.func @transform_0(%arg0: i32) -> (i32, i32, i32) {
    %c0_i32 = arith.constant 0 : i32
    %c0_i32_0 = arith.constant 0 : i32
    %c0_i32_1 = arith.constant 0 : i32
    return %arg0, %c0_i32, %c0_i32_0 : i32, i32, i32
  }
  func.func @transform_1(%arg0: i32) -> (i32, i32, i32) {
    %c0_i32 = arith.constant 0 : i32
    %c0_i32_0 = arith.constant 0 : i32
    %c0_i32_1 = arith.constant 0 : i32
    return %arg0, %c0_i32, %c0_i32_0 : i32, i32, i32
  }
  func.func @transform_2(%arg0: i32) -> (i32, i32) {
    %c0_i32 = arith.constant 0 : i32
    %c0_i32_0 = arith.constant 0 : i32
    %c0_i32_1 = arith.constant 0 : i32
    return %c0_i32, %c0_i32_0 : i32, i32
  }
  func.func @transform_3(%arg0: i32) -> (i32, i32) {
    %c0_i32 = arith.constant 0 : i32
    %c0_i32_0 = arith.constant 0 : i32
    %c0_i32_1 = arith.constant 0 : i32
    return %c0_i32, %c0_i32_0 : i32, i32
  }
  func.func @transform_4(%arg0: i32) -> (i32, i32) {
    %c0_i32 = arith.constant 0 : i32
    %c0_i32_0 = arith.constant 0 : i32
    %c0_i32_1 = arith.constant 0 : i32
    return %c0_i32, %c0_i32_0 : i32, i32
  }
  func.func @transform_5(%arg0: i32) -> (i32, i32) {
    %c0_i32 = arith.constant 0 : i32
    %c0_i32_0 = arith.constant 0 : i32
    %c0_i32_1 = arith.constant 0 : i32
    return %c0_i32, %c0_i32_0 : i32, i32
  }
  func.func @transform_6(%arg0: i32) -> (i32, i32) {
    %c0_i32 = arith.constant 0 : i32
    %c0_i32_0 = arith.constant 0 : i32
    %c0_i32_1 = arith.constant 0 : i32
    return %c0_i32, %c0_i32_0 : i32, i32
  }
  func.func @transform_7(%arg0: i32) -> (i32, i32) {
    %c0_i32 = arith.constant 0 : i32
    %c0_i32_0 = arith.constant 0 : i32
    %c0_i32_1 = arith.constant 0 : i32
    return %c0_i32, %c0_i32_0 : i32, i32
  }
  func.func @transform_8(%arg0: i32) -> (i32, i32) {
    %c0_i32 = arith.constant 0 : i32
    %c0_i32_0 = arith.constant 0 : i32
    %c0_i32_1 = arith.constant 0 : i32
    return %c0_i32, %c0_i32_0 : i32, i32
  }
  func.func @transform_9(%arg0: i32) -> (i32, i32) {
    %c0_i32 = arith.constant 0 : i32
    %c0_i32_0 = arith.constant 0 : i32
    %c0_i32_1 = arith.constant 0 : i32
    return %c0_i32, %c0_i32_0 : i32, i32
  }
  func.func @transform_10(%arg0: i32) -> (i32, i32) {
    %c0_i32 = arith.constant 0 : i32
    %c0_i32_0 = arith.constant 0 : i32
    %c0_i32_1 = arith.constant 0 : i32
    return %c0_i32, %c0_i32_0 : i32, i32
  }
  func.func @transform_11(%arg0: i32) -> (i32, i32) {
    %c0_i32 = arith.constant 0 : i32
    %c0_i32_0 = arith.constant 0 : i32
    %c0_i32_1 = arith.constant 0 : i32
    return %c0_i32, %c0_i32_0 : i32, i32
  }
  func.func @transform_12(%arg0: i32) -> (i32, i32) {
    %c0_i32 = arith.constant 0 : i32
    %c0_i32_0 = arith.constant 0 : i32
    %c0_i32_1 = arith.constant 0 : i32
    return %c0_i32, %c0_i32_0 : i32, i32
  }
  func.func @transform_13(%arg0: i32) -> (i32, i32, i32) {
    %c0_i32 = arith.constant 0 : i32
    %c0_i32_0 = arith.constant 0 : i32
    %c0_i32_1 = arith.constant 0 : i32
    return %arg0, %c0_i32, %c0_i32_0 : i32, i32, i32
  }
  func.func @transform_14(%arg0: i32) -> (i32, i32, i32) {
    %c0_i32 = arith.constant 0 : i32
    %c0_i32_0 = arith.constant 0 : i32
    %c0_i32_1 = arith.constant 0 : i32
    return %arg0, %c0_i32, %c0_i32_0 : i32, i32, i32
  }
}

</mosaic_0001>

<llo_original>
// kernel: tpu_custom_call.1
$region0: #{tpu_custom_call.1}
  #allocation0 [shape = 'u32[]', space=smem, size = 0x4, offset = 0x4, fixed_abs, tag = 'smem constant byte address 0x4 - core index']
  #allocation1 [shape = 'u32[72,128]{1,0:T(1,128)}', space=vmem, size = 0x9000, scoped, tag = 'internal scratch']
  %s0 = inlined_call_operand.hbm [shape: f32[20,32,32], index: 0, kind: input, shape index: {}]
  %s1 = inlined_call_operand.vmem [shape: f32[20,1,32], index: 1, kind: input, shape index: {}]
  %s2 = inlined_call_operand.vmem [shape: f32[1,128], index: 2, kind: input, shape index: {}]
  %s3 = inlined_call_operand.vmem [shape: s32[1,128], index: 3, kind: input, shape index: {}]
  %s4 = inlined_call_operand.vmem [shape: bf16[4,32], index: 4, kind: input, shape index: {}]
  %s5 = inlined_call_operand.vmem [shape: f32[128,12], index: 5, kind: input, shape index: {}]
  %s6 = inlined_call_operand.vmem [shape: f32[12,128], index: 6, kind: input, shape index: {}]
  %s7 = inlined_call_operand.vmem [shape: bf16[32,96], index: 7, kind: input, shape index: {}]
  %s8 = inlined_call_operand.vmem [shape: f32[1,96], index: 8, kind: input, shape index: {}]
  %s9 = inlined_call_operand.vmem [shape: bf16[32,32], index: 9, kind: input, shape index: {}]
  %s10 = inlined_call_operand.vmem [shape: f32[1,32], index: 10, kind: input, shape index: {}]
  %s11 = inlined_call_operand.vmem [shape: f32[1,32], index: 11, kind: input, shape index: {}]
  %s12 = inlined_call_operand.vmem [shape: f32[1,32], index: 12, kind: input, shape index: {}]
  %s13 = inlined_call_operand.hbm [shape: f32[20,32,32], index: 13, kind: output, shape index: {0}]
  %s14 = inlined_call_operand.hbm [shape: f32[20,32,128], index: 14, kind: output, shape index: {1}]
  %15 = xla_tuple %s13, %s14
  %s16 = sld [smem:[#allocation0]]
  $region97: #{tpu_custom_call.1} parent=0
    _
  %s18 = ssub.s32 1, %s16
  %s19 = scalar_select 0, %s18, %s16
  $region1: #{tpu_custom_call.1} parent=0
    #allocation2 [shape = 'u8[327680]{0}', space=vmem, size = 0x50000, scoped, tag = 'input window, operand 0']
    #allocation3 [shape = 's32[2]{0}', space=sflag, size = 0x8, scoped, tag = 'scoped memory for tpu_custom_call.1']
    #allocation4 [shape = 's32[2]{0}', space=sflag, size = 0x8, scoped, tag = 'scoped memory for tpu_custom_call.1']
    #allocation5 [shape = 'u8[327680]{0}', space=vmem, size = 0x50000, scoped, tag = 'output window, operand 0']
    #allocation6 [shape = 'u8[327680]{0}', space=vmem, size = 0x50000, scoped, tag = 'output window, operand 1']
    #allocation7 [shape = 's32[2]{0}', space=sflag, size = 0x8, scoped, tag = 'scoped memory for tpu_custom_call.1']
    %20 = vsyncpa [#allocation3], 0
    %s21 = scalar_lea.sflag [#allocation3], 1
    %22 = vsyncpa %s21, 0
    %23 = vsyncpa [#allocation4], 0
    %s24 = scalar_lea.sflag [#allocation4], 1
    %25 = vsyncpa %s24, 0
    %26 = vsyncpa [#allocation7], 0
    %s27 = scalar_lea.sflag [#allocation7], 1
    %28 = vsyncpa %s27, 0
    loop: start=0, step=1, limit=4
    $region2: #{tpu_custom_call.1} parent=1 // loop_pre_header
      _
    $region3: #{tpu_custom_call.1} parent=1 // loop_header
      %s30 = sphi 0, %s34
      %p31 = scmp.ge.s32.totalorder %s30, 4
      %s40 = sphi 0, %s42
      %s43 = sphi 0, %s40
      %s44 = sphi 0, %s43
      %s60 = sphi 0, %s44
      %s66 = sphi 0, %s68
      %s69 = sphi 0, %s66
      %s70 = sphi 0, %s69
      %s86 = sphi 0, %s70
      %s90 = sphi 0, %s90
      %s92 = sphi 0, %s90
      %s93 = sphi 0, %s92
      %s107 = sphi 0, %s93
      %s111 = sphi 0, %s111
      %s113 = sphi 0, %s111
      %s114 = sphi 0, %s113
      %s128 = sphi 0, %s114
      %s132 = sphi 0, %s132
      %s134 = sphi 0, %s132
      %s135 = sphi 0, %s134
      %s149 = sphi 0, %s135
      %s153 = sphi 0, %s153
      %s155 = sphi 0, %s153
      %s156 = sphi 0, %s155
      %s170 = sphi 0, %s156
      %s174 = sphi 0, %s174
      %s176 = sphi 0, %s174
      %s177 = sphi 0, %s176
      %s191 = sphi 0, %s177
      %s195 = sphi 0, %s195
      %s197 = sphi 0, %s195
      %s198 = sphi 0, %s197
      %s212 = sphi 0, %s198
      %s216 = sphi 0, %s216
      %s218 = sphi 0, %s216
      %s219 = sphi 0, %s218
      %s233 = sphi 0, %s219
      %s237 = sphi 0, %s237
      %s239 = sphi 0, %s237
      %s240 = sphi 0, %s239
      %s254 = sphi 0, %s240
      %s258 = sphi 0, %s258
      %s260 = sphi 0, %s258
      %s261 = sphi 0, %s260
      %s275 = sphi 0, %s261
      %s279 = sphi 0, %s279
      %s281 = sphi 0, %s279
      %s282 = sphi 0, %s281
      %s296 = sphi 0, %s282
      %s300 = sphi 0, %s300
      %s302 = sphi 0, %s300
      %s303 = sphi 0, %s302
      %s317 = sphi 0, %s303
      %s323 = sphi 0, %s325
      %s326 = sphi 0, %s323
      %s327 = sphi 0, %s326
      %s343 = sphi 0, %s327
      %s349 = sphi 0, %s351
      %s352 = sphi 0, %s349
      %s353 = sphi 0, %s352
      %s369 = sphi 0, %s353
    $region4: #{tpu_custom_call.1} parent=1 // loop_header_branch
      %33 = sbr.rel (%p31) target = $region8
    $region5: #{tpu_custom_call.1} parent=1 // loop_body
      %s35 = ssub.s32 %s30, 1
      %s36 = ssub.s32 %s30, 2
      %s37 = sadd.s32 %s30, 1
      %s38 = ssub.s32 %s30, %s37
      %p39 = scmp.eq.s32.totalorder %s38, 0
      %s41 = sadd.s32 %s40, 1
      %s42 = scalar_select %p39, %s40, %s41
      %p45 = pneg %p39
      %p46 = scmp.eq.s32.totalorder %s30, 1
      %p47 = por %p45, %p46
      %p48 = scmp.ne.s32.totalorder %s40, %s43
      %p49 = scmp.eq.s32.totalorder %s30, 0
      %p50 = por %p48, %p49
      %p51 = scmp.ne.s32.totalorder %s40, %s43
      %p52 = scmp.eq.s32.totalorder %s35, 1
      %p53 = por %p51, %p52
      %p54 = scmp.ne.s32.totalorder %s43, %s44
      %p55 = scmp.eq.s32.totalorder %s35, 0
      %p56 = por %p54, %p55
      %p57 = scmp.ne.s32.totalorder %s43, %s44
      %p58 = scmp.eq.s32.totalorder %s36, 1
      %p59 = por %p57, %p58
      %p61 = scmp.ne.s32.totalorder %s44, %s60
      %p62 = scmp.eq.s32.totalorder %s36, 0
      %p63 = por %p61, %p62
      %s64 = ssub.s32 %s30, %s37
      %p65 = scmp.eq.s32.totalorder %s64, 0
      %s67 = sadd.s32 %s66, 1
      %s68 = scalar_select %p65, %s66, %s67
      %p71 = pneg %p65
      %p72 = scmp.eq.s32.totalorder %s30, 1
      %p73 = por %p71, %p72
      %p74 = scmp.ne.s32.totalorder %s66, %s69
      %p75 = scmp.eq.s32.totalorder %s30, 0
      %p76 = por %p74, %p75
      %p77 = scmp.ne.s32.totalorder %s66, %s69
      %p78 = scmp.eq.s32.totalorder %s35, 1
      %p79 = por %p77, %p78
      %p80 = scmp.ne.s32.totalorder %s69, %s70
      %p81 = scmp.eq.s32.totalorder %s35, 0
      %p82 = por %p80, %p81
      %p83 = scmp.ne.s32.totalorder %s69, %s70
      %p84 = scmp.eq.s32.totalorder %s36, 1
      %p85 = por %p83, %p84
      %p87 = scmp.ne.s32.totalorder %s70, %s86
      %p88 = scmp.eq.s32.totalorder %s36, 0
      %p89 = por %p87, %p88
      %s91 = sadd.s32 %s90, 1
      %p94 = scmp.eq.s32.totalorder %s30, 1
      %p95 = scmp.ne.s32.totalorder %s90, %s92
      %p96 = scmp.eq.s32.totalorder %s30, 0
      %p97 = por %p95, %p96
      %p98 = scmp.ne.s32.totalorder %s90, %s92
      %p99 = scmp.eq.s32.totalorder %s35, 1
      %p100 = por %p98, %p99
      %p101 = scmp.ne.s32.totalorder %s92, %s93
      %p102 = scmp.eq.s32.totalorder %s35, 0
      %p103 = por %p101, %p102
      %p104 = scmp.ne.s32.totalorder %s92, %s93
      %p105 = scmp.eq.s32.totalorder %s36, 1
      %p106 = por %p104, %p105
      %p108 = scmp.ne.s32.totalorder %s93, %s107
      %p109 = scmp.eq.s32.totalorder %s36, 0
      %p110 = por %p108, %p109
      %s112 = sadd.s32 %s111, 1
      %p115 = scmp.eq.s32.totalorder %s30, 1
      %p116 = scmp.ne.s32.totalorder %s111, %s113
      %p117 = scmp.eq.s32.totalorder %s30, 0
      %p118 = por %p116, %p117
      %p119 = scmp.ne.s32.totalorder %s111, %s113
      %p120 = scmp.eq.s32.totalorder %s35, 1
      %p121 = por %p119, %p120
      %p122 = scmp.ne.s32.totalorder %s113, %s114
      %p123 = scmp.eq.s32.totalorder %s35, 0
      %p124 = por %p122, %p123
      %p125 = scmp.ne.s32.totalorder %s113, %s114
      %p126 = scmp.eq.s32.totalorder %s36, 1
      %p127 = por %p125, %p126
      %p129 = scmp.ne.s32.totalorder %s114, %s128
      %p130 = scmp.eq.s32.totalorder %s36, 0
      %p131 = por %p129, %p130
      %s133 = sadd.s32 %s132, 1
      %p136 = scmp.eq.s32.totalorder %s30, 1
      %p137 = scmp.ne.s32.totalorder %s132, %s134
      %p138 = scmp.eq.s32.totalorder %s30, 0
      %p139 = por %p137, %p138
      %p140 = scmp.ne.s32.totalorder %s132, %s134
      %p141 = scmp.eq.s32.totalorder %s35, 1
      %p142 = por %p140, %p141
      %p143 = scmp.ne.s32.totalorder %s134, %s135
      %p144 = scmp.eq.s32.totalorder %s35, 0
      %p145 = por %p143, %p144
      %p146 = scmp.ne.s32.totalorder %s134, %s135
      %p147 = scmp.eq.s32.totalorder %s36, 1
      %p148 = por %p146, %p147
      %p150 = scmp.ne.s32.totalorder %s135, %s149
      %p151 = scmp.eq.s32.totalorder %s36, 0
      %p152 = por %p150, %p151
      %s154 = sadd.s32 %s153, 1
      %p157 = scmp.eq.s32.totalorder %s30, 1
      %p158 = scmp.ne.s32.totalorder %s153, %s155
      %p159 = scmp.eq.s32.totalorder %s30, 0
      %p160 = por %p158, %p159
      %p161 = scmp.ne.s32.totalorder %s153, %s155
      %p162 = scmp.eq.s32.totalorder %s35, 1
      %p163 = por %p161, %p162
      %p164 = scmp.ne.s32.totalorder %s155, %s156
      %p165 = scmp.eq.s32.totalorder %s35, 0
      %p166 = por %p164, %p165
      %p167 = scmp.ne.s32.totalorder %s155, %s156
      %p168 = scmp.eq.s32.totalorder %s36, 1
      %p169 = por %p167, %p168
      %p171 = scmp.ne.s32.totalorder %s156, %s170
      %p172 = scmp.eq.s32.totalorder %s36, 0
      %p173 = por %p171, %p172
      %s175 = sadd.s32 %s174, 1
      %p178 = scmp.eq.s32.totalorder %s30, 1
      %p179 = scmp.ne.s32.totalorder %s174, %s176
      %p180 = scmp.eq.s32.totalorder %s30, 0
      %p181 = por %p179, %p180
      %p182 = scmp.ne.s32.totalorder %s174, %s176
      %p183 = scmp.eq.s32.totalorder %s35, 1
      %p184 = por %p182, %p183
      %p185 = scmp.ne.s32.totalorder %s176, %s177
      %p186 = scmp.eq.s32.totalorder %s35, 0
      %p187 = por %p185, %p186
      %p188 = scmp.ne.s32.totalorder %s176, %s177
      %p189 = scmp.eq.s32.totalorder %s36, 1
      %p190 = por %p188, %p189
      %p192 = scmp.ne.s32.totalorder %s177, %s191
      %p193 = scmp.eq.s32.totalorder %s36, 0
      %p194 = por %p192, %p193
      %s196 = sadd.s32 %s195, 1
      %p199 = scmp.eq.s32.totalorder %s30, 1
      %p200 = scmp.ne.s32.totalorder %s195, %s197
      %p201 = scmp.eq.s32.totalorder %s30, 0
      %p202 = por %p200, %p201
      %p203 = scmp.ne.s32.totalorder %s195, %s197
      %p204 = scmp.eq.s32.totalorder %s35, 1
      %p205 = por %p203, %p204
      %p206 = scmp.ne.s32.totalorder %s197, %s198
      %p207 = scmp.eq.s32.totalorder %s35, 0
      %p208 = por %p206, %p207
      %p209 = scmp.ne.s32.totalorder %s197, %s198
      %p210 = scmp.eq.s32.totalorder %s36, 1
      %p211 = por %p209, %p210
      %p213 = scmp.ne.s32.totalorder %s198, %s212
      %p214 = scmp.eq.s32.totalorder %s36, 0
      %p215 = por %p213, %p214
      %s217 = sadd.s32 %s216, 1
      %p220 = scmp.eq.s32.totalorder %s30, 1
      %p221 = scmp.ne.s32.totalorder %s216, %s218
      %p222 = scmp.eq.s32.totalorder %s30, 0
      %p223 = por %p221, %p222
      %p224 = scmp.ne.s32.totalorder %s216, %s218
      %p225 = scmp.eq.s32.totalorder %s35, 1
      %p226 = por %p224, %p225
      %p227 = scmp.ne.s32.totalorder %s218, %s219
      %p228 = scmp.eq.s32.totalorder %s35, 0
      %p229 = por %p227, %p228
      %p230 = scmp.ne.s32.totalorder %s218, %s219
      %p231 = scmp.eq.s32.totalorder %s36, 1
      %p232 = por %p230, %p231
      %p234 = scmp.ne.s32.totalorder %s219, %s233
      %p235 = scmp.eq.s32.totalorder %s36, 0
      %p236 = por %p234, %p235
      %s238 = sadd.s32 %s237, 1
      %p241 = scmp.eq.s32.totalorder %s30, 1
      %p242 = scmp.ne.s32.totalorder %s237, %s239
      %p243 = scmp.eq.s32.totalorder %s30, 0
      %p244 = por %p242, %p243
      %p245 = scmp.ne.s32.totalorder %s237, %s239
      %p246 = scmp.eq.s32.totalorder %s35, 1
      %p247 = por %p245, %p246
      %p248 = scmp.ne.s32.totalorder %s239, %s240
      %p249 = scmp.eq.s32.totalorder %s35, 0
      %p250 = por %p248, %p249
      %p251 = scmp.ne.s32.totalorder %s239, %s240
      %p252 = scmp.eq.s32.totalorder %s36, 1
      %p253 = por %p251, %p252
      %p255 = scmp.ne.s32.totalorder %s240, %s254
      %p256 = scmp.eq.s32.totalorder %s36, 0
      %p257 = por %p255, %p256
      %s259 = sadd.s32 %s258, 1
      %p262 = scmp.eq.s32.totalorder %s30, 1
      %p263 = scmp.ne.s32.totalorder %s258, %s260
      %p264 = scmp.eq.s32.totalorder %s30, 0
      %p265 = por %p263, %p264
      %p266 = scmp.ne.s32.totalorder %s258, %s260
      %p267 = scmp.eq.s32.totalorder %s35, 1
      %p268 = por %p266, %p267
      %p269 = scmp.ne.s32.totalorder %s260, %s261
      %p270 = scmp.eq.s32.totalorder %s35, 0
      %p271 = por %p269, %p270
      %p272 = scmp.ne.s32.totalorder %s260, %s261
      %p273 = scmp.eq.s32.totalorder %s36, 1
      %p274 = por %p272, %p273
      %p276 = scmp.ne.s32.totalorder %s261, %s275
      %p277 = scmp.eq.s32.totalorder %s36, 0
      %p278 = por %p276, %p277
      %s280 = sadd.s32 %s279, 1
      %p283 = scmp.eq.s32.totalorder %s30, 1
      %p284 = scmp.ne.s32.totalorder %s279, %s281
      %p285 = scmp.eq.s32.totalorder %s30, 0
      %p286 = por %p284, %p285
      %p287 = scmp.ne.s32.totalorder %s279, %s281
      %p288 = scmp.eq.s32.totalorder %s35, 1
      %p289 = por %p287, %p288
      %p290 = scmp.ne.s32.totalorder %s281, %s282
      %p291 = scmp.eq.s32.totalorder %s35, 0
      %p292 = por %p290, %p291
      %p293 = scmp.ne.s32.totalorder %s281, %s282
      %p294 = scmp.eq.s32.totalorder %s36, 1
      %p295 = por %p293, %p294
      %p297 = scmp.ne.s32.totalorder %s282, %s296
      %p298 = scmp.eq.s32.totalorder %s36, 0
      %p299 = por %p297, %p298
      %s301 = sadd.s32 %s300, 1
      %p304 = scmp.eq.s32.totalorder %s30, 1
      %p305 = scmp.ne.s32.totalorder %s300, %s302
      %p306 = scmp.eq.s32.totalorder %s30, 0
      %p307 = por %p305, %p306
      %p308 = scmp.ne.s32.totalorder %s300, %s302
      %p309 = scmp.eq.s32.totalorder %s35, 1
      %p310 = por %p308, %p309
      %p311 = scmp.ne.s32.totalorder %s302, %s303
      %p312 = scmp.eq.s32.totalorder %s35, 0
      %p313 = por %p311, %p312
      %p314 = scmp.ne.s32.totalorder %s302, %s303
      %p315 = scmp.eq.s32.totalorder %s36, 1
      %p316 = por %p314, %p315
      %p318 = scmp.ne.s32.totalorder %s303, %s317
      %p319 = scmp.eq.s32.totalorder %s36, 0
      %p320 = por %p318, %p319
      %s321 = ssub.s32 %s30, %s37
      %p322 = scmp.eq.s32.totalorder %s321, 0
      %s324 = sadd.s32 %s323, 1
      %s325 = scalar_select %p322, %s323, %s324
      %p328 = pneg %p322
      %p329 = scmp.eq.s32.totalorder %s30, 1
      %p330 = por %p328, %p329
      %p331 = scmp.ne.s32.totalorder %s323, %s326
      %p332 = scmp.eq.s32.totalorder %s30, 0
      %p333 = por %p331, %p332
      %p334 = scmp.ne.s32.totalorder %s323, %s326
      %p335 = scmp.eq.s32.totalorder %s35, 1
      %p336 = por %p334, %p335
      %p337 = scmp.ne.s32.totalorder %s326, %s327
      %p338 = scmp.eq.s32.totalorder %s35, 0
      %p339 = por %p337, %p338
      %p340 = scmp.ne.s32.totalorder %s326, %s327
      %p341 = scmp.eq.s32.totalorder %s36, 1
      %p342 = por %p340, %p341
      %p344 = scmp.ne.s32.totalorder %s327, %s343
      %p345 = scmp.eq.s32.totalorder %s36, 0
      %p346 = por %p344, %p345
      %s347 = ssub.s32 %s30, %s37
      %p348 = scmp.eq.s32.totalorder %s347, 0
      %s350 = sadd.s32 %s349, 1
      %s351 = scalar_select %p348, %s349, %s350
      %p354 = pneg %p348
      %p355 = scmp.eq.s32.totalorder %s30, 1
      %p356 = por %p354, %p355
      %p357 = scmp.ne.s32.totalorder %s349, %s352
      %p358 = scmp.eq.s32.totalorder %s30, 0
      %p359 = por %p357, %p358
      %p360 = scmp.ne.s32.totalorder %s349, %s352
      %p361 = scmp.eq.s32.totalorder %s35, 1
      %p362 = por %p360, %p361
      %p363 = scmp.ne.s32.totalorder %s352, %s353
      %p364 = scmp.eq.s32.totalorder %s35, 0
      %p365 = por %p363, %p364
      %p366 = scmp.ne.s32.totalorder %s352, %s353
      %p367 = scmp.eq.s32.totalorder %s36, 1
      %p368 = por %p366, %p367
      %p370 = scmp.ne.s32.totalorder %s353, %s369
      %p371 = scmp.eq.s32.totalorder %s36, 0
      %p372 = por %p370, %p371
      %p373 = scmp.le.s32.totalorder 1, %s30
      %p374 = scmp.lt.s32.totalorder %s30, 3
      %p375 = pnand %p373, %p374
      %p376 = pneg %p375
      // Predicated region
      $region9: #{tpu_custom_call.1} parent=5 // pred_check
        _
      $region10: #{tpu_custom_call.1} parent=5 // pred_check_branch
        %378 = sbr.rel (%p375) target = $region12
      $region11: #{tpu_custom_call.1} parent=5 // pred_region
        %s379 = ssub.s32 %s30, 1
        // Predicated region
        $region13: #{tpu_custom_call.1} parent=11 // pred_check
          %p380 = pneg %p103
        $region14: #{tpu_custom_call.1} parent=11 // pred_check_branch
          %382 = sbr.rel (%p380) target = $region16
        $region15: #{tpu_custom_call.1} parent=11 // pred_region
          _
        $region16: #{tpu_custom_call.1} parent=11 // pred_fallthru
          _
        // Predicated region
        $region17: #{tpu_custom_call.1} parent=11 // pred_check
          %p383 = pneg %p124
        $region18: #{tpu_custom_call.1} parent=11 // pred_check_branch
          %385 = sbr.rel (%p383) target = $region20
        $region19: #{tpu_custom_call.1} parent=11 // pred_region
          _
        $region20: #{tpu_custom_call.1} parent=11 // pred_fallthru
          _
        // Predicated region
        $region21: #{tpu_custom_call.1} parent=11 // pred_check
          %p386 = pneg %p145
        $region22: #{tpu_custom_call.1} parent=11 // pred_check_branch
          %388 = sbr.rel (%p386) target = $region24
        $region23: #{tpu_custom_call.1} parent=11 // pred_region
          _
        $region24: #{tpu_custom_call.1} parent=11 // pred_fallthru
          _
        // Predicated region
        $region25: #{tpu_custom_call.1} parent=11 // pred_check
          %p389 = pneg %p166
        $region26: #{tpu_custom_call.1} parent=11 // pred_check_branch
          %391 = sbr.rel (%p389) target = $region28
        $region27: #{tpu_custom_call.1} parent=11 // pred_region
          _
        $region28: #{tpu_custom_call.1} parent=11 // pred_fallthru
          _
        // Predicated region
        $region29: #{tpu_custom_call.1} parent=11 // pred_check
          %p392 = pneg %p187
        $region30: #{tpu_custom_call.1} parent=11 // pred_check_branch
          %394 = sbr.rel (%p392) target = $region32
        $region31: #{tpu_custom_call.1} parent=11 // pred_region
          _
        $region32: #{tpu_custom_call.1} parent=11 // pred_fallthru
          _
        // Predicated region
        $region33: #{tpu_custom_call.1} parent=11 // pred_check
          %p395 = pneg %p208
        $region34: #{tpu_custom_call.1} parent=11 // pred_check_branch
          %397 = sbr.rel (%p395) target = $region36
        $region35: #{tpu_custom_call.1} parent=11 // pred_region
          _
        $region36: #{tpu_custom_call.1} parent=11 // pred_fallthru
          _
        // Predicated region
        $region37: #{tpu_custom_call.1} parent=11 // pred_check
          %p398 = pneg %p229
        $region38: #{tpu_custom_call.1} parent=11 // pred_check_branch
          %400 = sbr.rel (%p398) target = $region40
        $region39: #{tpu_custom_call.1} parent=11 // pred_region
          _
        $region40: #{tpu_custom_call.1} parent=11 // pred_fallthru
          _
        // Predicated region
        $region41: #{tpu_custom_call.1} parent=11 // pred_check
          %p401 = pneg %p250
        $region42: #{tpu_custom_call.1} parent=11 // pred_check_branch
          %403 = sbr.rel (%p401) target = $region44
        $region43: #{tpu_custom_call.1} parent=11 // pred_region
          _
        $region44: #{tpu_custom_call.1} parent=11 // pred_fallthru
          _
        // Predicated region
        $region45: #{tpu_custom_call.1} parent=11 // pred_check
          %p404 = pneg %p271
        $region46: #{tpu_custom_call.1} parent=11 // pred_check_branch
          %406 = sbr.rel (%p404) target = $region48
        $region47: #{tpu_custom_call.1} parent=11 // pred_region
          _
        $region48: #{tpu_custom_call.1} parent=11 // pred_fallthru
          _
        // Predicated region
        $region49: #{tpu_custom_call.1} parent=11 // pred_check
          %p407 = pneg %p292
        $region50: #{tpu_custom_call.1} parent=11 // pred_check_branch
          %409 = sbr.rel (%p407) target = $region52
        $region51: #{tpu_custom_call.1} parent=11 // pred_region
          _
        $region52: #{tpu_custom_call.1} parent=11 // pred_fallthru
          _
        // Predicated region
        $region53: #{tpu_custom_call.1} parent=11 // pred_check
          %p410 = pneg %p313
        $region54: #{tpu_custom_call.1} parent=11 // pred_check_branch
          %412 = sbr.rel (%p410) target = $region56
        $region55: #{tpu_custom_call.1} parent=11 // pred_region
          _
        $region56: #{tpu_custom_call.1} parent=11 // pred_fallthru
          _
      $region12: #{tpu_custom_call.1} parent=5 // pred_fallthru
        _
      %p413 = scmp.lt.s32.totalorder %s30, 2
      // Predicated region
      $region57: #{tpu_custom_call.1} parent=5 // pred_check
        %p414 = pneg %p413
      $region58: #{tpu_custom_call.1} parent=5 // pred_check_branch
        %416 = sbr.rel (%p414) target = $region60
      $region59: #{tpu_custom_call.1} parent=5 // pred_region
        // Predicated region
        $region61: #{tpu_custom_call.1} parent=59 // pred_check
          %p417 = pneg %p50
        $region62: #{tpu_custom_call.1} parent=59 // pred_check_branch
          %419 = sbr.rel (%p417) target = $region64
        $region63: #{tpu_custom_call.1} parent=59 // pred_region
          %s420 = sand.u32 %s40, 1
          %s421 = scalar_lea.sflag [#allocation3], %s420
          %s422 = sand.u32 %s40, 1
          %s423 = smul.addr %s422, 320
          %s424 = scalar_lea.vmem [#allocation2], %s423
          %s425 = smul.u32 10, %s30
          %427 = vsyncadd %s421, 0
          %s428 = smul.addr %s425, 4
          %s429 = smul.addr %s428, 8
          %s430 = scalar_lea.hbm %s0, %s429
          %s431 = sshll.u32 %s430, 4
          %s432 = int_to_ptr.hbm [resolvable:$true] %s431
          %s433 = sshll.u32 %s424, 4
          %s434 = int_to_ptr.vmem [resolvable:$true] %s433
          %439 = dma.hbm_to_vmem [thread:$0]  %s432, 5120, %s434, %s421, 128, 128, 8
        $region64: #{tpu_custom_call.1} parent=59 // pred_fallthru
          _
        // Predicated region
        $region65: #{tpu_custom_call.1} parent=59 // pred_check
          %p440 = pneg %p76
        $region66: #{tpu_custom_call.1} parent=59 // pred_check_branch
          %442 = sbr.rel (%p440) target = $region68
        $region67: #{tpu_custom_call.1} parent=59 // pred_region
          %s443 = smul.u32 10, %s30
          %p444 = scmp.lt.s32.totalorder %s443, 19
          %s445 = scalar_select %p444, %s443, 19
          %s446 = scalar_lea.vmem %s1, %s445
          %s447 = smul.u32 10, %s30
        $region68: #{tpu_custom_call.1} parent=59 // pred_fallthru
          _
      $region60: #{tpu_custom_call.1} parent=5 // pred_fallthru
        _
      %p448 = scmp.le.s32.totalorder 1, %s30
      %p449 = scmp.lt.s32.totalorder %s30, 3
      %p450 = pnand %p448, %p449
      %p451 = pneg %p450
      // Predicated region
      $region69: #{tpu_custom_call.1} parent=5 // pred_check
        _
      $region70: #{tpu_custom_call.1} parent=5 // pred_check_branch
        %453 = sbr.rel (%p450) target = $region72
      $region71: #{tpu_custom_call.1} parent=5 // pred_region
        %s454 = ssub.s32 %s30, 1
        %s455 = sand.u32 %s43, 1
        %s456 = scalar_lea.sflag [#allocation3], %s455
        %s457 = sand.u32 %s43, 1
        %s458 = smul.addr %s457, 320
        %s459 = scalar_lea.vmem [#allocation2], %s458
        // Predicated region
        $region73: #{tpu_custom_call.1} parent=71 // pred_check
          %p460 = pneg %p56
        $region74: #{tpu_custom_call.1} parent=71 // pred_check_branch
          %462 = sbr.rel (%p460) target = $region76
        $region75: #{tpu_custom_call.1} parent=71 // pred_region
          %464 = dma.done %s456, 5120
        $region76: #{tpu_custom_call.1} parent=71 // pred_fallthru
          _
        %s465 = sand.u32 %s43, 1
        %s466 = scalar_lea.sflag [#allocation3], %s465
        %s467 = sand.u32 %s43, 1
        %s468 = smul.addr %s467, 320
        %s469 = scalar_lea.vmem [#allocation2], %s468
        %p470 = pneg %p56
        %p471 = pneg %p53
        %s472 = smul.u32 10, %s35
        %p473 = scmp.lt.s32.totalorder %s472, 19
        %s474 = scalar_select %p473, %s472, 19
        %s475 = scalar_lea.vmem %s1, %s474
        %p476 = pneg %p82
        %p477 = pneg %p79
        %p478 = pneg %p103
        %p479 = pneg %p100
        %p480 = pneg %p124
        %p481 = pneg %p121
        %p482 = pneg %p145
        %p483 = pneg %p142
        %p484 = pneg %p166
        %p485 = pneg %p163
        %p486 = pneg %p187
        %p487 = pneg %p184
        %p488 = pneg %p208
        %p489 = pneg %p205
        %p490 = pneg %p229
        %p491 = pneg %p226
        %p492 = pneg %p250
        %p493 = pneg %p247
        %p494 = pneg %p271
        %p495 = pneg %p268
        %p496 = pneg %p292
        %p497 = pneg %p289
        %p498 = pneg %p313
        %p499 = pneg %p310
        %p500 = pneg %p339
        %p501 = pneg %p336
        %s502 = sand.u32 %s326, 1
        %s503 = scalar_lea.sflag [#allocation4], %s502
        %s504 = sand.u32 %s326, 1
        %s505 = smul.addr %s504, 320
        %s506 = scalar_lea.vmem [#allocation5], %s505
        %p507 = pneg %p365
        %p508 = pneg %p362
        %s509 = sand.u32 %s352, 1
        %s510 = scalar_lea.sflag [#allocation7], %s509
        %s511 = sand.u32 %s352, 1
        %s512 = smul.addr %s511, 320
        %s513 = scalar_lea.vmem [#allocation6], %s512
        %s514 = smul.u32 10, %s35
        %s515 = smul.u32 10, %s35
        %p516 = scmp.lt.s32.totalorder %s515, 19
        %s517 = scalar_select %p516, %s515, 19
        %s518 = scalar_lea.vmem %s1, %s517
        %s519 = smul.u32 10, %s35
        %s520 = smul.u32 10, %s35
        %s521 = smul.u32 10, %s35
        %v523 = vld [vmem:[%s459] sm:$0xff]
        %v524 = vld [vmem:[%s459 + $0x8] sm:$0xff]
        %v525 = vld [vmem:[%s459 + $0x10] sm:$0xff]
        %v526 = vld [vmem:[%s459 + $0x18] sm:$0xff]
        %v527 = vld [vmem:[%s459 + $0x20] sm:$0xff]
        %v528 = vld [vmem:[%s459 + $0x28] sm:$0xff]
        %v529 = vld [vmem:[%s459 + $0x30] sm:$0xff]
        %v530 = vld [vmem:[%s459 + $0x38] sm:$0xff]
        %v531 = vld [vmem:[%s459 + $0x40] sm:$0xff]
        %v532 = vld [vmem:[%s459 + $0x48] sm:$0xff]
        %v533 = vld [vmem:[%s459 + $0x50] sm:$0xff]
        %v534 = vld [vmem:[%s459 + $0x58] sm:$0xff]
        %v535 = vld [vmem:[%s459 + $0x60] sm:$0xff]
        %v536 = vld [vmem:[%s459 + $0x68] sm:$0xff]
        %v537 = vld [vmem:[%s459 + $0x70] sm:$0xff]
        %v538 = vld [vmem:[%s459 + $0x78] sm:$0xff]
        %v539 = vld [vmem:[%s459 + $0x80] sm:$0xff]
        %v540 = vld [vmem:[%s459 + $0x88] sm:$0xff]
        %v541 = vld [vmem:[%s459 + $0x90] sm:$0xff]
        %v542 = vld [vmem:[%s459 + $0x98] sm:$0xff]
        %v543 = vld [vmem:[%s459 + $0xa0] sm:$0xff]
        %v544 = vld [vmem:[%s459 + $0xa8] sm:$0xff]
        %v545 = vld [vmem:[%s459 + $0xb0] sm:$0xff]
        %v546 = vld [vmem:[%s459 + $0xb8] sm:$0xff]
        %v547 = vld [vmem:[%s459 + $0xc0] sm:$0xff]
        %v548 = vld [vmem:[%s459 + $0xc8] sm:$0xff]
        %v549 = vld [vmem:[%s459 + $0xd0] sm:$0xff]
        %v550 = vld [vmem:[%s459 + $0xd8] sm:$0xff]
        %v551 = vld [vmem:[%s459 + $0xe0] sm:$0xff]
        %v552 = vld [vmem:[%s459 + $0xe8] sm:$0xff]
        %v553 = vld [vmem:[%s459 + $0xf0] sm:$0xff]
        %v554 = vld [vmem:[%s459 + $0xf8] sm:$0xff]
        %v555 = vld [vmem:[%s459 + $0x100] sm:$0xff]
        %v556 = vld [vmem:[%s459 + $0x108] sm:$0xff]
        %v557 = vld [vmem:[%s459 + $0x110] sm:$0xff]
        %v558 = vld [vmem:[%s459 + $0x118] sm:$0xff]
        %v559 = vld [vmem:[%s459 + $0x120] sm:$0xff]
        %v560 = vld [vmem:[%s459 + $0x128] sm:$0xff]
        %v561 = vld [vmem:[%s459 + $0x130] sm:$0xff]
        %v562 = vld [vmem:[%s459 + $0x138] sm:$0xff]
        %v563 = vpack.c.bf16 %v524, %v523
        %v564 = vpack.c.bf16 %v526, %v525
        %v565 = vpack.c.bf16 %v528, %v527
        %v566 = vpack.c.bf16 %v530, %v529
        %v567 = vpack.c.bf16 %v532, %v531
        %v568 = vpack.c.bf16 %v534, %v533
        %v569 = vpack.c.bf16 %v536, %v535
        %v570 = vpack.c.bf16 %v538, %v537
        %v571 = vpack.c.bf16 %v540, %v539
        %v572 = vpack.c.bf16 %v542, %v541
        %v573 = vpack.c.bf16 %v544, %v543
        %v574 = vpack.c.bf16 %v546, %v545
        %v575 = vpack.c.bf16 %v548, %v547
        %v576 = vpack.c.bf16 %v550, %v549
        %v577 = vpack.c.bf16 %v552, %v551
        %v578 = vpack.c.bf16 %v554, %v553
        %v579 = vpack.c.bf16 %v556, %v555
        %v580 = vpack.c.bf16 %v558, %v557
        %v581 = vpack.c.bf16 %v560, %v559
        %v582 = vpack.c.bf16 %v562, %v561
        %v583 = vld [vmem:[%s7] sm:$0xf]
        %v584 = vld [vmem:[%s7 + $0x4] sm:$0xf]
        %v585 = vld [vmem:[%s7 + $0x8] sm:$0xf]
        %v586 = vld [vmem:[%s7 + $0xc] sm:$0xf]
        %v587 = vld [vmem:[%s8] sm:$0x1]
        %v589 = vperm.slane %v587, 0
        %v595 = vunpack.c.l.b16 %v583
        %v596 = vunpack.c.l.b16 %v584
        %v597 = vunpack.c.l.b16 %v585
        %v598 = vunpack.c.l.b16 %v586
        %v599 = vpack.c.b16 %v596, %v595
        %v600 = vpack.c.b16 %v598, %v597
        %vm603 = vcmask 261120
        %v605 = vsel %vm603, %v563, 0
        %v608 = vsel %vm603, %v564, 0
        %v611 = vsel %vm603, %v565, 0
        %v614 = vsel %vm603, %v566, 0
        %v617 = vsel %vm603, %v567, 0
        %v620 = vsel %vm603, %v568, 0
        %v623 = vsel %vm603, %v569, 0
        %v626 = vsel %vm603, %v570, 0
        %v629 = vsel %vm603, %v571, 0
        %v632 = vsel %vm603, %v572, 0
        %v635 = vsel %vm603, %v573, 0
        %v638 = vsel %vm603, %v574, 0
        %v641 = vsel %vm603, %v575, 0
        %v644 = vsel %vm603, %v576, 0
        %v647 = vsel %vm603, %v577, 0
        %v650 = vsel %vm603, %v578, 0
        %v653 = vsel %vm603, %v579, 0
        %v656 = vsel %vm603, %v580, 0
        %v659 = vsel %vm603, %v581, 0
        %v662 = vsel %vm603, %v582, 0
        %664 = vmatpush.bf16.msra.mxu0 0
        %665 = vmatpush.bf16.msra.mxu0 0
        %666 = vmatpush.bf16.msra.mxu0 0
        %667 = vmatpush.bf16.msra.mxu0 0
        %668 = vmatpush.bf16.msra.mxu0 0
        %669 = vmatpush.bf16.msra.mxu0 0
        %670 = vmatpush.bf16.msra.mxu0 %v600
        %671 = vmatpush.bf16.msra.mxu0 %v599
        %672 = vmatmul.bf16.gmra.mxu0 %v605
        %v673 = vpop.f32.mrf.mxu0
        %v674 = vadd.f32 %v589, %v673
        %v675 = vpop.f32.mrf.mxu0
        %v676 = vadd.f32 %v589, %v675
        %677 = vmatmul.bf16.gmra.mxu0 %v608
        %v678 = vpop.f32.mrf.mxu0
        %v679 = vadd.f32 %v589, %v678
        %v680 = vpop.f32.mrf.mxu0
        %v681 = vadd.f32 %v589, %v680
        %682 = vmatmul.bf16.gmra.mxu0 %v611
        %v683 = vpop.f32.mrf.mxu0
        %v684 = vadd.f32 %v589, %v683
        %v685 = vpop.f32.mrf.mxu0
        %v686 = vadd.f32 %v589, %v685
        %687 = vmatmul.bf16.gmra.mxu0 %v614
        %v688 = vpop.f32.mrf.mxu0
        %v689 = vadd.f32 %v589, %v688
        %v690 = vpop.f32.mrf.mxu0
        %v691 = vadd.f32 %v589, %v690
        %692 = vmatmul.bf16.gmra.mxu0 %v617
        %v693 = vpop.f32.mrf.mxu0
        %v694 = vadd.f32 %v589, %v693
        %v695 = vpop.f32.mrf.mxu0
        %v696 = vadd.f32 %v589, %v695
        %697 = vmatmul.bf16.gmra.mxu0 %v620
        %v698 = vpop.f32.mrf.mxu0
        %v699 = vadd.f32 %v589, %v698
        %v700 = vpop.f32.mrf.mxu0
        %v701 = vadd.f32 %v589, %v700
        %702 = vmatmul.bf16.gmra.mxu0 %v623
        %v703 = vpop.f32.mrf.mxu0
        %v704 = vadd.f32 %v589, %v703
        %v705 = vpop.f32.mrf.mxu0
        %v706 = vadd.f32 %v589, %v705
        %707 = vmatmul.bf16.gmra.mxu0 %v626
        %v708 = vpop.f32.mrf.mxu0
        %v709 = vadd.f32 %v589, %v708
        %v710 = vpop.f32.mrf.mxu0
        %v711 = vadd.f32 %v589, %v710
        %712 = vmatmul.bf16.gmra.mxu0 %v629
        %v713 = vpop.f32.mrf.mxu0
        %v714 = vadd.f32 %v589, %v713
        %v715 = vpop.f32.mrf.mxu0
        %v716 = vadd.f32 %v589, %v715
        %717 = vmatmul.bf16.gmra.mxu0 %v632
        %v718 = vpop.f32.mrf.mxu0
        %v719 = vadd.f32 %v589, %v718
        %v720 = vpop.f32.mrf.mxu0
        %v721 = vadd.f32 %v589, %v720
        %722 = vmatmul.bf16.gmra.mxu0 %v635
        %v723 = vpop.f32.mrf.mxu0
        %v724 = vadd.f32 %v589, %v723
        %v725 = vpop.f32.mrf.mxu0
        %v726 = vadd.f32 %v589, %v725
        %727 = vmatmul.bf16.gmra.mxu0 %v638
        %v728 = vpop.f32.mrf.mxu0
        %v729 = vadd.f32 %v589, %v728
        %v730 = vpop.f32.mrf.mxu0
        %v731 = vadd.f32 %v589, %v730
        %732 = vmatmul.bf16.gmra.mxu0 %v641
        %v733 = vpop.f32.mrf.mxu0
        %v734 = vadd.f32 %v589, %v733
        %v735 = vpop.f32.mrf.mxu0
        %v736 = vadd.f32 %v589, %v735
        %737 = vmatmul.bf16.gmra.mxu0 %v644
        %v738 = vpop.f32.mrf.mxu0
        %v739 = vadd.f32 %v589, %v738
        %v740 = vpop.f32.mrf.mxu0
        %v741 = vadd.f32 %v589, %v740
        %742 = vmatmul.bf16.gmra.mxu0 %v647
        %v743 = vpop.f32.mrf.mxu0
        %v744 = vadd.f32 %v589, %v743
        %v745 = vpop.f32.mrf.mxu0
        %v746 = vadd.f32 %v589, %v745
        %747 = vmatmul.bf16.gmra.mxu0 %v650
        %v748 = vpop.f32.mrf.mxu0
        %v749 = vadd.f32 %v589, %v748
        %v750 = vpop.f32.mrf.mxu0
        %v751 = vadd.f32 %v589, %v750
        %752 = vmatmul.bf16.gmra.mxu0 %v653
        %v753 = vpop.f32.mrf.mxu0
        %v754 = vadd.f32 %v589, %v753
        %v755 = vpop.f32.mrf.mxu0
        %v756 = vadd.f32 %v589, %v755
        %757 = vmatmul.bf16.gmra.mxu0 %v656
        %v758 = vpop.f32.mrf.mxu0
        %v759 = vadd.f32 %v589, %v758
        %v760 = vpop.f32.mrf.mxu0
        %v761 = vadd.f32 %v589, %v760
        %762 = vmatmul.bf16.gmra.mxu0 %v659
        %v763 = vpop.f32.mrf.mxu0
        %v764 = vadd.f32 %v589, %v763
        %v765 = vpop.f32.mrf.mxu0
        %v766 = vadd.f32 %v589, %v765
        %767 = vmatmul.bf16.gmra.mxu0 %v662
        %v768 = vpop.f32.mrf.mxu0
        %v769 = vadd.f32 %v589, %v768
        %v770 = vpop.f32.mrf.mxu0
        %v771 = vadd.f32 %v589, %v770
        %772 = vdwg.mxu0
        %v773 = vpack.c.bf16 %v674, %v674
        %v774 = vpack.c.bf16 %v676, %v676
        %v775 = vpack.c.bf16 %v679, %v679
        %v776 = vpack.c.bf16 %v681, %v681
        %v777 = vpack.c.bf16 %v684, %v684
        %v778 = vpack.c.bf16 %v686, %v686
        %v779 = vpack.c.bf16 %v689, %v689
        %v780 = vpack.c.bf16 %v691, %v691
        %v781 = vpack.c.bf16 %v694, %v694
        %v782 = vpack.c.bf16 %v696, %v696
        %v783 = vpack.c.bf16 %v699, %v699
        %v784 = vpack.c.bf16 %v701, %v701
        %v785 = vpack.c.bf16 %v704, %v704
        %v786 = vpack.c.bf16 %v706, %v706
        %v787 = vpack.c.bf16 %v709, %v709
        %v788 = vpack.c.bf16 %v711, %v711
        %v789 = vpack.c.bf16 %v714, %v714
        %v790 = vpack.c.bf16 %v716, %v716
        %v791 = vpack.c.bf16 %v719, %v719
        %v792 = vpack.c.bf16 %v721, %v721
        %v793 = vpack.c.bf16 %v724, %v724
        %v794 = vpack.c.bf16 %v726, %v726
        %v795 = vpack.c.bf16 %v729, %v729
        %v796 = vpack.c.bf16 %v731, %v731
        %v797 = vpack.c.bf16 %v734, %v734
        %v798 = vpack.c.bf16 %v736, %v736
        %v799 = vpack.c.bf16 %v739, %v739
        %v800 = vpack.c.bf16 %v741, %v741
        %v801 = vpack.c.bf16 %v744, %v744
        %v802 = vpack.c.bf16 %v746, %v746
        %v803 = vpack.c.bf16 %v749, %v749
        %v804 = vpack.c.bf16 %v751, %v751
        %v805 = vpack.c.bf16 %v754, %v754
        %v806 = vpack.c.bf16 %v756, %v756
        %v807 = vpack.c.bf16 %v759, %v759
        %v808 = vpack.c.bf16 %v761, %v761
        %v809 = vpack.c.bf16 %v764, %v764
        %v810 = vpack.c.bf16 %v766, %v766
        %v811 = vpack.c.bf16 %v769, %v769
        %v812 = vpack.c.bf16 %v771, %v771
        %v813 = vld [vmem:[%s4] sm:$0x3]
        %v815 = vrot.slane %v813, 1
        %v816 = vrot.slane %v813, 2
        %v817 = vrot.slane %v813, 3
        %vm818 = vcmask 1040384
        %v821 = vsel %vm818, %v813, %v815
        %vm822 = vcmask 1042434
        %v825 = vsel %vm822, %v816, %v817
        %vm826 = vcmask 1041408
        %v827 = vsel %vm826, %v821, %v825
        %vm829 = vcmask 1041409
        %v830 = vsel %vm829, %v813, %v815
        %vm831 = vcmask 1043459
        %v832 = vsel %vm831, %v816, %v817
        %vm833 = vcmask 1042433
        %v834 = vsel %vm833, %v830, %v832
        %v836 = vrot.slane %v834, 1
        %v837 = vunpack.i.l.s16 %v827
        %v838 = vunpack.i.h.s16 %v827
        %v839 = vunpack.i.l.s16 %v836
        %v840 = vunpack.i.h.s16 %v836
        %v841 = vpack.i.b16 %v837, %v837
        %v842 = vpack.i.b16 %v838, %v838
        %v843 = vpack.i.b16 %v839, %v839
        %v844 = vpack.i.b16 %v840, %v840
        %v845 = vperm.slane %v841, 0
        %v846 = vperm.slane %v842, 0
        %v847 = vperm.slane %v843, 0
        %v848 = vperm.slane %v844, 0
        %v850 = vpack.i.b16 %v845, %v845
        %v852 = vperm.slane %v850, 0
        %v854 = vpack.i.b16 %v846, %v846
        %v856 = vperm.slane %v854, 0
        %v858 = vpack.i.b16 %v847, %v847
        %v860 = vperm.slane %v858, 0
        %v862 = vpack.i.b16 %v848, %v848
        %v864 = vperm.slane %v862, 0
        %v865 = vunpack.c.l.bf16 %v773
        %v866 = vunpack.c.l.bf16 %v774
        %v867 = vunpack.c.l.bf16 %v775
        %v868 = vunpack.c.l.bf16 %v776
        %v869 = vunpack.c.l.bf16 %v777
        %v870 = vunpack.c.l.bf16 %v778
        %v871 = vunpack.c.l.bf16 %v779
        %v872 = vunpack.c.l.bf16 %v780
        %v873 = vunpack.c.l.bf16 %v781
        %v874 = vunpack.c.l.bf16 %v782
        %v875 = vunpack.c.l.bf16 %v783
        %v876 = vunpack.c.l.bf16 %v784
        %v877 = vunpack.c.l.bf16 %v785
        %v878 = vunpack.c.l.bf16 %v786
        %v879 = vunpack.c.l.bf16 %v787
        %v880 = vunpack.c.l.bf16 %v788
        %v881 = vunpack.c.l.bf16 %v789
        %v882 = vunpack.c.l.bf16 %v790
        %v883 = vunpack.c.l.bf16 %v791
        %v884 = vunpack.c.l.bf16 %v792
        %v885 = vunpack.c.l.bf16 %v793
        %v886 = vunpack.c.l.bf16 %v794
        %v887 = vunpack.c.l.bf16 %v795
        %v888 = vunpack.c.l.bf16 %v796
        %v889 = vunpack.c.l.bf16 %v797
        %v890 = vunpack.c.l.bf16 %v798
        %v891 = vunpack.c.l.bf16 %v799
        %v892 = vunpack.c.l.bf16 %v800
        %v893 = vunpack.c.l.bf16 %v801
        %v894 = vunpack.c.l.bf16 %v802
        %v895 = vunpack.c.l.bf16 %v803
        %v896 = vunpack.c.l.bf16 %v804
        %v897 = vunpack.c.l.bf16 %v805
        %v898 = vunpack.c.l.bf16 %v806
        %v899 = vunpack.c.l.bf16 %v807
        %v900 = vunpack.c.l.bf16 %v808
        %v901 = vunpack.c.l.bf16 %v809
        %v902 = vunpack.c.l.bf16 %v810
        %v903 = vunpack.c.l.bf16 %v811
        %v904 = vunpack.c.l.bf16 %v812
        %v905 = vunpack.c.l.bf16 %v852
        %v906 = vunpack.c.l.bf16 %v856
        %v907 = vunpack.c.l.bf16 %v860
        %v908 = vunpack.c.l.bf16 %v864
        %913 = vrot.lane.b32.xlu0 %v905, 32
        %v914 = vpop.permute.xlu0 %913
        %915 = vrot.lane.b32.xlu0 %v906, 32
        %v916 = vpop.permute.xlu0 %915
        %917 = vrot.lane.b32.xlu0 %v907, 32
        %v918 = vpop.permute.xlu0 %917
        %919 = vrot.lane.b32.xlu0 %v908, 32
        %v920 = vpop.permute.xlu0 %919
        %v925 = vmul.f32 %v865, %v914
        %v926 = vmul.f32 %v866, %v914
        %v927 = vmul.f32 %v867, %v914
        %v928 = vmul.f32 %v868, %v914
        %v929 = vmul.f32 %v865, %v916
        %v930 = vmul.f32 %v866, %v916
        %v931 = vmul.f32 %v867, %v916
        %v932 = vmul.f32 %v868, %v916
        %v933 = vmul.f32 %v865, %v918
        %v934 = vmul.f32 %v866, %v918
        %v935 = vmul.f32 %v867, %v918
        %v936 = vmul.f32 %v868, %v918
        %v937 = vmul.f32 %v865, %v920
        %v938 = vmul.f32 %v866, %v920
        %v939 = vmul.f32 %v867, %v920
        %v940 = vmul.f32 %v868, %v920
        %v941 = vmul.f32 %v869, %v914
        %v942 = vmul.f32 %v870, %v914
        %v943 = vmul.f32 %v871, %v914
        %v944 = vmul.f32 %v872, %v914
        %v945 = vmul.f32 %v869, %v916
        %v946 = vmul.f32 %v870, %v916
        %v947 = vmul.f32 %v871, %v916
        %v948 = vmul.f32 %v872, %v916
        %v949 = vmul.f32 %v869, %v918
        %v950 = vmul.f32 %v870, %v918
        %v951 = vmul.f32 %v871, %v918
        %v952 = vmul.f32 %v872, %v918
        %v953 = vmul.f32 %v869, %v920
        %v954 = vmul.f32 %v870, %v920
        %v955 = vmul.f32 %v871, %v920
        %v956 = vmul.f32 %v872, %v920
        %v957 = vmul.f32 %v873, %v914
        %v958 = vmul.f32 %v874, %v914
        %v959 = vmul.f32 %v875, %v914
        %v960 = vmul.f32 %v876, %v914
        %v961 = vmul.f32 %v873, %v916
        %v962 = vmul.f32 %v874, %v916
        %v963 = vmul.f32 %v875, %v916
        %v964 = vmul.f32 %v876, %v916
        %v965 = vmul.f32 %v873, %v918
        %v966 = vmul.f32 %v874, %v918
        %v967 = vmul.f32 %v875, %v918
        %v968 = vmul.f32 %v876, %v918
        %v969 = vmul.f32 %v873, %v920
        %v970 = vmul.f32 %v874, %v920
        %v971 = vmul.f32 %v875, %v920
        %v972 = vmul.f32 %v876, %v920
        %v973 = vmul.f32 %v877, %v914
        %v974 = vmul.f32 %v878, %v914
        %v975 = vmul.f32 %v879, %v914
        %v976 = vmul.f32 %v880, %v914
        %v977 = vmul.f32 %v877, %v916
        %v978 = vmul.f32 %v878, %v916
        %v979 = vmul.f32 %v879, %v916
        %v980 = vmul.f32 %v880, %v916
        %v981 = vmul.f32 %v877, %v918
        %v982 = vmul.f32 %v878, %v918
        %v983 = vmul.f32 %v879, %v918
        %v984 = vmul.f32 %v880, %v918
        %v985 = vmul.f32 %v877, %v920
        %v986 = vmul.f32 %v878, %v920
        %v987 = vmul.f32 %v879, %v920
        %v988 = vmul.f32 %v880, %v920
        %v989 = vmul.f32 %v881, %v914
        %v990 = vmul.f32 %v882, %v914
        %v991 = vmul.f32 %v883, %v914
        %v992 = vmul.f32 %v884, %v914
        %v993 = vmul.f32 %v881, %v916
        %v994 = vmul.f32 %v882, %v916
        %v995 = vmul.f32 %v883, %v916
        %v996 = vmul.f32 %v884, %v916
        %v997 = vmul.f32 %v881, %v918
        %v998 = vmul.f32 %v882, %v918
        %v999 = vmul.f32 %v883, %v918
        %v1000 = vmul.f32 %v884, %v918
        %v1001 = vmul.f32 %v881, %v920
        %v1002 = vmul.f32 %v882, %v920
        %v1003 = vmul.f32 %v883, %v920
        %v1004 = vmul.f32 %v884, %v920
        %v1005 = vmul.f32 %v885, %v914
        %v1006 = vmul.f32 %v886, %v914
        %v1007 = vmul.f32 %v887, %v914
        %v1008 = vmul.f32 %v888, %v914
        %v1009 = vmul.f32 %v885, %v916
        %v1010 = vmul.f32 %v886, %v916
        %v1011 = vmul.f32 %v887, %v916
        %v1012 = vmul.f32 %v888, %v916
        %v1013 = vmul.f32 %v885, %v918
        %v1014 = vmul.f32 %v886, %v918
        %v1015 = vmul.f32 %v887, %v918
        %v1016 = vmul.f32 %v888, %v918
        %v1017 = vmul.f32 %v885, %v920
        %v1018 = vmul.f32 %v886, %v920
        %v1019 = vmul.f32 %v887, %v920
        %v1020 = vmul.f32 %v888, %v920
        %v1021 = vmul.f32 %v889, %v914
        %v1022 = vmul.f32 %v890, %v914
        %v1023 = vmul.f32 %v891, %v914
        %v1024 = vmul.f32 %v892, %v914
        %v1025 = vmul.f32 %v889, %v916
        %v1026 = vmul.f32 %v890, %v916
        %v1027 = vmul.f32 %v891, %v916
        %v1028 = vmul.f32 %v892, %v916
        %v1029 = vmul.f32 %v889, %v918
        %v1030 = vmul.f32 %v890, %v918
        %v1031 = vmul.f32 %v891, %v918
        %v1032 = vmul.f32 %v892, %v918
        %v1033 = vmul.f32 %v889, %v920
        %v1034 = vmul.f32 %v890, %v920
        %v1035 = vmul.f32 %v891, %v920
        %v1036 = vmul.f32 %v892, %v920
        %v1037 = vmul.f32 %v893, %v914
        %v1038 = vmul.f32 %v894, %v914
        %v1039 = vmul.f32 %v895, %v914
        %v1040 = vmul.f32 %v896, %v914
        %v1041 = vmul.f32 %v893, %v916
        %v1042 = vmul.f32 %v894, %v916
        %v1043 = vmul.f32 %v895, %v916
        %v1044 = vmul.f32 %v896, %v916
        %v1045 = vmul.f32 %v893, %v918
        %v1046 = vmul.f32 %v894, %v918
        %v1047 = vmul.f32 %v895, %v918
        %v1048 = vmul.f32 %v896, %v918
        %v1049 = vmul.f32 %v893, %v920
        %v1050 = vmul.f32 %v894, %v920
        %v1051 = vmul.f32 %v895, %v920
        %v1052 = vmul.f32 %v896, %v920
        %v1053 = vmul.f32 %v897, %v914
        %v1054 = vmul.f32 %v898, %v914
        %v1055 = vmul.f32 %v899, %v914
        %v1056 = vmul.f32 %v900, %v914
        %v1057 = vmul.f32 %v897, %v916
        %v1058 = vmul.f32 %v898, %v916
        %v1059 = vmul.f32 %v899, %v916
        %v1060 = vmul.f32 %v900, %v916
        %v1061 = vmul.f32 %v897, %v918
        %v1062 = vmul.f32 %v898, %v918
        %v1063 = vmul.f32 %v899, %v918
        %v1064 = vmul.f32 %v900, %v918
        %v1065 = vmul.f32 %v897, %v920
        %v1066 = vmul.f32 %v898, %v920
        %v1067 = vmul.f32 %v899, %v920
        %v1068 = vmul.f32 %v900, %v920
        %v1069 = vmul.f32 %v901, %v914
        %v1070 = vmul.f32 %v902, %v914
        %v1071 = vmul.f32 %v903, %v914
        %v1072 = vmul.f32 %v904, %v914
        %v1073 = vmul.f32 %v901, %v916
        %v1074 = vmul.f32 %v902, %v916
        %v1075 = vmul.f32 %v903, %v916
        %v1076 = vmul.f32 %v904, %v916
        %v1077 = vmul.f32 %v901, %v918
        %v1078 = vmul.f32 %v902, %v918
        %v1079 = vmul.f32 %v903, %v918
        %v1080 = vmul.f32 %v904, %v918
        %v1081 = vmul.f32 %v901, %v920
        %v1082 = vmul.f32 %v902, %v920
        %v1083 = vmul.f32 %v903, %v920
        %v1084 = vmul.f32 %v904, %v920
        %v1085 = vpack.c.bf16 %v925, %v925
        %v1086 = vpack.c.bf16 %v926, %v926
        %v1087 = vpack.c.bf16 %v927, %v927
        %v1088 = vpack.c.bf16 %v928, %v928
        %v1089 = vpack.c.bf16 %v929, %v929
        %v1090 = vpack.c.bf16 %v930, %v930
        %v1091 = vpack.c.bf16 %v931, %v931
        %v1092 = vpack.c.bf16 %v932, %v932
        %v1093 = vpack.c.bf16 %v933, %v933
        %v1094 = vpack.c.bf16 %v934, %v934
        %v1095 = vpack.c.bf16 %v935, %v935
        %v1096 = vpack.c.bf16 %v936, %v936
        %v1097 = vpack.c.bf16 %v937, %v937
        %v1098 = vpack.c.bf16 %v938, %v938
        %v1099 = vpack.c.bf16 %v939, %v939
        %v1100 = vpack.c.bf16 %v940, %v940
        %v1101 = vpack.c.bf16 %v941, %v941
        %v1102 = vpack.c.bf16 %v942, %v942
        %v1103 = vpack.c.bf16 %v943, %v943
        %v1104 = vpack.c.bf16 %v944, %v944
        %v1105 = vpack.c.bf16 %v945, %v945
        %v1106 = vpack.c.bf16 %v946, %v946
        %v1107 = vpack.c.bf16 %v947, %v947
        %v1108 = vpack.c.bf16 %v948, %v948
        %v1109 = vpack.c.bf16 %v949, %v949
        %v1110 = vpack.c.bf16 %v950, %v950
        %v1111 = vpack.c.bf16 %v951, %v951
        %v1112 = vpack.c.bf16 %v952, %v952
        %v1113 = vpack.c.bf16 %v953, %v953
        %v1114 = vpack.c.bf16 %v954, %v954
        %v1115 = vpack.c.bf16 %v955, %v955
        %v1116 = vpack.c.bf16 %v956, %v956
        %v1117 = vpack.c.bf16 %v957, %v957
        %v1118 = vpack.c.bf16 %v958, %v958
        %v1119 = vpack.c.bf16 %v959, %v959
        %v1120 = vpack.c.bf16 %v960, %v960
        %v1121 = vpack.c.bf16 %v961, %v961
        %v1122 = vpack.c.bf16 %v962, %v962
        %v1123 = vpack.c.bf16 %v963, %v963
        %v1124 = vpack.c.bf16 %v964, %v964
        %v1125 = vpack.c.bf16 %v965, %v965
        %v1126 = vpack.c.bf16 %v966, %v966
        %v1127 = vpack.c.bf16 %v967, %v967
        %v1128 = vpack.c.bf16 %v968, %v968
        %v1129 = vpack.c.bf16 %v969, %v969
        %v1130 = vpack.c.bf16 %v970, %v970
        %v1131 = vpack.c.bf16 %v971, %v971
        %v1132 = vpack.c.bf16 %v972, %v972
        %v1133 = vpack.c.bf16 %v973, %v973
        %v1134 = vpack.c.bf16 %v974, %v974
        %v1135 = vpack.c.bf16 %v975, %v975
        %v1136 = vpack.c.bf16 %v976, %v976
        %v1137 = vpack.c.bf16 %v977, %v977
        %v1138 = vpack.c.bf16 %v978, %v978
        %v1139 = vpack.c.bf16 %v979, %v979
        %v1140 = vpack.c.bf16 %v980, %v980
        %v1141 = vpack.c.bf16 %v981, %v981
        %v1142 = vpack.c.bf16 %v982, %v982
        %v1143 = vpack.c.bf16 %v983, %v983
        %v1144 = vpack.c.bf16 %v984, %v984
        %v1145 = vpack.c.bf16 %v985, %v985
        %v1146 = vpack.c.bf16 %v986, %v986
        %v1147 = vpack.c.bf16 %v987, %v987
        %v1148 = vpack.c.bf16 %v988, %v988
        %v1149 = vpack.c.bf16 %v989, %v989
        %v1150 = vpack.c.bf16 %v990, %v990
        %v1151 = vpack.c.bf16 %v991, %v991
        %v1152 = vpack.c.bf16 %v992, %v992
        %v1153 = vpack.c.bf16 %v993, %v993
        %v1154 = vpack.c.bf16 %v994, %v994
        %v1155 = vpack.c.bf16 %v995, %v995
        %v1156 = vpack.c.bf16 %v996, %v996
        %v1157 = vpack.c.bf16 %v997, %v997
        %v1158 = vpack.c.bf16 %v998, %v998
        %v1159 = vpack.c.bf16 %v999, %v999
        %v1160 = vpack.c.bf16 %v1000, %v1000
        %v1161 = vpack.c.bf16 %v1001, %v1001
        %v1162 = vpack.c.bf16 %v1002, %v1002
        %v1163 = vpack.c.bf16 %v1003, %v1003
        %v1164 = vpack.c.bf16 %v1004, %v1004
        %v1165 = vpack.c.bf16 %v1005, %v1005
        %v1166 = vpack.c.bf16 %v1006, %v1006
        %v1167 = vpack.c.bf16 %v1007, %v1007
        %v1168 = vpack.c.bf16 %v1008, %v1008
        %v1169 = vpack.c.bf16 %v1009, %v1009
        %v1170 = vpack.c.bf16 %v1010, %v1010
        %v1171 = vpack.c.bf16 %v1011, %v1011
        %v1172 = vpack.c.bf16 %v1012, %v1012
        %v1173 = vpack.c.bf16 %v1013, %v1013
        %v1174 = vpack.c.bf16 %v1014, %v1014
        %v1175 = vpack.c.bf16 %v1015, %v1015
        %v1176 = vpack.c.bf16 %v1016, %v1016
        %v1177 = vpack.c.bf16 %v1017, %v1017
        %v1178 = vpack.c.bf16 %v1018, %v1018
        %v1179 = vpack.c.bf16 %v1019, %v1019
        %v1180 = vpack.c.bf16 %v1020, %v1020
        %v1181 = vpack.c.bf16 %v1021, %v1021
        %v1182 = vpack.c.bf16 %v1022, %v1022
        %v1183 = vpack.c.bf16 %v1023, %v1023
        %v1184 = vpack.c.bf16 %v1024, %v1024
        %v1185 = vpack.c.bf16 %v1025, %v1025
        %v1186 = vpack.c.bf16 %v1026, %v1026
        %v1187 = vpack.c.bf16 %v1027, %v1027
        %v1188 = vpack.c.bf16 %v1028, %v1028
        %v1189 = vpack.c.bf16 %v1029, %v1029
        %v1190 = vpack.c.bf16 %v1030, %v1030
        %v1191 = vpack.c.bf16 %v1031, %v1031
        %v1192 = vpack.c.bf16 %v1032, %v1032
        %v1193 = vpack.c.bf16 %v1033, %v1033
        %v1194 = vpack.c.bf16 %v1034, %v1034
        %v1195 = vpack.c.bf16 %v1035, %v1035
        %v1196 = vpack.c.bf16 %v1036, %v1036
        %v1197 = vpack.c.bf16 %v1037, %v1037
        %v1198 = vpack.c.bf16 %v1038, %v1038
        %v1199 = vpack.c.bf16 %v1039, %v1039
        %v1200 = vpack.c.bf16 %v1040, %v1040
        %v1201 = vpack.c.bf16 %v1041, %v1041
        %v1202 = vpack.c.bf16 %v1042, %v1042
        %v1203 = vpack.c.bf16 %v1043, %v1043
        %v1204 = vpack.c.bf16 %v1044, %v1044
        %v1205 = vpack.c.bf16 %v1045, %v1045
        %v1206 = vpack.c.bf16 %v1046, %v1046
        %v1207 = vpack.c.bf16 %v1047, %v1047
        %v1208 = vpack.c.bf16 %v1048, %v1048
        %v1209 = vpack.c.bf16 %v1049, %v1049
        %v1210 = vpack.c.bf16 %v1050, %v1050
        %v1211 = vpack.c.bf16 %v1051, %v1051
        %v1212 = vpack.c.bf16 %v1052, %v1052
        %v1213 = vpack.c.bf16 %v1053, %v1053
        %v1214 = vpack.c.bf16 %v1054, %v1054
        %v1215 = vpack.c.bf16 %v1055, %v1055
        %v1216 = vpack.c.bf16 %v1056, %v1056
        %v1217 = vpack.c.bf16 %v1057, %v1057
        %v1218 = vpack.c.bf16 %v1058, %v1058
        %v1219 = vpack.c.bf16 %v1059, %v1059
        %v1220 = vpack.c.bf16 %v1060, %v1060
        %v1221 = vpack.c.bf16 %v1061, %v1061
        %v1222 = vpack.c.bf16 %v1062, %v1062
        %v1223 = vpack.c.bf16 %v1063, %v1063
        %v1224 = vpack.c.bf16 %v1064, %v1064
        %v1225 = vpack.c.bf16 %v1065, %v1065
        %v1226 = vpack.c.bf16 %v1066, %v1066
        %v1227 = vpack.c.bf16 %v1067, %v1067
        %v1228 = vpack.c.bf16 %v1068, %v1068
        %v1229 = vpack.c.bf16 %v1069, %v1069
        %v1230 = vpack.c.bf16 %v1070, %v1070
        %v1231 = vpack.c.bf16 %v1071, %v1071
        %v1232 = vpack.c.bf16 %v1072, %v1072
        %v1233 = vpack.c.bf16 %v1073, %v1073
        %v1234 = vpack.c.bf16 %v1074, %v1074
        %v1235 = vpack.c.bf16 %v1075, %v1075
        %v1236 = vpack.c.bf16 %v1076, %v1076
        %v1237 = vpack.c.bf16 %v1077, %v1077
        %v1238 = vpack.c.bf16 %v1078, %v1078
        %v1239 = vpack.c.bf16 %v1079, %v1079
        %v1240 = vpack.c.bf16 %v1080, %v1080
        %v1241 = vpack.c.bf16 %v1081, %v1081
        %v1242 = vpack.c.bf16 %v1082, %v1082
        %v1243 = vpack.c.bf16 %v1083, %v1083
        %v1244 = vpack.c.bf16 %v1084, %v1084
        %1245 = vrot.lane.b32.xlu0 %v905, 64
        %v1246 = vpop.permute.xlu0 %1245
        %1247 = vrot.lane.b32.xlu0 %v906, 64
        %v1248 = vpop.permute.xlu0 %1247
        %1249 = vrot.lane.b32.xlu0 %v907, 64
        %v1250 = vpop.permute.xlu0 %1249
        %1251 = vrot.lane.b32.xlu0 %v908, 64
        %v1252 = vpop.permute.xlu0 %1251
        %v1257 = vmul.f32 %v865, %v1246
        %v1258 = vmul.f32 %v866, %v1246
        %v1259 = vmul.f32 %v867, %v1246
        %v1260 = vmul.f32 %v868, %v1246
        %v1261 = vmul.f32 %v865, %v1248
        %v1262 = vmul.f32 %v866, %v1248
        %v1263 = vmul.f32 %v867, %v1248
        %v1264 = vmul.f32 %v868, %v1248
        %v1265 = vmul.f32 %v865, %v1250
        %v1266 = vmul.f32 %v866, %v1250
        %v1267 = vmul.f32 %v867, %v1250
        %v1268 = vmul.f32 %v868, %v1250
        %v1269 = vmul.f32 %v865, %v1252
        %v1270 = vmul.f32 %v866, %v1252
        %v1271 = vmul.f32 %v867, %v1252
        %v1272 = vmul.f32 %v868, %v1252
        %v1273 = vmul.f32 %v869, %v1246
        %v1274 = vmul.f32 %v870, %v1246
        %v1275 = vmul.f32 %v871, %v1246
        %v1276 = vmul.f32 %v872, %v1246
        %v1277 = vmul.f32 %v869, %v1248
        %v1278 = vmul.f32 %v870, %v1248
        %v1279 = vmul.f32 %v871, %v1248
        %v1280 = vmul.f32 %v872, %v1248
        %v1281 = vmul.f32 %v869, %v1250
        %v1282 = vmul.f32 %v870, %v1250
        %v1283 = vmul.f32 %v871, %v1250
        %v1284 = vmul.f32 %v872, %v1250
        %v1285 = vmul.f32 %v869, %v1252
        %v1286 = vmul.f32 %v870, %v1252
        %v1287 = vmul.f32 %v871, %v1252
        %v1288 = vmul.f32 %v872, %v1252
        %v1289 = vmul.f32 %v873, %v1246
        %v1290 = vmul.f32 %v874, %v1246
        %v1291 = vmul.f32 %v875, %v1246
        %v1292 = vmul.f32 %v876, %v1246
        %v1293 = vmul.f32 %v873, %v1248
        %v1294 = vmul.f32 %v874, %v1248
        %v1295 = vmul.f32 %v875, %v1248
        %v1296 = vmul.f32 %v876, %v1248
        %v1297 = vmul.f32 %v873, %v1250
        %v1298 = vmul.f32 %v874, %v1250
        %v1299 = vmul.f32 %v875, %v1250
        %v1300 = vmul.f32 %v876, %v1250
        %v1301 = vmul.f32 %v873, %v1252
        %v1302 = vmul.f32 %v874, %v1252
        %v1303 = vmul.f32 %v875, %v1252
        %v1304 = vmul.f32 %v876, %v1252
        %v1305 = vmul.f32 %v877, %v1246
        %v1306 = vmul.f32 %v878, %v1246
        %v1307 = vmul.f32 %v879, %v1246
        %v1308 = vmul.f32 %v880, %v1246
        %v1309 = vmul.f32 %v877, %v1248
        %v1310 = vmul.f32 %v878, %v1248
        %v1311 = vmul.f32 %v879, %v1248
        %v1312 = vmul.f32 %v880, %v1248
        %v1313 = vmul.f32 %v877, %v1250
        %v1314 = vmul.f32 %v878, %v1250
        %v1315 = vmul.f32 %v879, %v1250
        %v1316 = vmul.f32 %v880, %v1250
        %v1317 = vmul.f32 %v877, %v1252
        %v1318 = vmul.f32 %v878, %v1252
        %v1319 = vmul.f32 %v879, %v1252
        %v1320 = vmul.f32 %v880, %v1252
        %v1321 = vmul.f32 %v881, %v1246
        %v1322 = vmul.f32 %v882, %v1246
        %v1323 = vmul.f32 %v883, %v1246
        %v1324 = vmul.f32 %v884, %v1246
        %v1325 = vmul.f32 %v881, %v1248
        %v1326 = vmul.f32 %v882, %v1248
        %v1327 = vmul.f32 %v883, %v1248
        %v1328 = vmul.f32 %v884, %v1248
        %v1329 = vmul.f32 %v881, %v1250
        %v1330 = vmul.f32 %v882, %v1250
        %v1331 = vmul.f32 %v883, %v1250
        %v1332 = vmul.f32 %v884, %v1250
        %v1333 = vmul.f32 %v881, %v1252
        %v1334 = vmul.f32 %v882, %v1252
        %v1335 = vmul.f32 %v883, %v1252
        %v1336 = vmul.f32 %v884, %v1252
        %v1337 = vmul.f32 %v885, %v1246
        %v1338 = vmul.f32 %v886, %v1246
        %v1339 = vmul.f32 %v887, %v1246
        %v1340 = vmul.f32 %v888, %v1246
        %v1341 = vmul.f32 %v885, %v1248
        %v1342 = vmul.f32 %v886, %v1248
        %v1343 = vmul.f32 %v887, %v1248
        %v1344 = vmul.f32 %v888, %v1248
        %v1345 = vmul.f32 %v885, %v1250
        %v1346 = vmul.f32 %v886, %v1250
        %v1347 = vmul.f32 %v887, %v1250
        %v1348 = vmul.f32 %v888, %v1250
        %v1349 = vmul.f32 %v885, %v1252
        %v1350 = vmul.f32 %v886, %v1252
        %v1351 = vmul.f32 %v887, %v1252
        %v1352 = vmul.f32 %v888, %v1252
        %v1353 = vmul.f32 %v889, %v1246
        %v1354 = vmul.f32 %v890, %v1246
        %v1355 = vmul.f32 %v891, %v1246
        %v1356 = vmul.f32 %v892, %v1246
        %v1357 = vmul.f32 %v889, %v1248
        %v1358 = vmul.f32 %v890, %v1248
        %v1359 = vmul.f32 %v891, %v1248
        %v1360 = vmul.f32 %v892, %v1248
        %v1361 = vmul.f32 %v889, %v1250
        %v1362 = vmul.f32 %v890, %v1250
        %v1363 = vmul.f32 %v891, %v1250
        %v1364 = vmul.f32 %v892, %v1250
        %v1365 = vmul.f32 %v889, %v1252
        %v1366 = vmul.f32 %v890, %v1252
        %v1367 = vmul.f32 %v891, %v1252
        %v1368 = vmul.f32 %v892, %v1252
        %v1369 = vmul.f32 %v893, %v1246
        %v1370 = vmul.f32 %v894, %v1246
        %v1371 = vmul.f32 %v895, %v1246
        %v1372 = vmul.f32 %v896, %v1246
        %v1373 = vmul.f32 %v893, %v1248
        %v1374 = vmul.f32 %v894, %v1248
        %v1375 = vmul.f32 %v895, %v1248
        %v1376 = vmul.f32 %v896, %v1248
        %v1377 = vmul.f32 %v893, %v1250
        %v1378 = vmul.f32 %v894, %v1250
        %v1379 = vmul.f32 %v895, %v1250
        %v1380 = vmul.f32 %v896, %v1250
        %v1381 = vmul.f32 %v893, %v1252
        %v1382 = vmul.f32 %v894, %v1252
        %v1383 = vmul.f32 %v895, %v1252
        %v1384 = vmul.f32 %v896, %v1252
        %v1385 = vmul.f32 %v897, %v1246
        %v1386 = vmul.f32 %v898, %v1246
        %v1387 = vmul.f32 %v899, %v1246
        %v1388 = vmul.f32 %v900, %v1246
        %v1389 = vmul.f32 %v897, %v1248
        %v1390 = vmul.f32 %v898, %v1248
        %v1391 = vmul.f32 %v899, %v1248
        %v1392 = vmul.f32 %v900, %v1248
        %v1393 = vmul.f32 %v897, %v1250
        %v1394 = vmul.f32 %v898, %v1250
        %v1395 = vmul.f32 %v899, %v1250
        %v1396 = vmul.f32 %v900, %v1250
        %v1397 = vmul.f32 %v897, %v1252
        %v1398 = vmul.f32 %v898, %v1252
        %v1399 = vmul.f32 %v899, %v1252
        %v1400 = vmul.f32 %v900, %v1252
        %v1401 = vmul.f32 %v901, %v1246
        %v1402 = vmul.f32 %v902, %v1246
        %v1403 = vmul.f32 %v903, %v1246
        %v1404 = vmul.f32 %v904, %v1246
        %v1405 = vmul.f32 %v901, %v1248
        %v1406 = vmul.f32 %v902, %v1248
        %v1407 = vmul.f32 %v903, %v1248
        %v1408 = vmul.f32 %v904, %v1248
        %v1409 = vmul.f32 %v901, %v1250
        %v1410 = vmul.f32 %v902, %v1250
        %v1411 = vmul.f32 %v903, %v1250
        %v1412 = vmul.f32 %v904, %v1250
        %v1413 = vmul.f32 %v901, %v1252
        %v1414 = vmul.f32 %v902, %v1252
        %v1415 = vmul.f32 %v903, %v1252
        %v1416 = vmul.f32 %v904, %v1252
        %v1417 = vpack.c.bf16 %v1257, %v1257
        %v1418 = vpack.c.bf16 %v1258, %v1258
        %v1419 = vpack.c.bf16 %v1259, %v1259
        %v1420 = vpack.c.bf16 %v1260, %v1260
        %v1421 = vpack.c.bf16 %v1261, %v1261
        %v1422 = vpack.c.bf16 %v1262, %v1262
        %v1423 = vpack.c.bf16 %v1263, %v1263
        %v1424 = vpack.c.bf16 %v1264, %v1264
        %v1425 = vpack.c.bf16 %v1265, %v1265
        %v1426 = vpack.c.bf16 %v1266, %v1266
        %v1427 = vpack.c.bf16 %v1267, %v1267
        %v1428 = vpack.c.bf16 %v1268, %v1268
        %v1429 = vpack.c.bf16 %v1269, %v1269
        %v1430 = vpack.c.bf16 %v1270, %v1270
        %v1431 = vpack.c.bf16 %v1271, %v1271
        %v1432 = vpack.c.bf16 %v1272, %v1272
        %v1433 = vpack.c.bf16 %v1273, %v1273
        %v1434 = vpack.c.bf16 %v1274, %v1274
        %v1435 = vpack.c.bf16 %v1275, %v1275
        %v1436 = vpack.c.bf16 %v1276, %v1276
        %v1437 = vpack.c.bf16 %v1277, %v1277
        %v1438 = vpack.c.bf16 %v1278, %v1278
        %v1439 = vpack.c.bf16 %v1279, %v1279
        %v1440 = vpack.c.bf16 %v1280, %v1280
        %v1441 = vpack.c.bf16 %v1281, %v1281
        %v1442 = vpack.c.bf16 %v1282, %v1282
        %v1443 = vpack.c.bf16 %v1283, %v1283
        %v1444 = vpack.c.bf16 %v1284, %v1284
        %v1445 = vpack.c.bf16 %v1285, %v1285
        %v1446 = vpack.c.bf16 %v1286, %v1286
        %v1447 = vpack.c.bf16 %v1287, %v1287
        %v1448 = vpack.c.bf16 %v1288, %v1288
        %v1449 = vpack.c.bf16 %v1289, %v1289
        %v1450 = vpack.c.bf16 %v1290, %v1290
        %v1451 = vpack.c.bf16 %v1291, %v1291
        %v1452 = vpack.c.bf16 %v1292, %v1292
        %v1453 = vpack.c.bf16 %v1293, %v1293
        %v1454 = vpack.c.bf16 %v1294, %v1294
        %v1455 = vpack.c.bf16 %v1295, %v1295
        %v1456 = vpack.c.bf16 %v1296, %v1296
        %v1457 = vpack.c.bf16 %v1297, %v1297
        %v1458 = vpack.c.bf16 %v1298, %v1298
        %v1459 = vpack.c.bf16 %v1299, %v1299
        %v1460 = vpack.c.bf16 %v1300, %v1300
        %v1461 = vpack.c.bf16 %v1301, %v1301
        %v1462 = vpack.c.bf16 %v1302, %v1302
        %v1463 = vpack.c.bf16 %v1303, %v1303
        %v1464 = vpack.c.bf16 %v1304, %v1304
        %v1465 = vpack.c.bf16 %v1305, %v1305
        %v1466 = vpack.c.bf16 %v1306, %v1306
        %v1467 = vpack.c.bf16 %v1307, %v1307
        %v1468 = vpack.c.bf16 %v1308, %v1308
        %v1469 = vpack.c.bf16 %v1309, %v1309
        %v1470 = vpack.c.bf16 %v1310, %v1310
        %v1471 = vpack.c.bf16 %v1311, %v1311
        %v1472 = vpack.c.bf16 %v1312, %v1312
        %v1473 = vpack.c.bf16 %v1313, %v1313
        %v1474 = vpack.c.bf16 %v1314, %v1314
        %v1475 = vpack.c.bf16 %v1315, %v1315
        %v1476 = vpack.c.bf16 %v1316, %v1316
        %v1477 = vpack.c.bf16 %v1317, %v1317
        %v1478 = vpack.c.bf16 %v1318, %v1318
        %v1479 = vpack.c.bf16 %v1319, %v1319
        %v1480 = vpack.c.bf16 %v1320, %v1320
        %v1481 = vpack.c.bf16 %v1321, %v1321
        %v1482 = vpack.c.bf16 %v1322, %v1322
        %v1483 = vpack.c.bf16 %v1323, %v1323
        %v1484 = vpack.c.bf16 %v1324, %v1324
        %v1485 = vpack.c.bf16 %v1325, %v1325
        %v1486 = vpack.c.bf16 %v1326, %v1326
        %v1487 = vpack.c.bf16 %v1327, %v1327
        %v1488 = vpack.c.bf16 %v1328, %v1328
        %v1489 = vpack.c.bf16 %v1329, %v1329
        %v1490 = vpack.c.bf16 %v1330, %v1330
        %v1491 = vpack.c.bf16 %v1331, %v1331
        %v1492 = vpack.c.bf16 %v1332, %v1332
        %v1493 = vpack.c.bf16 %v1333, %v1333
        %v1494 = vpack.c.bf16 %v1334, %v1334
        %v1495 = vpack.c.bf16 %v1335, %v1335
        %v1496 = vpack.c.bf16 %v1336, %v1336
        %v1497 = vpack.c.bf16 %v1337, %v1337
        %v1498 = vpack.c.bf16 %v1338, %v1338
        %v1499 = vpack.c.bf16 %v1339, %v1339
        %v1500 = vpack.c.bf16 %v1340, %v1340
        %v1501 = vpack.c.bf16 %v1341, %v1341
        %v1502 = vpack.c.bf16 %v1342, %v1342
        %v1503 = vpack.c.bf16 %v1343, %v1343
        %v1504 = vpack.c.bf16 %v1344, %v1344
        %v1505 = vpack.c.bf16 %v1345, %v1345
        %v1506 = vpack.c.bf16 %v1346, %v1346
        %v1507 = vpack.c.bf16 %v1347, %v1347
        %v1508 = vpack.c.bf16 %v1348, %v1348
        %v1509 = vpack.c.bf16 %v1349, %v1349
        %v1510 = vpack.c.bf16 %v1350, %v1350
        %v1511 = vpack.c.bf16 %v1351, %v1351
        %v1512 = vpack.c.bf16 %v1352, %v1352
        %v1513 = vpack.c.bf16 %v1353, %v1353
        %v1514 = vpack.c.bf16 %v1354, %v1354
        %v1515 = vpack.c.bf16 %v1355, %v1355
        %v1516 = vpack.c.bf16 %v1356, %v1356
        %v1517 = vpack.c.bf16 %v1357, %v1357
        %v1518 = vpack.c.bf16 %v1358, %v1358
        %v1519 = vpack.c.bf16 %v1359, %v1359
        %v1520 = vpack.c.bf16 %v1360, %v1360
        %v1521 = vpack.c.bf16 %v1361, %v1361
        %v1522 = vpack.c.bf16 %v1362, %v1362
        %v1523 = vpack.c.bf16 %v1363, %v1363
        %v1524 = vpack.c.bf16 %v1364, %v1364
        %v1525 = vpack.c.bf16 %v1365, %v1365
        %v1526 = vpack.c.bf16 %v1366, %v1366
        %v1527 = vpack.c.bf16 %v1367, %v1367
        %v1528 = vpack.c.bf16 %v1368, %v1368
        %v1529 = vpack.c.bf16 %v1369, %v1369
        %v1530 = vpack.c.bf16 %v1370, %v1370
        %v1531 = vpack.c.bf16 %v1371, %v1371
        %v1532 = vpack.c.bf16 %v1372, %v1372
        %v1533 = vpack.c.bf16 %v1373, %v1373
        %v1534 = vpack.c.bf16 %v1374, %v1374
        %v1535 = vpack.c.bf16 %v1375, %v1375
        %v1536 = vpack.c.bf16 %v1376, %v1376
        %v1537 = vpack.c.bf16 %v1377, %v1377
        %v1538 = vpack.c.bf16 %v1378, %v1378
        %v1539 = vpack.c.bf16 %v1379, %v1379
        %v1540 = vpack.c.bf16 %v1380, %v1380
        %v1541 = vpack.c.bf16 %v1381, %v1381
        %v1542 = vpack.c.bf16 %v1382, %v1382
        %v1543 = vpack.c.bf16 %v1383, %v1383
        %v1544 = vpack.c.bf16 %v1384, %v1384
        %v1545 = vpack.c.bf16 %v1385, %v1385
        %v1546 = vpack.c.bf16 %v1386, %v1386
        %v1547 = vpack.c.bf16 %v1387, %v1387
        %v1548 = vpack.c.bf16 %v1388, %v1388
        %v1549 = vpack.c.bf16 %v1389, %v1389
        %v1550 = vpack.c.bf16 %v1390, %v1390
        %v1551 = vpack.c.bf16 %v1391, %v1391
        %v1552 = vpack.c.bf16 %v1392, %v1392
        %v1553 = vpack.c.bf16 %v1393, %v1393
        %v1554 = vpack.c.bf16 %v1394, %v1394
        %v1555 = vpack.c.bf16 %v1395, %v1395
        %v1556 = vpack.c.bf16 %v1396, %v1396
        %v1557 = vpack.c.bf16 %v1397, %v1397
        %v1558 = vpack.c.bf16 %v1398, %v1398
        %v1559 = vpack.c.bf16 %v1399, %v1399
        %v1560 = vpack.c.bf16 %v1400, %v1400
        %v1561 = vpack.c.bf16 %v1401, %v1401
        %v1562 = vpack.c.bf16 %v1402, %v1402
        %v1563 = vpack.c.bf16 %v1403, %v1403
        %v1564 = vpack.c.bf16 %v1404, %v1404
        %v1565 = vpack.c.bf16 %v1405, %v1405
        %v1566 = vpack.c.bf16 %v1406, %v1406
        %v1567 = vpack.c.bf16 %v1407, %v1407
        %v1568 = vpack.c.bf16 %v1408, %v1408
        %v1569 = vpack.c.bf16 %v1409, %v1409
        %v1570 = vpack.c.bf16 %v1410, %v1410
        %v1571 = vpack.c.bf16 %v1411, %v1411
        %v1572 = vpack.c.bf16 %v1412, %v1412
        %v1573 = vpack.c.bf16 %v1413, %v1413
        %v1574 = vpack.c.bf16 %v1414, %v1414
        %v1575 = vpack.c.bf16 %v1415, %v1415
        %v1576 = vpack.c.bf16 %v1416, %v1416
        %v1581 = vunpack.c.l.b16 %v773
        %v1582 = vunpack.c.l.b16 %v774
        %v1583 = vunpack.c.l.b16 %v775
        %v1584 = vunpack.c.l.b16 %v776
        %v1585 = vpack.c.b16 %v1582, %v1581
        %v1586 = vpack.c.b16 %v1584, %v1583
        %v1603 = vunpack.c.l.b16 %v1085
        %v1604 = vunpack.c.l.b16 %v1086
        %v1605 = vunpack.c.l.b16 %v1087
        %v1606 = vunpack.c.l.b16 %v1088
        %v1607 = vunpack.c.l.b16 %v1089
        %v1608 = vunpack.c.l.b16 %v1090
        %v1609 = vunpack.c.l.b16 %v1091
        %v1610 = vunpack.c.l.b16 %v1092
        %v1611 = vunpack.c.l.b16 %v1093
        %v1612 = vunpack.c.l.b16 %v1094
        %v1613 = vunpack.c.l.b16 %v1095
        %v1614 = vunpack.c.l.b16 %v1096
        %v1615 = vunpack.c.l.b16 %v1097
        %v1616 = vunpack.c.l.b16 %v1098
        %v1617 = vunpack.c.l.b16 %v1099
        %v1618 = vunpack.c.l.b16 %v1100
        %v1619 = vpack.c.b16 %v1604, %v1603
        %v1620 = vpack.c.b16 %v1606, %v1605
        %v1621 = vpack.c.b16 %v1608, %v1607
        %v1622 = vpack.c.b16 %v1610, %v1609
        %v1623 = vpack.c.b16 %v1612, %v1611
        %v1624 = vpack.c.b16 %v1614, %v1613
        %v1625 = vpack.c.b16 %v1616, %v1615
        %v1626 = vpack.c.b16 %v1618, %v1617
        %1627 = vrot.lane.b32.xlu0 %v1619, 96
        %v1628 = vpop.permute.xlu0 %1627
        %1629 = vrot.lane.b32.xlu0 %v1620, 96
        %v1630 = vpop.permute.xlu0 %1629
        %1631 = vrot.lane.b32.xlu0 %v1621, 96
        %v1632 = vpop.permute.xlu0 %1631
        %1633 = vrot.lane.b32.xlu0 %v1622, 96
        %v1634 = vpop.permute.xlu0 %1633
        %1635 = vrot.lane.b32.xlu0 %v1623, 96
        %v1636 = vpop.permute.xlu0 %1635
        %1637 = vrot.lane.b32.xlu0 %v1624, 96
        %v1638 = vpop.permute.xlu0 %1637
        %1639 = vrot.lane.b32.xlu0 %v1625, 96
        %v1640 = vpop.permute.xlu0 %1639
        %1641 = vrot.lane.b32.xlu0 %v1626, 96
        %v1642 = vpop.permute.xlu0 %1641
        %v1644 = vsel %vm603, %v1585, 0
        %v1647 = vsel %vm603, %v1586, 0
        %v1650 = vsel %vm603, %v1628, 0
        %v1653 = vsel %vm603, %v1630, 0
        %v1656 = vsel %vm603, %v1632, 0
        %v1659 = vsel %vm603, %v1634, 0
        %v1662 = vsel %vm603, %v1636, 0
        %v1665 = vsel %vm603, %v1638, 0
        %v1668 = vsel %vm603, %v1640, 0
        %v1671 = vsel %vm603, %v1642, 0
        %1673 = vmatpush.bf16.xpose.msra.mxu0 %v1671
        %1674 = vmatpush.bf16.xpose.msra.mxu0 %v1668
        %1675 = vmatpush.bf16.xpose.msra.mxu0 %v1665
        %1676 = vmatpush.bf16.xpose.msra.mxu0 %v1662
        %1677 = vmatpush.bf16.xpose.msra.mxu0 %v1659
        %1678 = vmatpush.bf16.xpose.msra.mxu0 %v1656
        %1679 = vmatpush.bf16.xpose.msra.mxu0 %v1653
        %1680 = vmatpush.bf16.xpose.msra.mxu0 %v1650
        %1681 = vmatmul.bf16.gmra.mxu0 %v1644
        %v1682 = vpop.f32.mrf.mxu0
        %v1683 = vadd.f32 0.0, %v1682
        %v1684 = vpop.f32.mrf.mxu0
        %v1685 = vadd.f32 0.0, %v1684
        %1686 = vmatmul.bf16.gmra.mxu0 %v1647
        %v1687 = vpop.f32.mrf.mxu0
        %v1688 = vadd.f32 0.0, %v1687
        %v1689 = vpop.f32.mrf.mxu0
        %v1690 = vadd.f32 0.0, %v1689
        %1691 = vdwg.mxu0
        %v1696 = vunpack.c.l.b16 %v777
        %v1697 = vunpack.c.l.b16 %v778
        %v1698 = vunpack.c.l.b16 %v779
        %v1699 = vunpack.c.l.b16 %v780
        %v1700 = vpack.c.b16 %v1697, %v1696
        %v1701 = vpack.c.b16 %v1699, %v1698
        %v1718 = vunpack.c.l.b16 %v1101
        %v1719 = vunpack.c.l.b16 %v1102
        %v1720 = vunpack.c.l.b16 %v1103
        %v1721 = vunpack.c.l.b16 %v1104
        %v1722 = vunpack.c.l.b16 %v1105
        %v1723 = vunpack.c.l.b16 %v1106
        %v1724 = vunpack.c.l.b16 %v1107
        %v1725 = vunpack.c.l.b16 %v1108
        %v1726 = vunpack.c.l.b16 %v1109
        %v1727 = vunpack.c.l.b16 %v1110
        %v1728 = vunpack.c.l.b16 %v1111
        %v1729 = vunpack.c.l.b16 %v1112
        %v1730 = vunpack.c.l.b16 %v1113
        %v1731 = vunpack.c.l.b16 %v1114
        %v1732 = vunpack.c.l.b16 %v1115
        %v1733 = vunpack.c.l.b16 %v1116
        %v1734 = vpack.c.b16 %v1719, %v1718
        %v1735 = vpack.c.b16 %v1721, %v1720
        %v1736 = vpack.c.b16 %v1723, %v1722
        %v1737 = vpack.c.b16 %v1725, %v1724
        %v1738 = vpack.c.b16 %v1727, %v1726
        %v1739 = vpack.c.b16 %v1729, %v1728
        %v1740 = vpack.c.b16 %v1731, %v1730
        %v1741 = vpack.c.b16 %v1733, %v1732
        %1742 = vrot.lane.b32.xlu0 %v1734, 96
        %v1743 = vpop.permute.xlu0 %1742
        %1744 = vrot.lane.b32.xlu0 %v1735, 96
        %v1745 = vpop.permute.xlu0 %1744
        %1746 = vrot.lane.b32.xlu0 %v1736, 96
        %v1747 = vpop.permute.xlu0 %1746
        %1748 = vrot.lane.b32.xlu0 %v1737, 96
        %v1749 = vpop.permute.xlu0 %1748
        %1750 = vrot.lane.b32.xlu0 %v1738, 96
        %v1751 = vpop.permute.xlu0 %1750
        %1752 = vrot.lane.b32.xlu0 %v1739, 96
        %v1753 = vpop.permute.xlu0 %1752
        %1754 = vrot.lane.b32.xlu0 %v1740, 96
        %v1755 = vpop.permute.xlu0 %1754
        %1756 = vrot.lane.b32.xlu0 %v1741, 96
        %v1757 = vpop.permute.xlu0 %1756
        %v1759 = vsel %vm603, %v1700, 0
        %v1762 = vsel %vm603, %v1701, 0
        %v1765 = vsel %vm603, %v1743, 0
        %v1768 = vsel %vm603, %v1745, 0
        %v1771 = vsel %vm603, %v1747, 0
        %v1774 = vsel %vm603, %v1749, 0
        %v1777 = vsel %vm603, %v1751, 0
        %v1780 = vsel %vm603, %v1753, 0
        %v1783 = vsel %vm603, %v1755, 0
        %v1786 = vsel %vm603, %v1757, 0
        %1788 = vmatpush.bf16.xpose.msra.mxu0 %v1786
        %1789 = vmatpush.bf16.xpose.msra.mxu0 %v1783
        %1790 = vmatpush.bf16.xpose.msra.mxu0 %v1780
        %1791 = vmatpush.bf16.xpose.msra.mxu0 %v1777
        %1792 = vmatpush.bf16.xpose.msra.mxu0 %v1774
        %1793 = vmatpush.bf16.xpose.msra.mxu0 %v1771
        %1794 = vmatpush.bf16.xpose.msra.mxu0 %v1768
        %1795 = vmatpush.bf16.xpose.msra.mxu0 %v1765
        %1796 = vmatmul.bf16.gmra.mxu0 %v1759
        %v1797 = vpop.f32.mrf.mxu0
        %v1798 = vadd.f32 0.0, %v1797
        %v1799 = vpop.f32.mrf.mxu0
        %v1800 = vadd.f32 0.0, %v1799
        %1801 = vmatmul.bf16.gmra.mxu0 %v1762
        %v1802 = vpop.f32.mrf.mxu0
        %v1803 = vadd.f32 0.0, %v1802
        %v1804 = vpop.f32.mrf.mxu0
        %v1805 = vadd.f32 0.0, %v1804
        %1806 = vdwg.mxu0
        %v1811 = vunpack.c.l.b16 %v781
        %v1812 = vunpack.c.l.b16 %v782
        %v1813 = vunpack.c.l.b16 %v783
        %v1814 = vunpack.c.l.b16 %v784
        %v1815 = vpack.c.b16 %v1812, %v1811
        %v1816 = vpack.c.b16 %v1814, %v1813
        %v1833 = vunpack.c.l.b16 %v1117
        %v1834 = vunpack.c.l.b16 %v1118
        %v1835 = vunpack.c.l.b16 %v1119
        %v1836 = vunpack.c.l.b16 %v1120
        %v1837 = vunpack.c.l.b16 %v1121
        %v1838 = vunpack.c.l.b16 %v1122
        %v1839 = vunpack.c.l.b16 %v1123
        %v1840 = vunpack.c.l.b16 %v1124
        %v1841 = vunpack.c.l.b16 %v1125
        %v1842 = vunpack.c.l.b16 %v1126
        %v1843 = vunpack.c.l.b16 %v1127
        %v1844 = vunpack.c.l.b16 %v1128
        %v1845 = vunpack.c.l.b16 %v1129
        %v1846 = vunpack.c.l.b16 %v1130
        %v1847 = vunpack.c.l.b16 %v1131
        %v1848 = vunpack.c.l.b16 %v1132
        %v1849 = vpack.c.b16 %v1834, %v1833
        %v1850 = vpack.c.b16 %v1836, %v1835
        %v1851 = vpack.c.b16 %v1838, %v1837
        %v1852 = vpack.c.b16 %v1840, %v1839
        %v1853 = vpack.c.b16 %v1842, %v1841
        %v1854 = vpack.c.b16 %v1844, %v1843
        %v1855 = vpack.c.b16 %v1846, %v1845
        %v1856 = vpack.c.b16 %v1848, %v1847
        %1857 = vrot.lane.b32.xlu0 %v1849, 96
        %v1858 = vpop.permute.xlu0 %1857
        %1859 = vrot.lane.b32.xlu0 %v1850, 96
        %v1860 = vpop.permute.xlu0 %1859
        %1861 = vrot.lane.b32.xlu0 %v1851, 96
        %v1862 = vpop.permute.xlu0 %1861
        %1863 = vrot.lane.b32.xlu0 %v1852, 96
        %v1864 = vpop.permute.xlu0 %1863
        %1865 = vrot.lane.b32.xlu0 %v1853, 96
        %v1866 = vpop.permute.xlu0 %1865
        %1867 = vrot.lane.b32.xlu0 %v1854, 96
        %v1868 = vpop.permute.xlu0 %1867
        %1869 = vrot.lane.b32.xlu0 %v1855, 96
        %v1870 = vpop.permute.xlu0 %1869
        %1871 = vrot.lane.b32.xlu0 %v1856, 96
        %v1872 = vpop.permute.xlu0 %1871
        %v1874 = vsel %vm603, %v1815, 0
        %v1877 = vsel %vm603, %v1816, 0
        %v1880 = vsel %vm603, %v1858, 0
        %v1883 = vsel %vm603, %v1860, 0
        %v1886 = vsel %vm603, %v1862, 0
        %v1889 = vsel %vm603, %v1864, 0
        %v1892 = vsel %vm603, %v1866, 0
        %v1895 = vsel %vm603, %v1868, 0
        %v1898 = vsel %vm603, %v1870, 0
        %v1901 = vsel %vm603, %v1872, 0
        %1903 = vmatpush.bf16.xpose.msra.mxu0 %v1901
        %1904 = vmatpush.bf16.xpose.msra.mxu0 %v1898
        %1905 = vmatpush.bf16.xpose.msra.mxu0 %v1895
        %1906 = vmatpush.bf16.xpose.msra.mxu0 %v1892
        %1907 = vmatpush.bf16.xpose.msra.mxu0 %v1889
        %1908 = vmatpush.bf16.xpose.msra.mxu0 %v1886
        %1909 = vmatpush.bf16.xpose.msra.mxu0 %v1883
        %1910 = vmatpush.bf16.xpose.msra.mxu0 %v1880
        %1911 = vmatmul.bf16.gmra.mxu0 %v1874
        %v1912 = vpop.f32.mrf.mxu0
        %v1913 = vadd.f32 0.0, %v1912
        %v1914 = vpop.f32.mrf.mxu0
        %v1915 = vadd.f32 0.0, %v1914
        %1916 = vmatmul.bf16.gmra.mxu0 %v1877
        %v1917 = vpop.f32.mrf.mxu0
        %v1918 = vadd.f32 0.0, %v1917
        %v1919 = vpop.f32.mrf.mxu0
        %v1920 = vadd.f32 0.0, %v1919
        %1921 = vdwg.mxu0
        %v1926 = vunpack.c.l.b16 %v785
        %v1927 = vunpack.c.l.b16 %v786
        %v1928 = vunpack.c.l.b16 %v787
        %v1929 = vunpack.c.l.b16 %v788
        %v1930 = vpack.c.b16 %v1927, %v1926
        %v1931 = vpack.c.b16 %v1929, %v1928
        %v1948 = vunpack.c.l.b16 %v1133
        %v1949 = vunpack.c.l.b16 %v1134
        %v1950 = vunpack.c.l.b16 %v1135
        %v1951 = vunpack.c.l.b16 %v1136
        %v1952 = vunpack.c.l.b16 %v1137
        %v1953 = vunpack.c.l.b16 %v1138
        %v1954 = vunpack.c.l.b16 %v1139
        %v1955 = vunpack.c.l.b16 %v1140
        %v1956 = vunpack.c.l.b16 %v1141
        %v1957 = vunpack.c.l.b16 %v1142
        %v1958 = vunpack.c.l.b16 %v1143
        %v1959 = vunpack.c.l.b16 %v1144
        %v1960 = vunpack.c.l.b16 %v1145
        %v1961 = vunpack.c.l.b16 %v1146
        %v1962 = vunpack.c.l.b16 %v1147
        %v1963 = vunpack.c.l.b16 %v1148
        %v1964 = vpack.c.b16 %v1949, %v1948
        %v1965 = vpack.c.b16 %v1951, %v1950
        %v1966 = vpack.c.b16 %v1953, %v1952
        %v1967 = vpack.c.b16 %v1955, %v1954
        %v1968 = vpack.c.b16 %v1957, %v1956
        %v1969 = vpack.c.b16 %v1959, %v1958
        %v1970 = vpack.c.b16 %v1961, %v1960
        %v1971 = vpack.c.b16 %v1963, %v1962
        %1972 = vrot.lane.b32.xlu0 %v1964, 96
        %v1973 = vpop.permute.xlu0 %1972
        %1974 = vrot.lane.b32.xlu0 %v1965, 96
        %v1975 = vpop.permute.xlu0 %1974
        %1976 = vrot.lane.b32.xlu0 %v1966, 96
        %v1977 = vpop.permute.xlu0 %1976
        %1978 = vrot.lane.b32.xlu0 %v1967, 96
        %v1979 = vpop.permute.xlu0 %1978
        %1980 = vrot.lane.b32.xlu0 %v1968, 96
        %v1981 = vpop.permute.xlu0 %1980
        %1982 = vrot.lane.b32.xlu0 %v1969, 96
        %v1983 = vpop.permute.xlu0 %1982
        %1984 = vrot.lane.b32.xlu0 %v1970, 96
        %v1985 = vpop.permute.xlu0 %1984
        %1986 = vrot.lane.b32.xlu0 %v1971, 96
        %v1987 = vpop.permute.xlu0 %1986
        %v1989 = vsel %vm603, %v1930, 0
        %v1992 = vsel %vm603, %v1931, 0
        %v1995 = vsel %vm603, %v1973, 0
        %v1998 = vsel %vm603, %v1975, 0
        %v2001 = vsel %vm603, %v1977, 0
        %v2004 = vsel %vm603, %v1979, 0
        %v2007 = vsel %vm603, %v1981, 0
        %v2010 = vsel %vm603, %v1983, 0
        %v2013 = vsel %vm603, %v1985, 0
        %v2016 = vsel %vm603, %v1987, 0
        %2018 = vmatpush.bf16.xpose.msra.mxu0 %v2016
        %2019 = vmatpush.bf16.xpose.msra.mxu0 %v2013
        %2020 = vmatpush.bf16.xpose.msra.mxu0 %v2010
        %2021 = vmatpush.bf16.xpose.msra.mxu0 %v2007
        %2022 = vmatpush.bf16.xpose.msra.mxu0 %v2004
        %2023 = vmatpush.bf16.xpose.msra.mxu0 %v2001
        %2024 = vmatpush.bf16.xpose.msra.mxu0 %v1998
        %2025 = vmatpush.bf16.xpose.msra.mxu0 %v1995
        %2026 = vmatmul.bf16.gmra.mxu0 %v1989
        %v2027 = vpop.f32.mrf.mxu0
        %v2028 = vadd.f32 0.0, %v2027
        %v2029 = vpop.f32.mrf.mxu0
        %v2030 = vadd.f32 0.0, %v2029
        %2031 = vmatmul.bf16.gmra.mxu0 %v1992
        %v2032 = vpop.f32.mrf.mxu0
        %v2033 = vadd.f32 0.0, %v2032
        %v2034 = vpop.f32.mrf.mxu0
        %v2035 = vadd.f32 0.0, %v2034
        %2036 = vdwg.mxu0
        %v2041 = vunpack.c.l.b16 %v789
        %v2042 = vunpack.c.l.b16 %v790
        %v2043 = vunpack.c.l.b16 %v791
        %v2044 = vunpack.c.l.b16 %v792
        %v2045 = vpack.c.b16 %v2042, %v2041
        %v2046 = vpack.c.b16 %v2044, %v2043
        %v2063 = vunpack.c.l.b16 %v1149
        %v2064 = vunpack.c.l.b16 %v1150
        %v2065 = vunpack.c.l.b16 %v1151
        %v2066 = vunpack.c.l.b16 %v1152
        %v2067 = vunpack.c.l.b16 %v1153
        %v2068 = vunpack.c.l.b16 %v1154
        %v2069 = vunpack.c.l.b16 %v1155
        %v2070 = vunpack.c.l.b16 %v1156
        %v2071 = vunpack.c.l.b16 %v1157
        %v2072 = vunpack.c.l.b16 %v1158
        %v2073 = vunpack.c.l.b16 %v1159
        %v2074 = vunpack.c.l.b16 %v1160
        %v2075 = vunpack.c.l.b16 %v1161
        %v2076 = vunpack.c.l.b16 %v1162
        %v2077 = vunpack.c.l.b16 %v1163
        %v2078 = vunpack.c.l.b16 %v1164
        %v2079 = vpack.c.b16 %v2064, %v2063
        %v2080 = vpack.c.b16 %v2066, %v2065
        %v2081 = vpack.c.b16 %v2068, %v2067
        %v2082 = vpack.c.b16 %v2070, %v2069
        %v2083 = vpack.c.b16 %v2072, %v2071
        %v2084 = vpack.c.b16 %v2074, %v2073
        %v2085 = vpack.c.b16 %v2076, %v2075
        %v2086 = vpack.c.b16 %v2078, %v2077
        %2087 = vrot.lane.b32.xlu0 %v2079, 96
        %v2088 = vpop.permute.xlu0 %2087
        %2089 = vrot.lane.b32.xlu0 %v2080, 96
        %v2090 = vpop.permute.xlu0 %2089
        %2091 = vrot.lane.b32.xlu0 %v2081, 96
        %v2092 = vpop.permute.xlu0 %2091
        %2093 = vrot.lane.b32.xlu0 %v2082, 96
        %v2094 = vpop.permute.xlu0 %2093
        %2095 = vrot.lane.b32.xlu0 %v2083, 96
        %v2096 = vpop.permute.xlu0 %2095
        %2097 = vrot.lane.b32.xlu0 %v2084, 96
        %v2098 = vpop.permute.xlu0 %2097
        %2099 = vrot.lane.b32.xlu0 %v2085, 96
        %v2100 = vpop.permute.xlu0 %2099
        %2101 = vrot.lane.b32.xlu0 %v2086, 96
        %v2102 = vpop.permute.xlu0 %2101
        %v2104 = vsel %vm603, %v2045, 0
        %v2107 = vsel %vm603, %v2046, 0
        %v2110 = vsel %vm603, %v2088, 0
        %v2113 = vsel %vm603, %v2090, 0
        %v2116 = vsel %vm603, %v2092, 0
        %v2119 = vsel %vm603, %v2094, 0
        %v2122 = vsel %vm603, %v2096, 0
        %v2125 = vsel %vm603, %v2098, 0
        %v2128 = vsel %vm603, %v2100, 0
        %v2131 = vsel %vm603, %v2102, 0
        %2133 = vmatpush.bf16.xpose.msra.mxu0 %v2131
        %2134 = vmatpush.bf16.xpose.msra.mxu0 %v2128
        %2135 = vmatpush.bf16.xpose.msra.mxu0 %v2125
        %2136 = vmatpush.bf16.xpose.msra.mxu0 %v2122
        %2137 = vmatpush.bf16.xpose.msra.mxu0 %v2119
        %2138 = vmatpush.bf16.xpose.msra.mxu0 %v2116
        %2139 = vmatpush.bf16.xpose.msra.mxu0 %v2113
        %2140 = vmatpush.bf16.xpose.msra.mxu0 %v2110
        %2141 = vmatmul.bf16.gmra.mxu0 %v2104
        %v2142 = vpop.f32.mrf.mxu0
        %v2143 = vadd.f32 0.0, %v2142
        %v2144 = vpop.f32.mrf.mxu0
        %v2145 = vadd.f32 0.0, %v2144
        %2146 = vmatmul.bf16.gmra.mxu0 %v2107
        %v2147 = vpop.f32.mrf.mxu0
        %v2148 = vadd.f32 0.0, %v2147
        %v2149 = vpop.f32.mrf.mxu0
        %v2150 = vadd.f32 0.0, %v2149
        %2151 = vdwg.mxu0
        %v2156 = vunpack.c.l.b16 %v793
        %v2157 = vunpack.c.l.b16 %v794
        %v2158 = vunpack.c.l.b16 %v795
        %v2159 = vunpack.c.l.b16 %v796
        %v2160 = vpack.c.b16 %v2157, %v2156
        %v2161 = vpack.c.b16 %v2159, %v2158
        %v2178 = vunpack.c.l.b16 %v1165
        %v2179 = vunpack.c.l.b16 %v1166
        %v2180 = vunpack.c.l.b16 %v1167
        %v2181 = vunpack.c.l.b16 %v1168
        %v2182 = vunpack.c.l.b16 %v1169
        %v2183 = vunpack.c.l.b16 %v1170
        %v2184 = vunpack.c.l.b16 %v1171
        %v2185 = vunpack.c.l.b16 %v1172
        %v2186 = vunpack.c.l.b16 %v1173
        %v2187 = vunpack.c.l.b16 %v1174
        %v2188 = vunpack.c.l.b16 %v1175
        %v2189 = vunpack.c.l.b16 %v1176
        %v2190 = vunpack.c.l.b16 %v1177
        %v2191 = vunpack.c.l.b16 %v1178
        %v2192 = vunpack.c.l.b16 %v1179
        %v2193 = vunpack.c.l.b16 %v1180
        %v2194 = vpack.c.b16 %v2179, %v2178
        %v2195 = vpack.c.b16 %v2181, %v2180
        %v2196 = vpack.c.b16 %v2183, %v2182
        %v2197 = vpack.c.b16 %v2185, %v2184
        %v2198 = vpack.c.b16 %v2187, %v2186
        %v2199 = vpack.c.b16 %v2189, %v2188
        %v2200 = vpack.c.b16 %v2191, %v2190
        %v2201 = vpack.c.b16 %v2193, %v2192
        %2202 = vrot.lane.b32.xlu0 %v2194, 96
        %v2203 = vpop.permute.xlu0 %2202
        %2204 = vrot.lane.b32.xlu0 %v2195, 96
        %v2205 = vpop.permute.xlu0 %2204
        %2206 = vrot.lane.b32.xlu0 %v2196, 96
        %v2207 = vpop.permute.xlu0 %2206
        %2208 = vrot.lane.b32.xlu0 %v2197, 96
        %v2209 = vpop.permute.xlu0 %2208
        %2210 = vrot.lane.b32.xlu0 %v2198, 96
        %v2211 = vpop.permute.xlu0 %2210
        %2212 = vrot.lane.b32.xlu0 %v2199, 96
        %v2213 = vpop.permute.xlu0 %2212
        %2214 = vrot.lane.b32.xlu0 %v2200, 96
        %v2215 = vpop.permute.xlu0 %2214
        %2216 = vrot.lane.b32.xlu0 %v2201, 96
        %v2217 = vpop.permute.xlu0 %2216
        %v2219 = vsel %vm603, %v2160, 0
        %v2222 = vsel %vm603, %v2161, 0
        %v2225 = vsel %vm603, %v2203, 0
        %v2228 = vsel %vm603, %v2205, 0
        %v2231 = vsel %vm603, %v2207, 0
        %v2234 = vsel %vm603, %v2209, 0
        %v2237 = vsel %vm603, %v2211, 0
        %v2240 = vsel %vm603, %v2213, 0
        %v2243 = vsel %vm603, %v2215, 0
        %v2246 = vsel %vm603, %v2217, 0
        %2248 = vmatpush.bf16.xpose.msra.mxu0 %v2246
        %2249 = vmatpush.bf16.xpose.msra.mxu0 %v2243
        %2250 = vmatpush.bf16.xpose.msra.mxu0 %v2240
        %2251 = vmatpush.bf16.xpose.msra.mxu0 %v2237
        %2252 = vmatpush.bf16.xpose.msra.mxu0 %v2234
        %2253 = vmatpush.bf16.xpose.msra.mxu0 %v2231
        %2254 = vmatpush.bf16.xpose.msra.mxu0 %v2228
        %2255 = vmatpush.bf16.xpose.msra.mxu0 %v2225
        %2256 = vmatmul.bf16.gmra.mxu0 %v2219
        %v2257 = vpop.f32.mrf.mxu0
        %v2258 = vadd.f32 0.0, %v2257
        %v2259 = vpop.f32.mrf.mxu0
        %v2260 = vadd.f32 0.0, %v2259
        %2261 = vmatmul.bf16.gmra.mxu0 %v2222
        %v2262 = vpop.f32.mrf.mxu0
        %v2263 = vadd.f32 0.0, %v2262
        %v2264 = vpop.f32.mrf.mxu0
        %v2265 = vadd.f32 0.0, %v2264
        %2266 = vdwg.mxu0
        %v2271 = vunpack.c.l.b16 %v797
        %v2272 = vunpack.c.l.b16 %v798
        %v2273 = vunpack.c.l.b16 %v799
        %v2274 = vunpack.c.l.b16 %v800
        %v2275 = vpack.c.b16 %v2272, %v2271
        %v2276 = vpack.c.b16 %v2274, %v2273
        %v2293 = vunpack.c.l.b16 %v1181
        %v2294 = vunpack.c.l.b16 %v1182
        %v2295 = vunpack.c.l.b16 %v1183
        %v2296 = vunpack.c.l.b16 %v1184
        %v2297 = vunpack.c.l.b16 %v1185
        %v2298 = vunpack.c.l.b16 %v1186
        %v2299 = vunpack.c.l.b16 %v1187
        %v2300 = vunpack.c.l.b16 %v1188
        %v2301 = vunpack.c.l.b16 %v1189
        %v2302 = vunpack.c.l.b16 %v1190
        %v2303 = vunpack.c.l.b16 %v1191
        %v2304 = vunpack.c.l.b16 %v1192
        %v2305 = vunpack.c.l.b16 %v1193
        %v2306 = vunpack.c.l.b16 %v1194
        %v2307 = vunpack.c.l.b16 %v1195
        %v2308 = vunpack.c.l.b16 %v1196
        %v2309 = vpack.c.b16 %v2294, %v2293
        %v2310 = vpack.c.b16 %v2296, %v2295
        %v2311 = vpack.c.b16 %v2298, %v2297
        %v2312 = vpack.c.b16 %v2300, %v2299
        %v2313 = vpack.c.b16 %v2302, %v2301
        %v2314 = vpack.c.b16 %v2304, %v2303
        %v2315 = vpack.c.b16 %v2306, %v2305
        %v2316 = vpack.c.b16 %v2308, %v2307
        %2317 = vrot.lane.b32.xlu0 %v2309, 96
        %v2318 = vpop.permute.xlu0 %2317
        %2319 = vrot.lane.b32.xlu0 %v2310, 96
        %v2320 = vpop.permute.xlu0 %2319
        %2321 = vrot.lane.b32.xlu0 %v2311, 96
        %v2322 = vpop.permute.xlu0 %2321
        %2323 = vrot.lane.b32.xlu0 %v2312, 96
        %v2324 = vpop.permute.xlu0 %2323
        %2325 = vrot.lane.b32.xlu0 %v2313, 96
        %v2326 = vpop.permute.xlu0 %2325
        %2327 = vrot.lane.b32.xlu0 %v2314, 96
        %v2328 = vpop.permute.xlu0 %2327
        %2329 = vrot.lane.b32.xlu0 %v2315, 96
        %v2330 = vpop.permute.xlu0 %2329
        %2331 = vrot.lane.b32.xlu0 %v2316, 96
        %v2332 = vpop.permute.xlu0 %2331
        %v2334 = vsel %vm603, %v2275, 0
        %v2337 = vsel %vm603, %v2276, 0
        %v2340 = vsel %vm603, %v2318, 0
        %v2343 = vsel %vm603, %v2320, 0
        %v2346 = vsel %vm603, %v2322, 0
        %v2349 = vsel %vm603, %v2324, 0
        %v2352 = vsel %vm603, %v2326, 0
        %v2355 = vsel %vm603, %v2328, 0
        %v2358 = vsel %vm603, %v2330, 0
        %v2361 = vsel %vm603, %v2332, 0
        %2363 = vmatpush.bf16.xpose.msra.mxu0 %v2361
        %2364 = vmatpush.bf16.xpose.msra.mxu0 %v2358
        %2365 = vmatpush.bf16.xpose.msra.mxu0 %v2355
        %2366 = vmatpush.bf16.xpose.msra.mxu0 %v2352
        %2367 = vmatpush.bf16.xpose.msra.mxu0 %v2349
        %2368 = vmatpush.bf16.xpose.msra.mxu0 %v2346
        %2369 = vmatpush.bf16.xpose.msra.mxu0 %v2343
        %2370 = vmatpush.bf16.xpose.msra.mxu0 %v2340
        %2371 = vmatmul.bf16.gmra.mxu0 %v2334
        %v2372 = vpop.f32.mrf.mxu0
        %v2373 = vadd.f32 0.0, %v2372
        %v2374 = vpop.f32.mrf.mxu0
        %v2375 = vadd.f32 0.0, %v2374
        %2376 = vmatmul.bf16.gmra.mxu0 %v2337
        %v2377 = vpop.f32.mrf.mxu0
        %v2378 = vadd.f32 0.0, %v2377
        %v2379 = vpop.f32.mrf.mxu0
        %v2380 = vadd.f32 0.0, %v2379
        %2381 = vdwg.mxu0
        %v2386 = vunpack.c.l.b16 %v801
        %v2387 = vunpack.c.l.b16 %v802
        %v2388 = vunpack.c.l.b16 %v803
        %v2389 = vunpack.c.l.b16 %v804
        %v2390 = vpack.c.b16 %v2387, %v2386
        %v2391 = vpack.c.b16 %v2389, %v2388
        %v2408 = vunpack.c.l.b16 %v1197
        %v2409 = vunpack.c.l.b16 %v1198
        %v2410 = vunpack.c.l.b16 %v1199
        %v2411 = vunpack.c.l.b16 %v1200
        %v2412 = vunpack.c.l.b16 %v1201
        %v2413 = vunpack.c.l.b16 %v1202
        %v2414 = vunpack.c.l.b16 %v1203
        %v2415 = vunpack.c.l.b16 %v1204
        %v2416 = vunpack.c.l.b16 %v1205
        %v2417 = vunpack.c.l.b16 %v1206
        %v2418 = vunpack.c.l.b16 %v1207
        %v2419 = vunpack.c.l.b16 %v1208
        %v2420 = vunpack.c.l.b16 %v1209
        %v2421 = vunpack.c.l.b16 %v1210
        %v2422 = vunpack.c.l.b16 %v1211
        %v2423 = vunpack.c.l.b16 %v1212
        %v2424 = vpack.c.b16 %v2409, %v2408
        %v2425 = vpack.c.b16 %v2411, %v2410
        %v2426 = vpack.c.b16 %v2413, %v2412
        %v2427 = vpack.c.b16 %v2415, %v2414
        %v2428 = vpack.c.b16 %v2417, %v2416
        %v2429 = vpack.c.b16 %v2419, %v2418
        %v2430 = vpack.c.b16 %v2421, %v2420
        %v2431 = vpack.c.b16 %v2423, %v2422
        %2432 = vrot.lane.b32.xlu0 %v2424, 96
        %v2433 = vpop.permute.xlu0 %2432
        %2434 = vrot.lane.b32.xlu0 %v2425, 96
        %v2435 = vpop.permute.xlu0 %2434
        %2436 = vrot.lane.b32.xlu0 %v2426, 96
        %v2437 = vpop.permute.xlu0 %2436
        %2438 = vrot.lane.b32.xlu0 %v2427, 96
        %v2439 = vpop.permute.xlu0 %2438
        %2440 = vrot.lane.b32.xlu0 %v2428, 96
        %v2441 = vpop.permute.xlu0 %2440
        %2442 = vrot.lane.b32.xlu0 %v2429, 96
        %v2443 = vpop.permute.xlu0 %2442
        %2444 = vrot.lane.b32.xlu0 %v2430, 96
        %v2445 = vpop.permute.xlu0 %2444
        %2446 = vrot.lane.b32.xlu0 %v2431, 96
        %v2447 = vpop.permute.xlu0 %2446
        %v2449 = vsel %vm603, %v2390, 0
        %v2452 = vsel %vm603, %v2391, 0
        %v2455 = vsel %vm603, %v2433, 0
        %v2458 = vsel %vm603, %v2435, 0
        %v2461 = vsel %vm603, %v2437, 0
        %v2464 = vsel %vm603, %v2439, 0
        %v2467 = vsel %vm603, %v2441, 0
        %v2470 = vsel %vm603, %v2443, 0
        %v2473 = vsel %vm603, %v2445, 0
        %v2476 = vsel %vm603, %v2447, 0
        %2478 = vmatpush.bf16.xpose.msra.mxu0 %v2476
        %2479 = vmatpush.bf16.xpose.msra.mxu0 %v2473
        %2480 = vmatpush.bf16.xpose.msra.mxu0 %v2470
        %2481 = vmatpush.bf16.xpose.msra.mxu0 %v2467
        %2482 = vmatpush.bf16.xpose.msra.mxu0 %v2464
        %2483 = vmatpush.bf16.xpose.msra.mxu0 %v2461
        %2484 = vmatpush.bf16.xpose.msra.mxu0 %v2458
        %2485 = vmatpush.bf16.xpose.msra.mxu0 %v2455
        %2486 = vmatmul.bf16.gmra.mxu0 %v2449
        %v2487 = vpop.f32.mrf.mxu0
        %v2488 = vadd.f32 0.0, %v2487
        %v2489 = vpop.f32.mrf.mxu0
        %v2490 = vadd.f32 0.0, %v2489
        %2491 = vmatmul.bf16.gmra.mxu0 %v2452
        %v2492 = vpop.f32.mrf.mxu0
        %v2493 = vadd.f32 0.0, %v2492
        %v2494 = vpop.f32.mrf.mxu0
        %v2495 = vadd.f32 0.0, %v2494
        %2496 = vdwg.mxu0
        %v2501 = vunpack.c.l.b16 %v805
        %v2502 = vunpack.c.l.b16 %v806
        %v2503 = vunpack.c.l.b16 %v807
        %v2504 = vunpack.c.l.b16 %v808
        %v2505 = vpack.c.b16 %v2502, %v2501
        %v2506 = vpack.c.b16 %v2504, %v2503
        %v2523 = vunpack.c.l.b16 %v1213
        %v2524 = vunpack.c.l.b16 %v1214
        %v2525 = vunpack.c.l.b16 %v1215
        %v2526 = vunpack.c.l.b16 %v1216
        %v2527 = vunpack.c.l.b16 %v1217
        %v2528 = vunpack.c.l.b16 %v1218
        %v2529 = vunpack.c.l.b16 %v1219
        %v2530 = vunpack.c.l.b16 %v1220
        %v2531 = vunpack.c.l.b16 %v1221
        %v2532 = vunpack.c.l.b16 %v1222
        %v2533 = vunpack.c.l.b16 %v1223
        %v2534 = vunpack.c.l.b16 %v1224
        %v2535 = vunpack.c.l.b16 %v1225
        %v2536 = vunpack.c.l.b16 %v1226
        %v2537 = vunpack.c.l.b16 %v1227
        %v2538 = vunpack.c.l.b16 %v1228
        %v2539 = vpack.c.b16 %v2524, %v2523
        %v2540 = vpack.c.b16 %v2526, %v2525
        %v2541 = vpack.c.b16 %v2528, %v2527
        %v2542 = vpack.c.b16 %v2530, %v2529
        %v2543 = vpack.c.b16 %v2532, %v2531
        %v2544 = vpack.c.b16 %v2534, %v2533
        %v2545 = vpack.c.b16 %v2536, %v2535
        %v2546 = vpack.c.b16 %v2538, %v2537
        %2547 = vrot.lane.b32.xlu0 %v2539, 96
        %v2548 = vpop.permute.xlu0 %2547
        %2549 = vrot.lane.b32.xlu0 %v2540, 96
        %v2550 = vpop.permute.xlu0 %2549
        %2551 = vrot.lane.b32.xlu0 %v2541, 96
        %v2552 = vpop.permute.xlu0 %2551
        %2553 = vrot.lane.b32.xlu0 %v2542, 96
        %v2554 = vpop.permute.xlu0 %2553
        %2555 = vrot.lane.b32.xlu0 %v2543, 96
        %v2556 = vpop.permute.xlu0 %2555
        %2557 = vrot.lane.b32.xlu0 %v2544, 96
        %v2558 = vpop.permute.xlu0 %2557
        %2559 = vrot.lane.b32.xlu0 %v2545, 96
        %v2560 = vpop.permute.xlu0 %2559
        %2561 = vrot.lane.b32.xlu0 %v2546, 96
        %v2562 = vpop.permute.xlu0 %2561
        %v2564 = vsel %vm603, %v2505, 0
        %v2567 = vsel %vm603, %v2506, 0
        %v2570 = vsel %vm603, %v2548, 0
        %v2573 = vsel %vm603, %v2550, 0
        %v2576 = vsel %vm603, %v2552, 0
        %v2579 = vsel %vm603, %v2554, 0
        %v2582 = vsel %vm603, %v2556, 0
        %v2585 = vsel %vm603, %v2558, 0
        %v2588 = vsel %vm603, %v2560, 0
        %v2591 = vsel %vm603, %v2562, 0
        %2593 = vmatpush.bf16.xpose.msra.mxu0 %v2591
        %2594 = vmatpush.bf16.xpose.msra.mxu0 %v2588
        %2595 = vmatpush.bf16.xpose.msra.mxu0 %v2585
        %2596 = vmatpush.bf16.xpose.msra.mxu0 %v2582
        %2597 = vmatpush.bf16.xpose.msra.mxu0 %v2579
        %2598 = vmatpush.bf16.xpose.msra.mxu0 %v2576
        %2599 = vmatpush.bf16.xpose.msra.mxu0 %v2573
        %2600 = vmatpush.bf16.xpose.msra.mxu0 %v2570
        %2601 = vmatmul.bf16.gmra.mxu0 %v2564
        %v2602 = vpop.f32.mrf.mxu0
        %v2603 = vadd.f32 0.0, %v2602
        %v2604 = vpop.f32.mrf.mxu0
        %v2605 = vadd.f32 0.0, %v2604
        %2606 = vmatmul.bf16.gmra.mxu0 %v2567
        %v2607 = vpop.f32.mrf.mxu0
        %v2608 = vadd.f32 0.0, %v2607
        %v2609 = vpop.f32.mrf.mxu0
        %v2610 = vadd.f32 0.0, %v2609
        %2611 = vdwg.mxu0
        %v2616 = vunpack.c.l.b16 %v809
        %v2617 = vunpack.c.l.b16 %v810
        %v2618 = vunpack.c.l.b16 %v811
        %v2619 = vunpack.c.l.b16 %v812
        %v2620 = vpack.c.b16 %v2617, %v2616
        %v2621 = vpack.c.b16 %v2619, %v2618
        %v2638 = vunpack.c.l.b16 %v1229
        %v2639 = vunpack.c.l.b16 %v1230
        %v2640 = vunpack.c.l.b16 %v1231
        %v2641 = vunpack.c.l.b16 %v1232
        %v2642 = vunpack.c.l.b16 %v1233
        %v2643 = vunpack.c.l.b16 %v1234
        %v2644 = vunpack.c.l.b16 %v1235
        %v2645 = vunpack.c.l.b16 %v1236
        %v2646 = vunpack.c.l.b16 %v1237
        %v2647 = vunpack.c.l.b16 %v1238
        %v2648 = vunpack.c.l.b16 %v1239
        %v2649 = vunpack.c.l.b16 %v1240
        %v2650 = vunpack.c.l.b16 %v1241
        %v2651 = vunpack.c.l.b16 %v1242
        %v2652 = vunpack.c.l.b16 %v1243
        %v2653 = vunpack.c.l.b16 %v1244
        %v2654 = vpack.c.b16 %v2639, %v2638
        %v2655 = vpack.c.b16 %v2641, %v2640
        %v2656 = vpack.c.b16 %v2643, %v2642
        %v2657 = vpack.c.b16 %v2645, %v2644
        %v2658 = vpack.c.b16 %v2647, %v2646
        %v2659 = vpack.c.b16 %v2649, %v2648
        %v2660 = vpack.c.b16 %v2651, %v2650
        %v2661 = vpack.c.b16 %v2653, %v2652
        %2662 = vrot.lane.b32.xlu0 %v2654, 96
        %v2663 = vpop.permute.xlu0 %2662
        %2664 = vrot.lane.b32.xlu0 %v2655, 96
        %v2665 = vpop.permute.xlu0 %2664
        %2666 = vrot.lane.b32.xlu0 %v2656, 96
        %v2667 = vpop.permute.xlu0 %2666
        %2668 = vrot.lane.b32.xlu0 %v2657, 96
        %v2669 = vpop.permute.xlu0 %2668
        %2670 = vrot.lane.b32.xlu0 %v2658, 96
        %v2671 = vpop.permute.xlu0 %2670
        %2672 = vrot.lane.b32.xlu0 %v2659, 96
        %v2673 = vpop.permute.xlu0 %2672
        %2674 = vrot.lane.b32.xlu0 %v2660, 96
        %v2675 = vpop.permute.xlu0 %2674
        %2676 = vrot.lane.b32.xlu0 %v2661, 96
        %v2677 = vpop.permute.xlu0 %2676
        %v2679 = vsel %vm603, %v2620, 0
        %v2682 = vsel %vm603, %v2621, 0
        %v2685 = vsel %vm603, %v2663, 0
        %v2688 = vsel %vm603, %v2665, 0
        %v2691 = vsel %vm603, %v2667, 0
        %v2694 = vsel %vm603, %v2669, 0
        %v2697 = vsel %vm603, %v2671, 0
        %v2700 = vsel %vm603, %v2673, 0
        %v2703 = vsel %vm603, %v2675, 0
        %v2706 = vsel %vm603, %v2677, 0
        %2708 = vmatpush.bf16.xpose.msra.mxu0 %v2706
        %2709 = vmatpush.bf16.xpose.msra.mxu0 %v2703
        %2710 = vmatpush.bf16.xpose.msra.mxu0 %v2700
        %2711 = vmatpush.bf16.xpose.msra.mxu0 %v2697
        %2712 = vmatpush.bf16.xpose.msra.mxu0 %v2694
        %2713 = vmatpush.bf16.xpose.msra.mxu0 %v2691
        %2714 = vmatpush.bf16.xpose.msra.mxu0 %v2688
        %2715 = vmatpush.bf16.xpose.msra.mxu0 %v2685
        %2716 = vmatmul.bf16.gmra.mxu0 %v2679
        %v2717 = vpop.f32.mrf.mxu0
        %v2718 = vadd.f32 0.0, %v2717
        %v2719 = vpop.f32.mrf.mxu0
        %v2720 = vadd.f32 0.0, %v2719
        %2721 = vmatmul.bf16.gmra.mxu0 %v2682
        %v2722 = vpop.f32.mrf.mxu0
        %v2723 = vadd.f32 0.0, %v2722
        %v2724 = vpop.f32.mrf.mxu0
        %v2725 = vadd.f32 0.0, %v2724
        %2726 = vdwg.mxu0
        %v2727 = vld [vmem:[%s518] sm:$0x1]
        %v2728 = vld [vmem:[%s518 + $0x1] sm:$0x1]
        %v2729 = vld [vmem:[%s518 + $0x2] sm:$0x1]
        %v2730 = vld [vmem:[%s518 + $0x3] sm:$0x1]
        %v2731 = vld [vmem:[%s518 + $0x4] sm:$0x1]
        %v2732 = vld [vmem:[%s518 + $0x5] sm:$0x1]
        %v2733 = vld [vmem:[%s518 + $0x6] sm:$0x1]
        %v2734 = vld [vmem:[%s518 + $0x7] sm:$0x1]
        %v2735 = vld [vmem:[%s518 + $0x8] sm:$0x1]
        %v2736 = vld [vmem:[%s518 + $0x9] sm:$0x1]
        %2747 = vst [vmem:[#allocation1] ss:$9 sm:$0xff] %v2727
        %s2748 = scalar_lea.vmem [#allocation1], 1
        %2749 = vst [vmem:[%s2748] ss:$9 sm:$0xff] %v2728
        %s2750 = scalar_lea.vmem [#allocation1], 2
        %2751 = vst [vmem:[%s2750] ss:$9 sm:$0xff] %v2729
        %s2752 = scalar_lea.vmem [#allocation1], 3
        %2753 = vst [vmem:[%s2752] ss:$9 sm:$0xff] %v2730
        %s2754 = scalar_lea.vmem [#allocation1], 4
        %2755 = vst [vmem:[%s2754] ss:$9 sm:$0xff] %v2731
        %s2756 = scalar_lea.vmem [#allocation1], 5
        %2757 = vst [vmem:[%s2756] ss:$9 sm:$0xff] %v2732
        %s2758 = scalar_lea.vmem [#allocation1], 6
        %2759 = vst [vmem:[%s2758] ss:$9 sm:$0xff] %v2733
        %s2760 = scalar_lea.vmem [#allocation1], 7
        %2761 = vst [vmem:[%s2760] ss:$9 sm:$0xff] %v2734
        %v2762 = vld [vmem:[#allocation1] sm:$0xff]
        %2763 = vst [vmem:[#allocation1] ss:$9 sm:$0xff] %v2735
        %2764 = vst [vmem:[%s2748] ss:$9 sm:$0xff] %v2736
        %v2765 = vld [vmem:[#allocation1] sm:$0xff]
        %2768 = vst [vmem:[#allocation1] ss:$9 sm:$0xff] %v2727
        %s2769 = scalar_lea.vmem [#allocation1], 1
        %2770 = vst [vmem:[%s2769] ss:$9 sm:$0xff] %v2728
        %s2771 = scalar_lea.vmem [#allocation1], 2
        %2772 = vst [vmem:[%s2771] ss:$9 sm:$0xff] %v2729
        %s2773 = scalar_lea.vmem [#allocation1], 3
        %2774 = vst [vmem:[%s2773] ss:$9 sm:$0xff] %v2730
        %s2775 = scalar_lea.vmem [#allocation1], 4
        %2776 = vst [vmem:[%s2775] ss:$9 sm:$0xff] %v2731
        %s2777 = scalar_lea.vmem [#allocation1], 5
        %2778 = vst [vmem:[%s2777] ss:$9 sm:$0xff] %v2732
        %s2779 = scalar_lea.vmem [#allocation1], 6
        %2780 = vst [vmem:[%s2779] ss:$9 sm:$0xff] %v2733
        %s2781 = scalar_lea.vmem [#allocation1], 7
        %2782 = vst [vmem:[%s2781] ss:$9 sm:$0xff] %v2734
        %v2783 = vld [vmem:[#allocation1] sm:$0xff]
        %2784 = vst [vmem:[#allocation1] ss:$9 sm:$0xff] %v2735
        %2785 = vst [vmem:[%s2769] ss:$9 sm:$0xff] %v2736
        %v2786 = vld [vmem:[#allocation1] sm:$0xff]
        %2787 = vrot.lane.b32.xlu0 %v2783, 32
        %v2788 = vpop.permute.xlu0 %2787
        %2789 = vrot.lane.b32.xlu0 %v2786, 32
        %v2790 = vpop.permute.xlu0 %2789
        %2793 = vst [vmem:[#allocation1] ss:$9 sm:$0xff] %v2727
        %s2794 = scalar_lea.vmem [#allocation1], 1
        %2795 = vst [vmem:[%s2794] ss:$9 sm:$0xff] %v2728
        %s2796 = scalar_lea.vmem [#allocation1], 2
        %2797 = vst [vmem:[%s2796] ss:$9 sm:$0xff] %v2729
        %s2798 = scalar_lea.vmem [#allocation1], 3
        %2799 = vst [vmem:[%s2798] ss:$9 sm:$0xff] %v2730
        %s2800 = scalar_lea.vmem [#allocation1], 4
        %2801 = vst [vmem:[%s2800] ss:$9 sm:$0xff] %v2731
        %s2802 = scalar_lea.vmem [#allocation1], 5
        %2803 = vst [vmem:[%s2802] ss:$9 sm:$0xff] %v2732
        %s2804 = scalar_lea.vmem [#allocation1], 6
        %2805 = vst [vmem:[%s2804] ss:$9 sm:$0xff] %v2733
        %s2806 = scalar_lea.vmem [#allocation1], 7
        %2807 = vst [vmem:[%s2806] ss:$9 sm:$0xff] %v2734
        %v2808 = vld [vmem:[#allocation1] sm:$0xff]
        %2809 = vst [vmem:[#allocation1] ss:$9 sm:$0xff] %v2735
        %2810 = vst [vmem:[%s2794] ss:$9 sm:$0xff] %v2736
        %v2811 = vld [vmem:[#allocation1] sm:$0xff]
        %2812 = vrot.lane.b32.xlu0 %v2808, 64
        %v2813 = vpop.permute.xlu0 %2812
        %2814 = vrot.lane.b32.xlu0 %v2811, 64
        %v2815 = vpop.permute.xlu0 %2814
        %2818 = vst [vmem:[#allocation1] ss:$9 sm:$0xff] %v2727
        %s2819 = scalar_lea.vmem [#allocation1], 1
        %2820 = vst [vmem:[%s2819] ss:$9 sm:$0xff] %v2728
        %s2821 = scalar_lea.vmem [#allocation1], 2
        %2822 = vst [vmem:[%s2821] ss:$9 sm:$0xff] %v2729
        %s2823 = scalar_lea.vmem [#allocation1], 3
        %2824 = vst [vmem:[%s2823] ss:$9 sm:$0xff] %v2730
        %s2825 = scalar_lea.vmem [#allocation1], 4
        %2826 = vst [vmem:[%s2825] ss:$9 sm:$0xff] %v2731
        %s2827 = scalar_lea.vmem [#allocation1], 5
        %2828 = vst [vmem:[%s2827] ss:$9 sm:$0xff] %v2732
        %s2829 = scalar_lea.vmem [#allocation1], 6
        %2830 = vst [vmem:[%s2829] ss:$9 sm:$0xff] %v2733
        %s2831 = scalar_lea.vmem [#allocation1], 7
        %2832 = vst [vmem:[%s2831] ss:$9 sm:$0xff] %v2734
        %v2833 = vld [vmem:[#allocation1] sm:$0xff]
        %2834 = vst [vmem:[#allocation1] ss:$9 sm:$0xff] %v2735
        %2835 = vst [vmem:[%s2819] ss:$9 sm:$0xff] %v2736
        %v2836 = vld [vmem:[#allocation1] sm:$0xff]
        %2837 = vrot.lane.b32.xlu0 %v2833, 96
        %v2838 = vpop.permute.xlu0 %2837
        %2839 = vrot.lane.b32.xlu0 %v2836, 96
        %v2840 = vpop.permute.xlu0 %2839
        %v2843 = vsel %vm603, %v2762, %v2788
        %v2844 = vsel %vm603, %v2765, %v2790
        %vm2845 = vcmask 523264
        %v2846 = vsel %vm2845, %v2843, %v2813
        %v2847 = vsel %vm2845, %v2844, %v2815
        %vm2848 = vcmask 785408
        %v2849 = vsel %vm2848, %v2846, %v2838
        %v2850 = vsel %vm2848, %v2847, %v2840
        %v2851 = vperm.slane %v2727, 0
        %v2852 = vlaneseq
        %v2853 = vshrl.u32 %v2852, 7
        %2855 = vset.pattern.permute.xlu0 %v2853
        %2856 = vperm.xlu0 %2855, %v2851
        %v2857 = vpop.permute.xlu0 %2856
        %v2858 = vlaneseq
        %v2859 = vshrl.u32 %v2858, 7
        %v2860 = vadd.s32 %v2859, 8
        %2861 = vset.pattern.permute.xlu0 %v2860
        %2862 = vperm.xlu0 %2861, %v2851
        %v2863 = vpop.permute.xlu0 %2862
        %v2864 = vlaneseq
        %v2865 = vshrl.u32 %v2864, 7
        %v2866 = vadd.s32 %v2865, 16
        %2867 = vset.pattern.permute.xlu0 %v2866
        %2868 = vperm.xlu0 %2867, %v2851
        %v2869 = vpop.permute.xlu0 %2868
        %v2870 = vlaneseq
        %v2871 = vshrl.u32 %v2870, 7
        %v2872 = vadd.s32 %v2871, 24
        %2873 = vset.pattern.permute.xlu0 %v2872
        %2874 = vperm.xlu0 %2873, %v2851
        %v2875 = vpop.permute.xlu0 %2874
        %v2876 = vperm.slane %v2728, 0
        %v2877 = vlaneseq
        %v2878 = vshrl.u32 %v2877, 7
        %2880 = vset.pattern.permute.xlu0 %v2878
        %2881 = vperm.xlu0 %2880, %v2876
        %v2882 = vpop.permute.xlu0 %2881
        %v2883 = vlaneseq
        %v2884 = vshrl.u32 %v2883, 7
        %v2885 = vadd.s32 %v2884, 8
        %2886 = vset.pattern.permute.xlu0 %v2885
        %2887 = vperm.xlu0 %2886, %v2876
        %v2888 = vpop.permute.xlu0 %2887
        %v2889 = vlaneseq
        %v2890 = vshrl.u32 %v2889, 7
        %v2891 = vadd.s32 %v2890, 16
        %2892 = vset.pattern.permute.xlu0 %v2891
        %2893 = vperm.xlu0 %2892, %v2876
        %v2894 = vpop.permute.xlu0 %2893
        %v2895 = vlaneseq
        %v2896 = vshrl.u32 %v2895, 7
        %v2897 = vadd.s32 %v2896, 24
        %2898 = vset.pattern.permute.xlu0 %v2897
        %2899 = vperm.xlu0 %2898, %v2876
        %v2900 = vpop.permute.xlu0 %2899
        %v2901 = vperm.slane %v2729, 0
        %v2902 = vlaneseq
        %v2903 = vshrl.u32 %v2902, 7
        %2905 = vset.pattern.permute.xlu0 %v2903
        %2906 = vperm.xlu0 %2905, %v2901
        %v2907 = vpop.permute.xlu0 %2906
        %v2908 = vlaneseq
        %v2909 = vshrl.u32 %v2908, 7
        %v2910 = vadd.s32 %v2909, 8
        %2911 = vset.pattern.permute.xlu0 %v2910
        %2912 = vperm.xlu0 %2911, %v2901
        %v2913 = vpop.permute.xlu0 %2912
        %v2914 = vlaneseq
        %v2915 = vshrl.u32 %v2914, 7
        %v2916 = vadd.s32 %v2915, 16
        %2917 = vset.pattern.permute.xlu0 %v2916
        %2918 = vperm.xlu0 %2917, %v2901
        %v2919 = vpop.permute.xlu0 %2918
        %v2920 = vlaneseq
        %v2921 = vshrl.u32 %v2920, 7
        %v2922 = vadd.s32 %v2921, 24
        %2923 = vset.pattern.permute.xlu0 %v2922
        %2924 = vperm.xlu0 %2923, %v2901
        %v2925 = vpop.permute.xlu0 %2924
        %v2926 = vperm.slane %v2730, 0
        %v2927 = vlaneseq
        %v2928 = vshrl.u32 %v2927, 7
        %2930 = vset.pattern.permute.xlu0 %v2928
        %2931 = vperm.xlu0 %2930, %v2926
        %v2932 = vpop.permute.xlu0 %2931
        %v2933 = vlaneseq
        %v2934 = vshrl.u32 %v2933, 7
        %v2935 = vadd.s32 %v2934, 8
        %2936 = vset.pattern.permute.xlu0 %v2935
        %2937 = vperm.xlu0 %2936, %v2926
        %v2938 = vpop.permute.xlu0 %2937
        %v2939 = vlaneseq
        %v2940 = vshrl.u32 %v2939, 7
        %v2941 = vadd.s32 %v2940, 16
        %2942 = vset.pattern.permute.xlu0 %v2941
        %2943 = vperm.xlu0 %2942, %v2926
        %v2944 = vpop.permute.xlu0 %2943
        %v2945 = vlaneseq
        %v2946 = vshrl.u32 %v2945, 7
        %v2947 = vadd.s32 %v2946, 24
        %2948 = vset.pattern.permute.xlu0 %v2947
        %2949 = vperm.xlu0 %2948, %v2926
        %v2950 = vpop.permute.xlu0 %2949
        %v2951 = vperm.slane %v2731, 0
        %v2952 = vlaneseq
        %v2953 = vshrl.u32 %v2952, 7
        %2955 = vset.pattern.permute.xlu0 %v2953
        %2956 = vperm.xlu0 %2955, %v2951
        %v2957 = vpop.permute.xlu0 %2956
        %v2958 = vlaneseq
        %v2959 = vshrl.u32 %v2958, 7
        %v2960 = vadd.s32 %v2959, 8
        %2961 = vset.pattern.permute.xlu0 %v2960
        %2962 = vperm.xlu0 %2961, %v2951
        %v2963 = vpop.permute.xlu0 %2962
        %v2964 = vlaneseq
        %v2965 = vshrl.u32 %v2964, 7
        %v2966 = vadd.s32 %v2965, 16
        %2967 = vset.pattern.permute.xlu0 %v2966
        %2968 = vperm.xlu0 %2967, %v2951
        %v2969 = vpop.permute.xlu0 %2968
        %v2970 = vlaneseq
        %v2971 = vshrl.u32 %v2970, 7
        %v2972 = vadd.s32 %v2971, 24
        %2973 = vset.pattern.permute.xlu0 %v2972
        %2974 = vperm.xlu0 %2973, %v2951
        %v2975 = vpop.permute.xlu0 %2974
        %v2976 = vperm.slane %v2732, 0
        %v2977 = vlaneseq
        %v2978 = vshrl.u32 %v2977, 7
        %2980 = vset.pattern.permute.xlu0 %v2978
        %2981 = vperm.xlu0 %2980, %v2976
        %v2982 = vpop.permute.xlu0 %2981
        %v2983 = vlaneseq
        %v2984 = vshrl.u32 %v2983, 7
        %v2985 = vadd.s32 %v2984, 8
        %2986 = vset.pattern.permute.xlu0 %v2985
        %2987 = vperm.xlu0 %2986, %v2976
        %v2988 = vpop.permute.xlu0 %2987
        %v2989 = vlaneseq
        %v2990 = vshrl.u32 %v2989, 7
        %v2991 = vadd.s32 %v2990, 16
        %2992 = vset.pattern.permute.xlu0 %v2991
        %2993 = vperm.xlu0 %2992, %v2976
        %v2994 = vpop.permute.xlu0 %2993
        %v2995 = vlaneseq
        %v2996 = vshrl.u32 %v2995, 7
        %v2997 = vadd.s32 %v2996, 24
        %2998 = vset.pattern.permute.xlu0 %v2997
        %2999 = vperm.xlu0 %2998, %v2976
        %v3000 = vpop.permute.xlu0 %2999
        %v3001 = vperm.slane %v2733, 0
        %v3002 = vlaneseq
        %v3003 = vshrl.u32 %v3002, 7
        %3005 = vset.pattern.permute.xlu0 %v3003
        %3006 = vperm.xlu0 %3005, %v3001
        %v3007 = vpop.permute.xlu0 %3006
        %v3008 = vlaneseq
        %v3009 = vshrl.u32 %v3008, 7
        %v3010 = vadd.s32 %v3009, 8
        %3011 = vset.pattern.permute.xlu0 %v3010
        %3012 = vperm.xlu0 %3011, %v3001
        %v3013 = vpop.permute.xlu0 %3012
        %v3014 = vlaneseq
        %v3015 = vshrl.u32 %v3014, 7
        %v3016 = vadd.s32 %v3015, 16
        %3017 = vset.pattern.permute.xlu0 %v3016
        %3018 = vperm.xlu0 %3017, %v3001
        %v3019 = vpop.permute.xlu0 %3018
        %v3020 = vlaneseq
        %v3021 = vshrl.u32 %v3020, 7
        %v3022 = vadd.s32 %v3021, 24
        %3023 = vset.pattern.permute.xlu0 %v3022
        %3024 = vperm.xlu0 %3023, %v3001
        %v3025 = vpop.permute.xlu0 %3024
        %v3026 = vperm.slane %v2734, 0
        %v3027 = vlaneseq
        %v3028 = vshrl.u32 %v3027, 7
        %3030 = vset.pattern.permute.xlu0 %v3028
        %3031 = vperm.xlu0 %3030, %v3026
        %v3032 = vpop.permute.xlu0 %3031
        %v3033 = vlaneseq
        %v3034 = vshrl.u32 %v3033, 7
        %v3035 = vadd.s32 %v3034, 8
        %3036 = vset.pattern.permute.xlu0 %v3035
        %3037 = vperm.xlu0 %3036, %v3026
        %v3038 = vpop.permute.xlu0 %3037
        %v3039 = vlaneseq
        %v3040 = vshrl.u32 %v3039, 7
        %v3041 = vadd.s32 %v3040, 16
        %3042 = vset.pattern.permute.xlu0 %v3041
        %3043 = vperm.xlu0 %3042, %v3026
        %v3044 = vpop.permute.xlu0 %3043
        %v3045 = vlaneseq
        %v3046 = vshrl.u32 %v3045, 7
        %v3047 = vadd.s32 %v3046, 24
        %3048 = vset.pattern.permute.xlu0 %v3047
        %3049 = vperm.xlu0 %3048, %v3026
        %v3050 = vpop.permute.xlu0 %3049
        %v3051 = vperm.slane %v2735, 0
        %v3052 = vlaneseq
        %v3053 = vshrl.u32 %v3052, 7
        %3055 = vset.pattern.permute.xlu0 %v3053
        %3056 = vperm.xlu0 %3055, %v3051
        %v3057 = vpop.permute.xlu0 %3056
        %v3058 = vlaneseq
        %v3059 = vshrl.u32 %v3058, 7
        %v3060 = vadd.s32 %v3059, 8
        %3061 = vset.pattern.permute.xlu0 %v3060
        %3062 = vperm.xlu0 %3061, %v3051
        %v3063 = vpop.permute.xlu0 %3062
        %v3064 = vlaneseq
        %v3065 = vshrl.u32 %v3064, 7
        %v3066 = vadd.s32 %v3065, 16
        %3067 = vset.pattern.permute.xlu0 %v3066
        %3068 = vperm.xlu0 %3067, %v3051
        %v3069 = vpop.permute.xlu0 %3068
        %v3070 = vlaneseq
        %v3071 = vshrl.u32 %v3070, 7
        %v3072 = vadd.s32 %v3071, 24
        %3073 = vset.pattern.permute.xlu0 %v3072
        %3074 = vperm.xlu0 %3073, %v3051
        %v3075 = vpop.permute.xlu0 %3074
        %v3076 = vperm.slane %v2736, 0
        %v3077 = vlaneseq
        %v3078 = vshrl.u32 %v3077, 7
        %3080 = vset.pattern.permute.xlu0 %v3078
        %3081 = vperm.xlu0 %3080, %v3076
        %v3082 = vpop.permute.xlu0 %3081
        %v3083 = vlaneseq
        %v3084 = vshrl.u32 %v3083, 7
        %v3085 = vadd.s32 %v3084, 8
        %3086 = vset.pattern.permute.xlu0 %v3085
        %3087 = vperm.xlu0 %3086, %v3076
        %v3088 = vpop.permute.xlu0 %3087
        %v3089 = vlaneseq
        %v3090 = vshrl.u32 %v3089, 7
        %v3091 = vadd.s32 %v3090, 16
        %3092 = vset.pattern.permute.xlu0 %v3091
        %3093 = vperm.xlu0 %3092, %v3076
        %v3094 = vpop.permute.xlu0 %3093
        %v3095 = vlaneseq
        %v3096 = vshrl.u32 %v3095, 7
        %v3097 = vadd.s32 %v3096, 24
        %3098 = vset.pattern.permute.xlu0 %v3097
        %3099 = vperm.xlu0 %3098, %v3076
        %v3100 = vpop.permute.xlu0 %3099
        %vm3101 = vcmp.ne.f32.partialorder %v2857, 0.0
        %vm3102 = vcmp.ne.f32.partialorder %v2863, 0.0
        %vm3103 = vcmp.ne.f32.partialorder %v2869, 0.0
        %vm3104 = vcmp.ne.f32.partialorder %v2875, 0.0
        %vm3105 = vcmp.ne.f32.partialorder %v2882, 0.0
        %vm3106 = vcmp.ne.f32.partialorder %v2888, 0.0
        %vm3107 = vcmp.ne.f32.partialorder %v2894, 0.0
        %vm3108 = vcmp.ne.f32.partialorder %v2900, 0.0
        %vm3109 = vcmp.ne.f32.partialorder %v2907, 0.0
        %vm3110 = vcmp.ne.f32.partialorder %v2913, 0.0
        %vm3111 = vcmp.ne.f32.partialorder %v2919, 0.0
        %vm3112 = vcmp.ne.f32.partialorder %v2925, 0.0
        %vm3113 = vcmp.ne.f32.partialorder %v2932, 0.0
        %vm3114 = vcmp.ne.f32.partialorder %v2938, 0.0
        %vm3115 = vcmp.ne.f32.partialorder %v2944, 0.0
        %vm3116 = vcmp.ne.f32.partialorder %v2950, 0.0
        %vm3117 = vcmp.ne.f32.partialorder %v2957, 0.0
        %vm3118 = vcmp.ne.f32.partialorder %v2963, 0.0
        %vm3119 = vcmp.ne.f32.partialorder %v2969, 0.0
        %vm3120 = vcmp.ne.f32.partialorder %v2975, 0.0
        %vm3121 = vcmp.ne.f32.partialorder %v2982, 0.0
        %vm3122 = vcmp.ne.f32.partialorder %v2988, 0.0
        %vm3123 = vcmp.ne.f32.partialorder %v2994, 0.0
        %vm3124 = vcmp.ne.f32.partialorder %v3000, 0.0
        %vm3125 = vcmp.ne.f32.partialorder %v3007, 0.0
        %vm3126 = vcmp.ne.f32.partialorder %v3013, 0.0
        %vm3127 = vcmp.ne.f32.partialorder %v3019, 0.0
        %vm3128 = vcmp.ne.f32.partialorder %v3025, 0.0
        %vm3129 = vcmp.ne.f32.partialorder %v3032, 0.0
        %vm3130 = vcmp.ne.f32.partialorder %v3038, 0.0
        %vm3131 = vcmp.ne.f32.partialorder %v3044, 0.0
        %vm3132 = vcmp.ne.f32.partialorder %v3050, 0.0
        %vm3133 = vcmp.ne.f32.partialorder %v3057, 0.0
        %vm3134 = vcmp.ne.f32.partialorder %v3063, 0.0
        %vm3135 = vcmp.ne.f32.partialorder %v3069, 0.0
        %vm3136 = vcmp.ne.f32.partialorder %v3075, 0.0
        %vm3137 = vcmp.ne.f32.partialorder %v3082, 0.0
        %vm3138 = vcmp.ne.f32.partialorder %v3088, 0.0
        %vm3139 = vcmp.ne.f32.partialorder %v3094, 0.0
        %vm3140 = vcmp.ne.f32.partialorder %v3100, 0.0
        %v3143 = vrot.slane %v2849, 1
        %v3144 = vrot.slane %v2849, 2
        %v3145 = vrot.slane %v2849, 3
        %v3146 = vrot.slane %v2849, 4
        %v3147 = vrot.slane %v2849, 5
        %v3148 = vrot.slane %v2849, 6
        %v3149 = vrot.slane %v2849, 7
        %v3150 = vrot.slane %v2850, 1
        %vm3159 = vcmp.ne.f32.partialorder %v2849, 0.0
        %vm3160 = vcmp.ne.f32.partialorder %v3143, 0.0
        %vm3161 = vcmp.ne.f32.partialorder %v3144, 0.0
        %vm3162 = vcmp.ne.f32.partialorder %v3145, 0.0
        %vm3163 = vcmp.ne.f32.partialorder %v3146, 0.0
        %vm3164 = vcmp.ne.f32.partialorder %v3147, 0.0
        %vm3165 = vcmp.ne.f32.partialorder %v3148, 0.0
        %vm3166 = vcmp.ne.f32.partialorder %v3149, 0.0
        %vm3167 = vcmp.ne.f32.partialorder %v2850, 0.0
        %vm3168 = vcmp.ne.f32.partialorder %v3150, 0.0
        %v3169 = vsel %vm3101, 1, 0
        %v3170 = vsel %vm3102, 1, 0
        %v3171 = vsel %vm3103, 1, 0
        %v3172 = vsel %vm3104, 1, 0
        %v3173 = vsel %vm3105, 1, 0
        %v3174 = vsel %vm3106, 1, 0
        %v3175 = vsel %vm3107, 1, 0
        %v3176 = vsel %vm3108, 1, 0
        %v3177 = vsel %vm3109, 1, 0
        %v3178 = vsel %vm3110, 1, 0
        %v3179 = vsel %vm3111, 1, 0
        %v3180 = vsel %vm3112, 1, 0
        %v3181 = vsel %vm3113, 1, 0
        %v3182 = vsel %vm3114, 1, 0
        %v3183 = vsel %vm3115, 1, 0
        %v3184 = vsel %vm3116, 1, 0
        %v3185 = vsel %vm3117, 1, 0
        %v3186 = vsel %vm3118, 1, 0
        %v3187 = vsel %vm3119, 1, 0
        %v3188 = vsel %vm3120, 1, 0
        %v3189 = vsel %vm3121, 1, 0
        %v3190 = vsel %vm3122, 1, 0
        %v3191 = vsel %vm3123, 1, 0
        %v3192 = vsel %vm3124, 1, 0
        %v3193 = vsel %vm3125, 1, 0
        %v3194 = vsel %vm3126, 1, 0
        %v3195 = vsel %vm3127, 1, 0
        %v3196 = vsel %vm3128, 1, 0
        %v3197 = vsel %vm3129, 1, 0
        %v3198 = vsel %vm3130, 1, 0
        %v3199 = vsel %vm3131, 1, 0
        %v3200 = vsel %vm3132, 1, 0
        %v3201 = vsel %vm3133, 1, 0
        %v3202 = vsel %vm3134, 1, 0
        %v3203 = vsel %vm3135, 1, 0
        %v3204 = vsel %vm3136, 1, 0
        %v3205 = vsel %vm3137, 1, 0
        %v3206 = vsel %vm3138, 1, 0
        %v3207 = vsel %vm3139, 1, 0
        %v3208 = vsel %vm3140, 1, 0
        %vm3209 = vcmp.eq.s32.totalorder %v3169, 1
        %vm3210 = vcmp.eq.s32.totalorder %v3170, 1
        %vm3211 = vcmp.eq.s32.totalorder %v3171, 1
        %vm3212 = vcmp.eq.s32.totalorder %v3172, 1
        %vm3213 = vcmp.eq.s32.totalorder %v3173, 1
        %vm3214 = vcmp.eq.s32.totalorder %v3174, 1
        %vm3215 = vcmp.eq.s32.totalorder %v3175, 1
        %vm3216 = vcmp.eq.s32.totalorder %v3176, 1
        %vm3217 = vcmp.eq.s32.totalorder %v3177, 1
        %vm3218 = vcmp.eq.s32.totalorder %v3178, 1
        %vm3219 = vcmp.eq.s32.totalorder %v3179, 1
        %vm3220 = vcmp.eq.s32.totalorder %v3180, 1
        %vm3221 = vcmp.eq.s32.totalorder %v3181, 1
        %vm3222 = vcmp.eq.s32.totalorder %v3182, 1
        %vm3223 = vcmp.eq.s32.totalorder %v3183, 1
        %vm3224 = vcmp.eq.s32.totalorder %v3184, 1
        %vm3225 = vcmp.eq.s32.totalorder %v3185, 1
        %vm3226 = vcmp.eq.s32.totalorder %v3186, 1
        %vm3227 = vcmp.eq.s32.totalorder %v3187, 1
        %vm3228 = vcmp.eq.s32.totalorder %v3188, 1
        %vm3229 = vcmp.eq.s32.totalorder %v3189, 1
        %vm3230 = vcmp.eq.s32.totalorder %v3190, 1
        %vm3231 = vcmp.eq.s32.totalorder %v3191, 1
        %vm3232 = vcmp.eq.s32.totalorder %v3192, 1
        %vm3233 = vcmp.eq.s32.totalorder %v3193, 1
        %vm3234 = vcmp.eq.s32.totalorder %v3194, 1
        %vm3235 = vcmp.eq.s32.totalorder %v3195, 1
        %vm3236 = vcmp.eq.s32.totalorder %v3196, 1
        %vm3237 = vcmp.eq.s32.totalorder %v3197, 1
        %vm3238 = vcmp.eq.s32.totalorder %v3198, 1
        %vm3239 = vcmp.eq.s32.totalorder %v3199, 1
        %vm3240 = vcmp.eq.s32.totalorder %v3200, 1
        %vm3241 = vcmp.eq.s32.totalorder %v3201, 1
        %vm3242 = vcmp.eq.s32.totalorder %v3202, 1
        %vm3243 = vcmp.eq.s32.totalorder %v3203, 1
        %vm3244 = vcmp.eq.s32.totalorder %v3204, 1
        %vm3245 = vcmp.eq.s32.totalorder %v3205, 1
        %vm3246 = vcmp.eq.s32.totalorder %v3206, 1
        %vm3247 = vcmp.eq.s32.totalorder %v3207, 1
        %vm3248 = vcmp.eq.s32.totalorder %v3208, 1
        %v3249 = vsel %vm3159, 1, 0
        %v3250 = vsel %vm3160, 1, 0
        %v3251 = vsel %vm3161, 1, 0
        %v3252 = vsel %vm3162, 1, 0
        %v3253 = vsel %vm3163, 1, 0
        %v3254 = vsel %vm3164, 1, 0
        %v3255 = vsel %vm3165, 1, 0
        %v3256 = vsel %vm3166, 1, 0
        %v3257 = vsel %vm3167, 1, 0
        %v3258 = vsel %vm3168, 1, 0
        %v3259 = vperm.slane %v3249, 0
        %v3260 = vperm.slane %v3250, 0
        %v3261 = vperm.slane %v3251, 0
        %v3262 = vperm.slane %v3252, 0
        %v3263 = vperm.slane %v3253, 0
        %v3264 = vperm.slane %v3254, 0
        %v3265 = vperm.slane %v3255, 0
        %v3266 = vperm.slane %v3256, 0
        %v3267 = vperm.slane %v3257, 0
        %v3268 = vperm.slane %v3258, 0
        %vm3269 = vcmp.eq.s32.totalorder %v3259, 1
        %vm3270 = vcmp.eq.s32.totalorder %v3260, 1
        %vm3271 = vcmp.eq.s32.totalorder %v3261, 1
        %vm3272 = vcmp.eq.s32.totalorder %v3262, 1
        %vm3273 = vcmp.eq.s32.totalorder %v3263, 1
        %vm3274 = vcmp.eq.s32.totalorder %v3264, 1
        %vm3275 = vcmp.eq.s32.totalorder %v3265, 1
        %vm3276 = vcmp.eq.s32.totalorder %v3266, 1
        %vm3277 = vcmp.eq.s32.totalorder %v3267, 1
        %vm3278 = vcmp.eq.s32.totalorder %v3268, 1
        %vm3279 = vmand %vm3209, %vm3269
        %vm3280 = vmand %vm3210, %vm3269
        %vm3281 = vmand %vm3211, %vm3269
        %vm3282 = vmand %vm3212, %vm3269
        %vm3283 = vmand %vm3213, %vm3270
        %vm3284 = vmand %vm3214, %vm3270
        %vm3285 = vmand %vm3215, %vm3270
        %vm3286 = vmand %vm3216, %vm3270
        %vm3287 = vmand %vm3217, %vm3271
        %vm3288 = vmand %vm3218, %vm3271
        %vm3289 = vmand %vm3219, %vm3271
        %vm3290 = vmand %vm3220, %vm3271
        %vm3291 = vmand %vm3221, %vm3272
        %vm3292 = vmand %vm3222, %vm3272
        %vm3293 = vmand %vm3223, %vm3272
        %vm3294 = vmand %vm3224, %vm3272
        %vm3295 = vmand %vm3225, %vm3273
        %vm3296 = vmand %vm3226, %vm3273
        %vm3297 = vmand %vm3227, %vm3273
        %vm3298 = vmand %vm3228, %vm3273
        %vm3299 = vmand %vm3229, %vm3274
        %vm3300 = vmand %vm3230, %vm3274
        %vm3301 = vmand %vm3231, %vm3274
        %vm3302 = vmand %vm3232, %vm3274
        %vm3303 = vmand %vm3233, %vm3275
        %vm3304 = vmand %vm3234, %vm3275
        %vm3305 = vmand %vm3235, %vm3275
        %vm3306 = vmand %vm3236, %vm3275
        %vm3307 = vmand %vm3237, %vm3276
        %vm3308 = vmand %vm3238, %vm3276
        %vm3309 = vmand %vm3239, %vm3276
        %vm3310 = vmand %vm3240, %vm3276
        %vm3311 = vmand %vm3241, %vm3277
        %vm3312 = vmand %vm3242, %vm3277
        %vm3313 = vmand %vm3243, %vm3277
        %vm3314 = vmand %vm3244, %vm3277
        %vm3315 = vmand %vm3245, %vm3278
        %vm3316 = vmand %vm3246, %vm3278
        %vm3317 = vmand %vm3247, %vm3278
        %vm3318 = vmand %vm3248, %vm3278
        %v3319 = vsel %vm3279, %v1683, -1.0737418e+09
        %v3320 = vsel %vm3280, %v1685, -1.0737418e+09
        %v3321 = vsel %vm3281, %v1688, -1.0737418e+09
        %v3322 = vsel %vm3282, %v1690, -1.0737418e+09
        %v3323 = vsel %vm3283, %v1798, -1.0737418e+09
        %v3324 = vsel %vm3284, %v1800, -1.0737418e+09
        %v3325 = vsel %vm3285, %v1803, -1.0737418e+09
        %v3326 = vsel %vm3286, %v1805, -1.0737418e+09
        %v3327 = vsel %vm3287, %v1913, -1.0737418e+09
        %v3328 = vsel %vm3288, %v1915, -1.0737418e+09
        %v3329 = vsel %vm3289, %v1918, -1.0737418e+09
        %v3330 = vsel %vm3290, %v1920, -1.0737418e+09
        %v3331 = vsel %vm3291, %v2028, -1.0737418e+09
        %v3332 = vsel %vm3292, %v2030, -1.0737418e+09
        %v3333 = vsel %vm3293, %v2033, -1.0737418e+09
        %v3334 = vsel %vm3294, %v2035, -1.0737418e+09
        %v3335 = vsel %vm3295, %v2143, -1.0737418e+09
        %v3336 = vsel %vm3296, %v2145, -1.0737418e+09
        %v3337 = vsel %vm3297, %v2148, -1.0737418e+09
        %v3338 = vsel %vm3298, %v2150, -1.0737418e+09
        %v3339 = vsel %vm3299, %v2258, -1.0737418e+09
        %v3340 = vsel %vm3300, %v2260, -1.0737418e+09
        %v3341 = vsel %vm3301, %v2263, -1.0737418e+09
        %v3342 = vsel %vm3302, %v2265, -1.0737418e+09
        %v3343 = vsel %vm3303, %v2373, -1.0737418e+09
        %v3344 = vsel %vm3304, %v2375, -1.0737418e+09
        %v3345 = vsel %vm3305, %v2378, -1.0737418e+09
        %v3346 = vsel %vm3306, %v2380, -1.0737418e+09
        %v3347 = vsel %vm3307, %v2488, -1.0737418e+09
        %v3348 = vsel %vm3308, %v2490, -1.0737418e+09
        %v3349 = vsel %vm3309, %v2493, -1.0737418e+09
        %v3350 = vsel %vm3310, %v2495, -1.0737418e+09
        %v3351 = vsel %vm3311, %v2603, -1.0737418e+09
        %v3352 = vsel %vm3312, %v2605, -1.0737418e+09
        %v3353 = vsel %vm3313, %v2608, -1.0737418e+09
        %v3354 = vsel %vm3314, %v2610, -1.0737418e+09
        %v3355 = vsel %vm3315, %v2718, -1.0737418e+09
        %v3356 = vsel %vm3316, %v2720, -1.0737418e+09
        %v3357 = vsel %vm3317, %v2723, -1.0737418e+09
        %v3358 = vsel %vm3318, %v2725, -1.0737418e+09
        %v3359 = vld [vmem:[%s3] sm:$0x1]
        %vm3360 = vcmp.eq.s32.totalorder %v3359, 0
        %v3361 = vsel %vm3360, 1, 0
        %v3362 = vperm.slane %v3361, 0
        %vm3363 = vcmp.eq.s32.totalorder %v3362, 1
        %v3364 = vsel %vm3363, %v3319, -3e+38
        %v3365 = vsel %vm3363, %v3320, -3e+38
        %v3366 = vsel %vm3363, %v3321, -3e+38
        %v3367 = vsel %vm3363, %v3322, -3e+38
        %v3368 = vsel %vm3363, %v3323, -3e+38
        %v3369 = vsel %vm3363, %v3324, -3e+38
        %v3370 = vsel %vm3363, %v3325, -3e+38
        %v3371 = vsel %vm3363, %v3326, -3e+38
        %v3372 = vsel %vm3363, %v3327, -3e+38
        %v3373 = vsel %vm3363, %v3328, -3e+38
        %v3374 = vsel %vm3363, %v3329, -3e+38
        %v3375 = vsel %vm3363, %v3330, -3e+38
        %v3376 = vsel %vm3363, %v3331, -3e+38
        %v3377 = vsel %vm3363, %v3332, -3e+38
        %v3378 = vsel %vm3363, %v3333, -3e+38
        %v3379 = vsel %vm3363, %v3334, -3e+38
        %v3380 = vsel %vm3363, %v3335, -3e+38
        %v3381 = vsel %vm3363, %v3336, -3e+38
        %v3382 = vsel %vm3363, %v3337, -3e+38
        %v3383 = vsel %vm3363, %v3338, -3e+38
        %v3384 = vsel %vm3363, %v3339, -3e+38
        %v3385 = vsel %vm3363, %v3340, -3e+38
        %v3386 = vsel %vm3363, %v3341, -3e+38
        %v3387 = vsel %vm3363, %v3342, -3e+38
        %v3388 = vsel %vm3363, %v3343, -3e+38
        %v3389 = vsel %vm3363, %v3344, -3e+38
        %v3390 = vsel %vm3363, %v3345, -3e+38
        %v3391 = vsel %vm3363, %v3346, -3e+38
        %v3392 = vsel %vm3363, %v3347, -3e+38
        %v3393 = vsel %vm3363, %v3348, -3e+38
        %v3394 = vsel %vm3363, %v3349, -3e+38
        %v3395 = vsel %vm3363, %v3350, -3e+38
        %v3396 = vsel %vm3363, %v3351, -3e+38
        %v3397 = vsel %vm3363, %v3352, -3e+38
        %v3398 = vsel %vm3363, %v3353, -3e+38
        %v3399 = vsel %vm3363, %v3354, -3e+38
        %v3400 = vsel %vm3363, %v3355, -3e+38
        %v3401 = vsel %vm3363, %v3356, -3e+38
        %v3402 = vsel %vm3363, %v3357, -3e+38
        %v3403 = vsel %vm3363, %v3358, -3e+38
        %3404 = vmax.xlane.f32.xlu0 %v3364
        %v3405 = vpop.xlane.xlu0 %3404
        %3406 = vmax.xlane.f32.xlu0 %v3365
        %v3407 = vpop.xlane.xlu0 %3406
        %3408 = vmax.xlane.f32.xlu0 %v3366
        %v3409 = vpop.xlane.xlu0 %3408
        %3410 = vmax.xlane.f32.xlu0 %v3367
        %v3411 = vpop.xlane.xlu0 %3410
        %3412 = vmax.xlane.f32.xlu0 %v3368
        %v3413 = vpop.xlane.xlu0 %3412
        %3414 = vmax.xlane.f32.xlu0 %v3369
        %v3415 = vpop.xlane.xlu0 %3414
        %3416 = vmax.xlane.f32.xlu0 %v3370
        %v3417 = vpop.xlane.xlu0 %3416
        %3418 = vmax.xlane.f32.xlu0 %v3371
        %v3419 = vpop.xlane.xlu0 %3418
        %3420 = vmax.xlane.f32.xlu0 %v3372
        %v3421 = vpop.xlane.xlu0 %3420
        %3422 = vmax.xlane.f32.xlu0 %v3373
        %v3423 = vpop.xlane.xlu0 %3422
        %3424 = vmax.xlane.f32.xlu0 %v3374
        %v3425 = vpop.xlane.xlu0 %3424
        %3426 = vmax.xlane.f32.xlu0 %v3375
        %v3427 = vpop.xlane.xlu0 %3426
        %3428 = vmax.xlane.f32.xlu0 %v3376
        %v3429 = vpop.xlane.xlu0 %3428
        %3430 = vmax.xlane.f32.xlu0 %v3377
        %v3431 = vpop.xlane.xlu0 %3430
        %3432 = vmax.xlane.f32.xlu0 %v3378
        %v3433 = vpop.xlane.xlu0 %3432
        %3434 = vmax.xlane.f32.xlu0 %v3379
        %v3435 = vpop.xlane.xlu0 %3434
        %3436 = vmax.xlane.f32.xlu0 %v3380
        %v3437 = vpop.xlane.xlu0 %3436
        %3438 = vmax.xlane.f32.xlu0 %v3381
        %v3439 = vpop.xlane.xlu0 %3438
        %3440 = vmax.xlane.f32.xlu0 %v3382
        %v3441 = vpop.xlane.xlu0 %3440
        %3442 = vmax.xlane.f32.xlu0 %v3383
        %v3443 = vpop.xlane.xlu0 %3442
        %3444 = vmax.xlane.f32.xlu0 %v3384
        %v3445 = vpop.xlane.xlu0 %3444
        %3446 = vmax.xlane.f32.xlu0 %v3385
        %v3447 = vpop.xlane.xlu0 %3446
        %3448 = vmax.xlane.f32.xlu0 %v3386
        %v3449 = vpop.xlane.xlu0 %3448
        %3450 = vmax.xlane.f32.xlu0 %v3387
        %v3451 = vpop.xlane.xlu0 %3450
        %3452 = vmax.xlane.f32.xlu0 %v3388
        %v3453 = vpop.xlane.xlu0 %3452
        %3454 = vmax.xlane.f32.xlu0 %v3389
        %v3455 = vpop.xlane.xlu0 %3454
        %3456 = vmax.xlane.f32.xlu0 %v3390
        %v3457 = vpop.xlane.xlu0 %3456
        %3458 = vmax.xlane.f32.xlu0 %v3391
        %v3459 = vpop.xlane.xlu0 %3458
        %3460 = vmax.xlane.f32.xlu0 %v3392
        %v3461 = vpop.xlane.xlu0 %3460
        %3462 = vmax.xlane.f32.xlu0 %v3393
        %v3463 = vpop.xlane.xlu0 %3462
        %3464 = vmax.xlane.f32.xlu0 %v3394
        %v3465 = vpop.xlane.xlu0 %3464
        %3466 = vmax.xlane.f32.xlu0 %v3395
        %v3467 = vpop.xlane.xlu0 %3466
        %3468 = vmax.xlane.f32.xlu0 %v3396
        %v3469 = vpop.xlane.xlu0 %3468
        %3470 = vmax.xlane.f32.xlu0 %v3397
        %v3471 = vpop.xlane.xlu0 %3470
        %3472 = vmax.xlane.f32.xlu0 %v3398
        %v3473 = vpop.xlane.xlu0 %3472
        %3474 = vmax.xlane.f32.xlu0 %v3399
        %v3475 = vpop.xlane.xlu0 %3474
        %3476 = vmax.xlane.f32.xlu0 %v3400
        %v3477 = vpop.xlane.xlu0 %3476
        %3478 = vmax.xlane.f32.xlu0 %v3401
        %v3479 = vpop.xlane.xlu0 %3478
        %3480 = vmax.xlane.f32.xlu0 %v3402
        %v3481 = vpop.xlane.xlu0 %3480
        %3482 = vmax.xlane.f32.xlu0 %v3403
        %v3483 = vpop.xlane.xlu0 %3482
        %v3484 = vsel %vm3363, %v3405, 0.0
        %v3485 = vsel %vm3363, %v3407, 0.0
        %v3486 = vsel %vm3363, %v3409, 0.0
        %v3487 = vsel %vm3363, %v3411, 0.0
        %v3488 = vsel %vm3363, %v3413, 0.0
        %v3489 = vsel %vm3363, %v3415, 0.0
        %v3490 = vsel %vm3363, %v3417, 0.0
        %v3491 = vsel %vm3363, %v3419, 0.0
        %v3492 = vsel %vm3363, %v3421, 0.0
        %v3493 = vsel %vm3363, %v3423, 0.0
        %v3494 = vsel %vm3363, %v3425, 0.0
        %v3495 = vsel %vm3363, %v3427, 0.0
        %v3496 = vsel %vm3363, %v3429, 0.0
        %v3497 = vsel %vm3363, %v3431, 0.0
        %v3498 = vsel %vm3363, %v3433, 0.0
        %v3499 = vsel %vm3363, %v3435, 0.0
        %v3500 = vsel %vm3363, %v3437, 0.0
        %v3501 = vsel %vm3363, %v3439, 0.0
        %v3502 = vsel %vm3363, %v3441, 0.0
        %v3503 = vsel %vm3363, %v3443, 0.0
        %v3504 = vsel %vm3363, %v3445, 0.0
        %v3505 = vsel %vm3363, %v3447, 0.0
        %v3506 = vsel %vm3363, %v3449, 0.0
        %v3507 = vsel %vm3363, %v3451, 0.0
        %v3508 = vsel %vm3363, %v3453, 0.0
        %v3509 = vsel %vm3363, %v3455, 0.0
        %v3510 = vsel %vm3363, %v3457, 0.0
        %v3511 = vsel %vm3363, %v3459, 0.0
        %v3512 = vsel %vm3363, %v3461, 0.0
        %v3513 = vsel %vm3363, %v3463, 0.0
        %v3514 = vsel %vm3363, %v3465, 0.0
        %v3515 = vsel %vm3363, %v3467, 0.0
        %v3516 = vsel %vm3363, %v3469, 0.0
        %v3517 = vsel %vm3363, %v3471, 0.0
        %v3518 = vsel %vm3363, %v3473, 0.0
        %v3519 = vsel %vm3363, %v3475, 0.0
        %v3520 = vsel %vm3363, %v3477, 0.0
        %v3521 = vsel %vm3363, %v3479, 0.0
        %v3522 = vsel %vm3363, %v3481, 0.0
        %v3523 = vsel %vm3363, %v3483, 0.0
        %vm3524 = vcmp.eq.s32.totalorder %v3359, 1
        %v3525 = vsel %vm3524, 1, 0
        %v3526 = vperm.slane %v3525, 0
        %vm3527 = vcmp.eq.s32.totalorder %v3526, 1
        %v3528 = vsel %vm3527, %v3319, -3e+38
        %v3529 = vsel %vm3527, %v3320, -3e+38
        %v3530 = vsel %vm3527, %v3321, -3e+38
        %v3531 = vsel %vm3527, %v3322, -3e+38
        %v3532 = vsel %vm3527, %v3323, -3e+38
        %v3533 = vsel %vm3527, %v3324, -3e+38
        %v3534 = vsel %vm3527, %v3325, -3e+38
        %v3535 = vsel %vm3527, %v3326, -3e+38
        %v3536 = vsel %vm3527, %v3327, -3e+38
        %v3537 = vsel %vm3527, %v3328, -3e+38
        %v3538 = vsel %vm3527, %v3329, -3e+38
        %v3539 = vsel %vm3527, %v3330, -3e+38
        %v3540 = vsel %vm3527, %v3331, -3e+38
        %v3541 = vsel %vm3527, %v3332, -3e+38
        %v3542 = vsel %vm3527, %v3333, -3e+38
        %v3543 = vsel %vm3527, %v3334, -3e+38
        %v3544 = vsel %vm3527, %v3335, -3e+38
        %v3545 = vsel %vm3527, %v3336, -3e+38
        %v3546 = vsel %vm3527, %v3337, -3e+38
        %v3547 = vsel %vm3527, %v3338, -3e+38
        %v3548 = vsel %vm3527, %v3339, -3e+38
        %v3549 = vsel %vm3527, %v3340, -3e+38
        %v3550 = vsel %vm3527, %v3341, -3e+38
        %v3551 = vsel %vm3527, %v3342, -3e+38
        %v3552 = vsel %vm3527, %v3343, -3e+38
        %v3553 = vsel %vm3527, %v3344, -3e+38
        %v3554 = vsel %vm3527, %v3345, -3e+38
        %v3555 = vsel %vm3527, %v3346, -3e+38
        %v3556 = vsel %vm3527, %v3347, -3e+38
        %v3557 = vsel %vm3527, %v3348, -3e+38
        %v3558 = vsel %vm3527, %v3349, -3e+38
        %v3559 = vsel %vm3527, %v3350, -3e+38
        %v3560 = vsel %vm3527, %v3351, -3e+38
        %v3561 = vsel %vm3527, %v3352, -3e+38
        %v3562 = vsel %vm3527, %v3353, -3e+38
        %v3563 = vsel %vm3527, %v3354, -3e+38
        %v3564 = vsel %vm3527, %v3355, -3e+38
        %v3565 = vsel %vm3527, %v3356, -3e+38
        %v3566 = vsel %vm3527, %v3357, -3e+38
        %v3567 = vsel %vm3527, %v3358, -3e+38
        %3568 = vmax.xlane.f32.xlu0 %v3528
        %v3569 = vpop.xlane.xlu0 %3568
        %3570 = vmax.xlane.f32.xlu0 %v3529
        %v3571 = vpop.xlane.xlu0 %3570
        %3572 = vmax.xlane.f32.xlu0 %v3530
        %v3573 = vpop.xlane.xlu0 %3572
        %3574 = vmax.xlane.f32.xlu0 %v3531
        %v3575 = vpop.xlane.xlu0 %3574
        %3576 = vmax.xlane.f32.xlu0 %v3532
        %v3577 = vpop.xlane.xlu0 %3576
        %3578 = vmax.xlane.f32.xlu0 %v3533
        %v3579 = vpop.xlane.xlu0 %3578
        %3580 = vmax.xlane.f32.xlu0 %v3534
        %v3581 = vpop.xlane.xlu0 %3580
        %3582 = vmax.xlane.f32.xlu0 %v3535
        %v3583 = vpop.xlane.xlu0 %3582
        %3584 = vmax.xlane.f32.xlu0 %v3536
        %v3585 = vpop.xlane.xlu0 %3584
        %3586 = vmax.xlane.f32.xlu0 %v3537
        %v3587 = vpop.xlane.xlu0 %3586
        %3588 = vmax.xlane.f32.xlu0 %v3538
        %v3589 = vpop.xlane.xlu0 %3588
        %3590 = vmax.xlane.f32.xlu0 %v3539
        %v3591 = vpop.xlane.xlu0 %3590
        %3592 = vmax.xlane.f32.xlu0 %v3540
        %v3593 = vpop.xlane.xlu0 %3592
        %3594 = vmax.xlane.f32.xlu0 %v3541
        %v3595 = vpop.xlane.xlu0 %3594
        %3596 = vmax.xlane.f32.xlu0 %v3542
        %v3597 = vpop.xlane.xlu0 %3596
        %3598 = vmax.xlane.f32.xlu0 %v3543
        %v3599 = vpop.xlane.xlu0 %3598
        %3600 = vmax.xlane.f32.xlu0 %v3544
        %v3601 = vpop.xlane.xlu0 %3600
        %3602 = vmax.xlane.f32.xlu0 %v3545
        %v3603 = vpop.xlane.xlu0 %3602
        %3604 = vmax.xlane.f32.xlu0 %v3546
        %v3605 = vpop.xlane.xlu0 %3604
        %3606 = vmax.xlane.f32.xlu0 %v3547
        %v3607 = vpop.xlane.xlu0 %3606
        %3608 = vmax.xlane.f32.xlu0 %v3548
        %v3609 = vpop.xlane.xlu0 %3608
        %3610 = vmax.xlane.f32.xlu0 %v3549
        %v3611 = vpop.xlane.xlu0 %3610
        %3612 = vmax.xlane.f32.xlu0 %v3550
        %v3613 = vpop.xlane.xlu0 %3612
        %3614 = vmax.xlane.f32.xlu0 %v3551
        %v3615 = vpop.xlane.xlu0 %3614
        %3616 = vmax.xlane.f32.xlu0 %v3552
        %v3617 = vpop.xlane.xlu0 %3616
        %3618 = vmax.xlane.f32.xlu0 %v3553
        %v3619 = vpop.xlane.xlu0 %3618
        %3620 = vmax.xlane.f32.xlu0 %v3554
        %v3621 = vpop.xlane.xlu0 %3620
        %3622 = vmax.xlane.f32.xlu0 %v3555
        %v3623 = vpop.xlane.xlu0 %3622
        %3624 = vmax.xlane.f32.xlu0 %v3556
        %v3625 = vpop.xlane.xlu0 %3624
        %3626 = vmax.xlane.f32.xlu0 %v3557
        %v3627 = vpop.xlane.xlu0 %3626
        %3628 = vmax.xlane.f32.xlu0 %v3558
        %v3629 = vpop.xlane.xlu0 %3628
        %3630 = vmax.xlane.f32.xlu0 %v3559
        %v3631 = vpop.xlane.xlu0 %3630
        %3632 = vmax.xlane.f32.xlu0 %v3560
        %v3633 = vpop.xlane.xlu0 %3632
        %3634 = vmax.xlane.f32.xlu0 %v3561
        %v3635 = vpop.xlane.xlu0 %3634
        %3636 = vmax.xlane.f32.xlu0 %v3562
        %v3637 = vpop.xlane.xlu0 %3636
        %3638 = vmax.xlane.f32.xlu0 %v3563
        %v3639 = vpop.xlane.xlu0 %3638
        %3640 = vmax.xlane.f32.xlu0 %v3564
        %v3641 = vpop.xlane.xlu0 %3640
        %3642 = vmax.xlane.f32.xlu0 %v3565
        %v3643 = vpop.xlane.xlu0 %3642
        %3644 = vmax.xlane.f32.xlu0 %v3566
        %v3645 = vpop.xlane.xlu0 %3644
        %3646 = vmax.xlane.f32.xlu0 %v3567
        %v3647 = vpop.xlane.xlu0 %3646
        %v3648 = vsel %vm3527, %v3569, %v3484
        %v3649 = vsel %vm3527, %v3571, %v3485
        %v3650 = vsel %vm3527, %v3573, %v3486
        %v3651 = vsel %vm3527, %v3575, %v3487
        %v3652 = vsel %vm3527, %v3577, %v3488
        %v3653 = vsel %vm3527, %v3579, %v3489
        %v3654 = vsel %vm3527, %v3581, %v3490
        %v3655 = vsel %vm3527, %v3583, %v3491
        %v3656 = vsel %vm3527, %v3585, %v3492
        %v3657 = vsel %vm3527, %v3587, %v3493
        %v3658 = vsel %vm3527, %v3589, %v3494
        %v3659 = vsel %vm3527, %v3591, %v3495
        %v3660 = vsel %vm3527, %v3593, %v3496
        %v3661 = vsel %vm3527, %v3595, %v3497
        %v3662 = vsel %vm3527, %v3597, %v3498
        %v3663 = vsel %vm3527, %v3599, %v3499
        %v3664 = vsel %vm3527, %v3601, %v3500
        %v3665 = vsel %vm3527, %v3603, %v3501
        %v3666 = vsel %vm3527, %v3605, %v3502
        %v3667 = vsel %vm3527, %v3607, %v3503
        %v3668 = vsel %vm3527, %v3609, %v3504
        %v3669 = vsel %vm3527, %v3611, %v3505
        %v3670 = vsel %vm3527, %v3613, %v3506
        %v3671 = vsel %vm3527, %v3615, %v3507
        %v3672 = vsel %vm3527, %v3617, %v3508
        %v3673 = vsel %vm3527, %v3619, %v3509
        %v3674 = vsel %vm3527, %v3621, %v3510
        %v3675 = vsel %vm3527, %v3623, %v3511
        %v3676 = vsel %vm3527, %v3625, %v3512
        %v3677 = vsel %vm3527, %v3627, %v3513
        %v3678 = vsel %vm3527, %v3629, %v3514
        %v3679 = vsel %vm3527, %v3631, %v3515
        %v3680 = vsel %vm3527, %v3633, %v3516
        %v3681 = vsel %vm3527, %v3635, %v3517
        %v3682 = vsel %vm3527, %v3637, %v3518
        %v3683 = vsel %vm3527, %v3639, %v3519
        %v3684 = vsel %vm3527, %v3641, %v3520
        %v3685 = vsel %vm3527, %v3643, %v3521
        %v3686 = vsel %vm3527, %v3645, %v3522
        %v3687 = vsel %vm3527, %v3647, %v3523
        %vm3688 = vcmp.eq.s32.totalorder %v3359, 2
        %v3689 = vsel %vm3688, 1, 0
        %v3690 = vperm.slane %v3689, 0
        %vm3691 = vcmp.eq.s32.totalorder %v3690, 1
        %v3692 = vsel %vm3691, %v3319, -3e+38
        %v3693 = vsel %vm3691, %v3320, -3e+38
        %v3694 = vsel %vm3691, %v3321, -3e+38
        %v3695 = vsel %vm3691, %v3322, -3e+38
        %v3696 = vsel %vm3691, %v3323, -3e+38
        %v3697 = vsel %vm3691, %v3324, -3e+38
        %v3698 = vsel %vm3691, %v3325, -3e+38
        %v3699 = vsel %vm3691, %v3326, -3e+38
        %v3700 = vsel %vm3691, %v3327, -3e+38
        %v3701 = vsel %vm3691, %v3328, -3e+38
        %v3702 = vsel %vm3691, %v3329, -3e+38
        %v3703 = vsel %vm3691, %v3330, -3e+38
        %v3704 = vsel %vm3691, %v3331, -3e+38
        %v3705 = vsel %vm3691, %v3332, -3e+38
        %v3706 = vsel %vm3691, %v3333, -3e+38
        %v3707 = vsel %vm3691, %v3334, -3e+38
        %v3708 = vsel %vm3691, %v3335, -3e+38
        %v3709 = vsel %vm3691, %v3336, -3e+38
        %v3710 = vsel %vm3691, %v3337, -3e+38
        %v3711 = vsel %vm3691, %v3338, -3e+38
        %v3712 = vsel %vm3691, %v3339, -3e+38
        %v3713 = vsel %vm3691, %v3340, -3e+38
        %v3714 = vsel %vm3691, %v3341, -3e+38
        %v3715 = vsel %vm3691, %v3342, -3e+38
        %v3716 = vsel %vm3691, %v3343, -3e+38
        %v3717 = vsel %vm3691, %v3344, -3e+38
        %v3718 = vsel %vm3691, %v3345, -3e+38
        %v3719 = vsel %vm3691, %v3346, -3e+38
        %v3720 = vsel %vm3691, %v3347, -3e+38
        %v3721 = vsel %vm3691, %v3348, -3e+38
        %v3722 = vsel %vm3691, %v3349, -3e+38
        %v3723 = vsel %vm3691, %v3350, -3e+38
        %v3724 = vsel %vm3691, %v3351, -3e+38
        %v3725 = vsel %vm3691, %v3352, -3e+38
        %v3726 = vsel %vm3691, %v3353, -3e+38
        %v3727 = vsel %vm3691, %v3354, -3e+38
        %v3728 = vsel %vm3691, %v3355, -3e+38
        %v3729 = vsel %vm3691, %v3356, -3e+38
        %v3730 = vsel %vm3691, %v3357, -3e+38
        %v3731 = vsel %vm3691, %v3358, -3e+38
        %3732 = vmax.xlane.f32.xlu0 %v3692
        %v3733 = vpop.xlane.xlu0 %3732
        %3734 = vmax.xlane.f32.xlu0 %v3693
        %v3735 = vpop.xlane.xlu0 %3734
        %3736 = vmax.xlane.f32.xlu0 %v3694
        %v3737 = vpop.xlane.xlu0 %3736
        %3738 = vmax.xlane.f32.xlu0 %v3695
        %v3739 = vpop.xlane.xlu0 %3738
        %3740 = vmax.xlane.f32.xlu0 %v3696
        %v3741 = vpop.xlane.xlu0 %3740
        %3742 = vmax.xlane.f32.xlu0 %v3697
        %v3743 = vpop.xlane.xlu0 %3742
        %3744 = vmax.xlane.f32.xlu0 %v3698
        %v3745 = vpop.xlane.xlu0 %3744
        %3746 = vmax.xlane.f32.xlu0 %v3699
        %v3747 = vpop.xlane.xlu0 %3746
        %3748 = vmax.xlane.f32.xlu0 %v3700
        %v3749 = vpop.xlane.xlu0 %3748
        %3750 = vmax.xlane.f32.xlu0 %v3701
        %v3751 = vpop.xlane.xlu0 %3750
        %3752 = vmax.xlane.f32.xlu0 %v3702
        %v3753 = vpop.xlane.xlu0 %3752
        %3754 = vmax.xlane.f32.xlu0 %v3703
        %v3755 = vpop.xlane.xlu0 %3754
        %3756 = vmax.xlane.f32.xlu0 %v3704
        %v3757 = vpop.xlane.xlu0 %3756
        %3758 = vmax.xlane.f32.xlu0 %v3705
        %v3759 = vpop.xlane.xlu0 %3758
        %3760 = vmax.xlane.f32.xlu0 %v3706
        %v3761 = vpop.xlane.xlu0 %3760
        %3762 = vmax.xlane.f32.xlu0 %v3707
        %v3763 = vpop.xlane.xlu0 %3762
        %3764 = vmax.xlane.f32.xlu0 %v3708
        %v3765 = vpop.xlane.xlu0 %3764
        %3766 = vmax.xlane.f32.xlu0 %v3709
        %v3767 = vpop.xlane.xlu0 %3766
        %3768 = vmax.xlane.f32.xlu0 %v3710
        %v3769 = vpop.xlane.xlu0 %3768
        %3770 = vmax.xlane.f32.xlu0 %v3711
        %v3771 = vpop.xlane.xlu0 %3770
        %3772 = vmax.xlane.f32.xlu0 %v3712
        %v3773 = vpop.xlane.xlu0 %3772
        %3774 = vmax.xlane.f32.xlu0 %v3713
        %v3775 = vpop.xlane.xlu0 %3774
        %3776 = vmax.xlane.f32.xlu0 %v3714
        %v3777 = vpop.xlane.xlu0 %3776
        %3778 = vmax.xlane.f32.xlu0 %v3715
        %v3779 = vpop.xlane.xlu0 %3778
        %3780 = vmax.xlane.f32.xlu0 %v3716
        %v3781 = vpop.xlane.xlu0 %3780
        %3782 = vmax.xlane.f32.xlu0 %v3717
        %v3783 = vpop.xlane.xlu0 %3782
        %3784 = vmax.xlane.f32.xlu0 %v3718
        %v3785 = vpop.xlane.xlu0 %3784
        %3786 = vmax.xlane.f32.xlu0 %v3719
        %v3787 = vpop.xlane.xlu0 %3786
        %3788 = vmax.xlane.f32.xlu0 %v3720
        %v3789 = vpop.xlane.xlu0 %3788
        %3790 = vmax.xlane.f32.xlu0 %v3721
        %v3791 = vpop.xlane.xlu0 %3790
        %3792 = vmax.xlane.f32.xlu0 %v3722
        %v3793 = vpop.xlane.xlu0 %3792
        %3794 = vmax.xlane.f32.xlu0 %v3723
        %v3795 = vpop.xlane.xlu0 %3794
        %3796 = vmax.xlane.f32.xlu0 %v3724
        %v3797 = vpop.xlane.xlu0 %3796
        %3798 = vmax.xlane.f32.xlu0 %v3725
        %v3799 = vpop.xlane.xlu0 %3798
        %3800 = vmax.xlane.f32.xlu0 %v3726
        %v3801 = vpop.xlane.xlu0 %3800
        %3802 = vmax.xlane.f32.xlu0 %v3727
        %v3803 = vpop.xlane.xlu0 %3802
        %3804 = vmax.xlane.f32.xlu0 %v3728
        %v3805 = vpop.xlane.xlu0 %3804
        %3806 = vmax.xlane.f32.xlu0 %v3729
        %v3807 = vpop.xlane.xlu0 %3806
        %3808 = vmax.xlane.f32.xlu0 %v3730
        %v3809 = vpop.xlane.xlu0 %3808
        %3810 = vmax.xlane.f32.xlu0 %v3731
        %v3811 = vpop.xlane.xlu0 %3810
        %v3812 = vsel %vm3691, %v3733, %v3648
        %v3813 = vsel %vm3691, %v3735, %v3649
        %v3814 = vsel %vm3691, %v3737, %v3650
        %v3815 = vsel %vm3691, %v3739, %v3651
        %v3816 = vsel %vm3691, %v3741, %v3652
        %v3817 = vsel %vm3691, %v3743, %v3653
        %v3818 = vsel %vm3691, %v3745, %v3654
        %v3819 = vsel %vm3691, %v3747, %v3655
        %v3820 = vsel %vm3691, %v3749, %v3656
        %v3821 = vsel %vm3691, %v3751, %v3657
        %v3822 = vsel %vm3691, %v3753, %v3658
        %v3823 = vsel %vm3691, %v3755, %v3659
        %v3824 = vsel %vm3691, %v3757, %v3660
        %v3825 = vsel %vm3691, %v3759, %v3661
        %v3826 = vsel %vm3691, %v3761, %v3662
        %v3827 = vsel %vm3691, %v3763, %v3663
        %v3828 = vsel %vm3691, %v3765, %v3664
        %v3829 = vsel %vm3691, %v3767, %v3665
        %v3830 = vsel %vm3691, %v3769, %v3666
        %v3831 = vsel %vm3691, %v3771, %v3667
        %v3832 = vsel %vm3691, %v3773, %v3668
        %v3833 = vsel %vm3691, %v3775, %v3669
        %v3834 = vsel %vm3691, %v3777, %v3670
        %v3835 = vsel %vm3691, %v3779, %v3671
        %v3836 = vsel %vm3691, %v3781, %v3672
        %v3837 = vsel %vm3691, %v3783, %v3673
        %v3838 = vsel %vm3691, %v3785, %v3674
        %v3839 = vsel %vm3691, %v3787, %v3675
        %v3840 = vsel %vm3691, %v3789, %v3676
        %v3841 = vsel %vm3691, %v3791, %v3677
        %v3842 = vsel %vm3691, %v3793, %v3678
        %v3843 = vsel %vm3691, %v3795, %v3679
        %v3844 = vsel %vm3691, %v3797, %v3680
        %v3845 = vsel %vm3691, %v3799, %v3681
        %v3846 = vsel %vm3691, %v3801, %v3682
        %v3847 = vsel %vm3691, %v3803, %v3683
        %v3848 = vsel %vm3691, %v3805, %v3684
        %v3849 = vsel %vm3691, %v3807, %v3685
        %v3850 = vsel %vm3691, %v3809, %v3686
        %v3851 = vsel %vm3691, %v3811, %v3687
        %vm3852 = vcmp.eq.s32.totalorder %v3359, 3
        %v3853 = vsel %vm3852, 1, 0
        %v3854 = vperm.slane %v3853, 0
        %vm3855 = vcmp.eq.s32.totalorder %v3854, 1
        %v3856 = vsel %vm3855, %v3319, -3e+38
        %v3857 = vsel %vm3855, %v3320, -3e+38
        %v3858 = vsel %vm3855, %v3321, -3e+38
        %v3859 = vsel %vm3855, %v3322, -3e+38
        %v3860 = vsel %vm3855, %v3323, -3e+38
        %v3861 = vsel %vm3855, %v3324, -3e+38
        %v3862 = vsel %vm3855, %v3325, -3e+38
        %v3863 = vsel %vm3855, %v3326, -3e+38
        %v3864 = vsel %vm3855, %v3327, -3e+38
        %v3865 = vsel %vm3855, %v3328, -3e+38
        %v3866 = vsel %vm3855, %v3329, -3e+38
        %v3867 = vsel %vm3855, %v3330, -3e+38
        %v3868 = vsel %vm3855, %v3331, -3e+38
        %v3869 = vsel %vm3855, %v3332, -3e+38
        %v3870 = vsel %vm3855, %v3333, -3e+38
        %v3871 = vsel %vm3855, %v3334, -3e+38
        %v3872 = vsel %vm3855, %v3335, -3e+38
        %v3873 = vsel %vm3855, %v3336, -3e+38
        %v3874 = vsel %vm3855, %v3337, -3e+38
        %v3875 = vsel %vm3855, %v3338, -3e+38
        %v3876 = vsel %vm3855, %v3339, -3e+38
        %v3877 = vsel %vm3855, %v3340, -3e+38
        %v3878 = vsel %vm3855, %v3341, -3e+38
        %v3879 = vsel %vm3855, %v3342, -3e+38
        %v3880 = vsel %vm3855, %v3343, -3e+38
        %v3881 = vsel %vm3855, %v3344, -3e+38
        %v3882 = vsel %vm3855, %v3345, -3e+38
        %v3883 = vsel %vm3855, %v3346, -3e+38
        %v3884 = vsel %vm3855, %v3347, -3e+38
        %v3885 = vsel %vm3855, %v3348, -3e+38
        %v3886 = vsel %vm3855, %v3349, -3e+38
        %v3887 = vsel %vm3855, %v3350, -3e+38
        %v3888 = vsel %vm3855, %v3351, -3e+38
        %v3889 = vsel %vm3855, %v3352, -3e+38
        %v3890 = vsel %vm3855, %v3353, -3e+38
        %v3891 = vsel %vm3855, %v3354, -3e+38
        %v3892 = vsel %vm3855, %v3355, -3e+38
        %v3893 = vsel %vm3855, %v3356, -3e+38
        %v3894 = vsel %vm3855, %v3357, -3e+38
        %v3895 = vsel %vm3855, %v3358, -3e+38
        %3896 = vmax.xlane.f32.xlu0 %v3856
        %v3897 = vpop.xlane.xlu0 %3896
        %3898 = vmax.xlane.f32.xlu0 %v3857
        %v3899 = vpop.xlane.xlu0 %3898
        %3900 = vmax.xlane.f32.xlu0 %v3858
        %v3901 = vpop.xlane.xlu0 %3900
        %3902 = vmax.xlane.f32.xlu0 %v3859
        %v3903 = vpop.xlane.xlu0 %3902
        %3904 = vmax.xlane.f32.xlu0 %v3860
        %v3905 = vpop.xlane.xlu0 %3904
        %3906 = vmax.xlane.f32.xlu0 %v3861
        %v3907 = vpop.xlane.xlu0 %3906
        %3908 = vmax.xlane.f32.xlu0 %v3862
        %v3909 = vpop.xlane.xlu0 %3908
        %3910 = vmax.xlane.f32.xlu0 %v3863
        %v3911 = vpop.xlane.xlu0 %3910
        %3912 = vmax.xlane.f32.xlu0 %v3864
        %v3913 = vpop.xlane.xlu0 %3912
        %3914 = vmax.xlane.f32.xlu0 %v3865
        %v3915 = vpop.xlane.xlu0 %3914
        %3916 = vmax.xlane.f32.xlu0 %v3866
        %v3917 = vpop.xlane.xlu0 %3916
        %3918 = vmax.xlane.f32.xlu0 %v3867
        %v3919 = vpop.xlane.xlu0 %3918
        %3920 = vmax.xlane.f32.xlu0 %v3868
        %v3921 = vpop.xlane.xlu0 %3920
        %3922 = vmax.xlane.f32.xlu0 %v3869
        %v3923 = vpop.xlane.xlu0 %3922
        %3924 = vmax.xlane.f32.xlu0 %v3870
        %v3925 = vpop.xlane.xlu0 %3924
        %3926 = vmax.xlane.f32.xlu0 %v3871
        %v3927 = vpop.xlane.xlu0 %3926
        %3928 = vmax.xlane.f32.xlu0 %v3872
        %v3929 = vpop.xlane.xlu0 %3928
        %3930 = vmax.xlane.f32.xlu0 %v3873
        %v3931 = vpop.xlane.xlu0 %3930
        %3932 = vmax.xlane.f32.xlu0 %v3874
        %v3933 = vpop.xlane.xlu0 %3932
        %3934 = vmax.xlane.f32.xlu0 %v3875
        %v3935 = vpop.xlane.xlu0 %3934
        %3936 = vmax.xlane.f32.xlu0 %v3876
        %v3937 = vpop.xlane.xlu0 %3936
        %3938 = vmax.xlane.f32.xlu0 %v3877
        %v3939 = vpop.xlane.xlu0 %3938
        %3940 = vmax.xlane.f32.xlu0 %v3878
        %v3941 = vpop.xlane.xlu0 %3940
        %3942 = vmax.xlane.f32.xlu0 %v3879
        %v3943 = vpop.xlane.xlu0 %3942
        %3944 = vmax.xlane.f32.xlu0 %v3880
        %v3945 = vpop.xlane.xlu0 %3944
        %3946 = vmax.xlane.f32.xlu0 %v3881
        %v3947 = vpop.xlane.xlu0 %3946
        %3948 = vmax.xlane.f32.xlu0 %v3882
        %v3949 = vpop.xlane.xlu0 %3948
        %3950 = vmax.xlane.f32.xlu0 %v3883
        %v3951 = vpop.xlane.xlu0 %3950
        %3952 = vmax.xlane.f32.xlu0 %v3884
        %v3953 = vpop.xlane.xlu0 %3952
        %3954 = vmax.xlane.f32.xlu0 %v3885
        %v3955 = vpop.xlane.xlu0 %3954
        %3956 = vmax.xlane.f32.xlu0 %v3886
        %v3957 = vpop.xlane.xlu0 %3956
        %3958 = vmax.xlane.f32.xlu0 %v3887
        %v3959 = vpop.xlane.xlu0 %3958
        %3960 = vmax.xlane.f32.xlu0 %v3888
        %v3961 = vpop.xlane.xlu0 %3960
        %3962 = vmax.xlane.f32.xlu0 %v3889
        %v3963 = vpop.xlane.xlu0 %3962
        %3964 = vmax.xlane.f32.xlu0 %v3890
        %v3965 = vpop.xlane.xlu0 %3964
        %3966 = vmax.xlane.f32.xlu0 %v3891
        %v3967 = vpop.xlane.xlu0 %3966
        %3968 = vmax.xlane.f32.xlu0 %v3892
        %v3969 = vpop.xlane.xlu0 %3968
        %3970 = vmax.xlane.f32.xlu0 %v3893
        %v3971 = vpop.xlane.xlu0 %3970
        %3972 = vmax.xlane.f32.xlu0 %v3894
        %v3973 = vpop.xlane.xlu0 %3972
        %3974 = vmax.xlane.f32.xlu0 %v3895
        %v3975 = vpop.xlane.xlu0 %3974
        %v3976 = vsel %vm3855, %v3897, %v3812
        %v3977 = vsel %vm3855, %v3899, %v3813
        %v3978 = vsel %vm3855, %v3901, %v3814
        %v3979 = vsel %vm3855, %v3903, %v3815
        %v3980 = vsel %vm3855, %v3905, %v3816
        %v3981 = vsel %vm3855, %v3907, %v3817
        %v3982 = vsel %vm3855, %v3909, %v3818
        %v3983 = vsel %vm3855, %v3911, %v3819
        %v3984 = vsel %vm3855, %v3913, %v3820
        %v3985 = vsel %vm3855, %v3915, %v3821
        %v3986 = vsel %vm3855, %v3917, %v3822
        %v3987 = vsel %vm3855, %v3919, %v3823
        %v3988 = vsel %vm3855, %v3921, %v3824
        %v3989 = vsel %vm3855, %v3923, %v3825
        %v3990 = vsel %vm3855, %v3925, %v3826
        %v3991 = vsel %vm3855, %v3927, %v3827
        %v3992 = vsel %vm3855, %v3929, %v3828
        %v3993 = vsel %vm3855, %v3931, %v3829
        %v3994 = vsel %vm3855, %v3933, %v3830
        %v3995 = vsel %vm3855, %v3935, %v3831
        %v3996 = vsel %vm3855, %v3937, %v3832
        %v3997 = vsel %vm3855, %v3939, %v3833
        %v3998 = vsel %vm3855, %v3941, %v3834
        %v3999 = vsel %vm3855, %v3943, %v3835
        %v4000 = vsel %vm3855, %v3945, %v3836
        %v4001 = vsel %vm3855, %v3947, %v3837
        %v4002 = vsel %vm3855, %v3949, %v3838
        %v4003 = vsel %vm3855, %v3951, %v3839
        %v4004 = vsel %vm3855, %v3953, %v3840
        %v4005 = vsel %vm3855, %v3955, %v3841
        %v4006 = vsel %vm3855, %v3957, %v3842
        %v4007 = vsel %vm3855, %v3959, %v3843
        %v4008 = vsel %vm3855, %v3961, %v3844
        %v4009 = vsel %vm3855, %v3963, %v3845
        %v4010 = vsel %vm3855, %v3965, %v3846
        %v4011 = vsel %vm3855, %v3967, %v3847
        %v4012 = vsel %vm3855, %v3969, %v3848
        %v4013 = vsel %vm3855, %v3971, %v3849
        %v4014 = vsel %vm3855, %v3973, %v3850
        %v4015 = vsel %vm3855, %v3975, %v3851
        %vm4016 = vcmp.eq.s32.totalorder %v3359, 4
        %v4017 = vsel %vm4016, 1, 0
        %v4018 = vperm.slane %v4017, 0
        %vm4019 = vcmp.eq.s32.totalorder %v4018, 1
        %v4020 = vsel %vm4019, %v3319, -3e+38
        %v4021 = vsel %vm4019, %v3320, -3e+38
        %v4022 = vsel %vm4019, %v3321, -3e+38
        %v4023 = vsel %vm4019, %v3322, -3e+38
        %v4024 = vsel %vm4019, %v3323, -3e+38
        %v4025 = vsel %vm4019, %v3324, -3e+38
        %v4026 = vsel %vm4019, %v3325, -3e+38
        %v4027 = vsel %vm4019, %v3326, -3e+38
        %v4028 = vsel %vm4019, %v3327, -3e+38
        %v4029 = vsel %vm4019, %v3328, -3e+38
        %v4030 = vsel %vm4019, %v3329, -3e+38
        %v4031 = vsel %vm4019, %v3330, -3e+38
        %v4032 = vsel %vm4019, %v3331, -3e+38
        %v4033 = vsel %vm4019, %v3332, -3e+38
        %v4034 = vsel %vm4019, %v3333, -3e+38
        %v4035 = vsel %vm4019, %v3334, -3e+38
        %v4036 = vsel %vm4019, %v3335, -3e+38
        %v4037 = vsel %vm4019, %v3336, -3e+38
        %v4038 = vsel %vm4019, %v3337, -3e+38
        %v4039 = vsel %vm4019, %v3338, -3e+38
        %v4040 = vsel %vm4019, %v3339, -3e+38
        %v4041 = vsel %vm4019, %v3340, -3e+38
        %v4042 = vsel %vm4019, %v3341, -3e+38
        %v4043 = vsel %vm4019, %v3342, -3e+38
        %v4044 = vsel %vm4019, %v3343, -3e+38
        %v4045 = vsel %vm4019, %v3344, -3e+38
        %v4046 = vsel %vm4019, %v3345, -3e+38
        %v4047 = vsel %vm4019, %v3346, -3e+38
        %v4048 = vsel %vm4019, %v3347, -3e+38
        %v4049 = vsel %vm4019, %v3348, -3e+38
        %v4050 = vsel %vm4019, %v3349, -3e+38
        %v4051 = vsel %vm4019, %v3350, -3e+38
        %v4052 = vsel %vm4019, %v3351, -3e+38
        %v4053 = vsel %vm4019, %v3352, -3e+38
        %v4054 = vsel %vm4019, %v3353, -3e+38
        %v4055 = vsel %vm4019, %v3354, -3e+38
        %v4056 = vsel %vm4019, %v3355, -3e+38
        %v4057 = vsel %vm4019, %v3356, -3e+38
        %v4058 = vsel %vm4019, %v3357, -3e+38
        %v4059 = vsel %vm4019, %v3358, -3e+38
        %4060 = vmax.xlane.f32.xlu0 %v4020
        %v4061 = vpop.xlane.xlu0 %4060
        %4062 = vmax.xlane.f32.xlu0 %v4021
        %v4063 = vpop.xlane.xlu0 %4062
        %4064 = vmax.xlane.f32.xlu0 %v4022
        %v4065 = vpop.xlane.xlu0 %4064
        %4066 = vmax.xlane.f32.xlu0 %v4023
        %v4067 = vpop.xlane.xlu0 %4066
        %4068 = vmax.xlane.f32.xlu0 %v4024
        %v4069 = vpop.xlane.xlu0 %4068
        %4070 = vmax.xlane.f32.xlu0 %v4025
        %v4071 = vpop.xlane.xlu0 %4070
        %4072 = vmax.xlane.f32.xlu0 %v4026
        %v4073 = vpop.xlane.xlu0 %4072
        %4074 = vmax.xlane.f32.xlu0 %v4027
        %v4075 = vpop.xlane.xlu0 %4074
        %4076 = vmax.xlane.f32.xlu0 %v4028
        %v4077 = vpop.xlane.xlu0 %4076
        %4078 = vmax.xlane.f32.xlu0 %v4029
        %v4079 = vpop.xlane.xlu0 %4078
        %4080 = vmax.xlane.f32.xlu0 %v4030
        %v4081 = vpop.xlane.xlu0 %4080
        %4082 = vmax.xlane.f32.xlu0 %v4031
        %v4083 = vpop.xlane.xlu0 %4082
        %4084 = vmax.xlane.f32.xlu0 %v4032
        %v4085 = vpop.xlane.xlu0 %4084
        %4086 = vmax.xlane.f32.xlu0 %v4033
        %v4087 = vpop.xlane.xlu0 %4086
        %4088 = vmax.xlane.f32.xlu0 %v4034
        %v4089 = vpop.xlane.xlu0 %4088
        %4090 = vmax.xlane.f32.xlu0 %v4035
        %v4091 = vpop.xlane.xlu0 %4090
        %4092 = vmax.xlane.f32.xlu0 %v4036
        %v4093 = vpop.xlane.xlu0 %4092
        %4094 = vmax.xlane.f32.xlu0 %v4037
        %v4095 = vpop.xlane.xlu0 %4094
        %4096 = vmax.xlane.f32.xlu0 %v4038
        %v4097 = vpop.xlane.xlu0 %4096
        %4098 = vmax.xlane.f32.xlu0 %v4039
        %v4099 = vpop.xlane.xlu0 %4098
        %4100 = vmax.xlane.f32.xlu0 %v4040
        %v4101 = vpop.xlane.xlu0 %4100
        %4102 = vmax.xlane.f32.xlu0 %v4041
        %v4103 = vpop.xlane.xlu0 %4102
        %4104 = vmax.xlane.f32.xlu0 %v4042
        %v4105 = vpop.xlane.xlu0 %4104
        %4106 = vmax.xlane.f32.xlu0 %v4043
        %v4107 = vpop.xlane.xlu0 %4106
        %4108 = vmax.xlane.f32.xlu0 %v4044
        %v4109 = vpop.xlane.xlu0 %4108
        %4110 = vmax.xlane.f32.xlu0 %v4045
        %v4111 = vpop.xlane.xlu0 %4110
        %4112 = vmax.xlane.f32.xlu0 %v4046
        %v4113 = vpop.xlane.xlu0 %4112
        %4114 = vmax.xlane.f32.xlu0 %v4047
        %v4115 = vpop.xlane.xlu0 %4114
        %4116 = vmax.xlane.f32.xlu0 %v4048
        %v4117 = vpop.xlane.xlu0 %4116
        %4118 = vmax.xlane.f32.xlu0 %v4049
        %v4119 = vpop.xlane.xlu0 %4118
        %4120 = vmax.xlane.f32.xlu0 %v4050
        %v4121 = vpop.xlane.xlu0 %4120
        %4122 = vmax.xlane.f32.xlu0 %v4051
        %v4123 = vpop.xlane.xlu0 %4122
        %4124 = vmax.xlane.f32.xlu0 %v4052
        %v4125 = vpop.xlane.xlu0 %4124
        %4126 = vmax.xlane.f32.xlu0 %v4053
        %v4127 = vpop.xlane.xlu0 %4126
        %4128 = vmax.xlane.f32.xlu0 %v4054
        %v4129 = vpop.xlane.xlu0 %4128
        %4130 = vmax.xlane.f32.xlu0 %v4055
        %v4131 = vpop.xlane.xlu0 %4130
        %4132 = vmax.xlane.f32.xlu0 %v4056
        %v4133 = vpop.xlane.xlu0 %4132
        %4134 = vmax.xlane.f32.xlu0 %v4057
        %v4135 = vpop.xlane.xlu0 %4134
        %4136 = vmax.xlane.f32.xlu0 %v4058
        %v4137 = vpop.xlane.xlu0 %4136
        %4138 = vmax.xlane.f32.xlu0 %v4059
        %v4139 = vpop.xlane.xlu0 %4138
        %v4140 = vsel %vm4019, %v4061, %v3976
        %v4141 = vsel %vm4019, %v4063, %v3977
        %v4142 = vsel %vm4019, %v4065, %v3978
        %v4143 = vsel %vm4019, %v4067, %v3979
        %v4144 = vsel %vm4019, %v4069, %v3980
        %v4145 = vsel %vm4019, %v4071, %v3981
        %v4146 = vsel %vm4019, %v4073, %v3982
        %v4147 = vsel %vm4019, %v4075, %v3983
        %v4148 = vsel %vm4019, %v4077, %v3984
        %v4149 = vsel %vm4019, %v4079, %v3985
        %v4150 = vsel %vm4019, %v4081, %v3986
        %v4151 = vsel %vm4019, %v4083, %v3987
        %v4152 = vsel %vm4019, %v4085, %v3988
        %v4153 = vsel %vm4019, %v4087, %v3989
        %v4154 = vsel %vm4019, %v4089, %v3990
        %v4155 = vsel %vm4019, %v4091, %v3991
        %v4156 = vsel %vm4019, %v4093, %v3992
        %v4157 = vsel %vm4019, %v4095, %v3993
        %v4158 = vsel %vm4019, %v4097, %v3994
        %v4159 = vsel %vm4019, %v4099, %v3995
        %v4160 = vsel %vm4019, %v4101, %v3996
        %v4161 = vsel %vm4019, %v4103, %v3997
        %v4162 = vsel %vm4019, %v4105, %v3998
        %v4163 = vsel %vm4019, %v4107, %v3999
        %v4164 = vsel %vm4019, %v4109, %v4000
        %v4165 = vsel %vm4019, %v4111, %v4001
        %v4166 = vsel %vm4019, %v4113, %v4002
        %v4167 = vsel %vm4019, %v4115, %v4003
        %v4168 = vsel %vm4019, %v4117, %v4004
        %v4169 = vsel %vm4019, %v4119, %v4005
        %v4170 = vsel %vm4019, %v4121, %v4006
        %v4171 = vsel %vm4019, %v4123, %v4007
        %v4172 = vsel %vm4019, %v4125, %v4008
        %v4173 = vsel %vm4019, %v4127, %v4009
        %v4174 = vsel %vm4019, %v4129, %v4010
        %v4175 = vsel %vm4019, %v4131, %v4011
        %v4176 = vsel %vm4019, %v4133, %v4012
        %v4177 = vsel %vm4019, %v4135, %v4013
        %v4178 = vsel %vm4019, %v4137, %v4014
        %v4179 = vsel %vm4019, %v4139, %v4015
        %vm4180 = vcmp.eq.s32.totalorder %v3359, 5
        %v4181 = vsel %vm4180, 1, 0
        %v4182 = vperm.slane %v4181, 0
        %vm4183 = vcmp.eq.s32.totalorder %v4182, 1
        %v4184 = vsel %vm4183, %v3319, -3e+38
        %v4185 = vsel %vm4183, %v3320, -3e+38
        %v4186 = vsel %vm4183, %v3321, -3e+38
        %v4187 = vsel %vm4183, %v3322, -3e+38
        %v4188 = vsel %vm4183, %v3323, -3e+38
        %v4189 = vsel %vm4183, %v3324, -3e+38
        %v4190 = vsel %vm4183, %v3325, -3e+38
        %v4191 = vsel %vm4183, %v3326, -3e+38
        %v4192 = vsel %vm4183, %v3327, -3e+38
        %v4193 = vsel %vm4183, %v3328, -3e+38
        %v4194 = vsel %vm4183, %v3329, -3e+38
        %v4195 = vsel %vm4183, %v3330, -3e+38
        %v4196 = vsel %vm4183, %v3331, -3e+38
        %v4197 = vsel %vm4183, %v3332, -3e+38
        %v4198 = vsel %vm4183, %v3333, -3e+38
        %v4199 = vsel %vm4183, %v3334, -3e+38
        %v4200 = vsel %vm4183, %v3335, -3e+38
        %v4201 = vsel %vm4183, %v3336, -3e+38
        %v4202 = vsel %vm4183, %v3337, -3e+38
        %v4203 = vsel %vm4183, %v3338, -3e+38
        %v4204 = vsel %vm4183, %v3339, -3e+38
        %v4205 = vsel %vm4183, %v3340, -3e+38
        %v4206 = vsel %vm4183, %v3341, -3e+38
        %v4207 = vsel %vm4183, %v3342, -3e+38
        %v4208 = vsel %vm4183, %v3343, -3e+38
        %v4209 = vsel %vm4183, %v3344, -3e+38
        %v4210 = vsel %vm4183, %v3345, -3e+38
        %v4211 = vsel %vm4183, %v3346, -3e+38
        %v4212 = vsel %vm4183, %v3347, -3e+38
        %v4213 = vsel %vm4183, %v3348, -3e+38
        %v4214 = vsel %vm4183, %v3349, -3e+38
        %v4215 = vsel %vm4183, %v3350, -3e+38
        %v4216 = vsel %vm4183, %v3351, -3e+38
        %v4217 = vsel %vm4183, %v3352, -3e+38
        %v4218 = vsel %vm4183, %v3353, -3e+38
        %v4219 = vsel %vm4183, %v3354, -3e+38
        %v4220 = vsel %vm4183, %v3355, -3e+38
        %v4221 = vsel %vm4183, %v3356, -3e+38
        %v4222 = vsel %vm4183, %v3357, -3e+38
        %v4223 = vsel %vm4183, %v3358, -3e+38
        %4224 = vmax.xlane.f32.xlu0 %v4184
        %v4225 = vpop.xlane.xlu0 %4224
        %4226 = vmax.xlane.f32.xlu0 %v4185
        %v4227 = vpop.xlane.xlu0 %4226
        %4228 = vmax.xlane.f32.xlu0 %v4186
        %v4229 = vpop.xlane.xlu0 %4228
        %4230 = vmax.xlane.f32.xlu0 %v4187
        %v4231 = vpop.xlane.xlu0 %4230
        %4232 = vmax.xlane.f32.xlu0 %v4188
        %v4233 = vpop.xlane.xlu0 %4232
        %4234 = vmax.xlane.f32.xlu0 %v4189
        %v4235 = vpop.xlane.xlu0 %4234
        %4236 = vmax.xlane.f32.xlu0 %v4190
        %v4237 = vpop.xlane.xlu0 %4236
        %4238 = vmax.xlane.f32.xlu0 %v4191
        %v4239 = vpop.xlane.xlu0 %4238
        %4240 = vmax.xlane.f32.xlu0 %v4192
        %v4241 = vpop.xlane.xlu0 %4240
        %4242 = vmax.xlane.f32.xlu0 %v4193
        %v4243 = vpop.xlane.xlu0 %4242
        %4244 = vmax.xlane.f32.xlu0 %v4194
        %v4245 = vpop.xlane.xlu0 %4244
        %4246 = vmax.xlane.f32.xlu0 %v4195
        %v4247 = vpop.xlane.xlu0 %4246
        %4248 = vmax.xlane.f32.xlu0 %v4196
        %v4249 = vpop.xlane.xlu0 %4248
        %4250 = vmax.xlane.f32.xlu0 %v4197
        %v4251 = vpop.xlane.xlu0 %4250
        %4252 = vmax.xlane.f32.xlu0 %v4198
        %v4253 = vpop.xlane.xlu0 %4252
        %4254 = vmax.xlane.f32.xlu0 %v4199
        %v4255 = vpop.xlane.xlu0 %4254
        %4256 = vmax.xlane.f32.xlu0 %v4200
        %v4257 = vpop.xlane.xlu0 %4256
        %4258 = vmax.xlane.f32.xlu0 %v4201
        %v4259 = vpop.xlane.xlu0 %4258
        %4260 = vmax.xlane.f32.xlu0 %v4202
        %v4261 = vpop.xlane.xlu0 %4260
        %4262 = vmax.xlane.f32.xlu0 %v4203
        %v4263 = vpop.xlane.xlu0 %4262
        %4264 = vmax.xlane.f32.xlu0 %v4204
        %v4265 = vpop.xlane.xlu0 %4264
        %4266 = vmax.xlane.f32.xlu0 %v4205
        %v4267 = vpop.xlane.xlu0 %4266
        %4268 = vmax.xlane.f32.xlu0 %v4206
        %v4269 = vpop.xlane.xlu0 %4268
        %4270 = vmax.xlane.f32.xlu0 %v4207
        %v4271 = vpop.xlane.xlu0 %4270
        %4272 = vmax.xlane.f32.xlu0 %v4208
        %v4273 = vpop.xlane.xlu0 %4272
        %4274 = vmax.xlane.f32.xlu0 %v4209
        %v4275 = vpop.xlane.xlu0 %4274
        %4276 = vmax.xlane.f32.xlu0 %v4210
        %v4277 = vpop.xlane.xlu0 %4276
        %4278 = vmax.xlane.f32.xlu0 %v4211
        %v4279 = vpop.xlane.xlu0 %4278
        %4280 = vmax.xlane.f32.xlu0 %v4212
        %v4281 = vpop.xlane.xlu0 %4280
        %4282 = vmax.xlane.f32.xlu0 %v4213
        %v4283 = vpop.xlane.xlu0 %4282
        %4284 = vmax.xlane.f32.xlu0 %v4214
        %v4285 = vpop.xlane.xlu0 %4284
        %4286 = vmax.xlane.f32.xlu0 %v4215
        %v4287 = vpop.xlane.xlu0 %4286
        %4288 = vmax.xlane.f32.xlu0 %v4216
        %v4289 = vpop.xlane.xlu0 %4288
        %4290 = vmax.xlane.f32.xlu0 %v4217
        %v4291 = vpop.xlane.xlu0 %4290
        %4292 = vmax.xlane.f32.xlu0 %v4218
        %v4293 = vpop.xlane.xlu0 %4292
        %4294 = vmax.xlane.f32.xlu0 %v4219
        %v4295 = vpop.xlane.xlu0 %4294
        %4296 = vmax.xlane.f32.xlu0 %v4220
        %v4297 = vpop.xlane.xlu0 %4296
        %4298 = vmax.xlane.f32.xlu0 %v4221
        %v4299 = vpop.xlane.xlu0 %4298
        %4300 = vmax.xlane.f32.xlu0 %v4222
        %v4301 = vpop.xlane.xlu0 %4300
        %4302 = vmax.xlane.f32.xlu0 %v4223
        %v4303 = vpop.xlane.xlu0 %4302
        %v4304 = vsel %vm4183, %v4225, %v4140
        %v4305 = vsel %vm4183, %v4227, %v4141
        %v4306 = vsel %vm4183, %v4229, %v4142
        %v4307 = vsel %vm4183, %v4231, %v4143
        %v4308 = vsel %vm4183, %v4233, %v4144
        %v4309 = vsel %vm4183, %v4235, %v4145
        %v4310 = vsel %vm4183, %v4237, %v4146
        %v4311 = vsel %vm4183, %v4239, %v4147
        %v4312 = vsel %vm4183, %v4241, %v4148
        %v4313 = vsel %vm4183, %v4243, %v4149
        %v4314 = vsel %vm4183, %v4245, %v4150
        %v4315 = vsel %vm4183, %v4247, %v4151
        %v4316 = vsel %vm4183, %v4249, %v4152
        %v4317 = vsel %vm4183, %v4251, %v4153
        %v4318 = vsel %vm4183, %v4253, %v4154
        %v4319 = vsel %vm4183, %v4255, %v4155
        %v4320 = vsel %vm4183, %v4257, %v4156
        %v4321 = vsel %vm4183, %v4259, %v4157
        %v4322 = vsel %vm4183, %v4261, %v4158
        %v4323 = vsel %vm4183, %v4263, %v4159
        %v4324 = vsel %vm4183, %v4265, %v4160
        %v4325 = vsel %vm4183, %v4267, %v4161
        %v4326 = vsel %vm4183, %v4269, %v4162
        %v4327 = vsel %vm4183, %v4271, %v4163
        %v4328 = vsel %vm4183, %v4273, %v4164
        %v4329 = vsel %vm4183, %v4275, %v4165
        %v4330 = vsel %vm4183, %v4277, %v4166
        %v4331 = vsel %vm4183, %v4279, %v4167
        %v4332 = vsel %vm4183, %v4281, %v4168
        %v4333 = vsel %vm4183, %v4283, %v4169
        %v4334 = vsel %vm4183, %v4285, %v4170
        %v4335 = vsel %vm4183, %v4287, %v4171
        %v4336 = vsel %vm4183, %v4289, %v4172
        %v4337 = vsel %vm4183, %v4291, %v4173
        %v4338 = vsel %vm4183, %v4293, %v4174
        %v4339 = vsel %vm4183, %v4295, %v4175
        %v4340 = vsel %vm4183, %v4297, %v4176
        %v4341 = vsel %vm4183, %v4299, %v4177
        %v4342 = vsel %vm4183, %v4301, %v4178
        %v4343 = vsel %vm4183, %v4303, %v4179
        %vm4344 = vcmp.eq.s32.totalorder %v3359, 6
        %v4345 = vsel %vm4344, 1, 0
        %v4346 = vperm.slane %v4345, 0
        %vm4347 = vcmp.eq.s32.totalorder %v4346, 1
        %v4348 = vsel %vm4347, %v3319, -3e+38
        %v4349 = vsel %vm4347, %v3320, -3e+38
        %v4350 = vsel %vm4347, %v3321, -3e+38
        %v4351 = vsel %vm4347, %v3322, -3e+38
        %v4352 = vsel %vm4347, %v3323, -3e+38
        %v4353 = vsel %vm4347, %v3324, -3e+38
        %v4354 = vsel %vm4347, %v3325, -3e+38
        %v4355 = vsel %vm4347, %v3326, -3e+38
        %v4356 = vsel %vm4347, %v3327, -3e+38
        %v4357 = vsel %vm4347, %v3328, -3e+38
        %v4358 = vsel %vm4347, %v3329, -3e+38
        %v4359 = vsel %vm4347, %v3330, -3e+38
        %v4360 = vsel %vm4347, %v3331, -3e+38
        %v4361 = vsel %vm4347, %v3332, -3e+38
        %v4362 = vsel %vm4347, %v3333, -3e+38
        %v4363 = vsel %vm4347, %v3334, -3e+38
        %v4364 = vsel %vm4347, %v3335, -3e+38
        %v4365 = vsel %vm4347, %v3336, -3e+38
        %v4366 = vsel %vm4347, %v3337, -3e+38
        %v4367 = vsel %vm4347, %v3338, -3e+38
        %v4368 = vsel %vm4347, %v3339, -3e+38
        %v4369 = vsel %vm4347, %v3340, -3e+38
        %v4370 = vsel %vm4347, %v3341, -3e+38
        %v4371 = vsel %vm4347, %v3342, -3e+38
        %v4372 = vsel %vm4347, %v3343, -3e+38
        %v4373 = vsel %vm4347, %v3344, -3e+38
        %v4374 = vsel %vm4347, %v3345, -3e+38
        %v4375 = vsel %vm4347, %v3346, -3e+38
        %v4376 = vsel %vm4347, %v3347, -3e+38
        %v4377 = vsel %vm4347, %v3348, -3e+38
        %v4378 = vsel %vm4347, %v3349, -3e+38
        %v4379 = vsel %vm4347, %v3350, -3e+38
        %v4380 = vsel %vm4347, %v3351, -3e+38
        %v4381 = vsel %vm4347, %v3352, -3e+38
        %v4382 = vsel %vm4347, %v3353, -3e+38
        %v4383 = vsel %vm4347, %v3354, -3e+38
        %v4384 = vsel %vm4347, %v3355, -3e+38
        %v4385 = vsel %vm4347, %v3356, -3e+38
        %v4386 = vsel %vm4347, %v3357, -3e+38
        %v4387 = vsel %vm4347, %v3358, -3e+38
        %4388 = vmax.xlane.f32.xlu0 %v4348
        %v4389 = vpop.xlane.xlu0 %4388
        %4390 = vmax.xlane.f32.xlu0 %v4349
        %v4391 = vpop.xlane.xlu0 %4390
        %4392 = vmax.xlane.f32.xlu0 %v4350
        %v4393 = vpop.xlane.xlu0 %4392
        %4394 = vmax.xlane.f32.xlu0 %v4351
        %v4395 = vpop.xlane.xlu0 %4394
        %4396 = vmax.xlane.f32.xlu0 %v4352
        %v4397 = vpop.xlane.xlu0 %4396
        %4398 = vmax.xlane.f32.xlu0 %v4353
        %v4399 = vpop.xlane.xlu0 %4398
        %4400 = vmax.xlane.f32.xlu0 %v4354
        %v4401 = vpop.xlane.xlu0 %4400
        %4402 = vmax.xlane.f32.xlu0 %v4355
        %v4403 = vpop.xlane.xlu0 %4402
        %4404 = vmax.xlane.f32.xlu0 %v4356
        %v4405 = vpop.xlane.xlu0 %4404
        %4406 = vmax.xlane.f32.xlu0 %v4357
        %v4407 = vpop.xlane.xlu0 %4406
        %4408 = vmax.xlane.f32.xlu0 %v4358
        %v4409 = vpop.xlane.xlu0 %4408
        %4410 = vmax.xlane.f32.xlu0 %v4359
        %v4411 = vpop.xlane.xlu0 %4410
        %4412 = vmax.xlane.f32.xlu0 %v4360
        %v4413 = vpop.xlane.xlu0 %4412
        %4414 = vmax.xlane.f32.xlu0 %v4361
        %v4415 = vpop.xlane.xlu0 %4414
        %4416 = vmax.xlane.f32.xlu0 %v4362
        %v4417 = vpop.xlane.xlu0 %4416
        %4418 = vmax.xlane.f32.xlu0 %v4363
        %v4419 = vpop.xlane.xlu0 %4418
        %4420 = vmax.xlane.f32.xlu0 %v4364
        %v4421 = vpop.xlane.xlu0 %4420
        %4422 = vmax.xlane.f32.xlu0 %v4365
        %v4423 = vpop.xlane.xlu0 %4422
        %4424 = vmax.xlane.f32.xlu0 %v4366
        %v4425 = vpop.xlane.xlu0 %4424
        %4426 = vmax.xlane.f32.xlu0 %v4367
        %v4427 = vpop.xlane.xlu0 %4426
        %4428 = vmax.xlane.f32.xlu0 %v4368
        %v4429 = vpop.xlane.xlu0 %4428
        %4430 = vmax.xlane.f32.xlu0 %v4369
        %v4431 = vpop.xlane.xlu0 %4430
        %4432 = vmax.xlane.f32.xlu0 %v4370
        %v4433 = vpop.xlane.xlu0 %4432
        %4434 = vmax.xlane.f32.xlu0 %v4371
        %v4435 = vpop.xlane.xlu0 %4434
        %4436 = vmax.xlane.f32.xlu0 %v4372
        %v4437 = vpop.xlane.xlu0 %4436
        %4438 = vmax.xlane.f32.xlu0 %v4373
        %v4439 = vpop.xlane.xlu0 %4438
        %4440 = vmax.xlane.f32.xlu0 %v4374
        %v4441 = vpop.xlane.xlu0 %4440
        %4442 = vmax.xlane.f32.xlu0 %v4375
        %v4443 = vpop.xlane.xlu0 %4442
        %4444 = vmax.xlane.f32.xlu0 %v4376
        %v4445 = vpop.xlane.xlu0 %4444
        %4446 = vmax.xlane.f32.xlu0 %v4377
        %v4447 = vpop.xlane.xlu0 %4446
        %4448 = vmax.xlane.f32.xlu0 %v4378
        %v4449 = vpop.xlane.xlu0 %4448
        %4450 = vmax.xlane.f32.xlu0 %v4379
        %v4451 = vpop.xlane.xlu0 %4450
        %4452 = vmax.xlane.f32.xlu0 %v4380
        %v4453 = vpop.xlane.xlu0 %4452
        %4454 = vmax.xlane.f32.xlu0 %v4381
        %v4455 = vpop.xlane.xlu0 %4454
        %4456 = vmax.xlane.f32.xlu0 %v4382
        %v4457 = vpop.xlane.xlu0 %4456
        %4458 = vmax.xlane.f32.xlu0 %v4383
        %v4459 = vpop.xlane.xlu0 %4458
        %4460 = vmax.xlane.f32.xlu0 %v4384
        %v4461 = vpop.xlane.xlu0 %4460
        %4462 = vmax.xlane.f32.xlu0 %v4385
        %v4463 = vpop.xlane.xlu0 %4462
        %4464 = vmax.xlane.f32.xlu0 %v4386
        %v4465 = vpop.xlane.xlu0 %4464
        %4466 = vmax.xlane.f32.xlu0 %v4387
        %v4467 = vpop.xlane.xlu0 %4466
        %v4468 = vsel %vm4347, %v4389, %v4304
        %v4469 = vsel %vm4347, %v4391, %v4305
        %v4470 = vsel %vm4347, %v4393, %v4306
        %v4471 = vsel %vm4347, %v4395, %v4307
        %v4472 = vsel %vm4347, %v4397, %v4308
        %v4473 = vsel %vm4347, %v4399, %v4309
        %v4474 = vsel %vm4347, %v4401, %v4310
        %v4475 = vsel %vm4347, %v4403, %v4311
        %v4476 = vsel %vm4347, %v4405, %v4312
        %v4477 = vsel %vm4347, %v4407, %v4313
        %v4478 = vsel %vm4347, %v4409, %v4314
        %v4479 = vsel %vm4347, %v4411, %v4315
        %v4480 = vsel %vm4347, %v4413, %v4316
        %v4481 = vsel %vm4347, %v4415, %v4317
        %v4482 = vsel %vm4347, %v4417, %v4318
        %v4483 = vsel %vm4347, %v4419, %v4319
        %v4484 = vsel %vm4347, %v4421, %v4320
        %v4485 = vsel %vm4347, %v4423, %v4321
        %v4486 = vsel %vm4347, %v4425, %v4322
        %v4487 = vsel %vm4347, %v4427, %v4323
        %v4488 = vsel %vm4347, %v4429, %v4324
        %v4489 = vsel %vm4347, %v4431, %v4325
        %v4490 = vsel %vm4347, %v4433, %v4326
        %v4491 = vsel %vm4347, %v4435, %v4327
        %v4492 = vsel %vm4347, %v4437, %v4328
        %v4493 = vsel %vm4347, %v4439, %v4329
        %v4494 = vsel %vm4347, %v4441, %v4330
        %v4495 = vsel %vm4347, %v4443, %v4331
        %v4496 = vsel %vm4347, %v4445, %v4332
        %v4497 = vsel %vm4347, %v4447, %v4333
        %v4498 = vsel %vm4347, %v4449, %v4334
        %v4499 = vsel %vm4347, %v4451, %v4335
        %v4500 = vsel %vm4347, %v4453, %v4336
        %v4501 = vsel %vm4347, %v4455, %v4337
        %v4502 = vsel %vm4347, %v4457, %v4338
        %v4503 = vsel %vm4347, %v4459, %v4339
        %v4504 = vsel %vm4347, %v4461, %v4340
        %v4505 = vsel %vm4347, %v4463, %v4341
        %v4506 = vsel %vm4347, %v4465, %v4342
        %v4507 = vsel %vm4347, %v4467, %v4343
        %vm4508 = vcmp.eq.s32.totalorder %v3359, 7
        %v4509 = vsel %vm4508, 1, 0
        %v4510 = vperm.slane %v4509, 0
        %vm4511 = vcmp.eq.s32.totalorder %v4510, 1
        %v4512 = vsel %vm4511, %v3319, -3e+38
        %v4513 = vsel %vm4511, %v3320, -3e+38
        %v4514 = vsel %vm4511, %v3321, -3e+38
        %v4515 = vsel %vm4511, %v3322, -3e+38
        %v4516 = vsel %vm4511, %v3323, -3e+38
        %v4517 = vsel %vm4511, %v3324, -3e+38
        %v4518 = vsel %vm4511, %v3325, -3e+38
        %v4519 = vsel %vm4511, %v3326, -3e+38
        %v4520 = vsel %vm4511, %v3327, -3e+38
        %v4521 = vsel %vm4511, %v3328, -3e+38
        %v4522 = vsel %vm4511, %v3329, -3e+38
        %v4523 = vsel %vm4511, %v3330, -3e+38
        %v4524 = vsel %vm4511, %v3331, -3e+38
        %v4525 = vsel %vm4511, %v3332, -3e+38
        %v4526 = vsel %vm4511, %v3333, -3e+38
        %v4527 = vsel %vm4511, %v3334, -3e+38
        %v4528 = vsel %vm4511, %v3335, -3e+38
        %v4529 = vsel %vm4511, %v3336, -3e+38
        %v4530 = vsel %vm4511, %v3337, -3e+38
        %v4531 = vsel %vm4511, %v3338, -3e+38
        %v4532 = vsel %vm4511, %v3339, -3e+38
        %v4533 = vsel %vm4511, %v3340, -3e+38
        %v4534 = vsel %vm4511, %v3341, -3e+38
        %v4535 = vsel %vm4511, %v3342, -3e+38
        %v4536 = vsel %vm4511, %v3343, -3e+38
        %v4537 = vsel %vm4511, %v3344, -3e+38
        %v4538 = vsel %vm4511, %v3345, -3e+38
        %v4539 = vsel %vm4511, %v3346, -3e+38
        %v4540 = vsel %vm4511, %v3347, -3e+38
        %v4541 = vsel %vm4511, %v3348, -3e+38
        %v4542 = vsel %vm4511, %v3349, -3e+38
        %v4543 = vsel %vm4511, %v3350, -3e+38
        %v4544 = vsel %vm4511, %v3351, -3e+38
        %v4545 = vsel %vm4511, %v3352, -3e+38
        %v4546 = vsel %vm4511, %v3353, -3e+38
        %v4547 = vsel %vm4511, %v3354, -3e+38
        %v4548 = vsel %vm4511, %v3355, -3e+38
        %v4549 = vsel %vm4511, %v3356, -3e+38
        %v4550 = vsel %vm4511, %v3357, -3e+38
        %v4551 = vsel %vm4511, %v3358, -3e+38
        %4552 = vmax.xlane.f32.xlu0 %v4512
        %v4553 = vpop.xlane.xlu0 %4552
        %4554 = vmax.xlane.f32.xlu0 %v4513
        %v4555 = vpop.xlane.xlu0 %4554
        %4556 = vmax.xlane.f32.xlu0 %v4514
        %v4557 = vpop.xlane.xlu0 %4556
        %4558 = vmax.xlane.f32.xlu0 %v4515
        %v4559 = vpop.xlane.xlu0 %4558
        %4560 = vmax.xlane.f32.xlu0 %v4516
        %v4561 = vpop.xlane.xlu0 %4560
        %4562 = vmax.xlane.f32.xlu0 %v4517
        %v4563 = vpop.xlane.xlu0 %4562
        %4564 = vmax.xlane.f32.xlu0 %v4518
        %v4565 = vpop.xlane.xlu0 %4564
        %4566 = vmax.xlane.f32.xlu0 %v4519
        %v4567 = vpop.xlane.xlu0 %4566
        %4568 = vmax.xlane.f32.xlu0 %v4520
        %v4569 = vpop.xlane.xlu0 %4568
        %4570 = vmax.xlane.f32.xlu0 %v4521
        %v4571 = vpop.xlane.xlu0 %4570
        %4572 = vmax.xlane.f32.xlu0 %v4522
        %v4573 = vpop.xlane.xlu0 %4572
        %4574 = vmax.xlane.f32.xlu0 %v4523
        %v4575 = vpop.xlane.xlu0 %4574
        %4576 = vmax.xlane.f32.xlu0 %v4524
        %v4577 = vpop.xlane.xlu0 %4576
        %4578 = vmax.xlane.f32.xlu0 %v4525
        %v4579 = vpop.xlane.xlu0 %4578
        %4580 = vmax.xlane.f32.xlu0 %v4526
        %v4581 = vpop.xlane.xlu0 %4580
        %4582 = vmax.xlane.f32.xlu0 %v4527
        %v4583 = vpop.xlane.xlu0 %4582
        %4584 = vmax.xlane.f32.xlu0 %v4528
        %v4585 = vpop.xlane.xlu0 %4584
        %4586 = vmax.xlane.f32.xlu0 %v4529
        %v4587 = vpop.xlane.xlu0 %4586
        %4588 = vmax.xlane.f32.xlu0 %v4530
        %v4589 = vpop.xlane.xlu0 %4588
        %4590 = vmax.xlane.f32.xlu0 %v4531
        %v4591 = vpop.xlane.xlu0 %4590
        %4592 = vmax.xlane.f32.xlu0 %v4532
        %v4593 = vpop.xlane.xlu0 %4592
        %4594 = vmax.xlane.f32.xlu0 %v4533
        %v4595 = vpop.xlane.xlu0 %4594
        %4596 = vmax.xlane.f32.xlu0 %v4534
        %v4597 = vpop.xlane.xlu0 %4596
        %4598 = vmax.xlane.f32.xlu0 %v4535
        %v4599 = vpop.xlane.xlu0 %4598
        %4600 = vmax.xlane.f32.xlu0 %v4536
        %v4601 = vpop.xlane.xlu0 %4600
        %4602 = vmax.xlane.f32.xlu0 %v4537
        %v4603 = vpop.xlane.xlu0 %4602
        %4604 = vmax.xlane.f32.xlu0 %v4538
        %v4605 = vpop.xlane.xlu0 %4604
        %4606 = vmax.xlane.f32.xlu0 %v4539
        %v4607 = vpop.xlane.xlu0 %4606
        %4608 = vmax.xlane.f32.xlu0 %v4540
        %v4609 = vpop.xlane.xlu0 %4608
        %4610 = vmax.xlane.f32.xlu0 %v4541
        %v4611 = vpop.xlane.xlu0 %4610
        %4612 = vmax.xlane.f32.xlu0 %v4542
        %v4613 = vpop.xlane.xlu0 %4612
        %4614 = vmax.xlane.f32.xlu0 %v4543
        %v4615 = vpop.xlane.xlu0 %4614
        %4616 = vmax.xlane.f32.xlu0 %v4544
        %v4617 = vpop.xlane.xlu0 %4616
        %4618 = vmax.xlane.f32.xlu0 %v4545
        %v4619 = vpop.xlane.xlu0 %4618
        %4620 = vmax.xlane.f32.xlu0 %v4546
        %v4621 = vpop.xlane.xlu0 %4620
        %4622 = vmax.xlane.f32.xlu0 %v4547
        %v4623 = vpop.xlane.xlu0 %4622
        %4624 = vmax.xlane.f32.xlu0 %v4548
        %v4625 = vpop.xlane.xlu0 %4624
        %4626 = vmax.xlane.f32.xlu0 %v4549
        %v4627 = vpop.xlane.xlu0 %4626
        %4628 = vmax.xlane.f32.xlu0 %v4550
        %v4629 = vpop.xlane.xlu0 %4628
        %4630 = vmax.xlane.f32.xlu0 %v4551
        %v4631 = vpop.xlane.xlu0 %4630
        %v4632 = vsel %vm4511, %v4553, %v4468
        %v4633 = vsel %vm4511, %v4555, %v4469
        %v4634 = vsel %vm4511, %v4557, %v4470
        %v4635 = vsel %vm4511, %v4559, %v4471
        %v4636 = vsel %vm4511, %v4561, %v4472
        %v4637 = vsel %vm4511, %v4563, %v4473
        %v4638 = vsel %vm4511, %v4565, %v4474
        %v4639 = vsel %vm4511, %v4567, %v4475
        %v4640 = vsel %vm4511, %v4569, %v4476
        %v4641 = vsel %vm4511, %v4571, %v4477
        %v4642 = vsel %vm4511, %v4573, %v4478
        %v4643 = vsel %vm4511, %v4575, %v4479
        %v4644 = vsel %vm4511, %v4577, %v4480
        %v4645 = vsel %vm4511, %v4579, %v4481
        %v4646 = vsel %vm4511, %v4581, %v4482
        %v4647 = vsel %vm4511, %v4583, %v4483
        %v4648 = vsel %vm4511, %v4585, %v4484
        %v4649 = vsel %vm4511, %v4587, %v4485
        %v4650 = vsel %vm4511, %v4589, %v4486
        %v4651 = vsel %vm4511, %v4591, %v4487
        %v4652 = vsel %vm4511, %v4593, %v4488
        %v4653 = vsel %vm4511, %v4595, %v4489
        %v4654 = vsel %vm4511, %v4597, %v4490
        %v4655 = vsel %vm4511, %v4599, %v4491
        %v4656 = vsel %vm4511, %v4601, %v4492
        %v4657 = vsel %vm4511, %v4603, %v4493
        %v4658 = vsel %vm4511, %v4605, %v4494
        %v4659 = vsel %vm4511, %v4607, %v4495
        %v4660 = vsel %vm4511, %v4609, %v4496
        %v4661 = vsel %vm4511, %v4611, %v4497
        %v4662 = vsel %vm4511, %v4613, %v4498
        %v4663 = vsel %vm4511, %v4615, %v4499
        %v4664 = vsel %vm4511, %v4617, %v4500
        %v4665 = vsel %vm4511, %v4619, %v4501
        %v4666 = vsel %vm4511, %v4621, %v4502
        %v4667 = vsel %vm4511, %v4623, %v4503
        %v4668 = vsel %vm4511, %v4625, %v4504
        %v4669 = vsel %vm4511, %v4627, %v4505
        %v4670 = vsel %vm4511, %v4629, %v4506
        %v4671 = vsel %vm4511, %v4631, %v4507
        %vm4672 = vcmp.eq.s32.totalorder %v3359, 8
        %v4673 = vsel %vm4672, 1, 0
        %v4674 = vperm.slane %v4673, 0
        %vm4675 = vcmp.eq.s32.totalorder %v4674, 1
        %v4676 = vsel %vm4675, %v3319, -3e+38
        %v4677 = vsel %vm4675, %v3320, -3e+38
        %v4678 = vsel %vm4675, %v3321, -3e+38
        %v4679 = vsel %vm4675, %v3322, -3e+38
        %v4680 = vsel %vm4675, %v3323, -3e+38
        %v4681 = vsel %vm4675, %v3324, -3e+38
        %v4682 = vsel %vm4675, %v3325, -3e+38
        %v4683 = vsel %vm4675, %v3326, -3e+38
        %v4684 = vsel %vm4675, %v3327, -3e+38
        %v4685 = vsel %vm4675, %v3328, -3e+38
        %v4686 = vsel %vm4675, %v3329, -3e+38
        %v4687 = vsel %vm4675, %v3330, -3e+38
        %v4688 = vsel %vm4675, %v3331, -3e+38
        %v4689 = vsel %vm4675, %v3332, -3e+38
        %v4690 = vsel %vm4675, %v3333, -3e+38
        %v4691 = vsel %vm4675, %v3334, -3e+38
        %v4692 = vsel %vm4675, %v3335, -3e+38
        %v4693 = vsel %vm4675, %v3336, -3e+38
        %v4694 = vsel %vm4675, %v3337, -3e+38
        %v4695 = vsel %vm4675, %v3338, -3e+38
        %v4696 = vsel %vm4675, %v3339, -3e+38
        %v4697 = vsel %vm4675, %v3340, -3e+38
        %v4698 = vsel %vm4675, %v3341, -3e+38
        %v4699 = vsel %vm4675, %v3342, -3e+38
        %v4700 = vsel %vm4675, %v3343, -3e+38
        %v4701 = vsel %vm4675, %v3344, -3e+38
        %v4702 = vsel %vm4675, %v3345, -3e+38
        %v4703 = vsel %vm4675, %v3346, -3e+38
        %v4704 = vsel %vm4675, %v3347, -3e+38
        %v4705 = vsel %vm4675, %v3348, -3e+38
        %v4706 = vsel %vm4675, %v3349, -3e+38
        %v4707 = vsel %vm4675, %v3350, -3e+38
        %v4708 = vsel %vm4675, %v3351, -3e+38
        %v4709 = vsel %vm4675, %v3352, -3e+38
        %v4710 = vsel %vm4675, %v3353, -3e+38
        %v4711 = vsel %vm4675, %v3354, -3e+38
        %v4712 = vsel %vm4675, %v3355, -3e+38
        %v4713 = vsel %vm4675, %v3356, -3e+38
        %v4714 = vsel %vm4675, %v3357, -3e+38
        %v4715 = vsel %vm4675, %v3358, -3e+38
        %4716 = vmax.xlane.f32.xlu0 %v4676
        %v4717 = vpop.xlane.xlu0 %4716
        %4718 = vmax.xlane.f32.xlu0 %v4677
        %v4719 = vpop.xlane.xlu0 %4718
        %4720 = vmax.xlane.f32.xlu0 %v4678
        %v4721 = vpop.xlane.xlu0 %4720
        %4722 = vmax.xlane.f32.xlu0 %v4679
        %v4723 = vpop.xlane.xlu0 %4722
        %4724 = vmax.xlane.f32.xlu0 %v4680
        %v4725 = vpop.xlane.xlu0 %4724
        %4726 = vmax.xlane.f32.xlu0 %v4681
        %v4727 = vpop.xlane.xlu0 %4726
        %4728 = vmax.xlane.f32.xlu0 %v4682
        %v4729 = vpop.xlane.xlu0 %4728
        %4730 = vmax.xlane.f32.xlu0 %v4683
        %v4731 = vpop.xlane.xlu0 %4730
        %4732 = vmax.xlane.f32.xlu0 %v4684
        %v4733 = vpop.xlane.xlu0 %4732
        %4734 = vmax.xlane.f32.xlu0 %v4685
        %v4735 = vpop.xlane.xlu0 %4734
        %4736 = vmax.xlane.f32.xlu0 %v4686
        %v4737 = vpop.xlane.xlu0 %4736
        %4738 = vmax.xlane.f32.xlu0 %v4687
        %v4739 = vpop.xlane.xlu0 %4738
        %4740 = vmax.xlane.f32.xlu0 %v4688
        %v4741 = vpop.xlane.xlu0 %4740
        %4742 = vmax.xlane.f32.xlu0 %v4689
        %v4743 = vpop.xlane.xlu0 %4742
        %4744 = vmax.xlane.f32.xlu0 %v4690
        %v4745 = vpop.xlane.xlu0 %4744
        %4746 = vmax.xlane.f32.xlu0 %v4691
        %v4747 = vpop.xlane.xlu0 %4746
        %4748 = vmax.xlane.f32.xlu0 %v4692
        %v4749 = vpop.xlane.xlu0 %4748
        %4750 = vmax.xlane.f32.xlu0 %v4693
        %v4751 = vpop.xlane.xlu0 %4750
        %4752 = vmax.xlane.f32.xlu0 %v4694
        %v4753 = vpop.xlane.xlu0 %4752
        %4754 = vmax.xlane.f32.xlu0 %v4695
        %v4755 = vpop.xlane.xlu0 %4754
        %4756 = vmax.xlane.f32.xlu0 %v4696
        %v4757 = vpop.xlane.xlu0 %4756
        %4758 = vmax.xlane.f32.xlu0 %v4697
        %v4759 = vpop.xlane.xlu0 %4758
        %4760 = vmax.xlane.f32.xlu0 %v4698
        %v4761 = vpop.xlane.xlu0 %4760
        %4762 = vmax.xlane.f32.xlu0 %v4699
        %v4763 = vpop.xlane.xlu0 %4762
        %4764 = vmax.xlane.f32.xlu0 %v4700
        %v4765 = vpop.xlane.xlu0 %4764
        %4766 = vmax.xlane.f32.xlu0 %v4701
        %v4767 = vpop.xlane.xlu0 %4766
        %4768 = vmax.xlane.f32.xlu0 %v4702
        %v4769 = vpop.xlane.xlu0 %4768
        %4770 = vmax.xlane.f32.xlu0 %v4703
        %v4771 = vpop.xlane.xlu0 %4770
        %4772 = vmax.xlane.f32.xlu0 %v4704
        %v4773 = vpop.xlane.xlu0 %4772
        %4774 = vmax.xlane.f32.xlu0 %v4705
        %v4775 = vpop.xlane.xlu0 %4774
        %4776 = vmax.xlane.f32.xlu0 %v4706
        %v4777 = vpop.xlane.xlu0 %4776
        %4778 = vmax.xlane.f32.xlu0 %v4707
        %v4779 = vpop.xlane.xlu0 %4778
        %4780 = vmax.xlane.f32.xlu0 %v4708
        %v4781 = vpop.xlane.xlu0 %4780
        %4782 = vmax.xlane.f32.xlu0 %v4709
        %v4783 = vpop.xlane.xlu0 %4782
        %4784 = vmax.xlane.f32.xlu0 %v4710
        %v4785 = vpop.xlane.xlu0 %4784
        %4786 = vmax.xlane.f32.xlu0 %v4711
        %v4787 = vpop.xlane.xlu0 %4786
        %4788 = vmax.xlane.f32.xlu0 %v4712
        %v4789 = vpop.xlane.xlu0 %4788
        %4790 = vmax.xlane.f32.xlu0 %v4713
        %v4791 = vpop.xlane.xlu0 %4790
        %4792 = vmax.xlane.f32.xlu0 %v4714
        %v4793 = vpop.xlane.xlu0 %4792
        %4794 = vmax.xlane.f32.xlu0 %v4715
        %v4795 = vpop.xlane.xlu0 %4794
        %v4796 = vsel %vm4675, %v4717, %v4632
        %v4797 = vsel %vm4675, %v4719, %v4633
        %v4798 = vsel %vm4675, %v4721, %v4634
        %v4799 = vsel %vm4675, %v4723, %v4635
        %v4800 = vsel %vm4675, %v4725, %v4636
        %v4801 = vsel %vm4675, %v4727, %v4637
        %v4802 = vsel %vm4675, %v4729, %v4638
        %v4803 = vsel %vm4675, %v4731, %v4639
        %v4804 = vsel %vm4675, %v4733, %v4640
        %v4805 = vsel %vm4675, %v4735, %v4641
        %v4806 = vsel %vm4675, %v4737, %v4642
        %v4807 = vsel %vm4675, %v4739, %v4643
        %v4808 = vsel %vm4675, %v4741, %v4644
        %v4809 = vsel %vm4675, %v4743, %v4645
        %v4810 = vsel %vm4675, %v4745, %v4646
        %v4811 = vsel %vm4675, %v4747, %v4647
        %v4812 = vsel %vm4675, %v4749, %v4648
        %v4813 = vsel %vm4675, %v4751, %v4649
        %v4814 = vsel %vm4675, %v4753, %v4650
        %v4815 = vsel %vm4675, %v4755, %v4651
        %v4816 = vsel %vm4675, %v4757, %v4652
        %v4817 = vsel %vm4675, %v4759, %v4653
        %v4818 = vsel %vm4675, %v4761, %v4654
        %v4819 = vsel %vm4675, %v4763, %v4655
        %v4820 = vsel %vm4675, %v4765, %v4656
        %v4821 = vsel %vm4675, %v4767, %v4657
        %v4822 = vsel %vm4675, %v4769, %v4658
        %v4823 = vsel %vm4675, %v4771, %v4659
        %v4824 = vsel %vm4675, %v4773, %v4660
        %v4825 = vsel %vm4675, %v4775, %v4661
        %v4826 = vsel %vm4675, %v4777, %v4662
        %v4827 = vsel %vm4675, %v4779, %v4663
        %v4828 = vsel %vm4675, %v4781, %v4664
        %v4829 = vsel %vm4675, %v4783, %v4665
        %v4830 = vsel %vm4675, %v4785, %v4666
        %v4831 = vsel %vm4675, %v4787, %v4667
        %v4832 = vsel %vm4675, %v4789, %v4668
        %v4833 = vsel %vm4675, %v4791, %v4669
        %v4834 = vsel %vm4675, %v4793, %v4670
        %v4835 = vsel %vm4675, %v4795, %v4671
        %vm4836 = vcmp.eq.s32.totalorder %v3359, 9
        %v4837 = vsel %vm4836, 1, 0
        %v4838 = vperm.slane %v4837, 0
        %vm4839 = vcmp.eq.s32.totalorder %v4838, 1
        %v4840 = vsel %vm4839, %v3319, -3e+38
        %v4841 = vsel %vm4839, %v3320, -3e+38
        %v4842 = vsel %vm4839, %v3321, -3e+38
        %v4843 = vsel %vm4839, %v3322, -3e+38
        %v4844 = vsel %vm4839, %v3323, -3e+38
        %v4845 = vsel %vm4839, %v3324, -3e+38
        %v4846 = vsel %vm4839, %v3325, -3e+38
        %v4847 = vsel %vm4839, %v3326, -3e+38
        %v4848 = vsel %vm4839, %v3327, -3e+38
        %v4849 = vsel %vm4839, %v3328, -3e+38
        %v4850 = vsel %vm4839, %v3329, -3e+38
        %v4851 = vsel %vm4839, %v3330, -3e+38
        %v4852 = vsel %vm4839, %v3331, -3e+38
        %v4853 = vsel %vm4839, %v3332, -3e+38
        %v4854 = vsel %vm4839, %v3333, -3e+38
        %v4855 = vsel %vm4839, %v3334, -3e+38
        %v4856 = vsel %vm4839, %v3335, -3e+38
        %v4857 = vsel %vm4839, %v3336, -3e+38
        %v4858 = vsel %vm4839, %v3337, -3e+38
        %v4859 = vsel %vm4839, %v3338, -3e+38
        %v4860 = vsel %vm4839, %v3339, -3e+38
        %v4861 = vsel %vm4839, %v3340, -3e+38
        %v4862 = vsel %vm4839, %v3341, -3e+38
        %v4863 = vsel %vm4839, %v3342, -3e+38
        %v4864 = vsel %vm4839, %v3343, -3e+38
        %v4865 = vsel %vm4839, %v3344, -3e+38
        %v4866 = vsel %vm4839, %v3345, -3e+38
        %v4867 = vsel %vm4839, %v3346, -3e+38
        %v4868 = vsel %vm4839, %v3347, -3e+38
        %v4869 = vsel %vm4839, %v3348, -3e+38
        %v4870 = vsel %vm4839, %v3349, -3e+38
        %v4871 = vsel %vm4839, %v3350, -3e+38
        %v4872 = vsel %vm4839, %v3351, -3e+38
        %v4873 = vsel %vm4839, %v3352, -3e+38
        %v4874 = vsel %vm4839, %v3353, -3e+38
        %v4875 = vsel %vm4839, %v3354, -3e+38
        %v4876 = vsel %vm4839, %v3355, -3e+38
        %v4877 = vsel %vm4839, %v3356, -3e+38
        %v4878 = vsel %vm4839, %v3357, -3e+38
        %v4879 = vsel %vm4839, %v3358, -3e+38
        %4880 = vmax.xlane.f32.xlu0 %v4840
        %v4881 = vpop.xlane.xlu0 %4880
        %4882 = vmax.xlane.f32.xlu0 %v4841
        %v4883 = vpop.xlane.xlu0 %4882
        %4884 = vmax.xlane.f32.xlu0 %v4842
        %v4885 = vpop.xlane.xlu0 %4884
        %4886 = vmax.xlane.f32.xlu0 %v4843
        %v4887 = vpop.xlane.xlu0 %4886
        %4888 = vmax.xlane.f32.xlu0 %v4844
        %v4889 = vpop.xlane.xlu0 %4888
        %4890 = vmax.xlane.f32.xlu0 %v4845
        %v4891 = vpop.xlane.xlu0 %4890
        %4892 = vmax.xlane.f32.xlu0 %v4846
        %v4893 = vpop.xlane.xlu0 %4892
        %4894 = vmax.xlane.f32.xlu0 %v4847
        %v4895 = vpop.xlane.xlu0 %4894
        %4896 = vmax.xlane.f32.xlu0 %v4848
        %v4897 = vpop.xlane.xlu0 %4896
        %4898 = vmax.xlane.f32.xlu0 %v4849
        %v4899 = vpop.xlane.xlu0 %4898
        %4900 = vmax.xlane.f32.xlu0 %v4850
        %v4901 = vpop.xlane.xlu0 %4900
        %4902 = vmax.xlane.f32.xlu0 %v4851
        %v4903 = vpop.xlane.xlu0 %4902
        %4904 = vmax.xlane.f32.xlu0 %v4852
        %v4905 = vpop.xlane.xlu0 %4904
        %4906 = vmax.xlane.f32.xlu0 %v4853
        %v4907 = vpop.xlane.xlu0 %4906
        %4908 = vmax.xlane.f32.xlu0 %v4854
        %v4909 = vpop.xlane.xlu0 %4908
        %4910 = vmax.xlane.f32.xlu0 %v4855
        %v4911 = vpop.xlane.xlu0 %4910
        %4912 = vmax.xlane.f32.xlu0 %v4856
        %v4913 = vpop.xlane.xlu0 %4912
        %4914 = vmax.xlane.f32.xlu0 %v4857
        %v4915 = vpop.xlane.xlu0 %4914
        %4916 = vmax.xlane.f32.xlu0 %v4858
        %v4917 = vpop.xlane.xlu0 %4916
        %4918 = vmax.xlane.f32.xlu0 %v4859
        %v4919 = vpop.xlane.xlu0 %4918
        %4920 = vmax.xlane.f32.xlu0 %v4860
        %v4921 = vpop.xlane.xlu0 %4920
        %4922 = vmax.xlane.f32.xlu0 %v4861
        %v4923 = vpop.xlane.xlu0 %4922
        %4924 = vmax.xlane.f32.xlu0 %v4862
        %v4925 = vpop.xlane.xlu0 %4924
        %4926 = vmax.xlane.f32.xlu0 %v4863
        %v4927 = vpop.xlane.xlu0 %4926
        %4928 = vmax.xlane.f32.xlu0 %v4864
        %v4929 = vpop.xlane.xlu0 %4928
        %4930 = vmax.xlane.f32.xlu0 %v4865
        %v4931 = vpop.xlane.xlu0 %4930
        %4932 = vmax.xlane.f32.xlu0 %v4866
        %v4933 = vpop.xlane.xlu0 %4932
        %4934 = vmax.xlane.f32.xlu0 %v4867
        %v4935 = vpop.xlane.xlu0 %4934
        %4936 = vmax.xlane.f32.xlu0 %v4868
        %v4937 = vpop.xlane.xlu0 %4936
        %4938 = vmax.xlane.f32.xlu0 %v4869
        %v4939 = vpop.xlane.xlu0 %4938
        %4940 = vmax.xlane.f32.xlu0 %v4870
        %v4941 = vpop.xlane.xlu0 %4940
        %4942 = vmax.xlane.f32.xlu0 %v4871
        %v4943 = vpop.xlane.xlu0 %4942
        %4944 = vmax.xlane.f32.xlu0 %v4872
        %v4945 = vpop.xlane.xlu0 %4944
        %4946 = vmax.xlane.f32.xlu0 %v4873
        %v4947 = vpop.xlane.xlu0 %4946
        %4948 = vmax.xlane.f32.xlu0 %v4874
        %v4949 = vpop.xlane.xlu0 %4948
        %4950 = vmax.xlane.f32.xlu0 %v4875
        %v4951 = vpop.xlane.xlu0 %4950
        %4952 = vmax.xlane.f32.xlu0 %v4876
        %v4953 = vpop.xlane.xlu0 %4952
        %4954 = vmax.xlane.f32.xlu0 %v4877
        %v4955 = vpop.xlane.xlu0 %4954
        %4956 = vmax.xlane.f32.xlu0 %v4878
        %v4957 = vpop.xlane.xlu0 %4956
        %4958 = vmax.xlane.f32.xlu0 %v4879
        %v4959 = vpop.xlane.xlu0 %4958
        %v4960 = vsel %vm4839, %v4881, %v4796
        %v4961 = vsel %vm4839, %v4883, %v4797
        %v4962 = vsel %vm4839, %v4885, %v4798
        %v4963 = vsel %vm4839, %v4887, %v4799
        %v4964 = vsel %vm4839, %v4889, %v4800
        %v4965 = vsel %vm4839, %v4891, %v4801
        %v4966 = vsel %vm4839, %v4893, %v4802
        %v4967 = vsel %vm4839, %v4895, %v4803
        %v4968 = vsel %vm4839, %v4897, %v4804
        %v4969 = vsel %vm4839, %v4899, %v4805
        %v4970 = vsel %vm4839, %v4901, %v4806
        %v4971 = vsel %vm4839, %v4903, %v4807
        %v4972 = vsel %vm4839, %v4905, %v4808
        %v4973 = vsel %vm4839, %v4907, %v4809
        %v4974 = vsel %vm4839, %v4909, %v4810
        %v4975 = vsel %vm4839, %v4911, %v4811
        %v4976 = vsel %vm4839, %v4913, %v4812
        %v4977 = vsel %vm4839, %v4915, %v4813
        %v4978 = vsel %vm4839, %v4917, %v4814
        %v4979 = vsel %vm4839, %v4919, %v4815
        %v4980 = vsel %vm4839, %v4921, %v4816
        %v4981 = vsel %vm4839, %v4923, %v4817
        %v4982 = vsel %vm4839, %v4925, %v4818
        %v4983 = vsel %vm4839, %v4927, %v4819
        %v4984 = vsel %vm4839, %v4929, %v4820
        %v4985 = vsel %vm4839, %v4931, %v4821
        %v4986 = vsel %vm4839, %v4933, %v4822
        %v4987 = vsel %vm4839, %v4935, %v4823
        %v4988 = vsel %vm4839, %v4937, %v4824
        %v4989 = vsel %vm4839, %v4939, %v4825
        %v4990 = vsel %vm4839, %v4941, %v4826
        %v4991 = vsel %vm4839, %v4943, %v4827
        %v4992 = vsel %vm4839, %v4945, %v4828
        %v4993 = vsel %vm4839, %v4947, %v4829
        %v4994 = vsel %vm4839, %v4949, %v4830
        %v4995 = vsel %vm4839, %v4951, %v4831
        %v4996 = vsel %vm4839, %v4953, %v4832
        %v4997 = vsel %vm4839, %v4955, %v4833
        %v4998 = vsel %vm4839, %v4957, %v4834
        %v4999 = vsel %vm4839, %v4959, %v4835
        %vm5000 = vcmp.eq.s32.totalorder %v3359, 10
        %v5001 = vsel %vm5000, 1, 0
        %v5002 = vperm.slane %v5001, 0
        %vm5003 = vcmp.eq.s32.totalorder %v5002, 1
        %v5004 = vsel %vm5003, %v3319, -3e+38
        %v5005 = vsel %vm5003, %v3320, -3e+38
        %v5006 = vsel %vm5003, %v3321, -3e+38
        %v5007 = vsel %vm5003, %v3322, -3e+38
        %v5008 = vsel %vm5003, %v3323, -3e+38
        %v5009 = vsel %vm5003, %v3324, -3e+38
        %v5010 = vsel %vm5003, %v3325, -3e+38
        %v5011 = vsel %vm5003, %v3326, -3e+38
        %v5012 = vsel %vm5003, %v3327, -3e+38
        %v5013 = vsel %vm5003, %v3328, -3e+38
        %v5014 = vsel %vm5003, %v3329, -3e+38
        %v5015 = vsel %vm5003, %v3330, -3e+38
        %v5016 = vsel %vm5003, %v3331, -3e+38
        %v5017 = vsel %vm5003, %v3332, -3e+38
        %v5018 = vsel %vm5003, %v3333, -3e+38
        %v5019 = vsel %vm5003, %v3334, -3e+38
        %v5020 = vsel %vm5003, %v3335, -3e+38
        %v5021 = vsel %vm5003, %v3336, -3e+38
        %v5022 = vsel %vm5003, %v3337, -3e+38
        %v5023 = vsel %vm5003, %v3338, -3e+38
        %v5024 = vsel %vm5003, %v3339, -3e+38
        %v5025 = vsel %vm5003, %v3340, -3e+38
        %v5026 = vsel %vm5003, %v3341, -3e+38
        %v5027 = vsel %vm5003, %v3342, -3e+38
        %v5028 = vsel %vm5003, %v3343, -3e+38
        %v5029 = vsel %vm5003, %v3344, -3e+38
        %v5030 = vsel %vm5003, %v3345, -3e+38
        %v5031 = vsel %vm5003, %v3346, -3e+38
        %v5032 = vsel %vm5003, %v3347, -3e+38
        %v5033 = vsel %vm5003, %v3348, -3e+38
        %v5034 = vsel %vm5003, %v3349, -3e+38
        %v5035 = vsel %vm5003, %v3350, -3e+38
        %v5036 = vsel %vm5003, %v3351, -3e+38
        %v5037 = vsel %vm5003, %v3352, -3e+38
        %v5038 = vsel %vm5003, %v3353, -3e+38
        %v5039 = vsel %vm5003, %v3354, -3e+38
        %v5040 = vsel %vm5003, %v3355, -3e+38
        %v5041 = vsel %vm5003, %v3356, -3e+38
        %v5042 = vsel %vm5003, %v3357, -3e+38
        %v5043 = vsel %vm5003, %v3358, -3e+38
        %5044 = vmax.xlane.f32.xlu0 %v5004
        %v5045 = vpop.xlane.xlu0 %5044
        %5046 = vmax.xlane.f32.xlu0 %v5005
        %v5047 = vpop.xlane.xlu0 %5046
        %5048 = vmax.xlane.f32.xlu0 %v5006
        %v5049 = vpop.xlane.xlu0 %5048
        %5050 = vmax.xlane.f32.xlu0 %v5007
        %v5051 = vpop.xlane.xlu0 %5050
        %5052 = vmax.xlane.f32.xlu0 %v5008
        %v5053 = vpop.xlane.xlu0 %5052
        %5054 = vmax.xlane.f32.xlu0 %v5009
        %v5055 = vpop.xlane.xlu0 %5054
        %5056 = vmax.xlane.f32.xlu0 %v5010
        %v5057 = vpop.xlane.xlu0 %5056
        %5058 = vmax.xlane.f32.xlu0 %v5011
        %v5059 = vpop.xlane.xlu0 %5058
        %5060 = vmax.xlane.f32.xlu0 %v5012
        %v5061 = vpop.xlane.xlu0 %5060
        %5062 = vmax.xlane.f32.xlu0 %v5013
        %v5063 = vpop.xlane.xlu0 %5062
        %5064 = vmax.xlane.f32.xlu0 %v5014
        %v5065 = vpop.xlane.xlu0 %5064
        %5066 = vmax.xlane.f32.xlu0 %v5015
        %v5067 = vpop.xlane.xlu0 %5066
        %5068 = vmax.xlane.f32.xlu0 %v5016
        %v5069 = vpop.xlane.xlu0 %5068
        %5070 = vmax.xlane.f32.xlu0 %v5017
        %v5071 = vpop.xlane.xlu0 %5070
        %5072 = vmax.xlane.f32.xlu0 %v5018
        %v5073 = vpop.xlane.xlu0 %5072
        %5074 = vmax.xlane.f32.xlu0 %v5019
        %v5075 = vpop.xlane.xlu0 %5074
        %5076 = vmax.xlane.f32.xlu0 %v5020
        %v5077 = vpop.xlane.xlu0 %5076
        %5078 = vmax.xlane.f32.xlu0 %v5021
        %v5079 = vpop.xlane.xlu0 %5078
        %5080 = vmax.xlane.f32.xlu0 %v5022
        %v5081 = vpop.xlane.xlu0 %5080
        %5082 = vmax.xlane.f32.xlu0 %v5023
        %v5083 = vpop.xlane.xlu0 %5082
        %5084 = vmax.xlane.f32.xlu0 %v5024
        %v5085 = vpop.xlane.xlu0 %5084
        %5086 = vmax.xlane.f32.xlu0 %v5025
        %v5087 = vpop.xlane.xlu0 %5086
        %5088 = vmax.xlane.f32.xlu0 %v5026
        %v5089 = vpop.xlane.xlu0 %5088
        %5090 = vmax.xlane.f32.xlu0 %v5027
        %v5091 = vpop.xlane.xlu0 %5090
        %5092 = vmax.xlane.f32.xlu0 %v5028
        %v5093 = vpop.xlane.xlu0 %5092
        %5094 = vmax.xlane.f32.xlu0 %v5029
        %v5095 = vpop.xlane.xlu0 %5094
        %5096 = vmax.xlane.f32.xlu0 %v5030
        %v5097 = vpop.xlane.xlu0 %5096
        %5098 = vmax.xlane.f32.xlu0 %v5031
        %v5099 = vpop.xlane.xlu0 %5098
        %5100 = vmax.xlane.f32.xlu0 %v5032
        %v5101 = vpop.xlane.xlu0 %5100
        %5102 = vmax.xlane.f32.xlu0 %v5033
        %v5103 = vpop.xlane.xlu0 %5102
        %5104 = vmax.xlane.f32.xlu0 %v5034
        %v5105 = vpop.xlane.xlu0 %5104
        %5106 = vmax.xlane.f32.xlu0 %v5035
        %v5107 = vpop.xlane.xlu0 %5106
        %5108 = vmax.xlane.f32.xlu0 %v5036
        %v5109 = vpop.xlane.xlu0 %5108
        %5110 = vmax.xlane.f32.xlu0 %v5037
        %v5111 = vpop.xlane.xlu0 %5110
        %5112 = vmax.xlane.f32.xlu0 %v5038
        %v5113 = vpop.xlane.xlu0 %5112
        %5114 = vmax.xlane.f32.xlu0 %v5039
        %v5115 = vpop.xlane.xlu0 %5114
        %5116 = vmax.xlane.f32.xlu0 %v5040
        %v5117 = vpop.xlane.xlu0 %5116
        %5118 = vmax.xlane.f32.xlu0 %v5041
        %v5119 = vpop.xlane.xlu0 %5118
        %5120 = vmax.xlane.f32.xlu0 %v5042
        %v5121 = vpop.xlane.xlu0 %5120
        %5122 = vmax.xlane.f32.xlu0 %v5043
        %v5123 = vpop.xlane.xlu0 %5122
        %v5124 = vsel %vm5003, %v5045, %v4960
        %v5125 = vsel %vm5003, %v5047, %v4961
        %v5126 = vsel %vm5003, %v5049, %v4962
        %v5127 = vsel %vm5003, %v5051, %v4963
        %v5128 = vsel %vm5003, %v5053, %v4964
        %v5129 = vsel %vm5003, %v5055, %v4965
        %v5130 = vsel %vm5003, %v5057, %v4966
        %v5131 = vsel %vm5003, %v5059, %v4967
        %v5132 = vsel %vm5003, %v5061, %v4968
        %v5133 = vsel %vm5003, %v5063, %v4969
        %v5134 = vsel %vm5003, %v5065, %v4970
        %v5135 = vsel %vm5003, %v5067, %v4971
        %v5136 = vsel %vm5003, %v5069, %v4972
        %v5137 = vsel %vm5003, %v5071, %v4973
        %v5138 = vsel %vm5003, %v5073, %v4974
        %v5139 = vsel %vm5003, %v5075, %v4975
        %v5140 = vsel %vm5003, %v5077, %v4976
        %v5141 = vsel %vm5003, %v5079, %v4977
        %v5142 = vsel %vm5003, %v5081, %v4978
        %v5143 = vsel %vm5003, %v5083, %v4979
        %v5144 = vsel %vm5003, %v5085, %v4980
        %v5145 = vsel %vm5003, %v5087, %v4981
        %v5146 = vsel %vm5003, %v5089, %v4982
        %v5147 = vsel %vm5003, %v5091, %v4983
        %v5148 = vsel %vm5003, %v5093, %v4984
        %v5149 = vsel %vm5003, %v5095, %v4985
        %v5150 = vsel %vm5003, %v5097, %v4986
        %v5151 = vsel %vm5003, %v5099, %v4987
        %v5152 = vsel %vm5003, %v5101, %v4988
        %v5153 = vsel %vm5003, %v5103, %v4989
        %v5154 = vsel %vm5003, %v5105, %v4990
        %v5155 = vsel %vm5003, %v5107, %v4991
        %v5156 = vsel %vm5003, %v5109, %v4992
        %v5157 = vsel %vm5003, %v5111, %v4993
        %v5158 = vsel %vm5003, %v5113, %v4994
        %v5159 = vsel %vm5003, %v5115, %v4995
        %v5160 = vsel %vm5003, %v5117, %v4996
        %v5161 = vsel %vm5003, %v5119, %v4997
        %v5162 = vsel %vm5003, %v5121, %v4998
        %v5163 = vsel %vm5003, %v5123, %v4999
        %vm5164 = vcmp.eq.s32.totalorder %v3359, 11
        %v5165 = vsel %vm5164, 1, 0
        %v5166 = vperm.slane %v5165, 0
        %vm5167 = vcmp.eq.s32.totalorder %v5166, 1
        %v5168 = vsel %vm5167, %v3319, -3e+38
        %v5169 = vsel %vm5167, %v3320, -3e+38
        %v5170 = vsel %vm5167, %v3321, -3e+38
        %v5171 = vsel %vm5167, %v3322, -3e+38
        %v5172 = vsel %vm5167, %v3323, -3e+38
        %v5173 = vsel %vm5167, %v3324, -3e+38
        %v5174 = vsel %vm5167, %v3325, -3e+38
        %v5175 = vsel %vm5167, %v3326, -3e+38
        %v5176 = vsel %vm5167, %v3327, -3e+38
        %v5177 = vsel %vm5167, %v3328, -3e+38
        %v5178 = vsel %vm5167, %v3329, -3e+38
        %v5179 = vsel %vm5167, %v3330, -3e+38
        %v5180 = vsel %vm5167, %v3331, -3e+38
        %v5181 = vsel %vm5167, %v3332, -3e+38
        %v5182 = vsel %vm5167, %v3333, -3e+38
        %v5183 = vsel %vm5167, %v3334, -3e+38
        %v5184 = vsel %vm5167, %v3335, -3e+38
        %v5185 = vsel %vm5167, %v3336, -3e+38
        %v5186 = vsel %vm5167, %v3337, -3e+38
        %v5187 = vsel %vm5167, %v3338, -3e+38
        %v5188 = vsel %vm5167, %v3339, -3e+38
        %v5189 = vsel %vm5167, %v3340, -3e+38
        %v5190 = vsel %vm5167, %v3341, -3e+38
        %v5191 = vsel %vm5167, %v3342, -3e+38
        %v5192 = vsel %vm5167, %v3343, -3e+38
        %v5193 = vsel %vm5167, %v3344, -3e+38
        %v5194 = vsel %vm5167, %v3345, -3e+38
        %v5195 = vsel %vm5167, %v3346, -3e+38
        %v5196 = vsel %vm5167, %v3347, -3e+38
        %v5197 = vsel %vm5167, %v3348, -3e+38
        %v5198 = vsel %vm5167, %v3349, -3e+38
        %v5199 = vsel %vm5167, %v3350, -3e+38
        %v5200 = vsel %vm5167, %v3351, -3e+38
        %v5201 = vsel %vm5167, %v3352, -3e+38
        %v5202 = vsel %vm5167, %v3353, -3e+38
        %v5203 = vsel %vm5167, %v3354, -3e+38
        %v5204 = vsel %vm5167, %v3355, -3e+38
        %v5205 = vsel %vm5167, %v3356, -3e+38
        %v5206 = vsel %vm5167, %v3357, -3e+38
        %v5207 = vsel %vm5167, %v3358, -3e+38
        %5208 = vmax.xlane.f32.xlu0 %v5168
        %v5209 = vpop.xlane.xlu0 %5208
        %5210 = vmax.xlane.f32.xlu0 %v5169
        %v5211 = vpop.xlane.xlu0 %5210
        %5212 = vmax.xlane.f32.xlu0 %v5170
        %v5213 = vpop.xlane.xlu0 %5212
        %5214 = vmax.xlane.f32.xlu0 %v5171
        %v5215 = vpop.xlane.xlu0 %5214
        %5216 = vmax.xlane.f32.xlu0 %v5172
        %v5217 = vpop.xlane.xlu0 %5216
        %5218 = vmax.xlane.f32.xlu0 %v5173
        %v5219 = vpop.xlane.xlu0 %5218
        %5220 = vmax.xlane.f32.xlu0 %v5174
        %v5221 = vpop.xlane.xlu0 %5220
        %5222 = vmax.xlane.f32.xlu0 %v5175
        %v5223 = vpop.xlane.xlu0 %5222
        %5224 = vmax.xlane.f32.xlu0 %v5176
        %v5225 = vpop.xlane.xlu0 %5224
        %5226 = vmax.xlane.f32.xlu0 %v5177
        %v5227 = vpop.xlane.xlu0 %5226
        %5228 = vmax.xlane.f32.xlu0 %v5178
        %v5229 = vpop.xlane.xlu0 %5228
        %5230 = vmax.xlane.f32.xlu0 %v5179
        %v5231 = vpop.xlane.xlu0 %5230
        %5232 = vmax.xlane.f32.xlu0 %v5180
        %v5233 = vpop.xlane.xlu0 %5232
        %5234 = vmax.xlane.f32.xlu0 %v5181
        %v5235 = vpop.xlane.xlu0 %5234
        %5236 = vmax.xlane.f32.xlu0 %v5182
        %v5237 = vpop.xlane.xlu0 %5236
        %5238 = vmax.xlane.f32.xlu0 %v5183
        %v5239 = vpop.xlane.xlu0 %5238
        %5240 = vmax.xlane.f32.xlu0 %v5184
        %v5241 = vpop.xlane.xlu0 %5240
        %5242 = vmax.xlane.f32.xlu0 %v5185
        %v5243 = vpop.xlane.xlu0 %5242
        %5244 = vmax.xlane.f32.xlu0 %v5186
        %v5245 = vpop.xlane.xlu0 %5244
        %5246 = vmax.xlane.f32.xlu0 %v5187
        %v5247 = vpop.xlane.xlu0 %5246
        %5248 = vmax.xlane.f32.xlu0 %v5188
        %v5249 = vpop.xlane.xlu0 %5248
        %5250 = vmax.xlane.f32.xlu0 %v5189
        %v5251 = vpop.xlane.xlu0 %5250
        %5252 = vmax.xlane.f32.xlu0 %v5190
        %v5253 = vpop.xlane.xlu0 %5252
        %5254 = vmax.xlane.f32.xlu0 %v5191
        %v5255 = vpop.xlane.xlu0 %5254
        %5256 = vmax.xlane.f32.xlu0 %v5192
        %v5257 = vpop.xlane.xlu0 %5256
        %5258 = vmax.xlane.f32.xlu0 %v5193
        %v5259 = vpop.xlane.xlu0 %5258
        %5260 = vmax.xlane.f32.xlu0 %v5194
        %v5261 = vpop.xlane.xlu0 %5260
        %5262 = vmax.xlane.f32.xlu0 %v5195
        %v5263 = vpop.xlane.xlu0 %5262
        %5264 = vmax.xlane.f32.xlu0 %v5196
        %v5265 = vpop.xlane.xlu0 %5264
        %5266 = vmax.xlane.f32.xlu0 %v5197
        %v5267 = vpop.xlane.xlu0 %5266
        %5268 = vmax.xlane.f32.xlu0 %v5198
        %v5269 = vpop.xlane.xlu0 %5268
        %5270 = vmax.xlane.f32.xlu0 %v5199
        %v5271 = vpop.xlane.xlu0 %5270
        %5272 = vmax.xlane.f32.xlu0 %v5200
        %v5273 = vpop.xlane.xlu0 %5272
        %5274 = vmax.xlane.f32.xlu0 %v5201
        %v5275 = vpop.xlane.xlu0 %5274
        %5276 = vmax.xlane.f32.xlu0 %v5202
        %v5277 = vpop.xlane.xlu0 %5276
        %5278 = vmax.xlane.f32.xlu0 %v5203
        %v5279 = vpop.xlane.xlu0 %5278
        %5280 = vmax.xlane.f32.xlu0 %v5204
        %v5281 = vpop.xlane.xlu0 %5280
        %5282 = vmax.xlane.f32.xlu0 %v5205
        %v5283 = vpop.xlane.xlu0 %5282
        %5284 = vmax.xlane.f32.xlu0 %v5206
        %v5285 = vpop.xlane.xlu0 %5284
        %5286 = vmax.xlane.f32.xlu0 %v5207
        %v5287 = vpop.xlane.xlu0 %5286
        %v5288 = vsel %vm5167, %v5209, %v5124
        %v5289 = vsel %vm5167, %v5211, %v5125
        %v5290 = vsel %vm5167, %v5213, %v5126
        %v5291 = vsel %vm5167, %v5215, %v5127
        %v5292 = vsel %vm5167, %v5217, %v5128
        %v5293 = vsel %vm5167, %v5219, %v5129
        %v5294 = vsel %vm5167, %v5221, %v5130
        %v5295 = vsel %vm5167, %v5223, %v5131
        %v5296 = vsel %vm5167, %v5225, %v5132
        %v5297 = vsel %vm5167, %v5227, %v5133
        %v5298 = vsel %vm5167, %v5229, %v5134
        %v5299 = vsel %vm5167, %v5231, %v5135
        %v5300 = vsel %vm5167, %v5233, %v5136
        %v5301 = vsel %vm5167, %v5235, %v5137
        %v5302 = vsel %vm5167, %v5237, %v5138
        %v5303 = vsel %vm5167, %v5239, %v5139
        %v5304 = vsel %vm5167, %v5241, %v5140
        %v5305 = vsel %vm5167, %v5243, %v5141
        %v5306 = vsel %vm5167, %v5245, %v5142
        %v5307 = vsel %vm5167, %v5247, %v5143
        %v5308 = vsel %vm5167, %v5249, %v5144
        %v5309 = vsel %vm5167, %v5251, %v5145
        %v5310 = vsel %vm5167, %v5253, %v5146
        %v5311 = vsel %vm5167, %v5255, %v5147
        %v5312 = vsel %vm5167, %v5257, %v5148
        %v5313 = vsel %vm5167, %v5259, %v5149
        %v5314 = vsel %vm5167, %v5261, %v5150
        %v5315 = vsel %vm5167, %v5263, %v5151
        %v5316 = vsel %vm5167, %v5265, %v5152
        %v5317 = vsel %vm5167, %v5267, %v5153
        %v5318 = vsel %vm5167, %v5269, %v5154
        %v5319 = vsel %vm5167, %v5271, %v5155
        %v5320 = vsel %vm5167, %v5273, %v5156
        %v5321 = vsel %vm5167, %v5275, %v5157
        %v5322 = vsel %vm5167, %v5277, %v5158
        %v5323 = vsel %vm5167, %v5279, %v5159
        %v5324 = vsel %vm5167, %v5281, %v5160
        %v5325 = vsel %vm5167, %v5283, %v5161
        %v5326 = vsel %vm5167, %v5285, %v5162
        %v5327 = vsel %vm5167, %v5287, %v5163
        %v5328 = vsub.f32 %v3319, %v5288
        %v5329 = vsub.f32 %v3320, %v5289
        %v5330 = vsub.f32 %v3321, %v5290
        %v5331 = vsub.f32 %v3322, %v5291
        %v5332 = vsub.f32 %v3323, %v5292
        %v5333 = vsub.f32 %v3324, %v5293
        %v5334 = vsub.f32 %v3325, %v5294
        %v5335 = vsub.f32 %v3326, %v5295
        %v5336 = vsub.f32 %v3327, %v5296
        %v5337 = vsub.f32 %v3328, %v5297
        %v5338 = vsub.f32 %v3329, %v5298
        %v5339 = vsub.f32 %v3330, %v5299
        %v5340 = vsub.f32 %v3331, %v5300
        %v5341 = vsub.f32 %v3332, %v5301
        %v5342 = vsub.f32 %v3333, %v5302
        %v5343 = vsub.f32 %v3334, %v5303
        %v5344 = vsub.f32 %v3335, %v5304
        %v5345 = vsub.f32 %v3336, %v5305
        %v5346 = vsub.f32 %v3337, %v5306
        %v5347 = vsub.f32 %v3338, %v5307
        %v5348 = vsub.f32 %v3339, %v5308
        %v5349 = vsub.f32 %v3340, %v5309
        %v5350 = vsub.f32 %v3341, %v5310
        %v5351 = vsub.f32 %v3342, %v5311
        %v5352 = vsub.f32 %v3343, %v5312
        %v5353 = vsub.f32 %v3344, %v5313
        %v5354 = vsub.f32 %v3345, %v5314
        %v5355 = vsub.f32 %v3346, %v5315
        %v5356 = vsub.f32 %v3347, %v5316
        %v5357 = vsub.f32 %v3348, %v5317
        %v5358 = vsub.f32 %v3349, %v5318
        %v5359 = vsub.f32 %v3350, %v5319
        %v5360 = vsub.f32 %v3351, %v5320
        %v5361 = vsub.f32 %v3352, %v5321
        %v5362 = vsub.f32 %v3353, %v5322
        %v5363 = vsub.f32 %v3354, %v5323
        %v5364 = vsub.f32 %v3355, %v5324
        %v5365 = vsub.f32 %v3356, %v5325
        %v5366 = vsub.f32 %v3357, %v5326
        %v5367 = vsub.f32 %v3358, %v5327
        %v5368 = vmul.f32 %v5328, 1.442695
        %v5369 = vpow.pop %v5368
        %v5370 = vmul.f32 %v5329, 1.442695
        %v5371 = vpow.pop %v5370
        %v5372 = vmul.f32 %v5330, 1.442695
        %v5373 = vpow.pop %v5372
        %v5374 = vmul.f32 %v5331, 1.442695
        %v5375 = vpow.pop %v5374
        %v5376 = vmul.f32 %v5332, 1.442695
        %v5377 = vpow.pop %v5376
        %v5378 = vmul.f32 %v5333, 1.442695
        %v5379 = vpow.pop %v5378
        %v5380 = vmul.f32 %v5334, 1.442695
        %v5381 = vpow.pop %v5380
        %v5382 = vmul.f32 %v5335, 1.442695
        %v5383 = vpow.pop %v5382
        %v5384 = vmul.f32 %v5336, 1.442695
        %v5385 = vpow.pop %v5384
        %v5386 = vmul.f32 %v5337, 1.442695
        %v5387 = vpow.pop %v5386
        %v5388 = vmul.f32 %v5338, 1.442695
        %v5389 = vpow.pop %v5388
        %v5390 = vmul.f32 %v5339, 1.442695
        %v5391 = vpow.pop %v5390
        %v5392 = vmul.f32 %v5340, 1.442695
        %v5393 = vpow.pop %v5392
        %v5394 = vmul.f32 %v5341, 1.442695
        %v5395 = vpow.pop %v5394
        %v5396 = vmul.f32 %v5342, 1.442695
        %v5397 = vpow.pop %v5396
        %v5398 = vmul.f32 %v5343, 1.442695
        %v5399 = vpow.pop %v5398
        %v5400 = vmul.f32 %v5344, 1.442695
        %v5401 = vpow.pop %v5400
        %v5402 = vmul.f32 %v5345, 1.442695
        %v5403 = vpow.pop %v5402
        %v5404 = vmul.f32 %v5346, 1.442695
        %v5405 = vpow.pop %v5404
        %v5406 = vmul.f32 %v5347, 1.442695
        %v5407 = vpow.pop %v5406
        %v5408 = vmul.f32 %v5348, 1.442695
        %v5409 = vpow.pop %v5408
        %v5410 = vmul.f32 %v5349, 1.442695
        %v5411 = vpow.pop %v5410
        %v5412 = vmul.f32 %v5350, 1.442695
        %v5413 = vpow.pop %v5412
        %v5414 = vmul.f32 %v5351, 1.442695
        %v5415 = vpow.pop %v5414
        %v5416 = vmul.f32 %v5352, 1.442695
        %v5417 = vpow.pop %v5416
        %v5418 = vmul.f32 %v5353, 1.442695
        %v5419 = vpow.pop %v5418
        %v5420 = vmul.f32 %v5354, 1.442695
        %v5421 = vpow.pop %v5420
        %v5422 = vmul.f32 %v5355, 1.442695
        %v5423 = vpow.pop %v5422
        %v5424 = vmul.f32 %v5356, 1.442695
        %v5425 = vpow.pop %v5424
        %v5426 = vmul.f32 %v5357, 1.442695
        %v5427 = vpow.pop %v5426
        %v5428 = vmul.f32 %v5358, 1.442695
        %v5429 = vpow.pop %v5428
        %v5430 = vmul.f32 %v5359, 1.442695
        %v5431 = vpow.pop %v5430
        %v5432 = vmul.f32 %v5360, 1.442695
        %v5433 = vpow.pop %v5432
        %v5434 = vmul.f32 %v5361, 1.442695
        %v5435 = vpow.pop %v5434
        %v5436 = vmul.f32 %v5362, 1.442695
        %v5437 = vpow.pop %v5436
        %v5438 = vmul.f32 %v5363, 1.442695
        %v5439 = vpow.pop %v5438
        %v5440 = vmul.f32 %v5364, 1.442695
        %v5441 = vpow.pop %v5440
        %v5442 = vmul.f32 %v5365, 1.442695
        %v5443 = vpow.pop %v5442
        %v5444 = vmul.f32 %v5366, 1.442695
        %v5445 = vpow.pop %v5444
        %v5446 = vmul.f32 %v5367, 1.442695
        %v5447 = vpow.pop %v5446
        %v5448 = vld [vmem:[%s5] sm:$0xff]
        %v5449 = vld [vmem:[%s5 + $0x8] sm:$0xff]
        %v5450 = vld [vmem:[%s5 + $0x10] sm:$0xff]
        %v5451 = vld [vmem:[%s5 + $0x18] sm:$0xff]
        %v5452 = vld [vmem:[%s5 + $0x20] sm:$0xff]
        %v5453 = vld [vmem:[%s5 + $0x28] sm:$0xff]
        %v5454 = vld [vmem:[%s5 + $0x30] sm:$0xff]
        %v5455 = vld [vmem:[%s5 + $0x38] sm:$0xff]
        %v5456 = vld [vmem:[%s5 + $0x40] sm:$0xff]
        %v5457 = vld [vmem:[%s5 + $0x48] sm:$0xff]
        %v5458 = vld [vmem:[%s5 + $0x50] sm:$0xff]
        %v5459 = vld [vmem:[%s5 + $0x58] sm:$0xff]
        %v5460 = vld [vmem:[%s5 + $0x60] sm:$0xff]
        %v5461 = vld [vmem:[%s5 + $0x68] sm:$0xff]
        %v5462 = vld [vmem:[%s5 + $0x70] sm:$0xff]
        %v5463 = vld [vmem:[%s5 + $0x78] sm:$0xff]
        %5464 = vmatpush.msra.mxu0 %v5463
        %5465 = vmatpush.msra.mxu0 %v5462
        %5466 = vmatpush.msra.mxu0 %v5461
        %5467 = vmatpush.msra.mxu0 %v5460
        %5468 = vmatpush.msra.mxu0 %v5459
        %5469 = vmatpush.msra.mxu0 %v5458
        %5470 = vmatpush.msra.mxu0 %v5457
        %5471 = vmatpush.msra.mxu0 %v5456
        %5472 = vmatpush.msra.mxu0 %v5455
        %5473 = vmatpush.msra.mxu0 %v5454
        %5474 = vmatpush.msra.mxu0 %v5453
        %5475 = vmatpush.msra.mxu0 %v5452
        %5476 = vmatpush.msra.mxu0 %v5451
        %5477 = vmatpush.msra.mxu0 %v5450
        %5478 = vmatpush.msra.mxu0 %v5449
        %5479 = vmatpush.msra.mxu0 %v5448
        %5480 = vmatmul.f32.gmra.mxu0 %v5369
        %v5481 = vpop.f32.mrf.mxu0
        %v5482 = vadd.f32 0.0, %v5481
        %5483 = vmatmul.f32.gmra.mxu0 %v5371
        %v5484 = vpop.f32.mrf.mxu0
        %v5485 = vadd.f32 0.0, %v5484
        %5486 = vmatmul.f32.gmra.mxu0 %v5373
        %v5487 = vpop.f32.mrf.mxu0
        %v5488 = vadd.f32 0.0, %v5487
        %5489 = vmatmul.f32.gmra.mxu0 %v5375
        %v5490 = vpop.f32.mrf.mxu0
        %v5491 = vadd.f32 0.0, %v5490
        %5492 = vmatmul.f32.gmra.mxu0 %v5377
        %v5493 = vpop.f32.mrf.mxu0
        %v5494 = vadd.f32 0.0, %v5493
        %5495 = vmatmul.f32.gmra.mxu0 %v5379
        %v5496 = vpop.f32.mrf.mxu0
        %v5497 = vadd.f32 0.0, %v5496
        %5498 = vmatmul.f32.gmra.mxu0 %v5381
        %v5499 = vpop.f32.mrf.mxu0
        %v5500 = vadd.f32 0.0, %v5499
        %5501 = vmatmul.f32.gmra.mxu0 %v5383
        %v5502 = vpop.f32.mrf.mxu0
        %v5503 = vadd.f32 0.0, %v5502
        %5504 = vmatmul.f32.gmra.mxu0 %v5385
        %v5505 = vpop.f32.mrf.mxu0
        %v5506 = vadd.f32 0.0, %v5505
        %5507 = vmatmul.f32.gmra.mxu0 %v5387
        %v5508 = vpop.f32.mrf.mxu0
        %v5509 = vadd.f32 0.0, %v5508
        %5510 = vmatmul.f32.gmra.mxu0 %v5389
        %v5511 = vpop.f32.mrf.mxu0
        %v5512 = vadd.f32 0.0, %v5511
        %5513 = vmatmul.f32.gmra.mxu0 %v5391
        %v5514 = vpop.f32.mrf.mxu0
        %v5515 = vadd.f32 0.0, %v5514
        %5516 = vmatmul.f32.gmra.mxu0 %v5393
        %v5517 = vpop.f32.mrf.mxu0
        %v5518 = vadd.f32 0.0, %v5517
        %5519 = vmatmul.f32.gmra.mxu0 %v5395
        %v5520 = vpop.f32.mrf.mxu0
        %v5521 = vadd.f32 0.0, %v5520
        %5522 = vmatmul.f32.gmra.mxu0 %v5397
        %v5523 = vpop.f32.mrf.mxu0
        %v5524 = vadd.f32 0.0, %v5523
        %5525 = vmatmul.f32.gmra.mxu0 %v5399
        %v5526 = vpop.f32.mrf.mxu0
        %v5527 = vadd.f32 0.0, %v5526
        %5528 = vmatmul.f32.gmra.mxu0 %v5401
        %v5529 = vpop.f32.mrf.mxu0
        %v5530 = vadd.f32 0.0, %v5529
        %5531 = vmatmul.f32.gmra.mxu0 %v5403
        %v5532 = vpop.f32.mrf.mxu0
        %v5533 = vadd.f32 0.0, %v5532
        %5534 = vmatmul.f32.gmra.mxu0 %v5405
        %v5535 = vpop.f32.mrf.mxu0
        %v5536 = vadd.f32 0.0, %v5535
        %5537 = vmatmul.f32.gmra.mxu0 %v5407
        %v5538 = vpop.f32.mrf.mxu0
        %v5539 = vadd.f32 0.0, %v5538
        %5540 = vmatmul.f32.gmra.mxu0 %v5409
        %v5541 = vpop.f32.mrf.mxu0
        %v5542 = vadd.f32 0.0, %v5541
        %5543 = vmatmul.f32.gmra.mxu0 %v5411
        %v5544 = vpop.f32.mrf.mxu0
        %v5545 = vadd.f32 0.0, %v5544
        %5546 = vmatmul.f32.gmra.mxu0 %v5413
        %v5547 = vpop.f32.mrf.mxu0
        %v5548 = vadd.f32 0.0, %v5547
        %5549 = vmatmul.f32.gmra.mxu0 %v5415
        %v5550 = vpop.f32.mrf.mxu0
        %v5551 = vadd.f32 0.0, %v5550
        %5552 = vmatmul.f32.gmra.mxu0 %v5417
        %v5553 = vpop.f32.mrf.mxu0
        %v5554 = vadd.f32 0.0, %v5553
        %5555 = vmatmul.f32.gmra.mxu0 %v5419
        %v5556 = vpop.f32.mrf.mxu0
        %v5557 = vadd.f32 0.0, %v5556
        %5558 = vmatmul.f32.gmra.mxu0 %v5421
        %v5559 = vpop.f32.mrf.mxu0
        %v5560 = vadd.f32 0.0, %v5559
        %5561 = vmatmul.f32.gmra.mxu0 %v5423
        %v5562 = vpop.f32.mrf.mxu0
        %v5563 = vadd.f32 0.0, %v5562
        %5564 = vmatmul.f32.gmra.mxu0 %v5425
        %v5565 = vpop.f32.mrf.mxu0
        %v5566 = vadd.f32 0.0, %v5565
        %5567 = vmatmul.f32.gmra.mxu0 %v5427
        %v5568 = vpop.f32.mrf.mxu0
        %v5569 = vadd.f32 0.0, %v5568
        %5570 = vmatmul.f32.gmra.mxu0 %v5429
        %v5571 = vpop.f32.mrf.mxu0
        %v5572 = vadd.f32 0.0, %v5571
        %5573 = vmatmul.f32.gmra.mxu0 %v5431
        %v5574 = vpop.f32.mrf.mxu0
        %v5575 = vadd.f32 0.0, %v5574
        %5576 = vmatmul.f32.gmra.mxu0 %v5433
        %v5577 = vpop.f32.mrf.mxu0
        %v5578 = vadd.f32 0.0, %v5577
        %5579 = vmatmul.f32.gmra.mxu0 %v5435
        %v5580 = vpop.f32.mrf.mxu0
        %v5581 = vadd.f32 0.0, %v5580
        %5582 = vmatmul.f32.gmra.mxu0 %v5437
        %v5583 = vpop.f32.mrf.mxu0
        %v5584 = vadd.f32 0.0, %v5583
        %5585 = vmatmul.f32.gmra.mxu0 %v5439
        %v5586 = vpop.f32.mrf.mxu0
        %v5587 = vadd.f32 0.0, %v5586
        %5588 = vmatmul.f32.gmra.mxu0 %v5441
        %v5589 = vpop.f32.mrf.mxu0
        %v5590 = vadd.f32 0.0, %v5589
        %5591 = vmatmul.f32.gmra.mxu0 %v5443
        %v5592 = vpop.f32.mrf.mxu0
        %v5593 = vadd.f32 0.0, %v5592
        %5594 = vmatmul.f32.gmra.mxu0 %v5445
        %v5595 = vpop.f32.mrf.mxu0
        %v5596 = vadd.f32 0.0, %v5595
        %5597 = vmatmul.f32.gmra.mxu0 %v5447
        %v5598 = vpop.f32.mrf.mxu0
        %v5599 = vadd.f32 0.0, %v5598
        %5600 = vdwg.mxu0
        %v5601 = vld [vmem:[%s6] sm:$0xff]
        %v5602 = vld [vmem:[%s6 + $0x8] sm:$0xf]
        %vm5603 = vcmask 97280
        %v5605 = vsel %vm5603, %v5482, 0
        %v5608 = vsel %vm5603, %v5485, 0
        %v5611 = vsel %vm5603, %v5488, 0
        %v5614 = vsel %vm5603, %v5491, 0
        %v5617 = vsel %vm5603, %v5494, 0
        %v5620 = vsel %vm5603, %v5497, 0
        %v5623 = vsel %vm5603, %v5500, 0
        %v5626 = vsel %vm5603, %v5503, 0
        %v5629 = vsel %vm5603, %v5506, 0
        %v5632 = vsel %vm5603, %v5509, 0
        %v5635 = vsel %vm5603, %v5512, 0
        %v5638 = vsel %vm5603, %v5515, 0
        %v5641 = vsel %vm5603, %v5518, 0
        %v5644 = vsel %vm5603, %v5521, 0
        %v5647 = vsel %vm5603, %v5524, 0
        %v5650 = vsel %vm5603, %v5527, 0
        %v5653 = vsel %vm5603, %v5530, 0
        %v5656 = vsel %vm5603, %v5533, 0
        %v5659 = vsel %vm5603, %v5536, 0
        %v5662 = vsel %vm5603, %v5539, 0
        %v5665 = vsel %vm5603, %v5542, 0
        %v5668 = vsel %vm5603, %v5545, 0
        %v5671 = vsel %vm5603, %v5548, 0
        %v5674 = vsel %vm5603, %v5551, 0
        %v5677 = vsel %vm5603, %v5554, 0
        %v5680 = vsel %vm5603, %v5557, 0
        %v5683 = vsel %vm5603, %v5560, 0
        %v5686 = vsel %vm5603, %v5563, 0
        %v5689 = vsel %vm5603, %v5566, 0
        %v5692 = vsel %vm5603, %v5569, 0
        %v5695 = vsel %vm5603, %v5572, 0
        %v5698 = vsel %vm5603, %v5575, 0
        %v5701 = vsel %vm5603, %v5578, 0
        %v5704 = vsel %vm5603, %v5581, 0
        %v5707 = vsel %vm5603, %v5584, 0
        %v5710 = vsel %vm5603, %v5587, 0
        %v5713 = vsel %vm5603, %v5590, 0
        %v5716 = vsel %vm5603, %v5593, 0
        %v5719 = vsel %vm5603, %v5596, 0
        %v5722 = vsel %vm5603, %v5599, 0
        %vm5724 = vcmask 1043456
        %v5726 = vsel %vm5724, %v5602, 0
        %5728 = vmatpush.msra.mxu0 0.0
        %5729 = vmatpush.msra.mxu0 0.0
        %5730 = vmatpush.msra.mxu0 0.0
        %5731 = vmatpush.msra.mxu0 0.0
        %5732 = vmatpush.msra.mxu0 0.0
        %5733 = vmatpush.msra.mxu0 0.0
        %5734 = vmatpush.msra.mxu0 0.0
        %5735 = vmatpush.msra.mxu0 0.0
        %5736 = vmatpush.msra.mxu0 0.0
        %5737 = vmatpush.msra.mxu0 0.0
        %5738 = vmatpush.msra.mxu0 0.0
        %5739 = vmatpush.msra.mxu0 0.0
        %5740 = vmatpush.msra.mxu0 0.0
        %5741 = vmatpush.msra.mxu0 0.0
        %5742 = vmatpush.msra.mxu0 %v5726
        %5743 = vmatpush.msra.mxu0 %v5601
        %5744 = vmatmul.f32.gmra.mxu0 %v5605
        %v5745 = vpop.f32.mrf.mxu0
        %v5746 = vadd.f32 0.0, %v5745
        %5747 = vmatmul.f32.gmra.mxu0 %v5608
        %v5748 = vpop.f32.mrf.mxu0
        %v5749 = vadd.f32 0.0, %v5748
        %5750 = vmatmul.f32.gmra.mxu0 %v5611
        %v5751 = vpop.f32.mrf.mxu0
        %v5752 = vadd.f32 0.0, %v5751
        %5753 = vmatmul.f32.gmra.mxu0 %v5614
        %v5754 = vpop.f32.mrf.mxu0
        %v5755 = vadd.f32 0.0, %v5754
        %5756 = vmatmul.f32.gmra.mxu0 %v5617
        %v5757 = vpop.f32.mrf.mxu0
        %v5758 = vadd.f32 0.0, %v5757
        %5759 = vmatmul.f32.gmra.mxu0 %v5620
        %v5760 = vpop.f32.mrf.mxu0
        %v5761 = vadd.f32 0.0, %v5760
        %5762 = vmatmul.f32.gmra.mxu0 %v5623
        %v5763 = vpop.f32.mrf.mxu0
        %v5764 = vadd.f32 0.0, %v5763
        %5765 = vmatmul.f32.gmra.mxu0 %v5626
        %v5766 = vpop.f32.mrf.mxu0
        %v5767 = vadd.f32 0.0, %v5766
        %5768 = vmatmul.f32.gmra.mxu0 %v5629
        %v5769 = vpop.f32.mrf.mxu0
        %v5770 = vadd.f32 0.0, %v5769
        %5771 = vmatmul.f32.gmra.mxu0 %v5632
        %v5772 = vpop.f32.mrf.mxu0
        %v5773 = vadd.f32 0.0, %v5772
        %5774 = vmatmul.f32.gmra.mxu0 %v5635
        %v5775 = vpop.f32.mrf.mxu0
        %v5776 = vadd.f32 0.0, %v5775
        %5777 = vmatmul.f32.gmra.mxu0 %v5638
        %v5778 = vpop.f32.mrf.mxu0
        %v5779 = vadd.f32 0.0, %v5778
        %5780 = vmatmul.f32.gmra.mxu0 %v5641
        %v5781 = vpop.f32.mrf.mxu0
        %v5782 = vadd.f32 0.0, %v5781
        %5783 = vmatmul.f32.gmra.mxu0 %v5644
        %v5784 = vpop.f32.mrf.mxu0
        %v5785 = vadd.f32 0.0, %v5784
        %5786 = vmatmul.f32.gmra.mxu0 %v5647
        %v5787 = vpop.f32.mrf.mxu0
        %v5788 = vadd.f32 0.0, %v5787
        %5789 = vmatmul.f32.gmra.mxu0 %v5650
        %v5790 = vpop.f32.mrf.mxu0
        %v5791 = vadd.f32 0.0, %v5790
        %5792 = vmatmul.f32.gmra.mxu0 %v5653
        %v5793 = vpop.f32.mrf.mxu0
        %v5794 = vadd.f32 0.0, %v5793
        %5795 = vmatmul.f32.gmra.mxu0 %v5656
        %v5796 = vpop.f32.mrf.mxu0
        %v5797 = vadd.f32 0.0, %v5796
        %5798 = vmatmul.f32.gmra.mxu0 %v5659
        %v5799 = vpop.f32.mrf.mxu0
        %v5800 = vadd.f32 0.0, %v5799
        %5801 = vmatmul.f32.gmra.mxu0 %v5662
        %v5802 = vpop.f32.mrf.mxu0
        %v5803 = vadd.f32 0.0, %v5802
        %5804 = vmatmul.f32.gmra.mxu0 %v5665
        %v5805 = vpop.f32.mrf.mxu0
        %v5806 = vadd.f32 0.0, %v5805
        %5807 = vmatmul.f32.gmra.mxu0 %v5668
        %v5808 = vpop.f32.mrf.mxu0
        %v5809 = vadd.f32 0.0, %v5808
        %5810 = vmatmul.f32.gmra.mxu0 %v5671
        %v5811 = vpop.f32.mrf.mxu0
        %v5812 = vadd.f32 0.0, %v5811
        %5813 = vmatmul.f32.gmra.mxu0 %v5674
        %v5814 = vpop.f32.mrf.mxu0
        %v5815 = vadd.f32 0.0, %v5814
        %5816 = vmatmul.f32.gmra.mxu0 %v5677
        %v5817 = vpop.f32.mrf.mxu0
        %v5818 = vadd.f32 0.0, %v5817
        %5819 = vmatmul.f32.gmra.mxu0 %v5680
        %v5820 = vpop.f32.mrf.mxu0
        %v5821 = vadd.f32 0.0, %v5820
        %5822 = vmatmul.f32.gmra.mxu0 %v5683
        %v5823 = vpop.f32.mrf.mxu0
        %v5824 = vadd.f32 0.0, %v5823
        %5825 = vmatmul.f32.gmra.mxu0 %v5686
        %v5826 = vpop.f32.mrf.mxu0
        %v5827 = vadd.f32 0.0, %v5826
        %5828 = vmatmul.f32.gmra.mxu0 %v5689
        %v5829 = vpop.f32.mrf.mxu0
        %v5830 = vadd.f32 0.0, %v5829
        %5831 = vmatmul.f32.gmra.mxu0 %v5692
        %v5832 = vpop.f32.mrf.mxu0
        %v5833 = vadd.f32 0.0, %v5832
        %5834 = vmatmul.f32.gmra.mxu0 %v5695
        %v5835 = vpop.f32.mrf.mxu0
        %v5836 = vadd.f32 0.0, %v5835
        %5837 = vmatmul.f32.gmra.mxu0 %v5698
        %v5838 = vpop.f32.mrf.mxu0
        %v5839 = vadd.f32 0.0, %v5838
        %5840 = vmatmul.f32.gmra.mxu0 %v5701
        %v5841 = vpop.f32.mrf.mxu0
        %v5842 = vadd.f32 0.0, %v5841
        %5843 = vmatmul.f32.gmra.mxu0 %v5704
        %v5844 = vpop.f32.mrf.mxu0
        %v5845 = vadd.f32 0.0, %v5844
        %5846 = vmatmul.f32.gmra.mxu0 %v5707
        %v5847 = vpop.f32.mrf.mxu0
        %v5848 = vadd.f32 0.0, %v5847
        %5849 = vmatmul.f32.gmra.mxu0 %v5710
        %v5850 = vpop.f32.mrf.mxu0
        %v5851 = vadd.f32 0.0, %v5850
        %5852 = vmatmul.f32.gmra.mxu0 %v5713
        %v5853 = vpop.f32.mrf.mxu0
        %v5854 = vadd.f32 0.0, %v5853
        %5855 = vmatmul.f32.gmra.mxu0 %v5716
        %v5856 = vpop.f32.mrf.mxu0
        %v5857 = vadd.f32 0.0, %v5856
        %5858 = vmatmul.f32.gmra.mxu0 %v5719
        %v5859 = vpop.f32.mrf.mxu0
        %v5860 = vadd.f32 0.0, %v5859
        %5861 = vmatmul.f32.gmra.mxu0 %v5722
        %v5862 = vpop.f32.mrf.mxu0
        %v5863 = vadd.f32 0.0, %v5862
        %5864 = vdwg.mxu0
        %v5865 = vrcp.pop %v5746
        %v5866 = vrcp.pop %v5749
        %v5867 = vrcp.pop %v5752
        %v5868 = vrcp.pop %v5755
        %v5869 = vrcp.pop %v5758
        %v5870 = vrcp.pop %v5761
        %v5871 = vrcp.pop %v5764
        %v5872 = vrcp.pop %v5767
        %v5873 = vrcp.pop %v5770
        %v5874 = vrcp.pop %v5773
        %v5875 = vrcp.pop %v5776
        %v5876 = vrcp.pop %v5779
        %v5877 = vrcp.pop %v5782
        %v5878 = vrcp.pop %v5785
        %v5879 = vrcp.pop %v5788
        %v5880 = vrcp.pop %v5791
        %v5881 = vrcp.pop %v5794
        %v5882 = vrcp.pop %v5797
        %v5883 = vrcp.pop %v5800
        %v5884 = vrcp.pop %v5803
        %v5885 = vrcp.pop %v5806
        %v5886 = vrcp.pop %v5809
        %v5887 = vrcp.pop %v5812
        %v5888 = vrcp.pop %v5815
        %v5889 = vrcp.pop %v5818
        %v5890 = vrcp.pop %v5821
        %v5891 = vrcp.pop %v5824
        %v5892 = vrcp.pop %v5827
        %v5893 = vrcp.pop %v5830
        %v5894 = vrcp.pop %v5833
        %v5895 = vrcp.pop %v5836
        %v5896 = vrcp.pop %v5839
        %v5897 = vrcp.pop %v5842
        %v5898 = vrcp.pop %v5845
        %v5899 = vrcp.pop %v5848
        %v5900 = vrcp.pop %v5851
        %v5901 = vrcp.pop %v5854
        %v5902 = vrcp.pop %v5857
        %v5903 = vrcp.pop %v5860
        %v5904 = vrcp.pop %v5863
        %v5905 = vmul.f32 %v5369, %v5865
        %v5906 = vmul.f32 %v5371, %v5866
        %v5907 = vmul.f32 %v5373, %v5867
        %v5908 = vmul.f32 %v5375, %v5868
        %v5909 = vmul.f32 %v5377, %v5869
        %v5910 = vmul.f32 %v5379, %v5870
        %v5911 = vmul.f32 %v5381, %v5871
        %v5912 = vmul.f32 %v5383, %v5872
        %v5913 = vmul.f32 %v5385, %v5873
        %v5914 = vmul.f32 %v5387, %v5874
        %v5915 = vmul.f32 %v5389, %v5875
        %v5916 = vmul.f32 %v5391, %v5876
        %v5917 = vmul.f32 %v5393, %v5877
        %v5918 = vmul.f32 %v5395, %v5878
        %v5919 = vmul.f32 %v5397, %v5879
        %v5920 = vmul.f32 %v5399, %v5880
        %v5921 = vmul.f32 %v5401, %v5881
        %v5922 = vmul.f32 %v5403, %v5882
        %v5923 = vmul.f32 %v5405, %v5883
        %v5924 = vmul.f32 %v5407, %v5884
        %v5925 = vmul.f32 %v5409, %v5885
        %v5926 = vmul.f32 %v5411, %v5886
        %v5927 = vmul.f32 %v5413, %v5887
        %v5928 = vmul.f32 %v5415, %v5888
        %v5929 = vmul.f32 %v5417, %v5889
        %v5930 = vmul.f32 %v5419, %v5890
        %v5931 = vmul.f32 %v5421, %v5891
        %v5932 = vmul.f32 %v5423, %v5892
        %v5933 = vmul.f32 %v5425, %v5893
        %v5934 = vmul.f32 %v5427, %v5894
        %v5935 = vmul.f32 %v5429, %v5895
        %v5936 = vmul.f32 %v5431, %v5896
        %v5937 = vmul.f32 %v5433, %v5897
        %v5938 = vmul.f32 %v5435, %v5898
        %v5939 = vmul.f32 %v5437, %v5899
        %v5940 = vmul.f32 %v5439, %v5900
        %v5941 = vmul.f32 %v5441, %v5901
        %v5942 = vmul.f32 %v5443, %v5902
        %v5943 = vmul.f32 %v5445, %v5903
        %v5944 = vmul.f32 %v5447, %v5904
        %v5945 = vld [vmem:[%s2] sm:$0x1]
        %v5947 = vperm.slane %v5945, 0
        %v5949 = vmul.f32 %v5905, %v5947
        %v5950 = vmul.f32 %v5906, %v5947
        %v5951 = vmul.f32 %v5907, %v5947
        %v5952 = vmul.f32 %v5908, %v5947
        %v5953 = vmul.f32 %v5909, %v5947
        %v5954 = vmul.f32 %v5910, %v5947
        %v5955 = vmul.f32 %v5911, %v5947
        %v5956 = vmul.f32 %v5912, %v5947
        %v5957 = vmul.f32 %v5913, %v5947
        %v5958 = vmul.f32 %v5914, %v5947
        %v5959 = vmul.f32 %v5915, %v5947
        %v5960 = vmul.f32 %v5916, %v5947
        %v5961 = vmul.f32 %v5917, %v5947
        %v5962 = vmul.f32 %v5918, %v5947
        %v5963 = vmul.f32 %v5919, %v5947
        %v5964 = vmul.f32 %v5920, %v5947
        %v5965 = vmul.f32 %v5921, %v5947
        %v5966 = vmul.f32 %v5922, %v5947
        %v5967 = vmul.f32 %v5923, %v5947
        %v5968 = vmul.f32 %v5924, %v5947
        %v5969 = vmul.f32 %v5925, %v5947
        %v5970 = vmul.f32 %v5926, %v5947
        %v5971 = vmul.f32 %v5927, %v5947
        %v5972 = vmul.f32 %v5928, %v5947
        %v5973 = vmul.f32 %v5929, %v5947
        %v5974 = vmul.f32 %v5930, %v5947
        %v5975 = vmul.f32 %v5931, %v5947
        %v5976 = vmul.f32 %v5932, %v5947
        %v5977 = vmul.f32 %v5933, %v5947
        %v5978 = vmul.f32 %v5934, %v5947
        %v5979 = vmul.f32 %v5935, %v5947
        %v5980 = vmul.f32 %v5936, %v5947
        %v5981 = vmul.f32 %v5937, %v5947
        %v5982 = vmul.f32 %v5938, %v5947
        %v5983 = vmul.f32 %v5939, %v5947
        %v5984 = vmul.f32 %v5940, %v5947
        %v5985 = vmul.f32 %v5941, %v5947
        %v5986 = vmul.f32 %v5942, %v5947
        %v5987 = vmul.f32 %v5943, %v5947
        %v5988 = vmul.f32 %v5944, %v5947
        %5989 = vst [vmem:[%s513] sm:$0xff] %v5949
        %5990 = vst [vmem:[%s513 + $0x8] sm:$0xff] %v5950
        %5991 = vst [vmem:[%s513 + $0x10] sm:$0xff] %v5951
        %5992 = vst [vmem:[%s513 + $0x18] sm:$0xff] %v5952
        %5993 = vst [vmem:[%s513 + $0x20] sm:$0xff] %v5953
        %5994 = vst [vmem:[%s513 + $0x28] sm:$0xff] %v5954
        %5995 = vst [vmem:[%s513 + $0x30] sm:$0xff] %v5955
        %5996 = vst [vmem:[%s513 + $0x38] sm:$0xff] %v5956
        %5997 = vst [vmem:[%s513 + $0x40] sm:$0xff] %v5957
        %5998 = vst [vmem:[%s513 + $0x48] sm:$0xff] %v5958
        %5999 = vst [vmem:[%s513 + $0x50] sm:$0xff] %v5959
        %6000 = vst [vmem:[%s513 + $0x58] sm:$0xff] %v5960
        %6001 = vst [vmem:[%s513 + $0x60] sm:$0xff] %v5961
        %6002 = vst [vmem:[%s513 + $0x68] sm:$0xff] %v5962
        %6003 = vst [vmem:[%s513 + $0x70] sm:$0xff] %v5963
        %6004 = vst [vmem:[%s513 + $0x78] sm:$0xff] %v5964
        %6005 = vst [vmem:[%s513 + $0x80] sm:$0xff] %v5965
        %6006 = vst [vmem:[%s513 + $0x88] sm:$0xff] %v5966
        %6007 = vst [vmem:[%s513 + $0x90] sm:$0xff] %v5967
        %6008 = vst [vmem:[%s513 + $0x98] sm:$0xff] %v5968
        %6009 = vst [vmem:[%s513 + $0xa0] sm:$0xff] %v5969
        %6010 = vst [vmem:[%s513 + $0xa8] sm:$0xff] %v5970
        %6011 = vst [vmem:[%s513 + $0xb0] sm:$0xff] %v5971
        %6012 = vst [vmem:[%s513 + $0xb8] sm:$0xff] %v5972
        %6013 = vst [vmem:[%s513 + $0xc0] sm:$0xff] %v5973
        %6014 = vst [vmem:[%s513 + $0xc8] sm:$0xff] %v5974
        %6015 = vst [vmem:[%s513 + $0xd0] sm:$0xff] %v5975
        %6016 = vst [vmem:[%s513 + $0xd8] sm:$0xff] %v5976
        %6017 = vst [vmem:[%s513 + $0xe0] sm:$0xff] %v5977
        %6018 = vst [vmem:[%s513 + $0xe8] sm:$0xff] %v5978
        %6019 = vst [vmem:[%s513 + $0xf0] sm:$0xff] %v5979
        %6020 = vst [vmem:[%s513 + $0xf8] sm:$0xff] %v5980
        %6021 = vst [vmem:[%s513 + $0x100] sm:$0xff] %v5981
        %6022 = vst [vmem:[%s513 + $0x108] sm:$0xff] %v5982
        %6023 = vst [vmem:[%s513 + $0x110] sm:$0xff] %v5983
        %6024 = vst [vmem:[%s513 + $0x118] sm:$0xff] %v5984
        %6025 = vst [vmem:[%s513 + $0x120] sm:$0xff] %v5985
        %6026 = vst [vmem:[%s513 + $0x128] sm:$0xff] %v5986
        %6027 = vst [vmem:[%s513 + $0x130] sm:$0xff] %v5987
        %6028 = vst [vmem:[%s513 + $0x138] sm:$0xff] %v5988
        %v6029 = vpack.c.bf16 %v5949, %v5949
        %v6030 = vpack.c.bf16 %v5950, %v5950
        %v6031 = vpack.c.bf16 %v5951, %v5951
        %v6032 = vpack.c.bf16 %v5952, %v5952
        %v6033 = vpack.c.bf16 %v5953, %v5953
        %v6034 = vpack.c.bf16 %v5954, %v5954
        %v6035 = vpack.c.bf16 %v5955, %v5955
        %v6036 = vpack.c.bf16 %v5956, %v5956
        %v6037 = vpack.c.bf16 %v5957, %v5957
        %v6038 = vpack.c.bf16 %v5958, %v5958
        %v6039 = vpack.c.bf16 %v5959, %v5959
        %v6040 = vpack.c.bf16 %v5960, %v5960
        %v6041 = vpack.c.bf16 %v5961, %v5961
        %v6042 = vpack.c.bf16 %v5962, %v5962
        %v6043 = vpack.c.bf16 %v5963, %v5963
        %v6044 = vpack.c.bf16 %v5964, %v5964
        %v6045 = vpack.c.bf16 %v5965, %v5965
        %v6046 = vpack.c.bf16 %v5966, %v5966
        %v6047 = vpack.c.bf16 %v5967, %v5967
        %v6048 = vpack.c.bf16 %v5968, %v5968
        %v6049 = vpack.c.bf16 %v5969, %v5969
        %v6050 = vpack.c.bf16 %v5970, %v5970
        %v6051 = vpack.c.bf16 %v5971, %v5971
        %v6052 = vpack.c.bf16 %v5972, %v5972
        %v6053 = vpack.c.bf16 %v5973, %v5973
        %v6054 = vpack.c.bf16 %v5974, %v5974
        %v6055 = vpack.c.bf16 %v5975, %v5975
        %v6056 = vpack.c.bf16 %v5976, %v5976
        %v6057 = vpack.c.bf16 %v5977, %v5977
        %v6058 = vpack.c.bf16 %v5978, %v5978
        %v6059 = vpack.c.bf16 %v5979, %v5979
        %v6060 = vpack.c.bf16 %v5980, %v5980
        %v6061 = vpack.c.bf16 %v5981, %v5981
        %v6062 = vpack.c.bf16 %v5982, %v5982
        %v6063 = vpack.c.bf16 %v5983, %v5983
        %v6064 = vpack.c.bf16 %v5984, %v5984
        %v6065 = vpack.c.bf16 %v5985, %v5985
        %v6066 = vpack.c.bf16 %v5986, %v5986
        %v6067 = vpack.c.bf16 %v5987, %v5987
        %v6068 = vpack.c.bf16 %v5988, %v5988
        %v6073 = vunpack.c.l.b16 %v6029
        %v6074 = vunpack.c.l.b16 %v6030
        %v6075 = vunpack.c.l.b16 %v6031
        %v6076 = vunpack.c.l.b16 %v6032
        %v6077 = vpack.c.b16 %v6074, %v6073
        %v6078 = vpack.c.b16 %v6076, %v6075
        %v6097 = vunpack.c.l.b16 %v1417
        %v6098 = vunpack.c.l.b16 %v1418
        %v6099 = vunpack.c.l.b16 %v1419
        %v6100 = vunpack.c.l.b16 %v1420
        %v6101 = vunpack.c.l.b16 %v1421
        %v6102 = vunpack.c.l.b16 %v1422
        %v6103 = vunpack.c.l.b16 %v1423
        %v6104 = vunpack.c.l.b16 %v1424
        %v6105 = vunpack.c.l.b16 %v1425
        %v6106 = vunpack.c.l.b16 %v1426
        %v6107 = vunpack.c.l.b16 %v1427
        %v6108 = vunpack.c.l.b16 %v1428
        %v6109 = vunpack.c.l.b16 %v1429
        %v6110 = vunpack.c.l.b16 %v1430
        %v6111 = vunpack.c.l.b16 %v1431
        %v6112 = vunpack.c.l.b16 %v1432
        %v6113 = vpack.c.b16 %v6098, %v6097
        %v6114 = vpack.c.b16 %v6100, %v6099
        %v6115 = vpack.c.b16 %v6102, %v6101
        %v6116 = vpack.c.b16 %v6104, %v6103
        %v6117 = vpack.c.b16 %v6106, %v6105
        %v6118 = vpack.c.b16 %v6108, %v6107
        %v6119 = vpack.c.b16 %v6110, %v6109
        %v6120 = vpack.c.b16 %v6112, %v6111
        %6121 = vrot.lane.b32.xlu0 %v6113, 64
        %v6122 = vpop.permute.xlu0 %6121
        %6123 = vrot.lane.b32.xlu0 %v6114, 64
        %v6124 = vpop.permute.xlu0 %6123
        %6125 = vrot.lane.b32.xlu0 %v6115, 64
        %v6126 = vpop.permute.xlu0 %6125
        %6127 = vrot.lane.b32.xlu0 %v6116, 64
        %v6128 = vpop.permute.xlu0 %6127
        %6129 = vrot.lane.b32.xlu0 %v6117, 64
        %v6130 = vpop.permute.xlu0 %6129
        %6131 = vrot.lane.b32.xlu0 %v6118, 64
        %v6132 = vpop.permute.xlu0 %6131
        %6133 = vrot.lane.b32.xlu0 %v6119, 64
        %v6134 = vpop.permute.xlu0 %6133
        %6135 = vrot.lane.b32.xlu0 %v6120, 64
        %v6136 = vpop.permute.xlu0 %6135
        %6145 = vmatpush.bf16.msra.mxu0 %v6136
        %6146 = vmatpush.bf16.msra.mxu0 %v6134
        %6147 = vmatpush.bf16.msra.mxu0 %v6132
        %6148 = vmatpush.bf16.msra.mxu0 %v6130
        %6149 = vmatpush.bf16.msra.mxu0 %v6128
        %6150 = vmatpush.bf16.msra.mxu0 %v6126
        %6151 = vmatpush.bf16.msra.mxu0 %v6124
        %6152 = vmatpush.bf16.msra.mxu0 %v6122
        %6153 = vmatmul.bf16.gmra.mxu0 %v6077
        %v6154 = vpop.f32.mrf.mxu0
        %v6155 = vadd.f32 0.0, %v6154
        %v6156 = vpop.f32.mrf.mxu0
        %v6157 = vadd.f32 0.0, %v6156
        %6158 = vmatmul.bf16.gmra.mxu0 %v6078
        %v6159 = vpop.f32.mrf.mxu0
        %v6160 = vadd.f32 0.0, %v6159
        %v6161 = vpop.f32.mrf.mxu0
        %v6162 = vadd.f32 0.0, %v6161
        %6163 = vdwg.mxu0
        %v6168 = vunpack.c.l.b16 %v6033
        %v6169 = vunpack.c.l.b16 %v6034
        %v6170 = vunpack.c.l.b16 %v6035
        %v6171 = vunpack.c.l.b16 %v6036
        %v6172 = vpack.c.b16 %v6169, %v6168
        %v6173 = vpack.c.b16 %v6171, %v6170
        %v6192 = vunpack.c.l.b16 %v1433
        %v6193 = vunpack.c.l.b16 %v1434
        %v6194 = vunpack.c.l.b16 %v1435
        %v6195 = vunpack.c.l.b16 %v1436
        %v6196 = vunpack.c.l.b16 %v1437
        %v6197 = vunpack.c.l.b16 %v1438
        %v6198 = vunpack.c.l.b16 %v1439
        %v6199 = vunpack.c.l.b16 %v1440
        %v6200 = vunpack.c.l.b16 %v1441
        %v6201 = vunpack.c.l.b16 %v1442
        %v6202 = vunpack.c.l.b16 %v1443
        %v6203 = vunpack.c.l.b16 %v1444
        %v6204 = vunpack.c.l.b16 %v1445
        %v6205 = vunpack.c.l.b16 %v1446
        %v6206 = vunpack.c.l.b16 %v1447
        %v6207 = vunpack.c.l.b16 %v1448
        %v6208 = vpack.c.b16 %v6193, %v6192
        %v6209 = vpack.c.b16 %v6195, %v6194
        %v6210 = vpack.c.b16 %v6197, %v6196
        %v6211 = vpack.c.b16 %v6199, %v6198
        %v6212 = vpack.c.b16 %v6201, %v6200
        %v6213 = vpack.c.b16 %v6203, %v6202
        %v6214 = vpack.c.b16 %v6205, %v6204
        %v6215 = vpack.c.b16 %v6207, %v6206
        %6216 = vrot.lane.b32.xlu0 %v6208, 64
        %v6217 = vpop.permute.xlu0 %6216
        %6218 = vrot.lane.b32.xlu0 %v6209, 64
        %v6219 = vpop.permute.xlu0 %6218
        %6220 = vrot.lane.b32.xlu0 %v6210, 64
        %v6221 = vpop.permute.xlu0 %6220
        %6222 = vrot.lane.b32.xlu0 %v6211, 64
        %v6223 = vpop.permute.xlu0 %6222
        %6224 = vrot.lane.b32.xlu0 %v6212, 64
        %v6225 = vpop.permute.xlu0 %6224
        %6226 = vrot.lane.b32.xlu0 %v6213, 64
        %v6227 = vpop.permute.xlu0 %6226
        %6228 = vrot.lane.b32.xlu0 %v6214, 64
        %v6229 = vpop.permute.xlu0 %6228
        %6230 = vrot.lane.b32.xlu0 %v6215, 64
        %v6231 = vpop.permute.xlu0 %6230
        %6240 = vmatpush.bf16.msra.mxu0 %v6231
        %6241 = vmatpush.bf16.msra.mxu0 %v6229
        %6242 = vmatpush.bf16.msra.mxu0 %v6227
        %6243 = vmatpush.bf16.msra.mxu0 %v6225
        %6244 = vmatpush.bf16.msra.mxu0 %v6223
        %6245 = vmatpush.bf16.msra.mxu0 %v6221
        %6246 = vmatpush.bf16.msra.mxu0 %v6219
        %6247 = vmatpush.bf16.msra.mxu0 %v6217
        %6248 = vmatmul.bf16.gmra.mxu0 %v6172
        %v6249 = vpop.f32.mrf.mxu0
        %v6250 = vadd.f32 0.0, %v6249
        %v6251 = vpop.f32.mrf.mxu0
        %v6252 = vadd.f32 0.0, %v6251
        %6253 = vmatmul.bf16.gmra.mxu0 %v6173
        %v6254 = vpop.f32.mrf.mxu0
        %v6255 = vadd.f32 0.0, %v6254
        %v6256 = vpop.f32.mrf.mxu0
        %v6257 = vadd.f32 0.0, %v6256
        %6258 = vdwg.mxu0
        %v6263 = vunpack.c.l.b16 %v6037
        %v6264 = vunpack.c.l.b16 %v6038
        %v6265 = vunpack.c.l.b16 %v6039
        %v6266 = vunpack.c.l.b16 %v6040
        %v6267 = vpack.c.b16 %v6264, %v6263
        %v6268 = vpack.c.b16 %v6266, %v6265
        %v6287 = vunpack.c.l.b16 %v1449
        %v6288 = vunpack.c.l.b16 %v1450
        %v6289 = vunpack.c.l.b16 %v1451
        %v6290 = vunpack.c.l.b16 %v1452
        %v6291 = vunpack.c.l.b16 %v1453
        %v6292 = vunpack.c.l.b16 %v1454
        %v6293 = vunpack.c.l.b16 %v1455
        %v6294 = vunpack.c.l.b16 %v1456
        %v6295 = vunpack.c.l.b16 %v1457
        %v6296 = vunpack.c.l.b16 %v1458
        %v6297 = vunpack.c.l.b16 %v1459
        %v6298 = vunpack.c.l.b16 %v1460
        %v6299 = vunpack.c.l.b16 %v1461
        %v6300 = vunpack.c.l.b16 %v1462
        %v6301 = vunpack.c.l.b16 %v1463
        %v6302 = vunpack.c.l.b16 %v1464
        %v6303 = vpack.c.b16 %v6288, %v6287
        %v6304 = vpack.c.b16 %v6290, %v6289
        %v6305 = vpack.c.b16 %v6292, %v6291
        %v6306 = vpack.c.b16 %v6294, %v6293
        %v6307 = vpack.c.b16 %v6296, %v6295
        %v6308 = vpack.c.b16 %v6298, %v6297
        %v6309 = vpack.c.b16 %v6300, %v6299
        %v6310 = vpack.c.b16 %v6302, %v6301
        %6311 = vrot.lane.b32.xlu0 %v6303, 64
        %v6312 = vpop.permute.xlu0 %6311
        %6313 = vrot.lane.b32.xlu0 %v6304, 64
        %v6314 = vpop.permute.xlu0 %6313
        %6315 = vrot.lane.b32.xlu0 %v6305, 64
        %v6316 = vpop.permute.xlu0 %6315
        %6317 = vrot.lane.b32.xlu0 %v6306, 64
        %v6318 = vpop.permute.xlu0 %6317
        %6319 = vrot.lane.b32.xlu0 %v6307, 64
        %v6320 = vpop.permute.xlu0 %6319
        %6321 = vrot.lane.b32.xlu0 %v6308, 64
        %v6322 = vpop.permute.xlu0 %6321
        %6323 = vrot.lane.b32.xlu0 %v6309, 64
        %v6324 = vpop.permute.xlu0 %6323
        %6325 = vrot.lane.b32.xlu0 %v6310, 64
        %v6326 = vpop.permute.xlu0 %6325
        %6335 = vmatpush.bf16.msra.mxu0 %v6326
        %6336 = vmatpush.bf16.msra.mxu0 %v6324
        %6337 = vmatpush.bf16.msra.mxu0 %v6322
        %6338 = vmatpush.bf16.msra.mxu0 %v6320
        %6339 = vmatpush.bf16.msra.mxu0 %v6318
        %6340 = vmatpush.bf16.msra.mxu0 %v6316
        %6341 = vmatpush.bf16.msra.mxu0 %v6314
        %6342 = vmatpush.bf16.msra.mxu0 %v6312
        %6343 = vmatmul.bf16.gmra.mxu0 %v6267
        %v6344 = vpop.f32.mrf.mxu0
        %v6345 = vadd.f32 0.0, %v6344
        %v6346 = vpop.f32.mrf.mxu0
        %v6347 = vadd.f32 0.0, %v6346
        %6348 = vmatmul.bf16.gmra.mxu0 %v6268
        %v6349 = vpop.f32.mrf.mxu0
        %v6350 = vadd.f32 0.0, %v6349
        %v6351 = vpop.f32.mrf.mxu0
        %v6352 = vadd.f32 0.0, %v6351
        %6353 = vdwg.mxu0
        %v6358 = vunpack.c.l.b16 %v6041
        %v6359 = vunpack.c.l.b16 %v6042
        %v6360 = vunpack.c.l.b16 %v6043
        %v6361 = vunpack.c.l.b16 %v6044
        %v6362 = vpack.c.b16 %v6359, %v6358
        %v6363 = vpack.c.b16 %v6361, %v6360
        %v6382 = vunpack.c.l.b16 %v1465
        %v6383 = vunpack.c.l.b16 %v1466
        %v6384 = vunpack.c.l.b16 %v1467
        %v6385 = vunpack.c.l.b16 %v1468
        %v6386 = vunpack.c.l.b16 %v1469
        %v6387 = vunpack.c.l.b16 %v1470
        %v6388 = vunpack.c.l.b16 %v1471
        %v6389 = vunpack.c.l.b16 %v1472
        %v6390 = vunpack.c.l.b16 %v1473
        %v6391 = vunpack.c.l.b16 %v1474
        %v6392 = vunpack.c.l.b16 %v1475
        %v6393 = vunpack.c.l.b16 %v1476
        %v6394 = vunpack.c.l.b16 %v1477
        %v6395 = vunpack.c.l.b16 %v1478
        %v6396 = vunpack.c.l.b16 %v1479
        %v6397 = vunpack.c.l.b16 %v1480
        %v6398 = vpack.c.b16 %v6383, %v6382
        %v6399 = vpack.c.b16 %v6385, %v6384
        %v6400 = vpack.c.b16 %v6387, %v6386
        %v6401 = vpack.c.b16 %v6389, %v6388
        %v6402 = vpack.c.b16 %v6391, %v6390
        %v6403 = vpack.c.b16 %v6393, %v6392
        %v6404 = vpack.c.b16 %v6395, %v6394
        %v6405 = vpack.c.b16 %v6397, %v6396
        %6406 = vrot.lane.b32.xlu0 %v6398, 64
        %v6407 = vpop.permute.xlu0 %6406
        %6408 = vrot.lane.b32.xlu0 %v6399, 64
        %v6409 = vpop.permute.xlu0 %6408
        %6410 = vrot.lane.b32.xlu0 %v6400, 64
        %v6411 = vpop.permute.xlu0 %6410
        %6412 = vrot.lane.b32.xlu0 %v6401, 64
        %v6413 = vpop.permute.xlu0 %6412
        %6414 = vrot.lane.b32.xlu0 %v6402, 64
        %v6415 = vpop.permute.xlu0 %6414
        %6416 = vrot.lane.b32.xlu0 %v6403, 64
        %v6417 = vpop.permute.xlu0 %6416
        %6418 = vrot.lane.b32.xlu0 %v6404, 64
        %v6419 = vpop.permute.xlu0 %6418
        %6420 = vrot.lane.b32.xlu0 %v6405, 64
        %v6421 = vpop.permute.xlu0 %6420
        %6430 = vmatpush.bf16.msra.mxu0 %v6421
        %6431 = vmatpush.bf16.msra.mxu0 %v6419
        %6432 = vmatpush.bf16.msra.mxu0 %v6417
        %6433 = vmatpush.bf16.msra.mxu0 %v6415
        %6434 = vmatpush.bf16.msra.mxu0 %v6413
        %6435 = vmatpush.bf16.msra.mxu0 %v6411
        %6436 = vmatpush.bf16.msra.mxu0 %v6409
        %6437 = vmatpush.bf16.msra.mxu0 %v6407
        %6438 = vmatmul.bf16.gmra.mxu0 %v6362
        %v6439 = vpop.f32.mrf.mxu0
        %v6440 = vadd.f32 0.0, %v6439
        %v6441 = vpop.f32.mrf.mxu0
        %v6442 = vadd.f32 0.0, %v6441
        %6443 = vmatmul.bf16.gmra.mxu0 %v6363
        %v6444 = vpop.f32.mrf.mxu0
        %v6445 = vadd.f32 0.0, %v6444
        %v6446 = vpop.f32.mrf.mxu0
        %v6447 = vadd.f32 0.0, %v6446
        %6448 = vdwg.mxu0
        %v6453 = vunpack.c.l.b16 %v6045
        %v6454 = vunpack.c.l.b16 %v6046
        %v6455 = vunpack.c.l.b16 %v6047
        %v6456 = vunpack.c.l.b16 %v6048
        %v6457 = vpack.c.b16 %v6454, %v6453
        %v6458 = vpack.c.b16 %v6456, %v6455
        %v6477 = vunpack.c.l.b16 %v1481
        %v6478 = vunpack.c.l.b16 %v1482
        %v6479 = vunpack.c.l.b16 %v1483
        %v6480 = vunpack.c.l.b16 %v1484
        %v6481 = vunpack.c.l.b16 %v1485
        %v6482 = vunpack.c.l.b16 %v1486
        %v6483 = vunpack.c.l.b16 %v1487
        %v6484 = vunpack.c.l.b16 %v1488
        %v6485 = vunpack.c.l.b16 %v1489
        %v6486 = vunpack.c.l.b16 %v1490
        %v6487 = vunpack.c.l.b16 %v1491
        %v6488 = vunpack.c.l.b16 %v1492
        %v6489 = vunpack.c.l.b16 %v1493
        %v6490 = vunpack.c.l.b16 %v1494
        %v6491 = vunpack.c.l.b16 %v1495
        %v6492 = vunpack.c.l.b16 %v1496
        %v6493 = vpack.c.b16 %v6478, %v6477
        %v6494 = vpack.c.b16 %v6480, %v6479
        %v6495 = vpack.c.b16 %v6482, %v6481
        %v6496 = vpack.c.b16 %v6484, %v6483
        %v6497 = vpack.c.b16 %v6486, %v6485
        %v6498 = vpack.c.b16 %v6488, %v6487
        %v6499 = vpack.c.b16 %v6490, %v6489
        %v6500 = vpack.c.b16 %v6492, %v6491
        %6501 = vrot.lane.b32.xlu0 %v6493, 64
        %v6502 = vpop.permute.xlu0 %6501
        %6503 = vrot.lane.b32.xlu0 %v6494, 64
        %v6504 = vpop.permute.xlu0 %6503
        %6505 = vrot.lane.b32.xlu0 %v6495, 64
        %v6506 = vpop.permute.xlu0 %6505
        %6507 = vrot.lane.b32.xlu0 %v6496, 64
        %v6508 = vpop.permute.xlu0 %6507
        %6509 = vrot.lane.b32.xlu0 %v6497, 64
        %v6510 = vpop.permute.xlu0 %6509
        %6511 = vrot.lane.b32.xlu0 %v6498, 64
        %v6512 = vpop.permute.xlu0 %6511
        %6513 = vrot.lane.b32.xlu0 %v6499, 64
        %v6514 = vpop.permute.xlu0 %6513
        %6515 = vrot.lane.b32.xlu0 %v6500, 64
        %v6516 = vpop.permute.xlu0 %6515
        %6525 = vmatpush.bf16.msra.mxu0 %v6516
        %6526 = vmatpush.bf16.msra.mxu0 %v6514
        %6527 = vmatpush.bf16.msra.mxu0 %v6512
        %6528 = vmatpush.bf16.msra.mxu0 %v6510
        %6529 = vmatpush.bf16.msra.mxu0 %v6508
        %6530 = vmatpush.bf16.msra.mxu0 %v6506
        %6531 = vmatpush.bf16.msra.mxu0 %v6504
        %6532 = vmatpush.bf16.msra.mxu0 %v6502
        %6533 = vmatmul.bf16.gmra.mxu0 %v6457
        %v6534 = vpop.f32.mrf.mxu0
        %v6535 = vadd.f32 0.0, %v6534
        %v6536 = vpop.f32.mrf.mxu0
        %v6537 = vadd.f32 0.0, %v6536
        %6538 = vmatmul.bf16.gmra.mxu0 %v6458
        %v6539 = vpop.f32.mrf.mxu0
        %v6540 = vadd.f32 0.0, %v6539
        %v6541 = vpop.f32.mrf.mxu0
        %v6542 = vadd.f32 0.0, %v6541
        %6543 = vdwg.mxu0
        %v6548 = vunpack.c.l.b16 %v6049
        %v6549 = vunpack.c.l.b16 %v6050
        %v6550 = vunpack.c.l.b16 %v6051
        %v6551 = vunpack.c.l.b16 %v6052
        %v6552 = vpack.c.b16 %v6549, %v6548
        %v6553 = vpack.c.b16 %v6551, %v6550
        %v6572 = vunpack.c.l.b16 %v1497
        %v6573 = vunpack.c.l.b16 %v1498
        %v6574 = vunpack.c.l.b16 %v1499
        %v6575 = vunpack.c.l.b16 %v1500
        %v6576 = vunpack.c.l.b16 %v1501
        %v6577 = vunpack.c.l.b16 %v1502
        %v6578 = vunpack.c.l.b16 %v1503
        %v6579 = vunpack.c.l.b16 %v1504
        %v6580 = vunpack.c.l.b16 %v1505
        %v6581 = vunpack.c.l.b16 %v1506
        %v6582 = vunpack.c.l.b16 %v1507
        %v6583 = vunpack.c.l.b16 %v1508
        %v6584 = vunpack.c.l.b16 %v1509
        %v6585 = vunpack.c.l.b16 %v1510
        %v6586 = vunpack.c.l.b16 %v1511
        %v6587 = vunpack.c.l.b16 %v1512
        %v6588 = vpack.c.b16 %v6573, %v6572
        %v6589 = vpack.c.b16 %v6575, %v6574
        %v6590 = vpack.c.b16 %v6577, %v6576
        %v6591 = vpack.c.b16 %v6579, %v6578
        %v6592 = vpack.c.b16 %v6581, %v6580
        %v6593 = vpack.c.b16 %v6583, %v6582
        %v6594 = vpack.c.b16 %v6585, %v6584
        %v6595 = vpack.c.b16 %v6587, %v6586
        %6596 = vrot.lane.b32.xlu0 %v6588, 64
        %v6597 = vpop.permute.xlu0 %6596
        %6598 = vrot.lane.b32.xlu0 %v6589, 64
        %v6599 = vpop.permute.xlu0 %6598
        %6600 = vrot.lane.b32.xlu0 %v6590, 64
        %v6601 = vpop.permute.xlu0 %6600
        %6602 = vrot.lane.b32.xlu0 %v6591, 64
        %v6603 = vpop.permute.xlu0 %6602
        %6604 = vrot.lane.b32.xlu0 %v6592, 64
        %v6605 = vpop.permute.xlu0 %6604
        %6606 = vrot.lane.b32.xlu0 %v6593, 64
        %v6607 = vpop.permute.xlu0 %6606
        %6608 = vrot.lane.b32.xlu0 %v6594, 64
        %v6609 = vpop.permute.xlu0 %6608
        %6610 = vrot.lane.b32.xlu0 %v6595, 64
        %v6611 = vpop.permute.xlu0 %6610
        %6620 = vmatpush.bf16.msra.mxu0 %v6611
        %6621 = vmatpush.bf16.msra.mxu0 %v6609
        %6622 = vmatpush.bf16.msra.mxu0 %v6607
        %6623 = vmatpush.bf16.msra.mxu0 %v6605
        %6624 = vmatpush.bf16.msra.mxu0 %v6603
        %6625 = vmatpush.bf16.msra.mxu0 %v6601
        %6626 = vmatpush.bf16.msra.mxu0 %v6599
        %6627 = vmatpush.bf16.msra.mxu0 %v6597
        %6628 = vmatmul.bf16.gmra.mxu0 %v6552
        %v6629 = vpop.f32.mrf.mxu0
        %v6630 = vadd.f32 0.0, %v6629
        %v6631 = vpop.f32.mrf.mxu0
        %v6632 = vadd.f32 0.0, %v6631
        %6633 = vmatmul.bf16.gmra.mxu0 %v6553
        %v6634 = vpop.f32.mrf.mxu0
        %v6635 = vadd.f32 0.0, %v6634
        %v6636 = vpop.f32.mrf.mxu0
        %v6637 = vadd.f32 0.0, %v6636
        %6638 = vdwg.mxu0
        %v6643 = vunpack.c.l.b16 %v6053
        %v6644 = vunpack.c.l.b16 %v6054
        %v6645 = vunpack.c.l.b16 %v6055
        %v6646 = vunpack.c.l.b16 %v6056
        %v6647 = vpack.c.b16 %v6644, %v6643
        %v6648 = vpack.c.b16 %v6646, %v6645
        %v6667 = vunpack.c.l.b16 %v1513
        %v6668 = vunpack.c.l.b16 %v1514
        %v6669 = vunpack.c.l.b16 %v1515
        %v6670 = vunpack.c.l.b16 %v1516
        %v6671 = vunpack.c.l.b16 %v1517
        %v6672 = vunpack.c.l.b16 %v1518
        %v6673 = vunpack.c.l.b16 %v1519
        %v6674 = vunpack.c.l.b16 %v1520
        %v6675 = vunpack.c.l.b16 %v1521
        %v6676 = vunpack.c.l.b16 %v1522
        %v6677 = vunpack.c.l.b16 %v1523
        %v6678 = vunpack.c.l.b16 %v1524
        %v6679 = vunpack.c.l.b16 %v1525
        %v6680 = vunpack.c.l.b16 %v1526
        %v6681 = vunpack.c.l.b16 %v1527
        %v6682 = vunpack.c.l.b16 %v1528
        %v6683 = vpack.c.b16 %v6668, %v6667
        %v6684 = vpack.c.b16 %v6670, %v6669
        %v6685 = vpack.c.b16 %v6672, %v6671
        %v6686 = vpack.c.b16 %v6674, %v6673
        %v6687 = vpack.c.b16 %v6676, %v6675
        %v6688 = vpack.c.b16 %v6678, %v6677
        %v6689 = vpack.c.b16 %v6680, %v6679
        %v6690 = vpack.c.b16 %v6682, %v6681
        %6691 = vrot.lane.b32.xlu0 %v6683, 64
        %v6692 = vpop.permute.xlu0 %6691
        %6693 = vrot.lane.b32.xlu0 %v6684, 64
        %v6694 = vpop.permute.xlu0 %6693
        %6695 = vrot.lane.b32.xlu0 %v6685, 64
        %v6696 = vpop.permute.xlu0 %6695
        %6697 = vrot.lane.b32.xlu0 %v6686, 64
        %v6698 = vpop.permute.xlu0 %6697
        %6699 = vrot.lane.b32.xlu0 %v6687, 64
        %v6700 = vpop.permute.xlu0 %6699
        %6701 = vrot.lane.b32.xlu0 %v6688, 64
        %v6702 = vpop.permute.xlu0 %6701
        %6703 = vrot.lane.b32.xlu0 %v6689, 64
        %v6704 = vpop.permute.xlu0 %6703
        %6705 = vrot.lane.b32.xlu0 %v6690, 64
        %v6706 = vpop.permute.xlu0 %6705
        %6715 = vmatpush.bf16.msra.mxu0 %v6706
        %6716 = vmatpush.bf16.msra.mxu0 %v6704
        %6717 = vmatpush.bf16.msra.mxu0 %v6702
        %6718 = vmatpush.bf16.msra.mxu0 %v6700
        %6719 = vmatpush.bf16.msra.mxu0 %v6698
        %6720 = vmatpush.bf16.msra.mxu0 %v6696
        %6721 = vmatpush.bf16.msra.mxu0 %v6694
        %6722 = vmatpush.bf16.msra.mxu0 %v6692
        %6723 = vmatmul.bf16.gmra.mxu0 %v6647
        %v6724 = vpop.f32.mrf.mxu0
        %v6725 = vadd.f32 0.0, %v6724
        %v6726 = vpop.f32.mrf.mxu0
        %v6727 = vadd.f32 0.0, %v6726
        %6728 = vmatmul.bf16.gmra.mxu0 %v6648
        %v6729 = vpop.f32.mrf.mxu0
        %v6730 = vadd.f32 0.0, %v6729
        %v6731 = vpop.f32.mrf.mxu0
        %v6732 = vadd.f32 0.0, %v6731
        %6733 = vdwg.mxu0
        %v6738 = vunpack.c.l.b16 %v6057
        %v6739 = vunpack.c.l.b16 %v6058
        %v6740 = vunpack.c.l.b16 %v6059
        %v6741 = vunpack.c.l.b16 %v6060
        %v6742 = vpack.c.b16 %v6739, %v6738
        %v6743 = vpack.c.b16 %v6741, %v6740
        %v6762 = vunpack.c.l.b16 %v1529
        %v6763 = vunpack.c.l.b16 %v1530
        %v6764 = vunpack.c.l.b16 %v1531
        %v6765 = vunpack.c.l.b16 %v1532
        %v6766 = vunpack.c.l.b16 %v1533
        %v6767 = vunpack.c.l.b16 %v1534
        %v6768 = vunpack.c.l.b16 %v1535
        %v6769 = vunpack.c.l.b16 %v1536
        %v6770 = vunpack.c.l.b16 %v1537
        %v6771 = vunpack.c.l.b16 %v1538
        %v6772 = vunpack.c.l.b16 %v1539
        %v6773 = vunpack.c.l.b16 %v1540
        %v6774 = vunpack.c.l.b16 %v1541
        %v6775 = vunpack.c.l.b16 %v1542
        %v6776 = vunpack.c.l.b16 %v1543
        %v6777 = vunpack.c.l.b16 %v1544
        %v6778 = vpack.c.b16 %v6763, %v6762
        %v6779 = vpack.c.b16 %v6765, %v6764
        %v6780 = vpack.c.b16 %v6767, %v6766
        %v6781 = vpack.c.b16 %v6769, %v6768
        %v6782 = vpack.c.b16 %v6771, %v6770
        %v6783 = vpack.c.b16 %v6773, %v6772
        %v6784 = vpack.c.b16 %v6775, %v6774
        %v6785 = vpack.c.b16 %v6777, %v6776
        %6786 = vrot.lane.b32.xlu0 %v6778, 64
        %v6787 = vpop.permute.xlu0 %6786
        %6788 = vrot.lane.b32.xlu0 %v6779, 64
        %v6789 = vpop.permute.xlu0 %6788
        %6790 = vrot.lane.b32.xlu0 %v6780, 64
        %v6791 = vpop.permute.xlu0 %6790
        %6792 = vrot.lane.b32.xlu0 %v6781, 64
        %v6793 = vpop.permute.xlu0 %6792
        %6794 = vrot.lane.b32.xlu0 %v6782, 64
        %v6795 = vpop.permute.xlu0 %6794
        %6796 = vrot.lane.b32.xlu0 %v6783, 64
        %v6797 = vpop.permute.xlu0 %6796
        %6798 = vrot.lane.b32.xlu0 %v6784, 64
        %v6799 = vpop.permute.xlu0 %6798
        %6800 = vrot.lane.b32.xlu0 %v6785, 64
        %v6801 = vpop.permute.xlu0 %6800
        %6810 = vmatpush.bf16.msra.mxu0 %v6801
        %6811 = vmatpush.bf16.msra.mxu0 %v6799
        %6812 = vmatpush.bf16.msra.mxu0 %v6797
        %6813 = vmatpush.bf16.msra.mxu0 %v6795
        %6814 = vmatpush.bf16.msra.mxu0 %v6793
        %6815 = vmatpush.bf16.msra.mxu0 %v6791
        %6816 = vmatpush.bf16.msra.mxu0 %v6789
        %6817 = vmatpush.bf16.msra.mxu0 %v6787
        %6818 = vmatmul.bf16.gmra.mxu0 %v6742
        %v6819 = vpop.f32.mrf.mxu0
        %v6820 = vadd.f32 0.0, %v6819
        %v6821 = vpop.f32.mrf.mxu0
        %v6822 = vadd.f32 0.0, %v6821
        %6823 = vmatmul.bf16.gmra.mxu0 %v6743
        %v6824 = vpop.f32.mrf.mxu0
        %v6825 = vadd.f32 0.0, %v6824
        %v6826 = vpop.f32.mrf.mxu0
        %v6827 = vadd.f32 0.0, %v6826
        %6828 = vdwg.mxu0
        %v6833 = vunpack.c.l.b16 %v6061
        %v6834 = vunpack.c.l.b16 %v6062
        %v6835 = vunpack.c.l.b16 %v6063
        %v6836 = vunpack.c.l.b16 %v6064
        %v6837 = vpack.c.b16 %v6834, %v6833
        %v6838 = vpack.c.b16 %v6836, %v6835
        %v6857 = vunpack.c.l.b16 %v1545
        %v6858 = vunpack.c.l.b16 %v1546
        %v6859 = vunpack.c.l.b16 %v1547
        %v6860 = vunpack.c.l.b16 %v1548
        %v6861 = vunpack.c.l.b16 %v1549
        %v6862 = vunpack.c.l.b16 %v1550
        %v6863 = vunpack.c.l.b16 %v1551
        %v6864 = vunpack.c.l.b16 %v1552
        %v6865 = vunpack.c.l.b16 %v1553
        %v6866 = vunpack.c.l.b16 %v1554
        %v6867 = vunpack.c.l.b16 %v1555
        %v6868 = vunpack.c.l.b16 %v1556
        %v6869 = vunpack.c.l.b16 %v1557
        %v6870 = vunpack.c.l.b16 %v1558
        %v6871 = vunpack.c.l.b16 %v1559
        %v6872 = vunpack.c.l.b16 %v1560
        %v6873 = vpack.c.b16 %v6858, %v6857
        %v6874 = vpack.c.b16 %v6860, %v6859
        %v6875 = vpack.c.b16 %v6862, %v6861
        %v6876 = vpack.c.b16 %v6864, %v6863
        %v6877 = vpack.c.b16 %v6866, %v6865
        %v6878 = vpack.c.b16 %v6868, %v6867
        %v6879 = vpack.c.b16 %v6870, %v6869
        %v6880 = vpack.c.b16 %v6872, %v6871
        %6881 = vrot.lane.b32.xlu0 %v6873, 64
        %v6882 = vpop.permute.xlu0 %6881
        %6883 = vrot.lane.b32.xlu0 %v6874, 64
        %v6884 = vpop.permute.xlu0 %6883
        %6885 = vrot.lane.b32.xlu0 %v6875, 64
        %v6886 = vpop.permute.xlu0 %6885
        %6887 = vrot.lane.b32.xlu0 %v6876, 64
        %v6888 = vpop.permute.xlu0 %6887
        %6889 = vrot.lane.b32.xlu0 %v6877, 64
        %v6890 = vpop.permute.xlu0 %6889
        %6891 = vrot.lane.b32.xlu0 %v6878, 64
        %v6892 = vpop.permute.xlu0 %6891
        %6893 = vrot.lane.b32.xlu0 %v6879, 64
        %v6894 = vpop.permute.xlu0 %6893
        %6895 = vrot.lane.b32.xlu0 %v6880, 64
        %v6896 = vpop.permute.xlu0 %6895
        %6905 = vmatpush.bf16.msra.mxu0 %v6896
        %6906 = vmatpush.bf16.msra.mxu0 %v6894
        %6907 = vmatpush.bf16.msra.mxu0 %v6892
        %6908 = vmatpush.bf16.msra.mxu0 %v6890
        %6909 = vmatpush.bf16.msra.mxu0 %v6888
        %6910 = vmatpush.bf16.msra.mxu0 %v6886
        %6911 = vmatpush.bf16.msra.mxu0 %v6884
        %6912 = vmatpush.bf16.msra.mxu0 %v6882
        %6913 = vmatmul.bf16.gmra.mxu0 %v6837
        %v6914 = vpop.f32.mrf.mxu0
        %v6915 = vadd.f32 0.0, %v6914
        %v6916 = vpop.f32.mrf.mxu0
        %v6917 = vadd.f32 0.0, %v6916
        %6918 = vmatmul.bf16.gmra.mxu0 %v6838
        %v6919 = vpop.f32.mrf.mxu0
        %v6920 = vadd.f32 0.0, %v6919
        %v6921 = vpop.f32.mrf.mxu0
        %v6922 = vadd.f32 0.0, %v6921
        %6923 = vdwg.mxu0
        %v6928 = vunpack.c.l.b16 %v6065
        %v6929 = vunpack.c.l.b16 %v6066
        %v6930 = vunpack.c.l.b16 %v6067
        %v6931 = vunpack.c.l.b16 %v6068
        %v6932 = vpack.c.b16 %v6929, %v6928
        %v6933 = vpack.c.b16 %v6931, %v6930
        %v6952 = vunpack.c.l.b16 %v1561
        %v6953 = vunpack.c.l.b16 %v1562
        %v6954 = vunpack.c.l.b16 %v1563
        %v6955 = vunpack.c.l.b16 %v1564
        %v6956 = vunpack.c.l.b16 %v1565
        %v6957 = vunpack.c.l.b16 %v1566
        %v6958 = vunpack.c.l.b16 %v1567
        %v6959 = vunpack.c.l.b16 %v1568
        %v6960 = vunpack.c.l.b16 %v1569
        %v6961 = vunpack.c.l.b16 %v1570
        %v6962 = vunpack.c.l.b16 %v1571
        %v6963 = vunpack.c.l.b16 %v1572
        %v6964 = vunpack.c.l.b16 %v1573
        %v6965 = vunpack.c.l.b16 %v1574
        %v6966 = vunpack.c.l.b16 %v1575
        %v6967 = vunpack.c.l.b16 %v1576
        %v6968 = vpack.c.b16 %v6953, %v6952
        %v6969 = vpack.c.b16 %v6955, %v6954
        %v6970 = vpack.c.b16 %v6957, %v6956
        %v6971 = vpack.c.b16 %v6959, %v6958
        %v6972 = vpack.c.b16 %v6961, %v6960
        %v6973 = vpack.c.b16 %v6963, %v6962
        %v6974 = vpack.c.b16 %v6965, %v6964
        %v6975 = vpack.c.b16 %v6967, %v6966
        %6976 = vrot.lane.b32.xlu0 %v6968, 64
        %v6977 = vpop.permute.xlu0 %6976
        %6978 = vrot.lane.b32.xlu0 %v6969, 64
        %v6979 = vpop.permute.xlu0 %6978
        %6980 = vrot.lane.b32.xlu0 %v6970, 64
        %v6981 = vpop.permute.xlu0 %6980
        %6982 = vrot.lane.b32.xlu0 %v6971, 64
        %v6983 = vpop.permute.xlu0 %6982
        %6984 = vrot.lane.b32.xlu0 %v6972, 64
        %v6985 = vpop.permute.xlu0 %6984
        %6986 = vrot.lane.b32.xlu0 %v6973, 64
        %v6987 = vpop.permute.xlu0 %6986
        %6988 = vrot.lane.b32.xlu0 %v6974, 64
        %v6989 = vpop.permute.xlu0 %6988
        %6990 = vrot.lane.b32.xlu0 %v6975, 64
        %v6991 = vpop.permute.xlu0 %6990
        %7000 = vmatpush.bf16.msra.mxu0 %v6991
        %7001 = vmatpush.bf16.msra.mxu0 %v6989
        %7002 = vmatpush.bf16.msra.mxu0 %v6987
        %7003 = vmatpush.bf16.msra.mxu0 %v6985
        %7004 = vmatpush.bf16.msra.mxu0 %v6983
        %7005 = vmatpush.bf16.msra.mxu0 %v6981
        %7006 = vmatpush.bf16.msra.mxu0 %v6979
        %7007 = vmatpush.bf16.msra.mxu0 %v6977
        %7008 = vmatmul.bf16.gmra.mxu0 %v6932
        %v7009 = vpop.f32.mrf.mxu0
        %v7010 = vadd.f32 0.0, %v7009
        %v7011 = vpop.f32.mrf.mxu0
        %v7012 = vadd.f32 0.0, %v7011
        %7013 = vmatmul.bf16.gmra.mxu0 %v6933
        %v7014 = vpop.f32.mrf.mxu0
        %v7015 = vadd.f32 0.0, %v7014
        %v7016 = vpop.f32.mrf.mxu0
        %v7017 = vadd.f32 0.0, %v7016
        %7018 = vdwg.mxu0
        %v7019 = vpack.c.bf16 %v6157, %v6155
        %v7020 = vpack.c.bf16 %v6162, %v6160
        %v7021 = vpack.c.bf16 %v6252, %v6250
        %v7022 = vpack.c.bf16 %v6257, %v6255
        %v7023 = vpack.c.bf16 %v6347, %v6345
        %v7024 = vpack.c.bf16 %v6352, %v6350
        %v7025 = vpack.c.bf16 %v6442, %v6440
        %v7026 = vpack.c.bf16 %v6447, %v6445
        %v7027 = vpack.c.bf16 %v6537, %v6535
        %v7028 = vpack.c.bf16 %v6542, %v6540
        %v7029 = vpack.c.bf16 %v6632, %v6630
        %v7030 = vpack.c.bf16 %v6637, %v6635
        %v7031 = vpack.c.bf16 %v6727, %v6725
        %v7032 = vpack.c.bf16 %v6732, %v6730
        %v7033 = vpack.c.bf16 %v6822, %v6820
        %v7034 = vpack.c.bf16 %v6827, %v6825
        %v7035 = vpack.c.bf16 %v6917, %v6915
        %v7036 = vpack.c.bf16 %v6922, %v6920
        %v7037 = vpack.c.bf16 %v7012, %v7010
        %v7038 = vpack.c.bf16 %v7017, %v7015
        %v7039 = vld [vmem:[%s9] sm:$0xf]
        %v7040 = vld [vmem:[%s9 + $0x4] sm:$0xf]
        %v7041 = vld [vmem:[%s9 + $0x8] sm:$0xf]
        %v7042 = vld [vmem:[%s9 + $0xc] sm:$0xf]
        %v7043 = vld [vmem:[%s10] sm:$0x1]
        %v7045 = vperm.slane %v7043, 0
        %v7051 = vunpack.c.l.b16 %v7039
        %v7052 = vunpack.c.l.b16 %v7040
        %v7053 = vunpack.c.l.b16 %v7041
        %v7054 = vunpack.c.l.b16 %v7042
        %v7055 = vpack.c.b16 %v7052, %v7051
        %v7056 = vpack.c.b16 %v7054, %v7053
        %v7060 = vsel %vm603, %v7019, 0
        %v7063 = vsel %vm603, %v7020, 0
        %v7066 = vsel %vm603, %v7021, 0
        %v7069 = vsel %vm603, %v7022, 0
        %v7072 = vsel %vm603, %v7023, 0
        %v7075 = vsel %vm603, %v7024, 0
        %v7078 = vsel %vm603, %v7025, 0
        %v7081 = vsel %vm603, %v7026, 0
        %v7084 = vsel %vm603, %v7027, 0
        %v7087 = vsel %vm603, %v7028, 0
        %v7090 = vsel %vm603, %v7029, 0
        %v7093 = vsel %vm603, %v7030, 0
        %v7096 = vsel %vm603, %v7031, 0
        %v7099 = vsel %vm603, %v7032, 0
        %v7102 = vsel %vm603, %v7033, 0
        %v7105 = vsel %vm603, %v7034, 0
        %v7108 = vsel %vm603, %v7035, 0
        %v7111 = vsel %vm603, %v7036, 0
        %v7114 = vsel %vm603, %v7037, 0
        %v7117 = vsel %vm603, %v7038, 0
        %7119 = vmatpush.bf16.msra.mxu0 0
        %7120 = vmatpush.bf16.msra.mxu0 0
        %7121 = vmatpush.bf16.msra.mxu0 0
        %7122 = vmatpush.bf16.msra.mxu0 0
        %7123 = vmatpush.bf16.msra.mxu0 0
        %7124 = vmatpush.bf16.msra.mxu0 0
        %7125 = vmatpush.bf16.msra.mxu0 %v7056
        %7126 = vmatpush.bf16.msra.mxu0 %v7055
        %7127 = vmatmul.bf16.gmra.mxu0 %v7060
        %v7128 = vpop.f32.mrf.mxu0
        %v7129 = vadd.f32 %v7045, %v7128
        %v7130 = vpop.f32.mrf.mxu0
        %v7131 = vadd.f32 %v7045, %v7130
        %7132 = vmatmul.bf16.gmra.mxu0 %v7063
        %v7133 = vpop.f32.mrf.mxu0
        %v7134 = vadd.f32 %v7045, %v7133
        %v7135 = vpop.f32.mrf.mxu0
        %v7136 = vadd.f32 %v7045, %v7135
        %7137 = vmatmul.bf16.gmra.mxu0 %v7066
        %v7138 = vpop.f32.mrf.mxu0
        %v7139 = vadd.f32 %v7045, %v7138
        %v7140 = vpop.f32.mrf.mxu0
        %v7141 = vadd.f32 %v7045, %v7140
        %7142 = vmatmul.bf16.gmra.mxu0 %v7069
        %v7143 = vpop.f32.mrf.mxu0
        %v7144 = vadd.f32 %v7045, %v7143
        %v7145 = vpop.f32.mrf.mxu0
        %v7146 = vadd.f32 %v7045, %v7145
        %7147 = vmatmul.bf16.gmra.mxu0 %v7072
        %v7148 = vpop.f32.mrf.mxu0
        %v7149 = vadd.f32 %v7045, %v7148
        %v7150 = vpop.f32.mrf.mxu0
        %v7151 = vadd.f32 %v7045, %v7150
        %7152 = vmatmul.bf16.gmra.mxu0 %v7075
        %v7153 = vpop.f32.mrf.mxu0
        %v7154 = vadd.f32 %v7045, %v7153
        %v7155 = vpop.f32.mrf.mxu0
        %v7156 = vadd.f32 %v7045, %v7155
        %7157 = vmatmul.bf16.gmra.mxu0 %v7078
        %v7158 = vpop.f32.mrf.mxu0
        %v7159 = vadd.f32 %v7045, %v7158
        %v7160 = vpop.f32.mrf.mxu0
        %v7161 = vadd.f32 %v7045, %v7160
        %7162 = vmatmul.bf16.gmra.mxu0 %v7081
        %v7163 = vpop.f32.mrf.mxu0
        %v7164 = vadd.f32 %v7045, %v7163
        %v7165 = vpop.f32.mrf.mxu0
        %v7166 = vadd.f32 %v7045, %v7165
        %7167 = vmatmul.bf16.gmra.mxu0 %v7084
        %v7168 = vpop.f32.mrf.mxu0
        %v7169 = vadd.f32 %v7045, %v7168
        %v7170 = vpop.f32.mrf.mxu0
        %v7171 = vadd.f32 %v7045, %v7170
        %7172 = vmatmul.bf16.gmra.mxu0 %v7087
        %v7173 = vpop.f32.mrf.mxu0
        %v7174 = vadd.f32 %v7045, %v7173
        %v7175 = vpop.f32.mrf.mxu0
        %v7176 = vadd.f32 %v7045, %v7175
        %7177 = vmatmul.bf16.gmra.mxu0 %v7090
        %v7178 = vpop.f32.mrf.mxu0
        %v7179 = vadd.f32 %v7045, %v7178
        %v7180 = vpop.f32.mrf.mxu0
        %v7181 = vadd.f32 %v7045, %v7180
        %7182 = vmatmul.bf16.gmra.mxu0 %v7093
        %v7183 = vpop.f32.mrf.mxu0
        %v7184 = vadd.f32 %v7045, %v7183
        %v7185 = vpop.f32.mrf.mxu0
        %v7186 = vadd.f32 %v7045, %v7185
        %7187 = vmatmul.bf16.gmra.mxu0 %v7096
        %v7188 = vpop.f32.mrf.mxu0
        %v7189 = vadd.f32 %v7045, %v7188
        %v7190 = vpop.f32.mrf.mxu0
        %v7191 = vadd.f32 %v7045, %v7190
        %7192 = vmatmul.bf16.gmra.mxu0 %v7099
        %v7193 = vpop.f32.mrf.mxu0
        %v7194 = vadd.f32 %v7045, %v7193
        %v7195 = vpop.f32.mrf.mxu0
        %v7196 = vadd.f32 %v7045, %v7195
        %7197 = vmatmul.bf16.gmra.mxu0 %v7102
        %v7198 = vpop.f32.mrf.mxu0
        %v7199 = vadd.f32 %v7045, %v7198
        %v7200 = vpop.f32.mrf.mxu0
        %v7201 = vadd.f32 %v7045, %v7200
        %7202 = vmatmul.bf16.gmra.mxu0 %v7105
        %v7203 = vpop.f32.mrf.mxu0
        %v7204 = vadd.f32 %v7045, %v7203
        %v7205 = vpop.f32.mrf.mxu0
        %v7206 = vadd.f32 %v7045, %v7205
        %7207 = vmatmul.bf16.gmra.mxu0 %v7108
        %v7208 = vpop.f32.mrf.mxu0
        %v7209 = vadd.f32 %v7045, %v7208
        %v7210 = vpop.f32.mrf.mxu0
        %v7211 = vadd.f32 %v7045, %v7210
        %7212 = vmatmul.bf16.gmra.mxu0 %v7111
        %v7213 = vpop.f32.mrf.mxu0
        %v7214 = vadd.f32 %v7045, %v7213
        %v7215 = vpop.f32.mrf.mxu0
        %v7216 = vadd.f32 %v7045, %v7215
        %7217 = vmatmul.bf16.gmra.mxu0 %v7114
        %v7218 = vpop.f32.mrf.mxu0
        %v7219 = vadd.f32 %v7045, %v7218
        %v7220 = vpop.f32.mrf.mxu0
        %v7221 = vadd.f32 %v7045, %v7220
        %7222 = vmatmul.bf16.gmra.mxu0 %v7117
        %v7223 = vpop.f32.mrf.mxu0
        %v7224 = vadd.f32 %v7045, %v7223
        %v7225 = vpop.f32.mrf.mxu0
        %v7226 = vadd.f32 %v7045, %v7225
        %7227 = vdwg.mxu0
        %v7228 = vadd.f32 %v7129, %v523
        %v7229 = vadd.f32 %v7131, %v524
        %v7230 = vadd.f32 %v7134, %v525
        %v7231 = vadd.f32 %v7136, %v526
        %v7232 = vadd.f32 %v7139, %v527
        %v7233 = vadd.f32 %v7141, %v528
        %v7234 = vadd.f32 %v7144, %v529
        %v7235 = vadd.f32 %v7146, %v530
        %v7236 = vadd.f32 %v7149, %v531
        %v7237 = vadd.f32 %v7151, %v532
        %v7238 = vadd.f32 %v7154, %v533
        %v7239 = vadd.f32 %v7156, %v534
        %v7240 = vadd.f32 %v7159, %v535
        %v7241 = vadd.f32 %v7161, %v536
        %v7242 = vadd.f32 %v7164, %v537
        %v7243 = vadd.f32 %v7166, %v538
        %v7244 = vadd.f32 %v7169, %v539
        %v7245 = vadd.f32 %v7171, %v540
        %v7246 = vadd.f32 %v7174, %v541
        %v7247 = vadd.f32 %v7176, %v542
        %v7248 = vadd.f32 %v7179, %v543
        %v7249 = vadd.f32 %v7181, %v544
        %v7250 = vadd.f32 %v7184, %v545
        %v7251 = vadd.f32 %v7186, %v546
        %v7252 = vadd.f32 %v7189, %v547
        %v7253 = vadd.f32 %v7191, %v548
        %v7254 = vadd.f32 %v7194, %v549
        %v7255 = vadd.f32 %v7196, %v550
        %v7256 = vadd.f32 %v7199, %v551
        %v7257 = vadd.f32 %v7201, %v552
        %v7258 = vadd.f32 %v7204, %v553
        %v7259 = vadd.f32 %v7206, %v554
        %v7260 = vadd.f32 %v7209, %v555
        %v7261 = vadd.f32 %v7211, %v556
        %v7262 = vadd.f32 %v7214, %v557
        %v7263 = vadd.f32 %v7216, %v558
        %v7264 = vadd.f32 %v7219, %v559
        %v7265 = vadd.f32 %v7221, %v560
        %v7266 = vadd.f32 %v7224, %v561
        %v7267 = vadd.f32 %v7226, %v562
        %v7268 = vsel %vm603, %v7228, 0.0
        %7269 = vadd.xlane.f32.xlu0 %v7268
        %v7270 = vpop.xlane.xlu0 %7269
        %v7271 = vsel %vm603, %v7229, 0.0
        %7272 = vadd.xlane.f32.xlu0 %v7271
        %v7273 = vpop.xlane.xlu0 %7272
        %v7274 = vsel %vm603, %v7230, 0.0
        %7275 = vadd.xlane.f32.xlu0 %v7274
        %v7276 = vpop.xlane.xlu0 %7275
        %v7277 = vsel %vm603, %v7231, 0.0
        %7278 = vadd.xlane.f32.xlu0 %v7277
        %v7279 = vpop.xlane.xlu0 %7278
        %v7280 = vsel %vm603, %v7232, 0.0
        %7281 = vadd.xlane.f32.xlu0 %v7280
        %v7282 = vpop.xlane.xlu0 %7281
        %v7283 = vsel %vm603, %v7233, 0.0
        %7284 = vadd.xlane.f32.xlu0 %v7283
        %v7285 = vpop.xlane.xlu0 %7284
        %v7286 = vsel %vm603, %v7234, 0.0
        %7287 = vadd.xlane.f32.xlu0 %v7286
        %v7288 = vpop.xlane.xlu0 %7287
        %v7289 = vsel %vm603, %v7235, 0.0
        %7290 = vadd.xlane.f32.xlu0 %v7289
        %v7291 = vpop.xlane.xlu0 %7290
        %v7292 = vsel %vm603, %v7236, 0.0
        %7293 = vadd.xlane.f32.xlu0 %v7292
        %v7294 = vpop.xlane.xlu0 %7293
        %v7295 = vsel %vm603, %v7237, 0.0
        %7296 = vadd.xlane.f32.xlu0 %v7295
        %v7297 = vpop.xlane.xlu0 %7296
        %v7298 = vsel %vm603, %v7238, 0.0
        %7299 = vadd.xlane.f32.xlu0 %v7298
        %v7300 = vpop.xlane.xlu0 %7299
        %v7301 = vsel %vm603, %v7239, 0.0
        %7302 = vadd.xlane.f32.xlu0 %v7301
        %v7303 = vpop.xlane.xlu0 %7302
        %v7304 = vsel %vm603, %v7240, 0.0
        %7305 = vadd.xlane.f32.xlu0 %v7304
        %v7306 = vpop.xlane.xlu0 %7305
        %v7307 = vsel %vm603, %v7241, 0.0
        %7308 = vadd.xlane.f32.xlu0 %v7307
        %v7309 = vpop.xlane.xlu0 %7308
        %v7310 = vsel %vm603, %v7242, 0.0
        %7311 = vadd.xlane.f32.xlu0 %v7310
        %v7312 = vpop.xlane.xlu0 %7311
        %v7313 = vsel %vm603, %v7243, 0.0
        %7314 = vadd.xlane.f32.xlu0 %v7313
        %v7315 = vpop.xlane.xlu0 %7314
        %v7316 = vsel %vm603, %v7244, 0.0
        %7317 = vadd.xlane.f32.xlu0 %v7316
        %v7318 = vpop.xlane.xlu0 %7317
        %v7319 = vsel %vm603, %v7245, 0.0
        %7320 = vadd.xlane.f32.xlu0 %v7319
        %v7321 = vpop.xlane.xlu0 %7320
        %v7322 = vsel %vm603, %v7246, 0.0
        %7323 = vadd.xlane.f32.xlu0 %v7322
        %v7324 = vpop.xlane.xlu0 %7323
        %v7325 = vsel %vm603, %v7247, 0.0
        %7326 = vadd.xlane.f32.xlu0 %v7325
        %v7327 = vpop.xlane.xlu0 %7326
        %v7328 = vsel %vm603, %v7248, 0.0
        %7329 = vadd.xlane.f32.xlu0 %v7328
        %v7330 = vpop.xlane.xlu0 %7329
        %v7331 = vsel %vm603, %v7249, 0.0
        %7332 = vadd.xlane.f32.xlu0 %v7331
        %v7333 = vpop.xlane.xlu0 %7332
        %v7334 = vsel %vm603, %v7250, 0.0
        %7335 = vadd.xlane.f32.xlu0 %v7334
        %v7336 = vpop.xlane.xlu0 %7335
        %v7337 = vsel %vm603, %v7251, 0.0
        %7338 = vadd.xlane.f32.xlu0 %v7337
        %v7339 = vpop.xlane.xlu0 %7338
        %v7340 = vsel %vm603, %v7252, 0.0
        %7341 = vadd.xlane.f32.xlu0 %v7340
        %v7342 = vpop.xlane.xlu0 %7341
        %v7343 = vsel %vm603, %v7253, 0.0
        %7344 = vadd.xlane.f32.xlu0 %v7343
        %v7345 = vpop.xlane.xlu0 %7344
        %v7346 = vsel %vm603, %v7254, 0.0
        %7347 = vadd.xlane.f32.xlu0 %v7346
        %v7348 = vpop.xlane.xlu0 %7347
        %v7349 = vsel %vm603, %v7255, 0.0
        %7350 = vadd.xlane.f32.xlu0 %v7349
        %v7351 = vpop.xlane.xlu0 %7350
        %v7352 = vsel %vm603, %v7256, 0.0
        %7353 = vadd.xlane.f32.xlu0 %v7352
        %v7354 = vpop.xlane.xlu0 %7353
        %v7355 = vsel %vm603, %v7257, 0.0
        %7356 = vadd.xlane.f32.xlu0 %v7355
        %v7357 = vpop.xlane.xlu0 %7356
        %v7358 = vsel %vm603, %v7258, 0.0
        %7359 = vadd.xlane.f32.xlu0 %v7358
        %v7360 = vpop.xlane.xlu0 %7359
        %v7361 = vsel %vm603, %v7259, 0.0
        %7362 = vadd.xlane.f32.xlu0 %v7361
        %v7363 = vpop.xlane.xlu0 %7362
        %v7364 = vsel %vm603, %v7260, 0.0
        %7365 = vadd.xlane.f32.xlu0 %v7364
        %v7366 = vpop.xlane.xlu0 %7365
        %v7367 = vsel %vm603, %v7261, 0.0
        %7368 = vadd.xlane.f32.xlu0 %v7367
        %v7369 = vpop.xlane.xlu0 %7368
        %v7370 = vsel %vm603, %v7262, 0.0
        %7371 = vadd.xlane.f32.xlu0 %v7370
        %v7372 = vpop.xlane.xlu0 %7371
        %v7373 = vsel %vm603, %v7263, 0.0
        %7374 = vadd.xlane.f32.xlu0 %v7373
        %v7375 = vpop.xlane.xlu0 %7374
        %v7376 = vsel %vm603, %v7264, 0.0
        %7377 = vadd.xlane.f32.xlu0 %v7376
        %v7378 = vpop.xlane.xlu0 %7377
        %v7379 = vsel %vm603, %v7265, 0.0
        %7380 = vadd.xlane.f32.xlu0 %v7379
        %v7381 = vpop.xlane.xlu0 %7380
        %v7382 = vsel %vm603, %v7266, 0.0
        %7383 = vadd.xlane.f32.xlu0 %v7382
        %v7384 = vpop.xlane.xlu0 %7383
        %v7385 = vsel %vm603, %v7267, 0.0
        %7386 = vadd.xlane.f32.xlu0 %v7385
        %v7387 = vpop.xlane.xlu0 %7386
        %v7388 = vrcp.pop 32.0
        %v7389 = vmul.f32 32.0, %v7388
        %v7390 = vsub.f32 1.0, %v7389
        %v7391 = vmul.f32 %v7388, %v7390
        %v7392 = vadd.f32 %v7388, %v7391
        %vm7393 = vweird.f32 %v7388
        %v7394 = vsel %vm7393, %v7388, %v7392
        %v7395 = vmul.f32 %v7270, %v7394
        %v7396 = vmul.f32 %v7273, %v7394
        %v7397 = vmul.f32 %v7276, %v7394
        %v7398 = vmul.f32 %v7279, %v7394
        %v7399 = vmul.f32 %v7282, %v7394
        %v7400 = vmul.f32 %v7285, %v7394
        %v7401 = vmul.f32 %v7288, %v7394
        %v7402 = vmul.f32 %v7291, %v7394
        %v7403 = vmul.f32 %v7294, %v7394
        %v7404 = vmul.f32 %v7297, %v7394
        %v7405 = vmul.f32 %v7300, %v7394
        %v7406 = vmul.f32 %v7303, %v7394
        %v7407 = vmul.f32 %v7306, %v7394
        %v7408 = vmul.f32 %v7309, %v7394
        %v7409 = vmul.f32 %v7312, %v7394
        %v7410 = vmul.f32 %v7315, %v7394
        %v7411 = vmul.f32 %v7318, %v7394
        %v7412 = vmul.f32 %v7321, %v7394
        %v7413 = vmul.f32 %v7324, %v7394
        %v7414 = vmul.f32 %v7327, %v7394
        %v7415 = vmul.f32 %v7330, %v7394
        %v7416 = vmul.f32 %v7333, %v7394
        %v7417 = vmul.f32 %v7336, %v7394
        %v7418 = vmul.f32 %v7339, %v7394
        %v7419 = vmul.f32 %v7342, %v7394
        %v7420 = vmul.f32 %v7345, %v7394
        %v7421 = vmul.f32 %v7348, %v7394
        %v7422 = vmul.f32 %v7351, %v7394
        %v7423 = vmul.f32 %v7354, %v7394
        %v7424 = vmul.f32 %v7357, %v7394
        %v7425 = vmul.f32 %v7360, %v7394
        %v7426 = vmul.f32 %v7363, %v7394
        %v7427 = vmul.f32 %v7366, %v7394
        %v7428 = vmul.f32 %v7369, %v7394
        %v7429 = vmul.f32 %v7372, %v7394
        %v7430 = vmul.f32 %v7375, %v7394
        %v7431 = vmul.f32 %v7378, %v7394
        %v7432 = vmul.f32 %v7381, %v7394
        %v7433 = vmul.f32 %v7384, %v7394
        %v7434 = vmul.f32 %v7387, %v7394
        %v7435 = vsub.f32 %v7228, %v7395
        %v7436 = vsub.f32 %v7229, %v7396
        %v7437 = vsub.f32 %v7230, %v7397
        %v7438 = vsub.f32 %v7231, %v7398
        %v7439 = vsub.f32 %v7232, %v7399
        %v7440 = vsub.f32 %v7233, %v7400
        %v7441 = vsub.f32 %v7234, %v7401
        %v7442 = vsub.f32 %v7235, %v7402
        %v7443 = vsub.f32 %v7236, %v7403
        %v7444 = vsub.f32 %v7237, %v7404
        %v7445 = vsub.f32 %v7238, %v7405
        %v7446 = vsub.f32 %v7239, %v7406
        %v7447 = vsub.f32 %v7240, %v7407
        %v7448 = vsub.f32 %v7241, %v7408
        %v7449 = vsub.f32 %v7242, %v7409
        %v7450 = vsub.f32 %v7243, %v7410
        %v7451 = vsub.f32 %v7244, %v7411
        %v7452 = vsub.f32 %v7245, %v7412
        %v7453 = vsub.f32 %v7246, %v7413
        %v7454 = vsub.f32 %v7247, %v7414
        %v7455 = vsub.f32 %v7248, %v7415
        %v7456 = vsub.f32 %v7249, %v7416
        %v7457 = vsub.f32 %v7250, %v7417
        %v7458 = vsub.f32 %v7251, %v7418
        %v7459 = vsub.f32 %v7252, %v7419
        %v7460 = vsub.f32 %v7253, %v7420
        %v7461 = vsub.f32 %v7254, %v7421
        %v7462 = vsub.f32 %v7255, %v7422
        %v7463 = vsub.f32 %v7256, %v7423
        %v7464 = vsub.f32 %v7257, %v7424
        %v7465 = vsub.f32 %v7258, %v7425
        %v7466 = vsub.f32 %v7259, %v7426
        %v7467 = vsub.f32 %v7260, %v7427
        %v7468 = vsub.f32 %v7261, %v7428
        %v7469 = vsub.f32 %v7262, %v7429
        %v7470 = vsub.f32 %v7263, %v7430
        %v7471 = vsub.f32 %v7264, %v7431
        %v7472 = vsub.f32 %v7265, %v7432
        %v7473 = vsub.f32 %v7266, %v7433
        %v7474 = vsub.f32 %v7267, %v7434
        %v7475 = vmul.f32 %v7435, %v7435
        %v7476 = vmul.f32 %v7436, %v7436
        %v7477 = vmul.f32 %v7437, %v7437
        %v7478 = vmul.f32 %v7438, %v7438
        %v7479 = vmul.f32 %v7439, %v7439
        %v7480 = vmul.f32 %v7440, %v7440
        %v7481 = vmul.f32 %v7441, %v7441
        %v7482 = vmul.f32 %v7442, %v7442
        %v7483 = vmul.f32 %v7443, %v7443
        %v7484 = vmul.f32 %v7444, %v7444
        %v7485 = vmul.f32 %v7445, %v7445
        %v7486 = vmul.f32 %v7446, %v7446
        %v7487 = vmul.f32 %v7447, %v7447
        %v7488 = vmul.f32 %v7448, %v7448
        %v7489 = vmul.f32 %v7449, %v7449
        %v7490 = vmul.f32 %v7450, %v7450
        %v7491 = vmul.f32 %v7451, %v7451
        %v7492 = vmul.f32 %v7452, %v7452
        %v7493 = vmul.f32 %v7453, %v7453
        %v7494 = vmul.f32 %v7454, %v7454
        %v7495 = vmul.f32 %v7455, %v7455
        %v7496 = vmul.f32 %v7456, %v7456
        %v7497 = vmul.f32 %v7457, %v7457
        %v7498 = vmul.f32 %v7458, %v7458
        %v7499 = vmul.f32 %v7459, %v7459
        %v7500 = vmul.f32 %v7460, %v7460
        %v7501 = vmul.f32 %v7461, %v7461
        %v7502 = vmul.f32 %v7462, %v7462
        %v7503 = vmul.f32 %v7463, %v7463
        %v7504 = vmul.f32 %v7464, %v7464
        %v7505 = vmul.f32 %v7465, %v7465
        %v7506 = vmul.f32 %v7466, %v7466
        %v7507 = vmul.f32 %v7467, %v7467
        %v7508 = vmul.f32 %v7468, %v7468
        %v7509 = vmul.f32 %v7469, %v7469
        %v7510 = vmul.f32 %v7470, %v7470
        %v7511 = vmul.f32 %v7471, %v7471
        %v7512 = vmul.f32 %v7472, %v7472
        %v7513 = vmul.f32 %v7473, %v7473
        %v7514 = vmul.f32 %v7474, %v7474
        %v7515 = vsel %vm603, %v7475, 0.0
        %7516 = vadd.xlane.f32.xlu0 %v7515
        %v7517 = vpop.xlane.xlu0 %7516
        %v7518 = vsel %vm603, %v7476, 0.0
        %7519 = vadd.xlane.f32.xlu0 %v7518
        %v7520 = vpop.xlane.xlu0 %7519
        %v7521 = vsel %vm603, %v7477, 0.0
        %7522 = vadd.xlane.f32.xlu0 %v7521
        %v7523 = vpop.xlane.xlu0 %7522
        %v7524 = vsel %vm603, %v7478, 0.0
        %7525 = vadd.xlane.f32.xlu0 %v7524
        %v7526 = vpop.xlane.xlu0 %7525
        %v7527 = vsel %vm603, %v7479, 0.0
        %7528 = vadd.xlane.f32.xlu0 %v7527
        %v7529 = vpop.xlane.xlu0 %7528
        %v7530 = vsel %vm603, %v7480, 0.0
        %7531 = vadd.xlane.f32.xlu0 %v7530
        %v7532 = vpop.xlane.xlu0 %7531
        %v7533 = vsel %vm603, %v7481, 0.0
        %7534 = vadd.xlane.f32.xlu0 %v7533
        %v7535 = vpop.xlane.xlu0 %7534
        %v7536 = vsel %vm603, %v7482, 0.0
        %7537 = vadd.xlane.f32.xlu0 %v7536
        %v7538 = vpop.xlane.xlu0 %7537
        %v7539 = vsel %vm603, %v7483, 0.0
        %7540 = vadd.xlane.f32.xlu0 %v7539
        %v7541 = vpop.xlane.xlu0 %7540
        %v7542 = vsel %vm603, %v7484, 0.0
        %7543 = vadd.xlane.f32.xlu0 %v7542
        %v7544 = vpop.xlane.xlu0 %7543
        %v7545 = vsel %vm603, %v7485, 0.0
        %7546 = vadd.xlane.f32.xlu0 %v7545
        %v7547 = vpop.xlane.xlu0 %7546
        %v7548 = vsel %vm603, %v7486, 0.0
        %7549 = vadd.xlane.f32.xlu0 %v7548
        %v7550 = vpop.xlane.xlu0 %7549
        %v7551 = vsel %vm603, %v7487, 0.0
        %7552 = vadd.xlane.f32.xlu0 %v7551
        %v7553 = vpop.xlane.xlu0 %7552
        %v7554 = vsel %vm603, %v7488, 0.0
        %7555 = vadd.xlane.f32.xlu0 %v7554
        %v7556 = vpop.xlane.xlu0 %7555
        %v7557 = vsel %vm603, %v7489, 0.0
        %7558 = vadd.xlane.f32.xlu0 %v7557
        %v7559 = vpop.xlane.xlu0 %7558
        %v7560 = vsel %vm603, %v7490, 0.0
        %7561 = vadd.xlane.f32.xlu0 %v7560
        %v7562 = vpop.xlane.xlu0 %7561
        %v7563 = vsel %vm603, %v7491, 0.0
        %7564 = vadd.xlane.f32.xlu0 %v7563
        %v7565 = vpop.xlane.xlu0 %7564
        %v7566 = vsel %vm603, %v7492, 0.0
        %7567 = vadd.xlane.f32.xlu0 %v7566
        %v7568 = vpop.xlane.xlu0 %7567
        %v7569 = vsel %vm603, %v7493, 0.0
        %7570 = vadd.xlane.f32.xlu0 %v7569
        %v7571 = vpop.xlane.xlu0 %7570
        %v7572 = vsel %vm603, %v7494, 0.0
        %7573 = vadd.xlane.f32.xlu0 %v7572
        %v7574 = vpop.xlane.xlu0 %7573
        %v7575 = vsel %vm603, %v7495, 0.0
        %7576 = vadd.xlane.f32.xlu0 %v7575
        %v7577 = vpop.xlane.xlu0 %7576
        %v7578 = vsel %vm603, %v7496, 0.0
        %7579 = vadd.xlane.f32.xlu0 %v7578
        %v7580 = vpop.xlane.xlu0 %7579
        %v7581 = vsel %vm603, %v7497, 0.0
        %7582 = vadd.xlane.f32.xlu0 %v7581
        %v7583 = vpop.xlane.xlu0 %7582
        %v7584 = vsel %vm603, %v7498, 0.0
        %7585 = vadd.xlane.f32.xlu0 %v7584
        %v7586 = vpop.xlane.xlu0 %7585
        %v7587 = vsel %vm603, %v7499, 0.0
        %7588 = vadd.xlane.f32.xlu0 %v7587
        %v7589 = vpop.xlane.xlu0 %7588
        %v7590 = vsel %vm603, %v7500, 0.0
        %7591 = vadd.xlane.f32.xlu0 %v7590
        %v7592 = vpop.xlane.xlu0 %7591
        %v7593 = vsel %vm603, %v7501, 0.0
        %7594 = vadd.xlane.f32.xlu0 %v7593
        %v7595 = vpop.xlane.xlu0 %7594
        %v7596 = vsel %vm603, %v7502, 0.0
        %7597 = vadd.xlane.f32.xlu0 %v7596
        %v7598 = vpop.xlane.xlu0 %7597
        %v7599 = vsel %vm603, %v7503, 0.0
        %7600 = vadd.xlane.f32.xlu0 %v7599
        %v7601 = vpop.xlane.xlu0 %7600
        %v7602 = vsel %vm603, %v7504, 0.0
        %7603 = vadd.xlane.f32.xlu0 %v7602
        %v7604 = vpop.xlane.xlu0 %7603
        %v7605 = vsel %vm603, %v7505, 0.0
        %7606 = vadd.xlane.f32.xlu0 %v7605
        %v7607 = vpop.xlane.xlu0 %7606
        %v7608 = vsel %vm603, %v7506, 0.0
        %7609 = vadd.xlane.f32.xlu0 %v7608
        %v7610 = vpop.xlane.xlu0 %7609
        %v7611 = vsel %vm603, %v7507, 0.0
        %7612 = vadd.xlane.f32.xlu0 %v7611
        %v7613 = vpop.xlane.xlu0 %7612
        %v7614 = vsel %vm603, %v7508, 0.0
        %7615 = vadd.xlane.f32.xlu0 %v7614
        %v7616 = vpop.xlane.xlu0 %7615
        %v7617 = vsel %vm603, %v7509, 0.0
        %7618 = vadd.xlane.f32.xlu0 %v7617
        %v7619 = vpop.xlane.xlu0 %7618
        %v7620 = vsel %vm603, %v7510, 0.0
        %7621 = vadd.xlane.f32.xlu0 %v7620
        %v7622 = vpop.xlane.xlu0 %7621
        %v7623 = vsel %vm603, %v7511, 0.0
        %7624 = vadd.xlane.f32.xlu0 %v7623
        %v7625 = vpop.xlane.xlu0 %7624
        %v7626 = vsel %vm603, %v7512, 0.0
        %7627 = vadd.xlane.f32.xlu0 %v7626
        %v7628 = vpop.xlane.xlu0 %7627
        %v7629 = vsel %vm603, %v7513, 0.0
        %7630 = vadd.xlane.f32.xlu0 %v7629
        %v7631 = vpop.xlane.xlu0 %7630
        %v7632 = vsel %vm603, %v7514, 0.0
        %7633 = vadd.xlane.f32.xlu0 %v7632
        %v7634 = vpop.xlane.xlu0 %7633
        %v7635 = vmul.f32 %v7517, %v7394
        %v7636 = vmul.f32 %v7520, %v7394
        %v7637 = vmul.f32 %v7523, %v7394
        %v7638 = vmul.f32 %v7526, %v7394
        %v7639 = vmul.f32 %v7529, %v7394
        %v7640 = vmul.f32 %v7532, %v7394
        %v7641 = vmul.f32 %v7535, %v7394
        %v7642 = vmul.f32 %v7538, %v7394
        %v7643 = vmul.f32 %v7541, %v7394
        %v7644 = vmul.f32 %v7544, %v7394
        %v7645 = vmul.f32 %v7547, %v7394
        %v7646 = vmul.f32 %v7550, %v7394
        %v7647 = vmul.f32 %v7553, %v7394
        %v7648 = vmul.f32 %v7556, %v7394
        %v7649 = vmul.f32 %v7559, %v7394
        %v7650 = vmul.f32 %v7562, %v7394
        %v7651 = vmul.f32 %v7565, %v7394
        %v7652 = vmul.f32 %v7568, %v7394
        %v7653 = vmul.f32 %v7571, %v7394
        %v7654 = vmul.f32 %v7574, %v7394
        %v7655 = vmul.f32 %v7577, %v7394
        %v7656 = vmul.f32 %v7580, %v7394
        %v7657 = vmul.f32 %v7583, %v7394
        %v7658 = vmul.f32 %v7586, %v7394
        %v7659 = vmul.f32 %v7589, %v7394
        %v7660 = vmul.f32 %v7592, %v7394
        %v7661 = vmul.f32 %v7595, %v7394
        %v7662 = vmul.f32 %v7598, %v7394
        %v7663 = vmul.f32 %v7601, %v7394
        %v7664 = vmul.f32 %v7604, %v7394
        %v7665 = vmul.f32 %v7607, %v7394
        %v7666 = vmul.f32 %v7610, %v7394
        %v7667 = vmul.f32 %v7613, %v7394
        %v7668 = vmul.f32 %v7616, %v7394
        %v7669 = vmul.f32 %v7619, %v7394
        %v7670 = vmul.f32 %v7622, %v7394
        %v7671 = vmul.f32 %v7625, %v7394
        %v7672 = vmul.f32 %v7628, %v7394
        %v7673 = vmul.f32 %v7631, %v7394
        %v7674 = vmul.f32 %v7634, %v7394
        %v7675 = vadd.f32 %v7635, 1e-12
        %v7676 = vadd.f32 %v7636, 1e-12
        %v7677 = vadd.f32 %v7637, 1e-12
        %v7678 = vadd.f32 %v7638, 1e-12
        %v7679 = vadd.f32 %v7639, 1e-12
        %v7680 = vadd.f32 %v7640, 1e-12
        %v7681 = vadd.f32 %v7641, 1e-12
        %v7682 = vadd.f32 %v7642, 1e-12
        %v7683 = vadd.f32 %v7643, 1e-12
        %v7684 = vadd.f32 %v7644, 1e-12
        %v7685 = vadd.f32 %v7645, 1e-12
        %v7686 = vadd.f32 %v7646, 1e-12
        %v7687 = vadd.f32 %v7647, 1e-12
        %v7688 = vadd.f32 %v7648, 1e-12
        %v7689 = vadd.f32 %v7649, 1e-12
        %v7690 = vadd.f32 %v7650, 1e-12
        %v7691 = vadd.f32 %v7651, 1e-12
        %v7692 = vadd.f32 %v7652, 1e-12
        %v7693 = vadd.f32 %v7653, 1e-12
        %v7694 = vadd.f32 %v7654, 1e-12
        %v7695 = vadd.f32 %v7655, 1e-12
        %v7696 = vadd.f32 %v7656, 1e-12
        %v7697 = vadd.f32 %v7657, 1e-12
        %v7698 = vadd.f32 %v7658, 1e-12
        %v7699 = vadd.f32 %v7659, 1e-12
        %v7700 = vadd.f32 %v7660, 1e-12
        %v7701 = vadd.f32 %v7661, 1e-12
        %v7702 = vadd.f32 %v7662, 1e-12
        %v7703 = vadd.f32 %v7663, 1e-12
        %v7704 = vadd.f32 %v7664, 1e-12
        %v7705 = vadd.f32 %v7665, 1e-12
        %v7706 = vadd.f32 %v7666, 1e-12
        %v7707 = vadd.f32 %v7667, 1e-12
        %v7708 = vadd.f32 %v7668, 1e-12
        %v7709 = vadd.f32 %v7669, 1e-12
        %v7710 = vadd.f32 %v7670, 1e-12
        %v7711 = vadd.f32 %v7671, 1e-12
        %v7712 = vadd.f32 %v7672, 1e-12
        %v7713 = vadd.f32 %v7673, 1e-12
        %v7714 = vadd.f32 %v7674, 1e-12
        %v7715 = vrsqrt.pop %v7675
        %v7716 = vmul.f32 %v7715, %v7675
        %v7717 = vmul.f32 %v7716, %v7715
        %v7718 = vmul.f32 0.5, %v7717
        %v7719 = vsub.f32 1.5, %v7718
        %v7720 = vmul.f32 %v7715, %v7719
        %vm7721 = vweird.f32 %v7675
        %vm7722 = vweird.f32 %v7715
        %vm7723 = vmor %vm7721, %vm7722
        %v7724 = vsel %vm7723, %v7715, %v7720
        %v7725 = vrsqrt.pop %v7676
        %v7726 = vmul.f32 %v7725, %v7676
        %v7727 = vmul.f32 %v7726, %v7725
        %v7728 = vmul.f32 0.5, %v7727
        %v7729 = vsub.f32 1.5, %v7728
        %v7730 = vmul.f32 %v7725, %v7729
        %vm7731 = vweird.f32 %v7676
        %vm7732 = vweird.f32 %v7725
        %vm7733 = vmor %vm7731, %vm7732
        %v7734 = vsel %vm7733, %v7725, %v7730
        %v7735 = vrsqrt.pop %v7677
        %v7736 = vmul.f32 %v7735, %v7677
        %v7737 = vmul.f32 %v7736, %v7735
        %v7738 = vmul.f32 0.5, %v7737
        %v7739 = vsub.f32 1.5, %v7738
        %v7740 = vmul.f32 %v7735, %v7739
        %vm7741 = vweird.f32 %v7677
        %vm7742 = vweird.f32 %v7735
        %vm7743 = vmor %vm7741, %vm7742
        %v7744 = vsel %vm7743, %v7735, %v7740
        %v7745 = vrsqrt.pop %v7678
        %v7746 = vmul.f32 %v7745, %v7678
        %v7747 = vmul.f32 %v7746, %v7745
        %v7748 = vmul.f32 0.5, %v7747
        %v7749 = vsub.f32 1.5, %v7748
        %v7750 = vmul.f32 %v7745, %v7749
        %vm7751 = vweird.f32 %v7678
        %vm7752 = vweird.f32 %v7745
        %vm7753 = vmor %vm7751, %vm7752
        %v7754 = vsel %vm7753, %v7745, %v7750
        %v7755 = vrsqrt.pop %v7679
        %v7756 = vmul.f32 %v7755, %v7679
        %v7757 = vmul.f32 %v7756, %v7755
        %v7758 = vmul.f32 0.5, %v7757
        %v7759 = vsub.f32 1.5, %v7758
        %v7760 = vmul.f32 %v7755, %v7759
        %vm7761 = vweird.f32 %v7679
        %vm7762 = vweird.f32 %v7755
        %vm7763 = vmor %vm7761, %vm7762
        %v7764 = vsel %vm7763, %v7755, %v7760
        %v7765 = vrsqrt.pop %v7680
        %v7766 = vmul.f32 %v7765, %v7680
        %v7767 = vmul.f32 %v7766, %v7765
        %v7768 = vmul.f32 0.5, %v7767
        %v7769 = vsub.f32 1.5, %v7768
        %v7770 = vmul.f32 %v7765, %v7769
        %vm7771 = vweird.f32 %v7680
        %vm7772 = vweird.f32 %v7765
        %vm7773 = vmor %vm7771, %vm7772
        %v7774 = vsel %vm7773, %v7765, %v7770
        %v7775 = vrsqrt.pop %v7681
        %v7776 = vmul.f32 %v7775, %v7681
        %v7777 = vmul.f32 %v7776, %v7775
        %v7778 = vmul.f32 0.5, %v7777
        %v7779 = vsub.f32 1.5, %v7778
        %v7780 = vmul.f32 %v7775, %v7779
        %vm7781 = vweird.f32 %v7681
        %vm7782 = vweird.f32 %v7775
        %vm7783 = vmor %vm7781, %vm7782
        %v7784 = vsel %vm7783, %v7775, %v7780
        %v7785 = vrsqrt.pop %v7682
        %v7786 = vmul.f32 %v7785, %v7682
        %v7787 = vmul.f32 %v7786, %v7785
        %v7788 = vmul.f32 0.5, %v7787
        %v7789 = vsub.f32 1.5, %v7788
        %v7790 = vmul.f32 %v7785, %v7789
        %vm7791 = vweird.f32 %v7682
        %vm7792 = vweird.f32 %v7785
        %vm7793 = vmor %vm7791, %vm7792
        %v7794 = vsel %vm7793, %v7785, %v7790
        %v7795 = vrsqrt.pop %v7683
        %v7796 = vmul.f32 %v7795, %v7683
        %v7797 = vmul.f32 %v7796, %v7795
        %v7798 = vmul.f32 0.5, %v7797
        %v7799 = vsub.f32 1.5, %v7798
        %v7800 = vmul.f32 %v7795, %v7799
        %vm7801 = vweird.f32 %v7683
        %vm7802 = vweird.f32 %v7795
        %vm7803 = vmor %vm7801, %vm7802
        %v7804 = vsel %vm7803, %v7795, %v7800
        %v7805 = vrsqrt.pop %v7684
        %v7806 = vmul.f32 %v7805, %v7684
        %v7807 = vmul.f32 %v7806, %v7805
        %v7808 = vmul.f32 0.5, %v7807
        %v7809 = vsub.f32 1.5, %v7808
        %v7810 = vmul.f32 %v7805, %v7809
        %vm7811 = vweird.f32 %v7684
        %vm7812 = vweird.f32 %v7805
        %vm7813 = vmor %vm7811, %vm7812
        %v7814 = vsel %vm7813, %v7805, %v7810
        %v7815 = vrsqrt.pop %v7685
        %v7816 = vmul.f32 %v7815, %v7685
        %v7817 = vmul.f32 %v7816, %v7815
        %v7818 = vmul.f32 0.5, %v7817
        %v7819 = vsub.f32 1.5, %v7818
        %v7820 = vmul.f32 %v7815, %v7819
        %vm7821 = vweird.f32 %v7685
        %vm7822 = vweird.f32 %v7815
        %vm7823 = vmor %vm7821, %vm7822
        %v7824 = vsel %vm7823, %v7815, %v7820
        %v7825 = vrsqrt.pop %v7686
        %v7826 = vmul.f32 %v7825, %v7686
        %v7827 = vmul.f32 %v7826, %v7825
        %v7828 = vmul.f32 0.5, %v7827
        %v7829 = vsub.f32 1.5, %v7828
        %v7830 = vmul.f32 %v7825, %v7829
        %vm7831 = vweird.f32 %v7686
        %vm7832 = vweird.f32 %v7825
        %vm7833 = vmor %vm7831, %vm7832
        %v7834 = vsel %vm7833, %v7825, %v7830
        %v7835 = vrsqrt.pop %v7687
        %v7836 = vmul.f32 %v7835, %v7687
        %v7837 = vmul.f32 %v7836, %v7835
        %v7838 = vmul.f32 0.5, %v7837
        %v7839 = vsub.f32 1.5, %v7838
        %v7840 = vmul.f32 %v7835, %v7839
        %vm7841 = vweird.f32 %v7687
        %vm7842 = vweird.f32 %v7835
        %vm7843 = vmor %vm7841, %vm7842
        %v7844 = vsel %vm7843, %v7835, %v7840
        %v7845 = vrsqrt.pop %v7688
        %v7846 = vmul.f32 %v7845, %v7688
        %v7847 = vmul.f32 %v7846, %v7845
        %v7848 = vmul.f32 0.5, %v7847
        %v7849 = vsub.f32 1.5, %v7848
        %v7850 = vmul.f32 %v7845, %v7849
        %vm7851 = vweird.f32 %v7688
        %vm7852 = vweird.f32 %v7845
        %vm7853 = vmor %vm7851, %vm7852
        %v7854 = vsel %vm7853, %v7845, %v7850
        %v7855 = vrsqrt.pop %v7689
        %v7856 = vmul.f32 %v7855, %v7689
        %v7857 = vmul.f32 %v7856, %v7855
        %v7858 = vmul.f32 0.5, %v7857
        %v7859 = vsub.f32 1.5, %v7858
        %v7860 = vmul.f32 %v7855, %v7859
        %vm7861 = vweird.f32 %v7689
        %vm7862 = vweird.f32 %v7855
        %vm7863 = vmor %vm7861, %vm7862
        %v7864 = vsel %vm7863, %v7855, %v7860
        %v7865 = vrsqrt.pop %v7690
        %v7866 = vmul.f32 %v7865, %v7690
        %v7867 = vmul.f32 %v7866, %v7865
        %v7868 = vmul.f32 0.5, %v7867
        %v7869 = vsub.f32 1.5, %v7868
        %v7870 = vmul.f32 %v7865, %v7869
        %vm7871 = vweird.f32 %v7690
        %vm7872 = vweird.f32 %v7865
        %vm7873 = vmor %vm7871, %vm7872
        %v7874 = vsel %vm7873, %v7865, %v7870
        %v7875 = vrsqrt.pop %v7691
        %v7876 = vmul.f32 %v7875, %v7691
        %v7877 = vmul.f32 %v7876, %v7875
        %v7878 = vmul.f32 0.5, %v7877
        %v7879 = vsub.f32 1.5, %v7878
        %v7880 = vmul.f32 %v7875, %v7879
        %vm7881 = vweird.f32 %v7691
        %vm7882 = vweird.f32 %v7875
        %vm7883 = vmor %vm7881, %vm7882
        %v7884 = vsel %vm7883, %v7875, %v7880
        %v7885 = vrsqrt.pop %v7692
        %v7886 = vmul.f32 %v7885, %v7692
        %v7887 = vmul.f32 %v7886, %v7885
        %v7888 = vmul.f32 0.5, %v7887
        %v7889 = vsub.f32 1.5, %v7888
        %v7890 = vmul.f32 %v7885, %v7889
        %vm7891 = vweird.f32 %v7692
        %vm7892 = vweird.f32 %v7885
        %vm7893 = vmor %vm7891, %vm7892
        %v7894 = vsel %vm7893, %v7885, %v7890
        %v7895 = vrsqrt.pop %v7693
        %v7896 = vmul.f32 %v7895, %v7693
        %v7897 = vmul.f32 %v7896, %v7895
        %v7898 = vmul.f32 0.5, %v7897
        %v7899 = vsub.f32 1.5, %v7898
        %v7900 = vmul.f32 %v7895, %v7899
        %vm7901 = vweird.f32 %v7693
        %vm7902 = vweird.f32 %v7895
        %vm7903 = vmor %vm7901, %vm7902
        %v7904 = vsel %vm7903, %v7895, %v7900
        %v7905 = vrsqrt.pop %v7694
        %v7906 = vmul.f32 %v7905, %v7694
        %v7907 = vmul.f32 %v7906, %v7905
        %v7908 = vmul.f32 0.5, %v7907
        %v7909 = vsub.f32 1.5, %v7908
        %v7910 = vmul.f32 %v7905, %v7909
        %vm7911 = vweird.f32 %v7694
        %vm7912 = vweird.f32 %v7905
        %vm7913 = vmor %vm7911, %vm7912
        %v7914 = vsel %vm7913, %v7905, %v7910
        %v7915 = vrsqrt.pop %v7695
        %v7916 = vmul.f32 %v7915, %v7695
        %v7917 = vmul.f32 %v7916, %v7915
        %v7918 = vmul.f32 0.5, %v7917
        %v7919 = vsub.f32 1.5, %v7918
        %v7920 = vmul.f32 %v7915, %v7919
        %vm7921 = vweird.f32 %v7695
        %vm7922 = vweird.f32 %v7915
        %vm7923 = vmor %vm7921, %vm7922
        %v7924 = vsel %vm7923, %v7915, %v7920
        %v7925 = vrsqrt.pop %v7696
        %v7926 = vmul.f32 %v7925, %v7696
        %v7927 = vmul.f32 %v7926, %v7925
        %v7928 = vmul.f32 0.5, %v7927
        %v7929 = vsub.f32 1.5, %v7928
        %v7930 = vmul.f32 %v7925, %v7929
        %vm7931 = vweird.f32 %v7696
        %vm7932 = vweird.f32 %v7925
        %vm7933 = vmor %vm7931, %vm7932
        %v7934 = vsel %vm7933, %v7925, %v7930
        %v7935 = vrsqrt.pop %v7697
        %v7936 = vmul.f32 %v7935, %v7697
        %v7937 = vmul.f32 %v7936, %v7935
        %v7938 = vmul.f32 0.5, %v7937
        %v7939 = vsub.f32 1.5, %v7938
        %v7940 = vmul.f32 %v7935, %v7939
        %vm7941 = vweird.f32 %v7697
        %vm7942 = vweird.f32 %v7935
        %vm7943 = vmor %vm7941, %vm7942
        %v7944 = vsel %vm7943, %v7935, %v7940
        %v7945 = vrsqrt.pop %v7698
        %v7946 = vmul.f32 %v7945, %v7698
        %v7947 = vmul.f32 %v7946, %v7945
        %v7948 = vmul.f32 0.5, %v7947
        %v7949 = vsub.f32 1.5, %v7948
        %v7950 = vmul.f32 %v7945, %v7949
        %vm7951 = vweird.f32 %v7698
        %vm7952 = vweird.f32 %v7945
        %vm7953 = vmor %vm7951, %vm7952
        %v7954 = vsel %vm7953, %v7945, %v7950
        %v7955 = vrsqrt.pop %v7699
        %v7956 = vmul.f32 %v7955, %v7699
        %v7957 = vmul.f32 %v7956, %v7955
        %v7958 = vmul.f32 0.5, %v7957
        %v7959 = vsub.f32 1.5, %v7958
        %v7960 = vmul.f32 %v7955, %v7959
        %vm7961 = vweird.f32 %v7699
        %vm7962 = vweird.f32 %v7955
        %vm7963 = vmor %vm7961, %vm7962
        %v7964 = vsel %vm7963, %v7955, %v7960
        %v7965 = vrsqrt.pop %v7700
        %v7966 = vmul.f32 %v7965, %v7700
        %v7967 = vmul.f32 %v7966, %v7965
        %v7968 = vmul.f32 0.5, %v7967
        %v7969 = vsub.f32 1.5, %v7968
        %v7970 = vmul.f32 %v7965, %v7969
        %vm7971 = vweird.f32 %v7700
        %vm7972 = vweird.f32 %v7965
        %vm7973 = vmor %vm7971, %vm7972
        %v7974 = vsel %vm7973, %v7965, %v7970
        %v7975 = vrsqrt.pop %v7701
        %v7976 = vmul.f32 %v7975, %v7701
        %v7977 = vmul.f32 %v7976, %v7975
        %v7978 = vmul.f32 0.5, %v7977
        %v7979 = vsub.f32 1.5, %v7978
        %v7980 = vmul.f32 %v7975, %v7979
        %vm7981 = vweird.f32 %v7701
        %vm7982 = vweird.f32 %v7975
        %vm7983 = vmor %vm7981, %vm7982
        %v7984 = vsel %vm7983, %v7975, %v7980
        %v7985 = vrsqrt.pop %v7702
        %v7986 = vmul.f32 %v7985, %v7702
        %v7987 = vmul.f32 %v7986, %v7985
        %v7988 = vmul.f32 0.5, %v7987
        %v7989 = vsub.f32 1.5, %v7988
        %v7990 = vmul.f32 %v7985, %v7989
        %vm7991 = vweird.f32 %v7702
        %vm7992 = vweird.f32 %v7985
        %vm7993 = vmor %vm7991, %vm7992
        %v7994 = vsel %vm7993, %v7985, %v7990
        %v7995 = vrsqrt.pop %v7703
        %v7996 = vmul.f32 %v7995, %v7703
        %v7997 = vmul.f32 %v7996, %v7995
        %v7998 = vmul.f32 0.5, %v7997
        %v7999 = vsub.f32 1.5, %v7998
        %v8000 = vmul.f32 %v7995, %v7999
        %vm8001 = vweird.f32 %v7703
        %vm8002 = vweird.f32 %v7995
        %vm8003 = vmor %vm8001, %vm8002
        %v8004 = vsel %vm8003, %v7995, %v8000
        %v8005 = vrsqrt.pop %v7704
        %v8006 = vmul.f32 %v8005, %v7704
        %v8007 = vmul.f32 %v8006, %v8005
        %v8008 = vmul.f32 0.5, %v8007
        %v8009 = vsub.f32 1.5, %v8008
        %v8010 = vmul.f32 %v8005, %v8009
        %vm8011 = vweird.f32 %v7704
        %vm8012 = vweird.f32 %v8005
        %vm8013 = vmor %vm8011, %vm8012
        %v8014 = vsel %vm8013, %v8005, %v8010
        %v8015 = vrsqrt.pop %v7705
        %v8016 = vmul.f32 %v8015, %v7705
        %v8017 = vmul.f32 %v8016, %v8015
        %v8018 = vmul.f32 0.5, %v8017
        %v8019 = vsub.f32 1.5, %v8018
        %v8020 = vmul.f32 %v8015, %v8019
        %vm8021 = vweird.f32 %v7705
        %vm8022 = vweird.f32 %v8015
        %vm8023 = vmor %vm8021, %vm8022
        %v8024 = vsel %vm8023, %v8015, %v8020
        %v8025 = vrsqrt.pop %v7706
        %v8026 = vmul.f32 %v8025, %v7706
        %v8027 = vmul.f32 %v8026, %v8025
        %v8028 = vmul.f32 0.5, %v8027
        %v8029 = vsub.f32 1.5, %v8028
        %v8030 = vmul.f32 %v8025, %v8029
        %vm8031 = vweird.f32 %v7706
        %vm8032 = vweird.f32 %v8025
        %vm8033 = vmor %vm8031, %vm8032
        %v8034 = vsel %vm8033, %v8025, %v8030
        %v8035 = vrsqrt.pop %v7707
        %v8036 = vmul.f32 %v8035, %v7707
        %v8037 = vmul.f32 %v8036, %v8035
        %v8038 = vmul.f32 0.5, %v8037
        %v8039 = vsub.f32 1.5, %v8038
        %v8040 = vmul.f32 %v8035, %v8039
        %vm8041 = vweird.f32 %v7707
        %vm8042 = vweird.f32 %v8035
        %vm8043 = vmor %vm8041, %vm8042
        %v8044 = vsel %vm8043, %v8035, %v8040
        %v8045 = vrsqrt.pop %v7708
        %v8046 = vmul.f32 %v8045, %v7708
        %v8047 = vmul.f32 %v8046, %v8045
        %v8048 = vmul.f32 0.5, %v8047
        %v8049 = vsub.f32 1.5, %v8048
        %v8050 = vmul.f32 %v8045, %v8049
        %vm8051 = vweird.f32 %v7708
        %vm8052 = vweird.f32 %v8045
        %vm8053 = vmor %vm8051, %vm8052
        %v8054 = vsel %vm8053, %v8045, %v8050
        %v8055 = vrsqrt.pop %v7709
        %v8056 = vmul.f32 %v8055, %v7709
        %v8057 = vmul.f32 %v8056, %v8055
        %v8058 = vmul.f32 0.5, %v8057
        %v8059 = vsub.f32 1.5, %v8058
        %v8060 = vmul.f32 %v8055, %v8059
        %vm8061 = vweird.f32 %v7709
        %vm8062 = vweird.f32 %v8055
        %vm8063 = vmor %vm8061, %vm8062
        %v8064 = vsel %vm8063, %v8055, %v8060
        %v8065 = vrsqrt.pop %v7710
        %v8066 = vmul.f32 %v8065, %v7710
        %v8067 = vmul.f32 %v8066, %v8065
        %v8068 = vmul.f32 0.5, %v8067
        %v8069 = vsub.f32 1.5, %v8068
        %v8070 = vmul.f32 %v8065, %v8069
        %vm8071 = vweird.f32 %v7710
        %vm8072 = vweird.f32 %v8065
        %vm8073 = vmor %vm8071, %vm8072
        %v8074 = vsel %vm8073, %v8065, %v8070
        %v8075 = vrsqrt.pop %v7711
        %v8076 = vmul.f32 %v8075, %v7711
        %v8077 = vmul.f32 %v8076, %v8075
        %v8078 = vmul.f32 0.5, %v8077
        %v8079 = vsub.f32 1.5, %v8078
        %v8080 = vmul.f32 %v8075, %v8079
        %vm8081 = vweird.f32 %v7711
        %vm8082 = vweird.f32 %v8075
        %vm8083 = vmor %vm8081, %vm8082
        %v8084 = vsel %vm8083, %v8075, %v8080
        %v8085 = vrsqrt.pop %v7712
        %v8086 = vmul.f32 %v8085, %v7712
        %v8087 = vmul.f32 %v8086, %v8085
        %v8088 = vmul.f32 0.5, %v8087
        %v8089 = vsub.f32 1.5, %v8088
        %v8090 = vmul.f32 %v8085, %v8089
        %vm8091 = vweird.f32 %v7712
        %vm8092 = vweird.f32 %v8085
        %vm8093 = vmor %vm8091, %vm8092
        %v8094 = vsel %vm8093, %v8085, %v8090
        %v8095 = vrsqrt.pop %v7713
        %v8096 = vmul.f32 %v8095, %v7713
        %v8097 = vmul.f32 %v8096, %v8095
        %v8098 = vmul.f32 0.5, %v8097
        %v8099 = vsub.f32 1.5, %v8098
        %v8100 = vmul.f32 %v8095, %v8099
        %vm8101 = vweird.f32 %v7713
        %vm8102 = vweird.f32 %v8095
        %vm8103 = vmor %vm8101, %vm8102
        %v8104 = vsel %vm8103, %v8095, %v8100
        %v8105 = vrsqrt.pop %v7714
        %v8106 = vmul.f32 %v8105, %v7714
        %v8107 = vmul.f32 %v8106, %v8105
        %v8108 = vmul.f32 0.5, %v8107
        %v8109 = vsub.f32 1.5, %v8108
        %v8110 = vmul.f32 %v8105, %v8109
        %vm8111 = vweird.f32 %v7714
        %vm8112 = vweird.f32 %v8105
        %vm8113 = vmor %vm8111, %vm8112
        %v8114 = vsel %vm8113, %v8105, %v8110
        %v8115 = vmul.f32 %v7435, %v7724
        %v8116 = vmul.f32 %v7436, %v7734
        %v8117 = vmul.f32 %v7437, %v7744
        %v8118 = vmul.f32 %v7438, %v7754
        %v8119 = vmul.f32 %v7439, %v7764
        %v8120 = vmul.f32 %v7440, %v7774
        %v8121 = vmul.f32 %v7441, %v7784
        %v8122 = vmul.f32 %v7442, %v7794
        %v8123 = vmul.f32 %v7443, %v7804
        %v8124 = vmul.f32 %v7444, %v7814
        %v8125 = vmul.f32 %v7445, %v7824
        %v8126 = vmul.f32 %v7446, %v7834
        %v8127 = vmul.f32 %v7447, %v7844
        %v8128 = vmul.f32 %v7448, %v7854
        %v8129 = vmul.f32 %v7449, %v7864
        %v8130 = vmul.f32 %v7450, %v7874
        %v8131 = vmul.f32 %v7451, %v7884
        %v8132 = vmul.f32 %v7452, %v7894
        %v8133 = vmul.f32 %v7453, %v7904
        %v8134 = vmul.f32 %v7454, %v7914
        %v8135 = vmul.f32 %v7455, %v7924
        %v8136 = vmul.f32 %v7456, %v7934
        %v8137 = vmul.f32 %v7457, %v7944
        %v8138 = vmul.f32 %v7458, %v7954
        %v8139 = vmul.f32 %v7459, %v7964
        %v8140 = vmul.f32 %v7460, %v7974
        %v8141 = vmul.f32 %v7461, %v7984
        %v8142 = vmul.f32 %v7462, %v7994
        %v8143 = vmul.f32 %v7463, %v8004
        %v8144 = vmul.f32 %v7464, %v8014
        %v8145 = vmul.f32 %v7465, %v8024
        %v8146 = vmul.f32 %v7466, %v8034
        %v8147 = vmul.f32 %v7467, %v8044
        %v8148 = vmul.f32 %v7468, %v8054
        %v8149 = vmul.f32 %v7469, %v8064
        %v8150 = vmul.f32 %v7470, %v8074
        %v8151 = vmul.f32 %v7471, %v8084
        %v8152 = vmul.f32 %v7472, %v8094
        %v8153 = vmul.f32 %v7473, %v8104
        %v8154 = vmul.f32 %v7474, %v8114
        %v8155 = vld [vmem:[%s11] sm:$0x1]
        %v8157 = vperm.slane %v8155, 0
        %v8159 = vmul.f32 %v8115, %v8157
        %v8160 = vmul.f32 %v8116, %v8157
        %v8161 = vmul.f32 %v8117, %v8157
        %v8162 = vmul.f32 %v8118, %v8157
        %v8163 = vmul.f32 %v8119, %v8157
        %v8164 = vmul.f32 %v8120, %v8157
        %v8165 = vmul.f32 %v8121, %v8157
        %v8166 = vmul.f32 %v8122, %v8157
        %v8167 = vmul.f32 %v8123, %v8157
        %v8168 = vmul.f32 %v8124, %v8157
        %v8169 = vmul.f32 %v8125, %v8157
        %v8170 = vmul.f32 %v8126, %v8157
        %v8171 = vmul.f32 %v8127, %v8157
        %v8172 = vmul.f32 %v8128, %v8157
        %v8173 = vmul.f32 %v8129, %v8157
        %v8174 = vmul.f32 %v8130, %v8157
        %v8175 = vmul.f32 %v8131, %v8157
        %v8176 = vmul.f32 %v8132, %v8157
        %v8177 = vmul.f32 %v8133, %v8157
        %v8178 = vmul.f32 %v8134, %v8157
        %v8179 = vmul.f32 %v8135, %v8157
        %v8180 = vmul.f32 %v8136, %v8157
        %v8181 = vmul.f32 %v8137, %v8157
        %v8182 = vmul.f32 %v8138, %v8157
        %v8183 = vmul.f32 %v8139, %v8157
        %v8184 = vmul.f32 %v8140, %v8157
        %v8185 = vmul.f32 %v8141, %v8157
        %v8186 = vmul.f32 %v8142, %v8157
        %v8187 = vmul.f32 %v8143, %v8157
        %v8188 = vmul.f32 %v8144, %v8157
        %v8189 = vmul.f32 %v8145, %v8157
        %v8190 = vmul.f32 %v8146, %v8157
        %v8191 = vmul.f32 %v8147, %v8157
        %v8192 = vmul.f32 %v8148, %v8157
        %v8193 = vmul.f32 %v8149, %v8157
        %v8194 = vmul.f32 %v8150, %v8157
        %v8195 = vmul.f32 %v8151, %v8157
        %v8196 = vmul.f32 %v8152, %v8157
        %v8197 = vmul.f32 %v8153, %v8157
        %v8198 = vmul.f32 %v8154, %v8157
        %v8199 = vld [vmem:[%s12] sm:$0x1]
        %v8201 = vperm.slane %v8199, 0
        %v8203 = vadd.f32 %v8159, %v8201
        %v8204 = vadd.f32 %v8160, %v8201
        %v8205 = vadd.f32 %v8161, %v8201
        %v8206 = vadd.f32 %v8162, %v8201
        %v8207 = vadd.f32 %v8163, %v8201
        %v8208 = vadd.f32 %v8164, %v8201
        %v8209 = vadd.f32 %v8165, %v8201
        %v8210 = vadd.f32 %v8166, %v8201
        %v8211 = vadd.f32 %v8167, %v8201
        %v8212 = vadd.f32 %v8168, %v8201
        %v8213 = vadd.f32 %v8169, %v8201
        %v8214 = vadd.f32 %v8170, %v8201
        %v8215 = vadd.f32 %v8171, %v8201
        %v8216 = vadd.f32 %v8172, %v8201
        %v8217 = vadd.f32 %v8173, %v8201
        %v8218 = vadd.f32 %v8174, %v8201
        %v8219 = vadd.f32 %v8175, %v8201
        %v8220 = vadd.f32 %v8176, %v8201
        %v8221 = vadd.f32 %v8177, %v8201
        %v8222 = vadd.f32 %v8178, %v8201
        %v8223 = vadd.f32 %v8179, %v8201
        %v8224 = vadd.f32 %v8180, %v8201
        %v8225 = vadd.f32 %v8181, %v8201
        %v8226 = vadd.f32 %v8182, %v8201
        %v8227 = vadd.f32 %v8183, %v8201
        %v8228 = vadd.f32 %v8184, %v8201
        %v8229 = vadd.f32 %v8185, %v8201
        %v8230 = vadd.f32 %v8186, %v8201
        %v8231 = vadd.f32 %v8187, %v8201
        %v8232 = vadd.f32 %v8188, %v8201
        %v8233 = vadd.f32 %v8189, %v8201
        %v8234 = vadd.f32 %v8190, %v8201
        %v8235 = vadd.f32 %v8191, %v8201
        %v8236 = vadd.f32 %v8192, %v8201
        %v8237 = vadd.f32 %v8193, %v8201
        %v8238 = vadd.f32 %v8194, %v8201
        %v8239 = vadd.f32 %v8195, %v8201
        %v8240 = vadd.f32 %v8196, %v8201
        %v8241 = vadd.f32 %v8197, %v8201
        %v8242 = vadd.f32 %v8198, %v8201
        %8243 = vst.msk [vmem:[%s506] sm:$0xff] %vm603, %v8203
        %8244 = vst.msk [vmem:[%s506 + $0x8] sm:$0xff] %vm603, %v8204
        %8245 = vst.msk [vmem:[%s506 + $0x10] sm:$0xff] %vm603, %v8205
        %8246 = vst.msk [vmem:[%s506 + $0x18] sm:$0xff] %vm603, %v8206
        %8247 = vst.msk [vmem:[%s506 + $0x20] sm:$0xff] %vm603, %v8207
        %8248 = vst.msk [vmem:[%s506 + $0x28] sm:$0xff] %vm603, %v8208
        %8249 = vst.msk [vmem:[%s506 + $0x30] sm:$0xff] %vm603, %v8209
        %8250 = vst.msk [vmem:[%s506 + $0x38] sm:$0xff] %vm603, %v8210
        %8251 = vst.msk [vmem:[%s506 + $0x40] sm:$0xff] %vm603, %v8211
        %8252 = vst.msk [vmem:[%s506 + $0x48] sm:$0xff] %vm603, %v8212
        %8253 = vst.msk [vmem:[%s506 + $0x50] sm:$0xff] %vm603, %v8213
        %8254 = vst.msk [vmem:[%s506 + $0x58] sm:$0xff] %vm603, %v8214
        %8255 = vst.msk [vmem:[%s506 + $0x60] sm:$0xff] %vm603, %v8215
        %8256 = vst.msk [vmem:[%s506 + $0x68] sm:$0xff] %vm603, %v8216
        %8257 = vst.msk [vmem:[%s506 + $0x70] sm:$0xff] %vm603, %v8217
        %8258 = vst.msk [vmem:[%s506 + $0x78] sm:$0xff] %vm603, %v8218
        %8259 = vst.msk [vmem:[%s506 + $0x80] sm:$0xff] %vm603, %v8219
        %8260 = vst.msk [vmem:[%s506 + $0x88] sm:$0xff] %vm603, %v8220
        %8261 = vst.msk [vmem:[%s506 + $0x90] sm:$0xff] %vm603, %v8221
        %8262 = vst.msk [vmem:[%s506 + $0x98] sm:$0xff] %vm603, %v8222
        %8263 = vst.msk [vmem:[%s506 + $0xa0] sm:$0xff] %vm603, %v8223
        %8264 = vst.msk [vmem:[%s506 + $0xa8] sm:$0xff] %vm603, %v8224
        %8265 = vst.msk [vmem:[%s506 + $0xb0] sm:$0xff] %vm603, %v8225
        %8266 = vst.msk [vmem:[%s506 + $0xb8] sm:$0xff] %vm603, %v8226
        %8267 = vst.msk [vmem:[%s506 + $0xc0] sm:$0xff] %vm603, %v8227
        %8268 = vst.msk [vmem:[%s506 + $0xc8] sm:$0xff] %vm603, %v8228
        %8269 = vst.msk [vmem:[%s506 + $0xd0] sm:$0xff] %vm603, %v8229
        %8270 = vst.msk [vmem:[%s506 + $0xd8] sm:$0xff] %vm603, %v8230
        %8271 = vst.msk [vmem:[%s506 + $0xe0] sm:$0xff] %vm603, %v8231
        %8272 = vst.msk [vmem:[%s506 + $0xe8] sm:$0xff] %vm603, %v8232
        %8273 = vst.msk [vmem:[%s506 + $0xf0] sm:$0xff] %vm603, %v8233
        %8274 = vst.msk [vmem:[%s506 + $0xf8] sm:$0xff] %vm603, %v8234
        %8275 = vst.msk [vmem:[%s506 + $0x100] sm:$0xff] %vm603, %v8235
        %8276 = vst.msk [vmem:[%s506 + $0x108] sm:$0xff] %vm603, %v8236
        %8277 = vst.msk [vmem:[%s506 + $0x110] sm:$0xff] %vm603, %v8237
        %8278 = vst.msk [vmem:[%s506 + $0x118] sm:$0xff] %vm603, %v8238
        %8279 = vst.msk [vmem:[%s506 + $0x120] sm:$0xff] %vm603, %v8239
        %8280 = vst.msk [vmem:[%s506 + $0x128] sm:$0xff] %vm603, %v8240
        %8281 = vst.msk [vmem:[%s506 + $0x130] sm:$0xff] %vm603, %v8241
        %8282 = vst.msk [vmem:[%s506 + $0x138] sm:$0xff] %vm603, %v8242
        %s8283 = sand.u32 %s326, 1
        %s8284 = scalar_lea.sflag [#allocation4], %s8283
        %s8285 = sand.u32 %s326, 1
        %s8286 = smul.addr %s8285, 320
        %s8287 = scalar_lea.vmem [#allocation5], %s8286
        %s8288 = sand.u32 %s352, 1
        %s8289 = scalar_lea.sflag [#allocation7], %s8288
        %s8290 = sand.u32 %s352, 1
        %s8291 = smul.addr %s8290, 320
        %s8292 = scalar_lea.vmem [#allocation6], %s8291
        // Predicated region
        $region77: #{tpu_custom_call.1} parent=71 // pred_check
          %p8293 = pneg %p336
        $region78: #{tpu_custom_call.1} parent=71 // pred_check_branch
          %8295 = sbr.rel (%p8293) target = $region80
        $region79: #{tpu_custom_call.1} parent=71 // pred_region
          %s8296 = smul.u32 10, %s35
          %8298 = vsyncadd %s8284, 0
          %s8299 = smul.addr %s8296, 4
          %s8300 = smul.addr %s8299, 8
          %s8301 = scalar_lea.hbm %s13, %s8300
          %s8302 = sshll.u32 %s8287, 4
          %s8303 = int_to_ptr.vmem [resolvable:$true] %s8302
          %s8304 = sshll.u32 %s8301, 4
          %s8305 = int_to_ptr.hbm [resolvable:$true] %s8304
          %8310 = dma.vmem_to_hbm [thread:$0]  %s8303, 5120, %s8305, %s8284, 128, 128, 8
        $region80: #{tpu_custom_call.1} parent=71 // pred_fallthru
          _
        // Predicated region
        $region81: #{tpu_custom_call.1} parent=71 // pred_check
          %p8311 = pneg %p362
        $region82: #{tpu_custom_call.1} parent=71 // pred_check_branch
          %8313 = sbr.rel (%p8311) target = $region84
        $region83: #{tpu_custom_call.1} parent=71 // pred_region
          %s8314 = smul.u32 10, %s35
          %8316 = vsyncadd %s8289, 0
          %s8317 = smul.addr %s8314, 4
          %s8318 = smul.addr %s8317, 8
          %s8319 = scalar_lea.hbm %s14, %s8318
          %s8320 = sshll.u32 %s8292, 4
          %s8321 = int_to_ptr.vmem [resolvable:$true] %s8320
          %s8322 = sshll.u32 %s8319, 4
          %s8323 = int_to_ptr.hbm [resolvable:$true] %s8322
          %8328 = dma.vmem_to_hbm [thread:$0]  %s8321, 5120, %s8323, %s8289, 128, 128, 8
        $region84: #{tpu_custom_call.1} parent=71 // pred_fallthru
          _
      $region72: #{tpu_custom_call.1} parent=5 // pred_fallthru
        _
      %p8329 = scmp.le.s32.totalorder 2, %s30
      // Predicated region
      $region85: #{tpu_custom_call.1} parent=5 // pred_check
        %p8330 = pneg %p8329
      $region86: #{tpu_custom_call.1} parent=5 // pred_check_branch
        %8332 = sbr.rel (%p8330) target = $region88
      $region87: #{tpu_custom_call.1} parent=5 // pred_region
        %s8333 = ssub.s32 %s30, 2
        // Predicated region
        $region89: #{tpu_custom_call.1} parent=87 // pred_check
          %p8334 = pneg %p342
        $region90: #{tpu_custom_call.1} parent=87 // pred_check_branch
          %8336 = sbr.rel (%p8334) target = $region92
        $region91: #{tpu_custom_call.1} parent=87 // pred_region
          %s8337 = sand.u32 %s327, 1
          %s8338 = scalar_lea.sflag [#allocation4], %s8337
          %s8339 = sand.u32 %s327, 1
          %s8340 = smul.addr %s8339, 320
          %s8341 = scalar_lea.vmem [#allocation5], %s8340
          %8343 = dma.done %s8338, 5120
        $region92: #{tpu_custom_call.1} parent=87 // pred_fallthru
          _
        // Predicated region
        $region93: #{tpu_custom_call.1} parent=87 // pred_check
          %p8344 = pneg %p368
        $region94: #{tpu_custom_call.1} parent=87 // pred_check_branch
          %8346 = sbr.rel (%p8344) target = $region96
        $region95: #{tpu_custom_call.1} parent=87 // pred_region
          %s8347 = sand.u32 %s353, 1
          %s8348 = scalar_lea.sflag [#allocation7], %s8347
          %s8349 = sand.u32 %s353, 1
          %s8350 = smul.addr %s8349, 320
          %s8351 = scalar_lea.vmem [#allocation6], %s8350
          %8353 = dma.done %s8348, 5120
        $region96: #{tpu_custom_call.1} parent=87 // pred_fallthru
          _
      $region88: #{tpu_custom_call.1} parent=5 // pred_fallthru
        _
    $region6: #{tpu_custom_call.1} parent=1 // loop_footer
      %s34 = sadd.s32 1, %s30
    $region7: #{tpu_custom_call.1} parent=1 // loop_footer_branch
      %29 = sbr.rel target = $region3
    $region8: #{tpu_custom_call.1} parent=1 // loop_exit
      _
    %8354 = vsyncpa [#allocation3], 1
    %s8355 = scalar_lea.sflag [#allocation3], 1
    %8356 = vsyncpa %s8355, 1
    %8357 = vsyncpa [#allocation4], 1
    %s8358 = scalar_lea.sflag [#allocation4], 1
    %8359 = vsyncpa %s8358, 1
    %8360 = vsyncpa [#allocation7], 1
    %s8361 = scalar_lea.sflag [#allocation7], 1
    %8362 = vsyncpa %s8361, 1

</llo_original>
